<compile_context>
chip_gen: v5e
topology: v5e:2x2
jax: 0.10.0
libtpu: 0.0.40
codegen_flags: <defaults>
</compile_context>

<pallas_src>
import functools

import numpy as np
import jax
import jax.numpy as jnp
from jax.experimental import pallas as pl
from jax.experimental.pallas import tpu as pltpu

MXU_DTYPE = jnp.bfloat16
VMEM_LIMIT = 32 * 1024 * 1024          # conservative; safe on v5e/v6e/v7x scoped VMEM
CONV_CHANNELS = (1, 16, 32, 64)        # fixed by the nn.Module
_TAPS = tuple((dh, dw) for dh in range(3) for dw in range(3))


# --------------------------------------------------------------------------- #
# In-kernel building blocks (traced inline into the fused kernel)
# --------------------------------------------------------------------------- #
def _conv_pool_layer(slab_ref, w_ref, b_ref, patch_ref, *, Ho, Wo, Cin, Cout, TB):
    """Conv3x3(pad=1) + bias + ReLU + MaxPool2 for TB images.

    slab_ref : (4*(Ho+1), TB, (Wo+1)*Cin) zero-bordered parity slabs of the padded
               layer input; slab s = 2*pr+pc, slab row r holds padded row pr+2r,
               lane chunk j holds padded col pc+2j (Cin fastest).
    w_ref    : (9*Wo*Cin, Wo*Cout) block-diagonal conv weight (bf16).  Column (wo)
               order is whatever the caller baked in (parity-grouped for layers
               feeding another conv layer).
    b_ref    : (1, Wo*Cout) bias tiled over wo (f32).
    patch_ref: (4*Ho, TB, 9*Wo*Cin) bf16 scratch for the assembled patches.

    Returns the pooled activation as a (Ho*TB, Wo*Cout) bf16 value, rows ordered
    (ho, b) with b fastest, lanes following w_ref's column order.
    """
    kw = Wo * Cin
    rps = Ho + 1                                   # slab rows per parity slab
    # 36 contiguous copies assemble all 4 pooling corners x 9 conv taps.
    for ci in range(2):
        for cj in range(2):
            corner = 2 * ci + cj
            for t, (dh, dw) in enumerate(_TAPS):
                s = ((ci + dh) % 2) * 2 + ((cj + dw) % 2)
                r0 = (ci + dh) // 2
                c0 = (cj + dw) // 2
                patch_ref[corner * Ho:(corner + 1) * Ho, :, t * kw:(t + 1) * kw] = (
                    slab_ref[s * rps + r0: s * rps + r0 + Ho, :,
                             c0 * Cin: c0 * Cin + kw])

    # One MXU pass for all 4 corners and all 9 taps (bf16 in, f32 accumulation).
    p = patch_ref[...].reshape(4 * Ho * TB, 9 * kw)
    y = jnp.dot(p, w_ref[...], preferred_element_type=jnp.float32)  # (4*Ho*TB, Wo*Cout)

    # Max-pool over the 4 corners, then bias + ReLU once (hoisted; f32 elementwise).
    m = Ho * TB
    y = jnp.maximum(jnp.maximum(y[0:m], y[m:2 * m]),
                    jnp.maximum(y[2 * m:3 * m], y[3 * m:4 * m]))
    y = jnp.maximum(y + b_ref[...], 0.0)
    return y.astype(MXU_DTYPE)


def _scatter_to_slabs(act, slab_ref, *, H, W, C, TB):
    """Scatter a pooled activation into the NEXT layer's padded parity slabs (in VMEM).

    act      : (H*TB, W*C) bf16 value, rows (h, b) with b fastest; lanes are
               [even-w cols | odd-w cols] x C (producer used a parity-grouped weight).
    slab_ref : (4*(H//2+1), TB, (W//2+1)*C) bf16 scratch; the zero border supplies
               the next conv layer's zero padding.
    """
    Hn, Wn = H // 2, W // 2
    rps = Hn + 1
    half = Wn * C
    slab_ref[...] = jnp.zeros_like(slab_ref)
    for h in range(H):
        pr = (h + 1) % 2                      # parity of padded row h+1
        row = (h + 1) // 2
        blk = act[h * TB:(h + 1) * TB, :]
        # even output cols -> padded-col parity 1, slab chunks 0..Wn-1 (lane offset 0)
        slab_ref[(pr * 2 + 1) * rps + row, :, 0:half] = blk[:, 0:half]
        # odd output cols  -> padded-col parity 0, slab chunks 1..Wn (lane offset C)
        slab_ref[(pr * 2 + 0) * rps + row, :, C:C + half] = blk[:, half:]


def _fused_cnn_kernel(slab_in_ref,
                      wb1_ref, bb1_ref, wb2_ref, bb2_ref, wb3_ref, bb3_ref,
                      w1_ref, b1_ref, w2_ref, b2_ref, w3_ref,
                      o_ref,
                      patch1_ref, slabs2_ref, patch2_ref, slabs3_ref, patch3_ref,
                      *, dims, TB):
    """Whole SimpleCNN forward for one batch tile of TB images."""
    conv_refs = ((slab_in_ref, wb1_ref, bb1_ref, patch1_ref),
                 (slabs2_ref, wb2_ref, bb2_ref, patch2_ref),
                 (slabs3_ref, wb3_ref, bb3_ref, patch3_ref))
    act = None
    for li, (Ho, Wo, Cin, Cout) in enumerate(dims):
        slab_ref, w_ref, b_ref, patch_ref = conv_refs[li]
        if li > 0:
            Hp, Wp, _, Cp = dims[li - 1]
            _scatter_to_slabs(act, slab_ref, H=Hp, W=Wp, C=Cp, TB=TB)
        act = _conv_pool_layer(slab_ref, w_ref, b_ref, patch_ref,
                               Ho=Ho, Wo=Wo, Cin=Cin, Cout=Cout, TB=TB)

    # FC head.  Feature columns are (ho, wo, cout); the PyTorch (C,H,W) flatten
    # order is folded into w1's rows at weight-prep time.
    Ho3 = dims[-1][0]
    feat = jnp.concatenate([act[h * TB:(h + 1) * TB, :] for h in range(Ho3)], axis=1)
    h1 = jnp.dot(feat, w1_ref[...], preferred_element_type=jnp.float32) + b1_ref[...]
    h1 = jnp.maximum(h1, 0.0)
    h2 = jnp.dot(h1.astype(w2_ref.dtype), w2_ref[...],
                 preferred_element_type=jnp.float32) + b2_ref[...]
    h2 = jnp.maximum(h2, 0.0)
    # Final 64 -> 1 Linear (bias=False): lane reduction on VPU/XLU, not a 1-lane MXU op.
    o_ref[...] = jnp.sum(h2 * w3_ref[...], axis=-1, keepdims=True)


# --------------------------------------------------------------------------- #
# Host-side wrappers
# --------------------------------------------------------------------------- #
def prepare_params(params, in_hw=(16, 16)):
    """One-time weight preparation (hoisted out of the jitted forward, per review)."""
    conv_params, (w1, b1, w2, b2, w3) = params
    H, W = in_hw
    assert H % 8 == 0 and W % 8 == 0, "needs 3 rounds of 2x2 pooling"
    n_layers = len(conv_params)
    prepared_conv = []
    h, w = H, W
    for li, (wl, bl) in enumerate(conv_params):
        Cin, Cout = int(wl.shape[2]), int(wl.shape[3])
        Ho, Wo = h // 2, w // 2
        w9 = wl.reshape(9, Cin, Cout)
        eye = jnp.eye(Wo, dtype=wl.dtype)
        # kron(I_Wo, w_tap): rows (tap, wo, cin), cols (wo, cout).  4-8x zero MACs,
        # accepted per review: keeps one 128-lane-dense MXU pass per layer.
        wbig = jnp.einsum("kl,tcf->tkclf", eye, w9).reshape(9 * Wo * Cin, Wo * Cout)
        if li < n_layers - 1:
            # Parity-group columns (even wo block | odd wo block) so the in-VMEM
            # scatter into the next layer's parity slabs is two contiguous lane slices.
            order = np.concatenate([np.arange(0, Wo, 2), np.arange(1, Wo, 2)])
            wbig = wbig.reshape(9 * Wo * Cin, Wo, Cout)[:, order, :]
            wbig = wbig.reshape(9 * Wo * Cin, Wo * Cout)
        bbig = jnp.tile(bl, Wo).reshape(1, Wo * Cout)   # same per wo -> order-free
        prepared_conv.append((wbig.astype(MXU_DTYPE), bbig.astype(jnp.float32)))
        h, w = Ho, Wo

    H3, W3, C3 = h, w, int(conv_params[-1][0].shape[3])
    feat = H3 * W3 * C3
    assert w1.shape[0] == feat, (w1.shape, feat)
    # Kernel feature order f = (ho, wo, c); PyTorch flatten order = (c, ho, wo).
    perm = np.arange(feat).reshape(C3, H3, W3).transpose(1, 2, 0).reshape(-1)
    fc = (w1[perm, :].astype(MXU_DTYPE),
          b1.reshape(1, -1).astype(jnp.float32),
          w2.astype(MXU_DTYPE),
          b2.reshape(1, -1).astype(jnp.float32),
          w3.reshape(1, -1).astype(jnp.float32))
    return {"conv": tuple(prepared_conv), "fc": fc}


def simple_cnn_forward(x_nchw, prepared):
    """Forward pass matching SimpleCNN.forward (inference mode)."""
    x = jnp.transpose(x_nchw, (0, 2, 3, 1)).astype(jnp.float32)    # NCHW -> NHWC
    N, H, W, Cin = x.shape
    assert Cin == CONV_CHANNELS[0] and H % 8 == 0 and W % 8 == 0

    dims = []
    h, w = H, W
    for li in range(3):
        dims.append((h // 2, w // 2, CONV_CHANNELS[li], CONV_CHANNELS[li + 1]))
        h, w = h // 2, w // 2
    dims = tuple(dims)
    (Ho1, Wo1, C0, C1), (Ho2, Wo2, _, C2), (Ho3, Wo3, _, C3) = dims

    # Batch tile: fills the MXU M dim (layer-3 dot M = 8*TB); keeps >=2 "parallel"
    # grid steps for v7x dual-TC sharding whenever the batch allows it.
    TB = 32 if N >= 64 else 16
    Np = ((N + TB - 1) // TB) * TB
    grid = (Np // TB,)

    # Layer-1 padded input, parity-split, batch as the sublane dim, bf16.
    xp = jnp.pad(x, ((0, Np - N), (1, 1), (1, 1), (0, 0)))
    slabs = []
    for pr in range(2):
        for pc in range(2):
            s = xp[:, pr::2, pc::2, :].reshape(Np, Ho1 + 1, (Wo1 + 1) * C0)
            slabs.append(jnp.transpose(s, (1, 0, 2)))
    in_slabs = jnp.concatenate(slabs, axis=0).astype(MXU_DTYPE)  # (4*(Ho1+1), Np, (Wo1+1)*C0)

    (wb1, bb1), (wb2, bb2), (wb3, bb3) = prepared["conv"]
    w1, b1, w2, b2, w3 = prepared["fc"]

    def full(a):
        nd = len(a.shape)
        return pl.BlockSpec(tuple(a.shape), lambda i, _nd=nd: (0,) * _nd)

    out = pl.pallas_call(
        functools.partial(_fused_cnn_kernel, dims=dims, TB=TB),
        grid=grid,
        in_specs=[
            pl.BlockSpec((4 * (Ho1 + 1), TB, (Wo1 + 1) * C0), lambda i: (0, i, 0)),
            full(wb1), full(bb1), full(wb2), full(bb2), full(wb3), full(bb3),
            full(w1), full(b1), full(w2), full(b2), full(w3),
        ],
        out_specs=pl.BlockSpec((TB, 1), lambda i: (i, 0)),
        out_shape=jax.ShapeDtypeStruct((Np, 1), jnp.float32),
        scratch_shapes=[
            pltpu.VMEM((4 * Ho1, TB, 9 * Wo1 * C0), MXU_DTYPE),           # patch1
            pltpu.VMEM((4 * (Ho2 + 1), TB, (Wo2 + 1) * C1), MXU_DTYPE),   # slabs2
            pltpu.VMEM((4 * Ho2, TB, 9 * Wo2 * C1), MXU_DTYPE),           # patch2
            pltpu.VMEM((4 * (Ho3 + 1), TB, (Wo3 + 1) * C2), MXU_DTYPE),   # slabs3
            pltpu.VMEM((4 * Ho3, TB, 9 * Wo3 * C2), MXU_DTYPE),           # patch3
        ],
        compiler_params=pltpu.CompilerParams(
            dimension_semantics=("parallel",), vmem_limit_bytes=VMEM_LIMIT),
    )(in_slabs, wb1, bb1, wb2, bb2, wb3, bb3, w1, b1, w2, b2, w3)
    return out[:N]


# --------------------------------------------------------------------------- #
# Deterministic parameter init (synthetic; shapes follow the nn.Module)
# --------------------------------------------------------------------------- #
def init_params(key, in_hw=(16, 16)):
    H, W = in_hw
    keys = jax.random.split(key, 11)

    def init(k, fan_in, shape):
        return jax.random.normal(k, shape, jnp.float32) / jnp.sqrt(float(fan_in))

    conv_params = []
    cin, ki = CONV_CHANNELS[0], 0
    for cout in CONV_CHANNELS[1:]:
        wl = init(keys[ki], 9 * cin, (3, 3, cin, cout)); ki += 1   # (kh, kw, Cin, Cout)
        bl = init(keys[ki], 9 * cin, (cout,)); ki += 1
        conv_params.append((wl, bl))
        cin = cout

    # PyTorch hard-codes 64*32*16*10 for its (implied huge) input; here the fc1 fan-in
    # is derived from the actual spatial size after three 2x2 pools.
    feat = CONV_CHANNELS[-1] * (H // 8) * (W // 8)
    w1 = init(keys[ki], feat, (feat, 256)); ki += 1   # stored (in, out), rows in (C,H,W) order
    b1 = init(keys[ki], feat, (256,)); ki += 1
    w2 = init(keys[ki], 256, (256, 64)); ki += 1
    b2 = init(keys[ki], 256, (64,)); ki += 1
    w3 = init(keys[ki], 64, (64, 1)); ki += 1         # bias=False
    return conv_params, (w1, b1, w2, b2, w3)


if __name__ == "__main__":
    key = jax.random.PRNGKey(0)
    pkey, xkey = jax.random.split(key)
    params = init_params(pkey, in_hw=(16, 16))
    prepared = prepare_params(params, in_hw=(16, 16))            # one-time weight prep
    x = jax.random.normal(xkey, (2, 1, 16, 16), jnp.float32)     # NCHW, 1 input channel
    out = jax.jit(simple_cnn_forward)(x, prepared)
    jax.block_until_ready(out)
    assert out.shape == (2, 1), out.shape
    assert bool(jnp.all(jnp.isfinite(out))), "non-finite output"
    print("KERNEL_OK")
</pallas_src>

<mosaic_0001>
module attributes {stable_mosaic.version = 11 : i64} {
  func.func @_fused_cnn_kernel(%arg0: i32, %arg1: memref<36x16x9xbf16, #tpu.memory_space<vmem>>, %arg2: memref<72x128xbf16, #tpu.memory_space<vmem>>, %arg3: memref<1x128xf32, #tpu.memory_space<vmem>>, %arg4: memref<576x128xbf16, #tpu.memory_space<vmem>>, %arg5: memref<1x128xf32, #tpu.memory_space<vmem>>, %arg6: memref<576x128xbf16, #tpu.memory_space<vmem>>, %arg7: memref<1x128xf32, #tpu.memory_space<vmem>>, %arg8: memref<256x256xbf16, #tpu.memory_space<vmem>>, %arg9: memref<1x256xf32, #tpu.memory_space<vmem>>, %arg10: memref<256x64xbf16, #tpu.memory_space<vmem>>, %arg11: memref<1x64xf32, #tpu.memory_space<vmem>>, %arg12: memref<1x64xf32, #tpu.memory_space<vmem>>, %arg13: memref<16x1xf32, #tpu.memory_space<vmem>>, %arg14: memref<32x16x72xbf16, #tpu.memory_space<vmem>>, %arg15: memref<20x16x80xbf16, #tpu.memory_space<vmem>>, %arg16: memref<16x16x576xbf16, #tpu.memory_space<vmem>>, %arg17: memref<12x16x96xbf16, #tpu.memory_space<vmem>>, %arg18: memref<8x16x576xbf16, #tpu.memory_space<vmem>>) attributes {dimension_semantics = [#tpu.dimension_semantics<parallel>], iteration_bounds = array<i64: 1>, scalar_prefetch = 0 : i64, scratch_operands = 5 : i64, tpu.core_type = #tpu.core_type<tc>, window_params = [{transform_indices = @transform_0, window_bounds = array<i64: 36, 16, 9>}, {pipeline_mode = #tpu.pipeline_mode<synchronous>, transform_indices = @transform_1, window_bounds = array<i64: 72, 128>}, {pipeline_mode = #tpu.pipeline_mode<synchronous>, transform_indices = @transform_2, window_bounds = array<i64: 1, 128>}, {pipeline_mode = #tpu.pipeline_mode<synchronous>, transform_indices = @transform_3, window_bounds = array<i64: 576, 128>}, {pipeline_mode = #tpu.pipeline_mode<synchronous>, transform_indices = @transform_4, window_bounds = array<i64: 1, 128>}, {pipeline_mode = #tpu.pipeline_mode<synchronous>, transform_indices = @transform_5, window_bounds = array<i64: 576, 128>}, {pipeline_mode = #tpu.pipeline_mode<synchronous>, transform_indices = @transform_6, window_bounds = array<i64: 1, 128>}, {pipeline_mode = #tpu.pipeline_mode<synchronous>, transform_indices = @transform_7, window_bounds = array<i64: 256, 256>}, {pipeline_mode = #tpu.pipeline_mode<synchronous>, transform_indices = @transform_8, window_bounds = array<i64: 1, 256>}, {pipeline_mode = #tpu.pipeline_mode<synchronous>, transform_indices = @transform_9, window_bounds = array<i64: 256, 64>}, {pipeline_mode = #tpu.pipeline_mode<synchronous>, transform_indices = @transform_10, window_bounds = array<i64: 1, 64>}, {pipeline_mode = #tpu.pipeline_mode<synchronous>, transform_indices = @transform_11, window_bounds = array<i64: 1, 64>}, {transform_indices = @transform_12, window_bounds = array<i64: 16, 1>}]} {
    %c0 = arith.constant 0 : index
    %c0_0 = arith.constant 0 : index
    %c0_1 = arith.constant 0 : index
    %0 = vector.load %arg1[%c0, %c0_0, %c0_1] : memref<36x16x9xbf16, #tpu.memory_space<vmem>>, vector<8x16x8xbf16>
    %c0_2 = arith.constant 0 : index
    %c0_3 = arith.constant 0 : index
    %c0_4 = arith.constant 0 : index
    %1 = vector.load %arg14[%c0_2, %c0_3, %c0_4] : memref<32x16x72xbf16, #tpu.memory_space<vmem>>, vector<8x16x8xbf16>
    tpu.vector_store %arg14[%c0_2, %c0_3, %c0_4], %0 {strides = array<i32>} : memref<32x16x72xbf16, #tpu.memory_space<vmem>>, vector<8x16x8xbf16>,
    %c9 = arith.constant 9 : index
    %c0_5 = arith.constant 0 : index
    %c0_6 = arith.constant 0 : index
    %2 = vector.load %arg1[%c9, %c0_5, %c0_6] : memref<36x16x9xbf16, #tpu.memory_space<vmem>>, vector<8x16x8xbf16>
    %c0_7 = arith.constant 0 : index
    %c0_8 = arith.constant 0 : index
    %c8 = arith.constant 8 : index
    %3 = vector.load %arg14[%c0_7, %c0_8, %c8] : memref<32x16x72xbf16, #tpu.memory_space<vmem>>, vector<8x16x8xbf16>
    tpu.vector_store %arg14[%c0_7, %c0_8, %c8], %2 {strides = array<i32>} : memref<32x16x72xbf16, #tpu.memory_space<vmem>>, vector<8x16x8xbf16>,
    %c0_9 = arith.constant 0 : index
    %c0_10 = arith.constant 0 : index
    %c1 = arith.constant 1 : index
    %4 = vector.load %arg1[%c0_9, %c0_10, %c1] : memref<36x16x9xbf16, #tpu.memory_space<vmem>>, vector<8x16x8xbf16>
    %c0_11 = arith.constant 0 : index
    %c0_12 = arith.constant 0 : index
    %c16 = arith.constant 16 : index
    %5 = vector.load %arg14[%c0_11, %c0_12, %c16] : memref<32x16x72xbf16, #tpu.memory_space<vmem>>, vector<8x16x8xbf16>
    tpu.vector_store %arg14[%c0_11, %c0_12, %c16], %4 {strides = array<i32>} : memref<32x16x72xbf16, #tpu.memory_space<vmem>>, vector<8x16x8xbf16>,
    %c18 = arith.constant 18 : index
    %c0_13 = arith.constant 0 : index
    %c0_14 = arith.constant 0 : index
    %6 = vector.load %arg1[%c18, %c0_13, %c0_14] : memref<36x16x9xbf16, #tpu.memory_space<vmem>>, vector<8x16x8xbf16>
    %c0_15 = arith.constant 0 : index
    %c0_16 = arith.constant 0 : index
    %c24 = arith.constant 24 : index
    %7 = vector.load %arg14[%c0_15, %c0_16, %c24] : memref<32x16x72xbf16, #tpu.memory_space<vmem>>, vector<8x16x8xbf16>
    tpu.vector_store %arg14[%c0_15, %c0_16, %c24], %6 {strides = array<i32>} : memref<32x16x72xbf16, #tpu.memory_space<vmem>>, vector<8x16x8xbf16>,
    %c27 = arith.constant 27 : index
    %c0_17 = arith.constant 0 : index
    %c0_18 = arith.constant 0 : index
    %8 = vector.load %arg1[%c27, %c0_17, %c0_18] : memref<36x16x9xbf16, #tpu.memory_space<vmem>>, vector<8x16x8xbf16>
    %c0_19 = arith.constant 0 : index
    %c0_20 = arith.constant 0 : index
    %c32 = arith.constant 32 : index
    %9 = vector.load %arg14[%c0_19, %c0_20, %c32] : memref<32x16x72xbf16, #tpu.memory_space<vmem>>, vector<8x16x8xbf16>
    tpu.vector_store %arg14[%c0_19, %c0_20, %c32], %8 {strides = array<i32>} : memref<32x16x72xbf16, #tpu.memory_space<vmem>>, vector<8x16x8xbf16>,
    %c18_21 = arith.constant 18 : index
    %c0_22 = arith.constant 0 : index
    %c1_23 = arith.constant 1 : index
    %10 = vector.load %arg1[%c18_21, %c0_22, %c1_23] : memref<36x16x9xbf16, #tpu.memory_space<vmem>>, vector<8x16x8xbf16>
    %c0_24 = arith.constant 0 : index
    %c0_25 = arith.constant 0 : index
    %c40 = arith.constant 40 : index
    %11 = vector.load %arg14[%c0_24, %c0_25, %c40] : memref<32x16x72xbf16, #tpu.memory_space<vmem>>, vector<8x16x8xbf16>
    tpu.vector_store %arg14[%c0_24, %c0_25, %c40], %10 {strides = array<i32>} : memref<32x16x72xbf16, #tpu.memory_space<vmem>>, vector<8x16x8xbf16>,
    %c1_26 = arith.constant 1 : index
    %c0_27 = arith.constant 0 : index
    %c0_28 = arith.constant 0 : index
    %12 = vector.load %arg1[%c1_26, %c0_27, %c0_28] : memref<36x16x9xbf16, #tpu.memory_space<vmem>>, vector<8x16x8xbf16>
    %c0_29 = arith.constant 0 : index
    %c0_30 = arith.constant 0 : index
    %c48 = arith.constant 48 : index
    %13 = vector.load %arg14[%c0_29, %c0_30, %c48] : memref<32x16x72xbf16, #tpu.memory_space<vmem>>, vector<8x16x8xbf16>
    tpu.vector_store %arg14[%c0_29, %c0_30, %c48], %12 {strides = array<i32>} : memref<32x16x72xbf16, #tpu.memory_space<vmem>>, vector<8x16x8xbf16>,
    %c10 = arith.constant 10 : index
    %c0_31 = arith.constant 0 : index
    %c0_32 = arith.constant 0 : index
    %14 = vector.load %arg1[%c10, %c0_31, %c0_32] : memref<36x16x9xbf16, #tpu.memory_space<vmem>>, vector<8x16x8xbf16>
    %c0_33 = arith.constant 0 : index
    %c0_34 = arith.constant 0 : index
    %c56 = arith.constant 56 : index
    %15 = vector.load %arg14[%c0_33, %c0_34, %c56] : memref<32x16x72xbf16, #tpu.memory_space<vmem>>, vector<8x16x8xbf16>
    tpu.vector_store %arg14[%c0_33, %c0_34, %c56], %14 {strides = array<i32>} : memref<32x16x72xbf16, #tpu.memory_space<vmem>>, vector<8x16x8xbf16>,
    %c1_35 = arith.constant 1 : index
    %c0_36 = arith.constant 0 : index
    %c1_37 = arith.constant 1 : index
    %16 = vector.load %arg1[%c1_35, %c0_36, %c1_37] : memref<36x16x9xbf16, #tpu.memory_space<vmem>>, vector<8x16x8xbf16>
    %c0_38 = arith.constant 0 : index
    %c0_39 = arith.constant 0 : index
    %c64 = arith.constant 64 : index
    %17 = vector.load %arg14[%c0_38, %c0_39, %c64] : memref<32x16x72xbf16, #tpu.memory_space<vmem>>, vector<8x16x8xbf16>
    tpu.vector_store %arg14[%c0_38, %c0_39, %c64], %16 {strides = array<i32>} : memref<32x16x72xbf16, #tpu.memory_space<vmem>>, vector<8x16x8xbf16>,
    %c9_40 = arith.constant 9 : index
    %c0_41 = arith.constant 0 : index
    %c0_42 = arith.constant 0 : index
    %18 = vector.load %arg1[%c9_40, %c0_41, %c0_42] : memref<36x16x9xbf16, #tpu.memory_space<vmem>>, vector<8x16x8xbf16>
    %c8_43 = arith.constant 8 : index
    %c0_44 = arith.constant 0 : index
    %c0_45 = arith.constant 0 : index
    %19 = vector.load %arg14[%c8_43, %c0_44, %c0_45] : memref<32x16x72xbf16, #tpu.memory_space<vmem>>, vector<8x16x8xbf16>
    tpu.vector_store %arg14[%c8_43, %c0_44, %c0_45], %18 {strides = array<i32>} : memref<32x16x72xbf16, #tpu.memory_space<vmem>>, vector<8x16x8xbf16>,
    %c0_46 = arith.constant 0 : index
    %c0_47 = arith.constant 0 : index
    %c1_48 = arith.constant 1 : index
    %20 = vector.load %arg1[%c0_46, %c0_47, %c1_48] : memref<36x16x9xbf16, #tpu.memory_space<vmem>>, vector<8x16x8xbf16>
    %c8_49 = arith.constant 8 : index
    %c0_50 = arith.constant 0 : index
    %c8_51 = arith.constant 8 : index
    %21 = vector.load %arg14[%c8_49, %c0_50, %c8_51] : memref<32x16x72xbf16, #tpu.memory_space<vmem>>, vector<8x16x8xbf16>
    tpu.vector_store %arg14[%c8_49, %c0_50, %c8_51], %20 {strides = array<i32>} : memref<32x16x72xbf16, #tpu.memory_space<vmem>>, vector<8x16x8xbf16>,
    %c9_52 = arith.constant 9 : index
    %c0_53 = arith.constant 0 : index
    %c1_54 = arith.constant 1 : index
    %22 = vector.load %arg1[%c9_52, %c0_53, %c1_54] : memref<36x16x9xbf16, #tpu.memory_space<vmem>>, vector<8x16x8xbf16>
    %c8_55 = arith.constant 8 : index
    %c0_56 = arith.constant 0 : index
    %c16_57 = arith.constant 16 : index
    %23 = vector.load %arg14[%c8_55, %c0_56, %c16_57] : memref<32x16x72xbf16, #tpu.memory_space<vmem>>, vector<8x16x8xbf16>
    tpu.vector_store %arg14[%c8_55, %c0_56, %c16_57], %22 {strides = array<i32>} : memref<32x16x72xbf16, #tpu.memory_space<vmem>>, vector<8x16x8xbf16>,
    %c27_58 = arith.constant 27 : index
    %c0_59 = arith.constant 0 : index
    %c0_60 = arith.constant 0 : index
    %24 = vector.load %arg1[%c27_58, %c0_59, %c0_60] : memref<36x16x9xbf16, #tpu.memory_space<vmem>>, vector<8x16x8xbf16>
    %c8_61 = arith.constant 8 : index
    %c0_62 = arith.constant 0 : index
    %c24_63 = arith.constant 24 : index
    %25 = vector.load %arg14[%c8_61, %c0_62, %c24_63] : memref<32x16x72xbf16, #tpu.memory_space<vmem>>, vector<8x16x8xbf16>
    tpu.vector_store %arg14[%c8_61, %c0_62, %c24_63], %24 {strides = array<i32>} : memref<32x16x72xbf16, #tpu.memory_space<vmem>>, vector<8x16x8xbf16>,
    %c18_64 = arith.constant 18 : index
    %c0_65 = arith.constant 0 : index
    %c1_66 = arith.constant 1 : index
    %26 = vector.load %arg1[%c18_64, %c0_65, %c1_66] : memref<36x16x9xbf16, #tpu.memory_space<vmem>>, vector<8x16x8xbf16>
    %c8_67 = arith.constant 8 : index
    %c0_68 = arith.constant 0 : index
    %c32_69 = arith.constant 32 : index
    %27 = vector.load %arg14[%c8_67, %c0_68, %c32_69] : memref<32x16x72xbf16, #tpu.memory_space<vmem>>, vector<8x16x8xbf16>
    tpu.vector_store %arg14[%c8_67, %c0_68, %c32_69], %26 {strides = array<i32>} : memref<32x16x72xbf16, #tpu.memory_space<vmem>>, vector<8x16x8xbf16>,
    %c27_70 = arith.constant 27 : index
    %c0_71 = arith.constant 0 : index
    %c1_72 = arith.constant 1 : index
    %28 = vector.load %arg1[%c27_70, %c0_71, %c1_72] : memref<36x16x9xbf16, #tpu.memory_space<vmem>>, vector<8x16x8xbf16>
    %c8_73 = arith.constant 8 : index
    %c0_74 = arith.constant 0 : index
    %c40_75 = arith.constant 40 : index
    %29 = vector.load %arg14[%c8_73, %c0_74, %c40_75] : memref<32x16x72xbf16, #tpu.memory_space<vmem>>, vector<8x16x8xbf16>
    tpu.vector_store %arg14[%c8_73, %c0_74, %c40_75], %28 {strides = array<i32>} : memref<32x16x72xbf16, #tpu.memory_space<vmem>>, vector<8x16x8xbf16>,
    %c10_76 = arith.constant 10 : index
    %c0_77 = arith.constant 0 : index
    %c0_78 = arith.constant 0 : index
    %30 = vector.load %arg1[%c10_76, %c0_77, %c0_78] : memref<36x16x9xbf16, #tpu.memory_space<vmem>>, vector<8x16x8xbf16>
    %c8_79 = arith.constant 8 : index
    %c0_80 = arith.constant 0 : index
    %c48_81 = arith.constant 48 : index
    %31 = vector.load %arg14[%c8_79, %c0_80, %c48_81] : memref<32x16x72xbf16, #tpu.memory_space<vmem>>, vector<8x16x8xbf16>
    tpu.vector_store %arg14[%c8_79, %c0_80, %c48_81], %30 {strides = array<i32>} : memref<32x16x72xbf16, #tpu.memory_space<vmem>>, vector<8x16x8xbf16>,
    %c1_82 = arith.constant 1 : index
    %c0_83 = arith.constant 0 : index
    %c1_84 = arith.constant 1 : index
    %32 = vector.load %arg1[%c1_82, %c0_83, %c1_84] : memref<36x16x9xbf16, #tpu.memory_space<vmem>>, vector<8x16x8xbf16>
    %c8_85 = arith.constant 8 : index
    %c0_86 = arith.constant 0 : index
    %c56_87 = arith.constant 56 : index
    %33 = vector.load %arg14[%c8_85, %c0_86, %c56_87] : memref<32x16x72xbf16, #tpu.memory_space<vmem>>, vector<8x16x8xbf16>
    tpu.vector_store %arg14[%c8_85, %c0_86, %c56_87], %32 {strides = array<i32>} : memref<32x16x72xbf16, #tpu.memory_space<vmem>>, vector<8x16x8xbf16>,
    %c10_88 = arith.constant 10 : index
    %c0_89 = arith.constant 0 : index
    %c1_90 = arith.constant 1 : index
    %34 = vector.load %arg1[%c10_88, %c0_89, %c1_90] : memref<36x16x9xbf16, #tpu.memory_space<vmem>>, vector<8x16x8xbf16>
    %c8_91 = arith.constant 8 : index
    %c0_92 = arith.constant 0 : index
    %c64_93 = arith.constant 64 : index
    %35 = vector.load %arg14[%c8_91, %c0_92, %c64_93] : memref<32x16x72xbf16, #tpu.memory_space<vmem>>, vector<8x16x8xbf16>
    tpu.vector_store %arg14[%c8_91, %c0_92, %c64_93], %34 {strides = array<i32>} : memref<32x16x72xbf16, #tpu.memory_space<vmem>>, vector<8x16x8xbf16>,
    %c18_94 = arith.constant 18 : index
    %c0_95 = arith.constant 0 : index
    %c0_96 = arith.constant 0 : index
    %36 = vector.load %arg1[%c18_94, %c0_95, %c0_96] : memref<36x16x9xbf16, #tpu.memory_space<vmem>>, vector<8x16x8xbf16>
    %c16_97 = arith.constant 16 : index
    %c0_98 = arith.constant 0 : index
    %c0_99 = arith.constant 0 : index
    %37 = vector.load %arg14[%c16_97, %c0_98, %c0_99] : memref<32x16x72xbf16, #tpu.memory_space<vmem>>, vector<8x16x8xbf16>
    tpu.vector_store %arg14[%c16_97, %c0_98, %c0_99], %36 {strides = array<i32>} : memref<32x16x72xbf16, #tpu.memory_space<vmem>>, vector<8x16x8xbf16>,
    %c27_100 = arith.constant 27 : index
    %c0_101 = arith.constant 0 : index
    %c0_102 = arith.constant 0 : index
    %38 = vector.load %arg1[%c27_100, %c0_101, %c0_102] : memref<36x16x9xbf16, #tpu.memory_space<vmem>>, vector<8x16x8xbf16>
    %c16_103 = arith.constant 16 : index
    %c0_104 = arith.constant 0 : index
    %c8_105 = arith.constant 8 : index
    %39 = vector.load %arg14[%c16_103, %c0_104, %c8_105] : memref<32x16x72xbf16, #tpu.memory_space<vmem>>, vector<8x16x8xbf16>
    tpu.vector_store %arg14[%c16_103, %c0_104, %c8_105], %38 {strides = array<i32>} : memref<32x16x72xbf16, #tpu.memory_space<vmem>>, vector<8x16x8xbf16>,
    %c18_106 = arith.constant 18 : index
    %c0_107 = arith.constant 0 : index
    %c1_108 = arith.constant 1 : index
    %40 = vector.load %arg1[%c18_106, %c0_107, %c1_108] : memref<36x16x9xbf16, #tpu.memory_space<vmem>>, vector<8x16x8xbf16>
    %c16_109 = arith.constant 16 : index
    %c0_110 = arith.constant 0 : index
    %c16_111 = arith.constant 16 : index
    %41 = vector.load %arg14[%c16_109, %c0_110, %c16_111] : memref<32x16x72xbf16, #tpu.memory_space<vmem>>, vector<8x16x8xbf16>
    tpu.vector_store %arg14[%c16_109, %c0_110, %c16_111], %40 {strides = array<i32>} : memref<32x16x72xbf16, #tpu.memory_space<vmem>>, vector<8x16x8xbf16>,
    %c1_112 = arith.constant 1 : index
    %c0_113 = arith.constant 0 : index
    %c0_114 = arith.constant 0 : index
    %42 = vector.load %arg1[%c1_112, %c0_113, %c0_114] : memref<36x16x9xbf16, #tpu.memory_space<vmem>>, vector<8x16x8xbf16>
    %c16_115 = arith.constant 16 : index
    %c0_116 = arith.constant 0 : index
    %c24_117 = arith.constant 24 : index
    %43 = vector.load %arg14[%c16_115, %c0_116, %c24_117] : memref<32x16x72xbf16, #tpu.memory_space<vmem>>, vector<8x16x8xbf16>
    tpu.vector_store %arg14[%c16_115, %c0_116, %c24_117], %42 {strides = array<i32>} : memref<32x16x72xbf16, #tpu.memory_space<vmem>>, vector<8x16x8xbf16>,
    %c10_118 = arith.constant 10 : index
    %c0_119 = arith.constant 0 : index
    %c0_120 = arith.constant 0 : index
    %44 = vector.load %arg1[%c10_118, %c0_119, %c0_120] : memref<36x16x9xbf16, #tpu.memory_space<vmem>>, vector<8x16x8xbf16>
    %c16_121 = arith.constant 16 : index
    %c0_122 = arith.constant 0 : index
    %c32_123 = arith.constant 32 : index
    %45 = vector.load %arg14[%c16_121, %c0_122, %c32_123] : memref<32x16x72xbf16, #tpu.memory_space<vmem>>, vector<8x16x8xbf16>
    tpu.vector_store %arg14[%c16_121, %c0_122, %c32_123], %44 {strides = array<i32>} : memref<32x16x72xbf16, #tpu.memory_space<vmem>>, vector<8x16x8xbf16>,
    %c1_124 = arith.constant 1 : index
    %c0_125 = arith.constant 0 : index
    %c1_126 = arith.constant 1 : index
    %46 = vector.load %arg1[%c1_124, %c0_125, %c1_126] : memref<36x16x9xbf16, #tpu.memory_space<vmem>>, vector<8x16x8xbf16>
    %c16_127 = arith.constant 16 : index
    %c0_128 = arith.constant 0 : index
    %c40_129 = arith.constant 40 : index
    %47 = vector.load %arg14[%c16_127, %c0_128, %c40_129] : memref<32x16x72xbf16, #tpu.memory_space<vmem>>, vector<8x16x8xbf16>
    tpu.vector_store %arg14[%c16_127, %c0_128, %c40_129], %46 {strides = array<i32>} : memref<32x16x72xbf16, #tpu.memory_space<vmem>>, vector<8x16x8xbf16>,
    %c19 = arith.constant 19 : index
    %c0_130 = arith.constant 0 : index
    %c0_131 = arith.constant 0 : index
    %48 = vector.load %arg1[%c19, %c0_130, %c0_131] : memref<36x16x9xbf16, #tpu.memory_space<vmem>>, vector<8x16x8xbf16>
    %c16_132 = arith.constant 16 : index
    %c0_133 = arith.constant 0 : index
    %c48_134 = arith.constant 48 : index
    %49 = vector.load %arg14[%c16_132, %c0_133, %c48_134] : memref<32x16x72xbf16, #tpu.memory_space<vmem>>, vector<8x16x8xbf16>
    tpu.vector_store %arg14[%c16_132, %c0_133, %c48_134], %48 {strides = array<i32>} : memref<32x16x72xbf16, #tpu.memory_space<vmem>>, vector<8x16x8xbf16>,
    %c28 = arith.constant 28 : index
    %c0_135 = arith.constant 0 : index
    %c0_136 = arith.constant 0 : index
    %50 = vector.load %arg1[%c28, %c0_135, %c0_136] : memref<36x16x9xbf16, #tpu.memory_space<vmem>>, vector<8x16x8xbf16>
    %c16_137 = arith.constant 16 : index
    %c0_138 = arith.constant 0 : index
    %c56_139 = arith.constant 56 : index
    %51 = vector.load %arg14[%c16_137, %c0_138, %c56_139] : memref<32x16x72xbf16, #tpu.memory_space<vmem>>, vector<8x16x8xbf16>
    tpu.vector_store %arg14[%c16_137, %c0_138, %c56_139], %50 {strides = array<i32>} : memref<32x16x72xbf16, #tpu.memory_space<vmem>>, vector<8x16x8xbf16>,
    %c19_140 = arith.constant 19 : index
    %c0_141 = arith.constant 0 : index
    %c1_142 = arith.constant 1 : index
    %52 = vector.load %arg1[%c19_140, %c0_141, %c1_142] : memref<36x16x9xbf16, #tpu.memory_space<vmem>>, vector<8x16x8xbf16>
    %c16_143 = arith.constant 16 : index
    %c0_144 = arith.constant 0 : index
    %c64_145 = arith.constant 64 : index
    %53 = vector.load %arg14[%c16_143, %c0_144, %c64_145] : memref<32x16x72xbf16, #tpu.memory_space<vmem>>, vector<8x16x8xbf16>
    tpu.vector_store %arg14[%c16_143, %c0_144, %c64_145], %52 {strides = array<i32>} : memref<32x16x72xbf16, #tpu.memory_space<vmem>>, vector<8x16x8xbf16>,
    %c27_146 = arith.constant 27 : index
    %c0_147 = arith.constant 0 : index
    %c0_148 = arith.constant 0 : index
    %54 = vector.load %arg1[%c27_146, %c0_147, %c0_148] : memref<36x16x9xbf16, #tpu.memory_space<vmem>>, vector<8x16x8xbf16>
    %c24_149 = arith.constant 24 : index
    %c0_150 = arith.constant 0 : index
    %c0_151 = arith.constant 0 : index
    %55 = vector.load %arg14[%c24_149, %c0_150, %c0_151] : memref<32x16x72xbf16, #tpu.memory_space<vmem>>, vector<8x16x8xbf16>
    tpu.vector_store %arg14[%c24_149, %c0_150, %c0_151], %54 {strides = array<i32>} : memref<32x16x72xbf16, #tpu.memory_space<vmem>>, vector<8x16x8xbf16>,
    %c18_152 = arith.constant 18 : index
    %c0_153 = arith.constant 0 : index
    %c1_154 = arith.constant 1 : index
    %56 = vector.load %arg1[%c18_152, %c0_153, %c1_154] : memref<36x16x9xbf16, #tpu.memory_space<vmem>>, vector<8x16x8xbf16>
    %c24_155 = arith.constant 24 : index
    %c0_156 = arith.constant 0 : index
    %c8_157 = arith.constant 8 : index
    %57 = vector.load %arg14[%c24_155, %c0_156, %c8_157] : memref<32x16x72xbf16, #tpu.memory_space<vmem>>, vector<8x16x8xbf16>
    tpu.vector_store %arg14[%c24_155, %c0_156, %c8_157], %56 {strides = array<i32>} : memref<32x16x72xbf16, #tpu.memory_space<vmem>>, vector<8x16x8xbf16>,
    %c27_158 = arith.constant 27 : index
    %c0_159 = arith.constant 0 : index
    %c1_160 = arith.constant 1 : index
    %58 = vector.load %arg1[%c27_158, %c0_159, %c1_160] : memref<36x16x9xbf16, #tpu.memory_space<vmem>>, vector<8x16x8xbf16>
    %c24_161 = arith.constant 24 : index
    %c0_162 = arith.constant 0 : index
    %c16_163 = arith.constant 16 : index
    %59 = vector.load %arg14[%c24_161, %c0_162, %c16_163] : memref<32x16x72xbf16, #tpu.memory_space<vmem>>, vector<8x16x8xbf16>
    tpu.vector_store %arg14[%c24_161, %c0_162, %c16_163], %58 {strides = array<i32>} : memref<32x16x72xbf16, #tpu.memory_space<vmem>>, vector<8x16x8xbf16>,
    %c10_164 = arith.constant 10 : index
    %c0_165 = arith.constant 0 : index
    %c0_166 = arith.constant 0 : index
    %60 = vector.load %arg1[%c10_164, %c0_165, %c0_166] : memref<36x16x9xbf16, #tpu.memory_space<vmem>>, vector<8x16x8xbf16>
    %c24_167 = arith.constant 24 : index
    %c0_168 = arith.constant 0 : index
    %c24_169 = arith.constant 24 : index
    %61 = vector.load %arg14[%c24_167, %c0_168, %c24_169] : memref<32x16x72xbf16, #tpu.memory_space<vmem>>, vector<8x16x8xbf16>
    tpu.vector_store %arg14[%c24_167, %c0_168, %c24_169], %60 {strides = array<i32>} : memref<32x16x72xbf16, #tpu.memory_space<vmem>>, vector<8x16x8xbf16>,
    %c1_170 = arith.constant 1 : index
    %c0_171 = arith.constant 0 : index
    %c1_172 = arith.constant 1 : index
    %62 = vector.load %arg1[%c1_170, %c0_171, %c1_172] : memref<36x16x9xbf16, #tpu.memory_space<vmem>>, vector<8x16x8xbf16>
    %c24_173 = arith.constant 24 : index
    %c0_174 = arith.constant 0 : index
    %c32_175 = arith.constant 32 : index
    %63 = vector.load %arg14[%c24_173, %c0_174, %c32_175] : memref<32x16x72xbf16, #tpu.memory_space<vmem>>, vector<8x16x8xbf16>
    tpu.vector_store %arg14[%c24_173, %c0_174, %c32_175], %62 {strides = array<i32>} : memref<32x16x72xbf16, #tpu.memory_space<vmem>>, vector<8x16x8xbf16>,
    %c10_176 = arith.constant 10 : index
    %c0_177 = arith.constant 0 : index
    %c1_178 = arith.constant 1 : index
    %64 = vector.load %arg1[%c10_176, %c0_177, %c1_178] : memref<36x16x9xbf16, #tpu.memory_space<vmem>>, vector<8x16x8xbf16>
    %c24_179 = arith.constant 24 : index
    %c0_180 = arith.constant 0 : index
    %c40_181 = arith.constant 40 : index
    %65 = vector.load %arg14[%c24_179, %c0_180, %c40_181] : memref<32x16x72xbf16, #tpu.memory_space<vmem>>, vector<8x16x8xbf16>
    tpu.vector_store %arg14[%c24_179, %c0_180, %c40_181], %64 {strides = array<i32>} : memref<32x16x72xbf16, #tpu.memory_space<vmem>>, vector<8x16x8xbf16>,
    %c28_182 = arith.constant 28 : index
    %c0_183 = arith.constant 0 : index
    %c0_184 = arith.constant 0 : index
    %66 = vector.load %arg1[%c28_182, %c0_183, %c0_184] : memref<36x16x9xbf16, #tpu.memory_space<vmem>>, vector<8x16x8xbf16>
    %c24_185 = arith.constant 24 : index
    %c0_186 = arith.constant 0 : index
    %c48_187 = arith.constant 48 : index
    %67 = vector.load %arg14[%c24_185, %c0_186, %c48_187] : memref<32x16x72xbf16, #tpu.memory_space<vmem>>, vector<8x16x8xbf16>
    tpu.vector_store %arg14[%c24_185, %c0_186, %c48_187], %66 {strides = array<i32>} : memref<32x16x72xbf16, #tpu.memory_space<vmem>>, vector<8x16x8xbf16>,
    %c19_188 = arith.constant 19 : index
    %c0_189 = arith.constant 0 : index
    %c1_190 = arith.constant 1 : index
    %68 = vector.load %arg1[%c19_188, %c0_189, %c1_190] : memref<36x16x9xbf16, #tpu.memory_space<vmem>>, vector<8x16x8xbf16>
    %c24_191 = arith.constant 24 : index
    %c0_192 = arith.constant 0 : index
    %c56_193 = arith.constant 56 : index
    %69 = vector.load %arg14[%c24_191, %c0_192, %c56_193] : memref<32x16x72xbf16, #tpu.memory_space<vmem>>, vector<8x16x8xbf16>
    tpu.vector_store %arg14[%c24_191, %c0_192, %c56_193], %68 {strides = array<i32>} : memref<32x16x72xbf16, #tpu.memory_space<vmem>>, vector<8x16x8xbf16>,
    %c28_194 = arith.constant 28 : index
    %c0_195 = arith.constant 0 : index
    %c1_196 = arith.constant 1 : index
    %70 = vector.load %arg1[%c28_194, %c0_195, %c1_196] : memref<36x16x9xbf16, #tpu.memory_space<vmem>>, vector<8x16x8xbf16>
    %c24_197 = arith.constant 24 : index
    %c0_198 = arith.constant 0 : index
    %c64_199 = arith.constant 64 : index
    %71 = vector.load %arg14[%c24_197, %c0_198, %c64_199] : memref<32x16x72xbf16, #tpu.memory_space<vmem>>, vector<8x16x8xbf16>
    tpu.vector_store %arg14[%c24_197, %c0_198, %c64_199], %70 {strides = array<i32>} : memref<32x16x72xbf16, #tpu.memory_space<vmem>>, vector<8x16x8xbf16>,
    %c0_200 = arith.constant 0 : index
    %c0_201 = arith.constant 0 : index
    %c0_202 = arith.constant 0 : index
    %72 = vector.load %arg14[%c0_200, %c0_201, %c0_202] : memref<32x16x72xbf16, #tpu.memory_space<vmem>>, vector<32x16x72xbf16>
    %73 = vector.shape_cast %72 : vector<32x16x72xbf16> to vector<512x72xbf16>
    %c0_203 = arith.constant 0 : index
    %c0_204 = arith.constant 0 : index
    %74 = vector.load %arg2[%c0_203, %c0_204] : memref<72x128xbf16, #tpu.memory_space<vmem>>, vector<72x128xbf16>
    %cst = arith.constant dense<0.000000e+00> : vector<512x128xf32>
    %75 = tpu.matmul %73, %74, %cst {dimension_numbers = #tpu.dot_dimension_numbers<[1], [0], [0], [1], [0, 0, 1, 1], [], []>} : vector<512x72xbf16>, vector<72x128xbf16>, vector<512x128xf32> -> vector<512x128xf32>
    %76 = vector.extract_strided_slice %75 {offsets = [0, 0], sizes = [128, 128], strides = [1, 1]} : vector<512x128xf32> to vector<128x128xf32>
    %77 = vector.extract_strided_slice %75 {offsets = [128, 0], sizes = [128, 128], strides = [1, 1]} : vector<512x128xf32> to vector<128x128xf32>
    %78 = arith.maximumf %76, %77 : vector<128x128xf32>
    %79 = vector.extract_strided_slice %75 {offsets = [256, 0], sizes = [128, 128], strides = [1, 1]} : vector<512x128xf32> to vector<128x128xf32>
    %80 = vector.extract_strided_slice %75 {offsets = [384, 0], sizes = [128, 128], strides = [1, 1]} : vector<512x128xf32> to vector<128x128xf32>
    %81 = arith.maximumf %79, %80 : vector<128x128xf32>
    %82 = arith.maximumf %78, %81 : vector<128x128xf32>
    %c0_205 = arith.constant 0 : index
    %c0_206 = arith.constant 0 : index
    %83 = vector.load %arg3[%c0_205, %c0_206] : memref<1x128xf32, #tpu.memory_space<vmem>>, vector<1x128xf32>
    %84 = vector.broadcast %83 : vector<1x128xf32> to vector<128x128xf32>
    %85 = arith.addf %82, %84 : vector<128x128xf32>
    %cst_207 = arith.constant 0.000000e+00 : f32
    %86 = vector.broadcast %cst_207 : f32 to vector<128x128xf32>
    %87 = arith.maximumf %85, %86 : vector<128x128xf32>
    %88 = arith.truncf %87 : vector<128x128xf32> to vector<128x128xbf16>
    %cst_208 = arith.constant 0.000000e+00 : bf16
    %89 = vector.broadcast %cst_208 : bf16 to vector<20x16x80xbf16>
    %c0_209 = arith.constant 0 : index
    %c0_210 = arith.constant 0 : index
    %c0_211 = arith.constant 0 : index
    %90 = vector.load %arg15[%c0_209, %c0_210, %c0_211] : memref<20x16x80xbf16, #tpu.memory_space<vmem>>, vector<20x16x80xbf16>
    tpu.vector_store %arg15[%c0_209, %c0_210, %c0_211], %89 {strides = array<i32>} : memref<20x16x80xbf16, #tpu.memory_space<vmem>>, vector<20x16x80xbf16>,
    %91 = vector.extract_strided_slice %88 {offsets = [0, 0], sizes = [16, 128], strides = [1, 1]} : vector<128x128xbf16> to vector<16x128xbf16>
    %92 = vector.extract_strided_slice %91 {offsets = [0, 0], sizes = [16, 64], strides = [1, 1]} : vector<16x128xbf16> to vector<16x64xbf16>
    %c15 = arith.constant 15 : index
    %c0_212 = arith.constant 0 : index
    %c0_213 = arith.constant 0 : index
    %93 = vector.load %arg15[%c15, %c0_212, %c0_213] : memref<20x16x80xbf16, #tpu.memory_space<vmem>>, vector<1x16x64xbf16>
    %94 = vector.shape_cast %93 : vector<1x16x64xbf16> to vector<16x64xbf16>
    %95 = vector.shape_cast %92 : vector<16x64xbf16> to vector<1x16x64xbf16>
    tpu.vector_store %arg15[%c15, %c0_212, %c0_213], %95 {strides = array<i32>} : memref<20x16x80xbf16, #tpu.memory_space<vmem>>, vector<1x16x64xbf16>,
    %96 = vector.extract_strided_slice %91 {offsets = [0, 64], sizes = [16, 64], strides = [1, 1]} : vector<16x128xbf16> to vector<16x64xbf16>
    %c10_214 = arith.constant 10 : index
    %c0_215 = arith.constant 0 : index
    %c16_216 = arith.constant 16 : index
    %97 = vector.load %arg15[%c10_214, %c0_215, %c16_216] : memref<20x16x80xbf16, #tpu.memory_space<vmem>>, vector<1x16x64xbf16>
    %98 = vector.shape_cast %97 : vector<1x16x64xbf16> to vector<16x64xbf16>
    %99 = vector.shape_cast %96 : vector<16x64xbf16> to vector<1x16x64xbf16>
    tpu.vector_store %arg15[%c10_214, %c0_215, %c16_216], %99 {strides = array<i32>} : memref<20x16x80xbf16, #tpu.memory_space<vmem>>, vector<1x16x64xbf16>,
    %100 = vector.extract_strided_slice %88 {offsets = [16, 0], sizes = [16, 128], strides = [1, 1]} : vector<128x128xbf16> to vector<16x128xbf16>
    %101 = vector.extract_strided_slice %100 {offsets = [0, 0], sizes = [16, 64], strides = [1, 1]} : vector<16x128xbf16> to vector<16x64xbf16>
    %c6 = arith.constant 6 : index
    %c0_217 = arith.constant 0 : index
    %c0_218 = arith.constant 0 : index
    %102 = vector.load %arg15[%c6, %c0_217, %c0_218] : memref<20x16x80xbf16, #tpu.memory_space<vmem>>, vector<1x16x64xbf16>
    %103 = vector.shape_cast %102 : vector<1x16x64xbf16> to vector<16x64xbf16>
    %104 = vector.shape_cast %101 : vector<16x64xbf16> to vector<1x16x64xbf16>
    tpu.vector_store %arg15[%c6, %c0_217, %c0_218], %104 {strides = array<i32>} : memref<20x16x80xbf16, #tpu.memory_space<vmem>>, vector<1x16x64xbf16>,
    %105 = vector.extract_strided_slice %100 {offsets = [0, 64], sizes = [16, 64], strides = [1, 1]} : vector<16x128xbf16> to vector<16x64xbf16>
    %c1_219 = arith.constant 1 : index
    %c0_220 = arith.constant 0 : index
    %c16_221 = arith.constant 16 : index
    %106 = vector.load %arg15[%c1_219, %c0_220, %c16_221] : memref<20x16x80xbf16, #tpu.memory_space<vmem>>, vector<1x16x64xbf16>
    %107 = vector.shape_cast %106 : vector<1x16x64xbf16> to vector<16x64xbf16>
    %108 = vector.shape_cast %105 : vector<16x64xbf16> to vector<1x16x64xbf16>
    tpu.vector_store %arg15[%c1_219, %c0_220, %c16_221], %108 {strides = array<i32>} : memref<20x16x80xbf16, #tpu.memory_space<vmem>>, vector<1x16x64xbf16>,
    %109 = vector.extract_strided_slice %88 {offsets = [32, 0], sizes = [16, 128], strides = [1, 1]} : vector<128x128xbf16> to vector<16x128xbf16>
    %110 = vector.extract_strided_slice %109 {offsets = [0, 0], sizes = [16, 64], strides = [1, 1]} : vector<16x128xbf16> to vector<16x64xbf16>
    %c16_222 = arith.constant 16 : index
    %c0_223 = arith.constant 0 : index
    %c0_224 = arith.constant 0 : index
    %111 = vector.load %arg15[%c16_222, %c0_223, %c0_224] : memref<20x16x80xbf16, #tpu.memory_space<vmem>>, vector<1x16x64xbf16>
    %112 = vector.shape_cast %111 : vector<1x16x64xbf16> to vector<16x64xbf16>
    %113 = vector.shape_cast %110 : vector<16x64xbf16> to vector<1x16x64xbf16>
    tpu.vector_store %arg15[%c16_222, %c0_223, %c0_224], %113 {strides = array<i32>} : memref<20x16x80xbf16, #tpu.memory_space<vmem>>, vector<1x16x64xbf16>,
    %114 = vector.extract_strided_slice %109 {offsets = [0, 64], sizes = [16, 64], strides = [1, 1]} : vector<16x128xbf16> to vector<16x64xbf16>
    %c11 = arith.constant 11 : index
    %c0_225 = arith.constant 0 : index
    %c16_226 = arith.constant 16 : index
    %115 = vector.load %arg15[%c11, %c0_225, %c16_226] : memref<20x16x80xbf16, #tpu.memory_space<vmem>>, vector<1x16x64xbf16>
    %116 = vector.shape_cast %115 : vector<1x16x64xbf16> to vector<16x64xbf16>
    %117 = vector.shape_cast %114 : vector<16x64xbf16> to vector<1x16x64xbf16>
    tpu.vector_store %arg15[%c11, %c0_225, %c16_226], %117 {strides = array<i32>} : memref<20x16x80xbf16, #tpu.memory_space<vmem>>, vector<1x16x64xbf16>,
    %118 = vector.extract_strided_slice %88 {offsets = [48, 0], sizes = [16, 128], strides = [1, 1]} : vector<128x128xbf16> to vector<16x128xbf16>
    %119 = vector.extract_strided_slice %118 {offsets = [0, 0], sizes = [16, 64], strides = [1, 1]} : vector<16x128xbf16> to vector<16x64xbf16>
    %c7 = arith.constant 7 : index
    %c0_227 = arith.constant 0 : index
    %c0_228 = arith.constant 0 : index
    %120 = vector.load %arg15[%c7, %c0_227, %c0_228] : memref<20x16x80xbf16, #tpu.memory_space<vmem>>, vector<1x16x64xbf16>
    %121 = vector.shape_cast %120 : vector<1x16x64xbf16> to vector<16x64xbf16>
    %122 = vector.shape_cast %119 : vector<16x64xbf16> to vector<1x16x64xbf16>
    tpu.vector_store %arg15[%c7, %c0_227, %c0_228], %122 {strides = array<i32>} : memref<20x16x80xbf16, #tpu.memory_space<vmem>>, vector<1x16x64xbf16>,
    %123 = vector.extract_strided_slice %118 {offsets = [0, 64], sizes = [16, 64], strides = [1, 1]} : vector<16x128xbf16> to vector<16x64xbf16>
    %c2 = arith.constant 2 : index
    %c0_229 = arith.constant 0 : index
    %c16_230 = arith.constant 16 : index
    %124 = vector.load %arg15[%c2, %c0_229, %c16_230] : memref<20x16x80xbf16, #tpu.memory_space<vmem>>, vector<1x16x64xbf16>
    %125 = vector.shape_cast %124 : vector<1x16x64xbf16> to vector<16x64xbf16>
    %126 = vector.shape_cast %123 : vector<16x64xbf16> to vector<1x16x64xbf16>
    tpu.vector_store %arg15[%c2, %c0_229, %c16_230], %126 {strides = array<i32>} : memref<20x16x80xbf16, #tpu.memory_space<vmem>>, vector<1x16x64xbf16>,
    %127 = vector.extract_strided_slice %88 {offsets = [64, 0], sizes = [16, 128], strides = [1, 1]} : vector<128x128xbf16> to vector<16x128xbf16>
    %128 = vector.extract_strided_slice %127 {offsets = [0, 0], sizes = [16, 64], strides = [1, 1]} : vector<16x128xbf16> to vector<16x64xbf16>
    %c17 = arith.constant 17 : index
    %c0_231 = arith.constant 0 : index
    %c0_232 = arith.constant 0 : index
    %129 = vector.load %arg15[%c17, %c0_231, %c0_232] : memref<20x16x80xbf16, #tpu.memory_space<vmem>>, vector<1x16x64xbf16>
    %130 = vector.shape_cast %129 : vector<1x16x64xbf16> to vector<16x64xbf16>
    %131 = vector.shape_cast %128 : vector<16x64xbf16> to vector<1x16x64xbf16>
    tpu.vector_store %arg15[%c17, %c0_231, %c0_232], %131 {strides = array<i32>} : memref<20x16x80xbf16, #tpu.memory_space<vmem>>, vector<1x16x64xbf16>,
    %132 = vector.extract_strided_slice %127 {offsets = [0, 64], sizes = [16, 64], strides = [1, 1]} : vector<16x128xbf16> to vector<16x64xbf16>
    %c12 = arith.constant 12 : index
    %c0_233 = arith.constant 0 : index
    %c16_234 = arith.constant 16 : index
    %133 = vector.load %arg15[%c12, %c0_233, %c16_234] : memref<20x16x80xbf16, #tpu.memory_space<vmem>>, vector<1x16x64xbf16>
    %134 = vector.shape_cast %133 : vector<1x16x64xbf16> to vector<16x64xbf16>
    %135 = vector.shape_cast %132 : vector<16x64xbf16> to vector<1x16x64xbf16>
    tpu.vector_store %arg15[%c12, %c0_233, %c16_234], %135 {strides = array<i32>} : memref<20x16x80xbf16, #tpu.memory_space<vmem>>, vector<1x16x64xbf16>,
    %136 = vector.extract_strided_slice %88 {offsets = [80, 0], sizes = [16, 128], strides = [1, 1]} : vector<128x128xbf16> to vector<16x128xbf16>
    %137 = vector.extract_strided_slice %136 {offsets = [0, 0], sizes = [16, 64], strides = [1, 1]} : vector<16x128xbf16> to vector<16x64xbf16>
    %c8_235 = arith.constant 8 : index
    %c0_236 = arith.constant 0 : index
    %c0_237 = arith.constant 0 : index
    %138 = vector.load %arg15[%c8_235, %c0_236, %c0_237] : memref<20x16x80xbf16, #tpu.memory_space<vmem>>, vector<1x16x64xbf16>
    %139 = vector.shape_cast %138 : vector<1x16x64xbf16> to vector<16x64xbf16>
    %140 = vector.shape_cast %137 : vector<16x64xbf16> to vector<1x16x64xbf16>
    tpu.vector_store %arg15[%c8_235, %c0_236, %c0_237], %140 {strides = array<i32>} : memref<20x16x80xbf16, #tpu.memory_space<vmem>>, vector<1x16x64xbf16>,
    %141 = vector.extract_strided_slice %136 {offsets = [0, 64], sizes = [16, 64], strides = [1, 1]} : vector<16x128xbf16> to vector<16x64xbf16>
    %c3 = arith.constant 3 : index
    %c0_238 = arith.constant 0 : index
    %c16_239 = arith.constant 16 : index
    %142 = vector.load %arg15[%c3, %c0_238, %c16_239] : memref<20x16x80xbf16, #tpu.memory_space<vmem>>, vector<1x16x64xbf16>
    %143 = vector.shape_cast %142 : vector<1x16x64xbf16> to vector<16x64xbf16>
    %144 = vector.shape_cast %141 : vector<16x64xbf16> to vector<1x16x64xbf16>
    tpu.vector_store %arg15[%c3, %c0_238, %c16_239], %144 {strides = array<i32>} : memref<20x16x80xbf16, #tpu.memory_space<vmem>>, vector<1x16x64xbf16>,
    %145 = vector.extract_strided_slice %88 {offsets = [96, 0], sizes = [16, 128], strides = [1, 1]} : vector<128x128xbf16> to vector<16x128xbf16>
    %146 = vector.extract_strided_slice %145 {offsets = [0, 0], sizes = [16, 64], strides = [1, 1]} : vector<16x128xbf16> to vector<16x64xbf16>
    %c18_240 = arith.constant 18 : index
    %c0_241 = arith.constant 0 : index
    %c0_242 = arith.constant 0 : index
    %147 = vector.load %arg15[%c18_240, %c0_241, %c0_242] : memref<20x16x80xbf16, #tpu.memory_space<vmem>>, vector<1x16x64xbf16>
    %148 = vector.shape_cast %147 : vector<1x16x64xbf16> to vector<16x64xbf16>
    %149 = vector.shape_cast %146 : vector<16x64xbf16> to vector<1x16x64xbf16>
    tpu.vector_store %arg15[%c18_240, %c0_241, %c0_242], %149 {strides = array<i32>} : memref<20x16x80xbf16, #tpu.memory_space<vmem>>, vector<1x16x64xbf16>,
    %150 = vector.extract_strided_slice %145 {offsets = [0, 64], sizes = [16, 64], strides = [1, 1]} : vector<16x128xbf16> to vector<16x64xbf16>
    %c13 = arith.constant 13 : index
    %c0_243 = arith.constant 0 : index
    %c16_244 = arith.constant 16 : index
    %151 = vector.load %arg15[%c13, %c0_243, %c16_244] : memref<20x16x80xbf16, #tpu.memory_space<vmem>>, vector<1x16x64xbf16>
    %152 = vector.shape_cast %151 : vector<1x16x64xbf16> to vector<16x64xbf16>
    %153 = vector.shape_cast %150 : vector<16x64xbf16> to vector<1x16x64xbf16>
    tpu.vector_store %arg15[%c13, %c0_243, %c16_244], %153 {strides = array<i32>} : memref<20x16x80xbf16, #tpu.memory_space<vmem>>, vector<1x16x64xbf16>,
    %154 = vector.extract_strided_slice %88 {offsets = [112, 0], sizes = [16, 128], strides = [1, 1]} : vector<128x128xbf16> to vector<16x128xbf16>
    %155 = vector.extract_strided_slice %154 {offsets = [0, 0], sizes = [16, 64], strides = [1, 1]} : vector<16x128xbf16> to vector<16x64xbf16>
    %c9_245 = arith.constant 9 : index
    %c0_246 = arith.constant 0 : index
    %c0_247 = arith.constant 0 : index
    %156 = vector.load %arg15[%c9_245, %c0_246, %c0_247] : memref<20x16x80xbf16, #tpu.memory_space<vmem>>, vector<1x16x64xbf16>
    %157 = vector.shape_cast %156 : vector<1x16x64xbf16> to vector<16x64xbf16>
    %158 = vector.shape_cast %155 : vector<16x64xbf16> to vector<1x16x64xbf16>
    tpu.vector_store %arg15[%c9_245, %c0_246, %c0_247], %158 {strides = array<i32>} : memref<20x16x80xbf16, #tpu.memory_space<vmem>>, vector<1x16x64xbf16>,
    %159 = vector.extract_strided_slice %154 {offsets = [0, 64], sizes = [16, 64], strides = [1, 1]} : vector<16x128xbf16> to vector<16x64xbf16>
    %c4 = arith.constant 4 : index
    %c0_248 = arith.constant 0 : index
    %c16_249 = arith.constant 16 : index
    %160 = vector.load %arg15[%c4, %c0_248, %c16_249] : memref<20x16x80xbf16, #tpu.memory_space<vmem>>, vector<1x16x64xbf16>
    %161 = vector.shape_cast %160 : vector<1x16x64xbf16> to vector<16x64xbf16>
    %162 = vector.shape_cast %159 : vector<16x64xbf16> to vector<1x16x64xbf16>
    tpu.vector_store %arg15[%c4, %c0_248, %c16_249], %162 {strides = array<i32>} : memref<20x16x80xbf16, #tpu.memory_space<vmem>>, vector<1x16x64xbf16>,
    %c0_250 = arith.constant 0 : index
    %c0_251 = arith.constant 0 : index
    %c0_252 = arith.constant 0 : index
    %163 = vector.load %arg15[%c0_250, %c0_251, %c0_252] : memref<20x16x80xbf16, #tpu.memory_space<vmem>>, vector<4x16x64xbf16>
    %c0_253 = arith.constant 0 : index
    %c0_254 = arith.constant 0 : index
    %c0_255 = arith.constant 0 : index
    %164 = vector.load %arg16[%c0_253, %c0_254, %c0_255] : memref<16x16x576xbf16, #tpu.memory_space<vmem>>, vector<4x16x64xbf16>
    tpu.vector_store %arg16[%c0_253, %c0_254, %c0_255], %163 {strides = array<i32>} : memref<16x16x576xbf16, #tpu.memory_space<vmem>>, vector<4x16x64xbf16>,
    %c5 = arith.constant 5 : index
    %c0_256 = arith.constant 0 : index
    %c0_257 = arith.constant 0 : index
    %165 = vector.load %arg15[%c5, %c0_256, %c0_257] : memref<20x16x80xbf16, #tpu.memory_space<vmem>>, vector<4x16x64xbf16>
    %c0_258 = arith.constant 0 : index
    %c0_259 = arith.constant 0 : index
    %c64_260 = arith.constant 64 : index
    %166 = vector.load %arg16[%c0_258, %c0_259, %c64_260] : memref<16x16x576xbf16, #tpu.memory_space<vmem>>, vector<4x16x64xbf16>
    tpu.vector_store %arg16[%c0_258, %c0_259, %c64_260], %165 {strides = array<i32>} : memref<16x16x576xbf16, #tpu.memory_space<vmem>>, vector<4x16x64xbf16>,
    %c0_261 = arith.constant 0 : index
    %c0_262 = arith.constant 0 : index
    %c16_263 = arith.constant 16 : index
    %167 = vector.load %arg15[%c0_261, %c0_262, %c16_263] : memref<20x16x80xbf16, #tpu.memory_space<vmem>>, vector<4x16x64xbf16>
    %c0_264 = arith.constant 0 : index
    %c0_265 = arith.constant 0 : index
    %c128 = arith.constant 128 : index
    %168 = vector.load %arg16[%c0_264, %c0_265, %c128] : memref<16x16x576xbf16, #tpu.memory_space<vmem>>, vector<4x16x64xbf16>
    tpu.vector_store %arg16[%c0_264, %c0_265, %c128], %167 {strides = array<i32>} : memref<16x16x576xbf16, #tpu.memory_space<vmem>>, vector<4x16x64xbf16>,
    %c10_266 = arith.constant 10 : index
    %c0_267 = arith.constant 0 : index
    %c0_268 = arith.constant 0 : index
    %169 = vector.load %arg15[%c10_266, %c0_267, %c0_268] : memref<20x16x80xbf16, #tpu.memory_space<vmem>>, vector<4x16x64xbf16>
    %c0_269 = arith.constant 0 : index
    %c0_270 = arith.constant 0 : index
    %c192 = arith.constant 192 : index
    %170 = vector.load %arg16[%c0_269, %c0_270, %c192] : memref<16x16x576xbf16, #tpu.memory_space<vmem>>, vector<4x16x64xbf16>
    tpu.vector_store %arg16[%c0_269, %c0_270, %c192], %169 {strides = array<i32>} : memref<16x16x576xbf16, #tpu.memory_space<vmem>>, vector<4x16x64xbf16>,
    %c15_271 = arith.constant 15 : index
    %c0_272 = arith.constant 0 : index
    %c0_273 = arith.constant 0 : index
    %171 = vector.load %arg15[%c15_271, %c0_272, %c0_273] : memref<20x16x80xbf16, #tpu.memory_space<vmem>>, vector<4x16x64xbf16>
    %c0_274 = arith.constant 0 : index
    %c0_275 = arith.constant 0 : index
    %c256 = arith.constant 256 : index
    %172 = vector.load %arg16[%c0_274, %c0_275, %c256] : memref<16x16x576xbf16, #tpu.memory_space<vmem>>, vector<4x16x64xbf16>
    tpu.vector_store %arg16[%c0_274, %c0_275, %c256], %171 {strides = array<i32>} : memref<16x16x576xbf16, #tpu.memory_space<vmem>>, vector<4x16x64xbf16>,
    %c10_276 = arith.constant 10 : index
    %c0_277 = arith.constant 0 : index
    %c16_278 = arith.constant 16 : index
    %173 = vector.load %arg15[%c10_276, %c0_277, %c16_278] : memref<20x16x80xbf16, #tpu.memory_space<vmem>>, vector<4x16x64xbf16>
    %c0_279 = arith.constant 0 : index
    %c0_280 = arith.constant 0 : index
    %c320 = arith.constant 320 : index
    %174 = vector.load %arg16[%c0_279, %c0_280, %c320] : memref<16x16x576xbf16, #tpu.memory_space<vmem>>, vector<4x16x64xbf16>
    tpu.vector_store %arg16[%c0_279, %c0_280, %c320], %173 {strides = array<i32>} : memref<16x16x576xbf16, #tpu.memory_space<vmem>>, vector<4x16x64xbf16>,
    %c1_281 = arith.constant 1 : index
    %c0_282 = arith.constant 0 : index
    %c0_283 = arith.constant 0 : index
    %175 = vector.load %arg15[%c1_281, %c0_282, %c0_283] : memref<20x16x80xbf16, #tpu.memory_space<vmem>>, vector<4x16x64xbf16>
    %c0_284 = arith.constant 0 : index
    %c0_285 = arith.constant 0 : index
    %c384 = arith.constant 384 : index
    %176 = vector.load %arg16[%c0_284, %c0_285, %c384] : memref<16x16x576xbf16, #tpu.memory_space<vmem>>, vector<4x16x64xbf16>
    tpu.vector_store %arg16[%c0_284, %c0_285, %c384], %175 {strides = array<i32>} : memref<16x16x576xbf16, #tpu.memory_space<vmem>>, vector<4x16x64xbf16>,
    %c6_286 = arith.constant 6 : index
    %c0_287 = arith.constant 0 : index
    %c0_288 = arith.constant 0 : index
    %177 = vector.load %arg15[%c6_286, %c0_287, %c0_288] : memref<20x16x80xbf16, #tpu.memory_space<vmem>>, vector<4x16x64xbf16>
    %c0_289 = arith.constant 0 : index
    %c0_290 = arith.constant 0 : index
    %c448 = arith.constant 448 : index
    %178 = vector.load %arg16[%c0_289, %c0_290, %c448] : memref<16x16x576xbf16, #tpu.memory_space<vmem>>, vector<4x16x64xbf16>
    tpu.vector_store %arg16[%c0_289, %c0_290, %c448], %177 {strides = array<i32>} : memref<16x16x576xbf16, #tpu.memory_space<vmem>>, vector<4x16x64xbf16>,
    %c1_291 = arith.constant 1 : index
    %c0_292 = arith.constant 0 : index
    %c16_293 = arith.constant 16 : index
    %179 = vector.load %arg15[%c1_291, %c0_292, %c16_293] : memref<20x16x80xbf16, #tpu.memory_space<vmem>>, vector<4x16x64xbf16>
    %c0_294 = arith.constant 0 : index
    %c0_295 = arith.constant 0 : index
    %c512 = arith.constant 512 : index
    %180 = vector.load %arg16[%c0_294, %c0_295, %c512] : memref<16x16x576xbf16, #tpu.memory_space<vmem>>, vector<4x16x64xbf16>
    tpu.vector_store %arg16[%c0_294, %c0_295, %c512], %179 {strides = array<i32>} : memref<16x16x576xbf16, #tpu.memory_space<vmem>>, vector<4x16x64xbf16>,
    %c5_296 = arith.constant 5 : index
    %c0_297 = arith.constant 0 : index
    %c0_298 = arith.constant 0 : index
    %181 = vector.load %arg15[%c5_296, %c0_297, %c0_298] : memref<20x16x80xbf16, #tpu.memory_space<vmem>>, vector<4x16x64xbf16>
    %c4_299 = arith.constant 4 : index
    %c0_300 = arith.constant 0 : index
    %c0_301 = arith.constant 0 : index
    %182 = vector.load %arg16[%c4_299, %c0_300, %c0_301] : memref<16x16x576xbf16, #tpu.memory_space<vmem>>, vector<4x16x64xbf16>
    tpu.vector_store %arg16[%c4_299, %c0_300, %c0_301], %181 {strides = array<i32>} : memref<16x16x576xbf16, #tpu.memory_space<vmem>>, vector<4x16x64xbf16>,
    %c0_302 = arith.constant 0 : index
    %c0_303 = arith.constant 0 : index
    %c16_304 = arith.constant 16 : index
    %183 = vector.load %arg15[%c0_302, %c0_303, %c16_304] : memref<20x16x80xbf16, #tpu.memory_space<vmem>>, vector<4x16x64xbf16>
    %c4_305 = arith.constant 4 : index
    %c0_306 = arith.constant 0 : index
    %c64_307 = arith.constant 64 : index
    %184 = vector.load %arg16[%c4_305, %c0_306, %c64_307] : memref<16x16x576xbf16, #tpu.memory_space<vmem>>, vector<4x16x64xbf16>
    tpu.vector_store %arg16[%c4_305, %c0_306, %c64_307], %183 {strides = array<i32>} : memref<16x16x576xbf16, #tpu.memory_space<vmem>>, vector<4x16x64xbf16>,
    %c5_308 = arith.constant 5 : index
    %c0_309 = arith.constant 0 : index
    %c16_310 = arith.constant 16 : index
    %185 = vector.load %arg15[%c5_308, %c0_309, %c16_310] : memref<20x16x80xbf16, #tpu.memory_space<vmem>>, vector<4x16x64xbf16>
    %c4_311 = arith.constant 4 : index
    %c0_312 = arith.constant 0 : index
    %c128_313 = arith.constant 128 : index
    %186 = vector.load %arg16[%c4_311, %c0_312, %c128_313] : memref<16x16x576xbf16, #tpu.memory_space<vmem>>, vector<4x16x64xbf16>
    tpu.vector_store %arg16[%c4_311, %c0_312, %c128_313], %185 {strides = array<i32>} : memref<16x16x576xbf16, #tpu.memory_space<vmem>>, vector<4x16x64xbf16>,
    %c15_314 = arith.constant 15 : index
    %c0_315 = arith.constant 0 : index
    %c0_316 = arith.constant 0 : index
    %187 = vector.load %arg15[%c15_314, %c0_315, %c0_316] : memref<20x16x80xbf16, #tpu.memory_space<vmem>>, vector<4x16x64xbf16>
    %c4_317 = arith.constant 4 : index
    %c0_318 = arith.constant 0 : index
    %c192_319 = arith.constant 192 : index
    %188 = vector.load %arg16[%c4_317, %c0_318, %c192_319] : memref<16x16x576xbf16, #tpu.memory_space<vmem>>, vector<4x16x64xbf16>
    tpu.vector_store %arg16[%c4_317, %c0_318, %c192_319], %187 {strides = array<i32>} : memref<16x16x576xbf16, #tpu.memory_space<vmem>>, vector<4x16x64xbf16>,
    %c10_320 = arith.constant 10 : index
    %c0_321 = arith.constant 0 : index
    %c16_322 = arith.constant 16 : index
    %189 = vector.load %arg15[%c10_320, %c0_321, %c16_322] : memref<20x16x80xbf16, #tpu.memory_space<vmem>>, vector<4x16x64xbf16>
    %c4_323 = arith.constant 4 : index
    %c0_324 = arith.constant 0 : index
    %c256_325 = arith.constant 256 : index
    %190 = vector.load %arg16[%c4_323, %c0_324, %c256_325] : memref<16x16x576xbf16, #tpu.memory_space<vmem>>, vector<4x16x64xbf16>
    tpu.vector_store %arg16[%c4_323, %c0_324, %c256_325], %189 {strides = array<i32>} : memref<16x16x576xbf16, #tpu.memory_space<vmem>>, vector<4x16x64xbf16>,
    %c15_326 = arith.constant 15 : index
    %c0_327 = arith.constant 0 : index
    %c16_328 = arith.constant 16 : index
    %191 = vector.load %arg15[%c15_326, %c0_327, %c16_328] : memref<20x16x80xbf16, #tpu.memory_space<vmem>>, vector<4x16x64xbf16>
    %c4_329 = arith.constant 4 : index
    %c0_330 = arith.constant 0 : index
    %c320_331 = arith.constant 320 : index
    %192 = vector.load %arg16[%c4_329, %c0_330, %c320_331] : memref<16x16x576xbf16, #tpu.memory_space<vmem>>, vector<4x16x64xbf16>
    tpu.vector_store %arg16[%c4_329, %c0_330, %c320_331], %191 {strides = array<i32>} : memref<16x16x576xbf16, #tpu.memory_space<vmem>>, vector<4x16x64xbf16>,
    %c6_332 = arith.constant 6 : index
    %c0_333 = arith.constant 0 : index
    %c0_334 = arith.constant 0 : index
    %193 = vector.load %arg15[%c6_332, %c0_333, %c0_334] : memref<20x16x80xbf16, #tpu.memory_space<vmem>>, vector<4x16x64xbf16>
    %c4_335 = arith.constant 4 : index
    %c0_336 = arith.constant 0 : index
    %c384_337 = arith.constant 384 : index
    %194 = vector.load %arg16[%c4_335, %c0_336, %c384_337] : memref<16x16x576xbf16, #tpu.memory_space<vmem>>, vector<4x16x64xbf16>
    tpu.vector_store %arg16[%c4_335, %c0_336, %c384_337], %193 {strides = array<i32>} : memref<16x16x576xbf16, #tpu.memory_space<vmem>>, vector<4x16x64xbf16>,
    %c1_338 = arith.constant 1 : index
    %c0_339 = arith.constant 0 : index
    %c16_340 = arith.constant 16 : index
    %195 = vector.load %arg15[%c1_338, %c0_339, %c16_340] : memref<20x16x80xbf16, #tpu.memory_space<vmem>>, vector<4x16x64xbf16>
    %c4_341 = arith.constant 4 : index
    %c0_342 = arith.constant 0 : index
    %c448_343 = arith.constant 448 : index
    %196 = vector.load %arg16[%c4_341, %c0_342, %c448_343] : memref<16x16x576xbf16, #tpu.memory_space<vmem>>, vector<4x16x64xbf16>
    tpu.vector_store %arg16[%c4_341, %c0_342, %c448_343], %195 {strides = array<i32>} : memref<16x16x576xbf16, #tpu.memory_space<vmem>>, vector<4x16x64xbf16>,
    %c6_344 = arith.constant 6 : index
    %c0_345 = arith.constant 0 : index
    %c16_346 = arith.constant 16 : index
    %197 = vector.load %arg15[%c6_344, %c0_345, %c16_346] : memref<20x16x80xbf16, #tpu.memory_space<vmem>>, vector<4x16x64xbf16>
    %c4_347 = arith.constant 4 : index
    %c0_348 = arith.constant 0 : index
    %c512_349 = arith.constant 512 : index
    %198 = vector.load %arg16[%c4_347, %c0_348, %c512_349] : memref<16x16x576xbf16, #tpu.memory_space<vmem>>, vector<4x16x64xbf16>
    tpu.vector_store %arg16[%c4_347, %c0_348, %c512_349], %197 {strides = array<i32>} : memref<16x16x576xbf16, #tpu.memory_space<vmem>>, vector<4x16x64xbf16>,
    %c10_350 = arith.constant 10 : index
    %c0_351 = arith.constant 0 : index
    %c0_352 = arith.constant 0 : index
    %199 = vector.load %arg15[%c10_350, %c0_351, %c0_352] : memref<20x16x80xbf16, #tpu.memory_space<vmem>>, vector<4x16x64xbf16>
    %c8_353 = arith.constant 8 : index
    %c0_354 = arith.constant 0 : index
    %c0_355 = arith.constant 0 : index
    %200 = vector.load %arg16[%c8_353, %c0_354, %c0_355] : memref<16x16x576xbf16, #tpu.memory_space<vmem>>, vector<4x16x64xbf16>
    tpu.vector_store %arg16[%c8_353, %c0_354, %c0_355], %199 {strides = array<i32>} : memref<16x16x576xbf16, #tpu.memory_space<vmem>>, vector<4x16x64xbf16>,
    %c15_356 = arith.constant 15 : index
    %c0_357 = arith.constant 0 : index
    %c0_358 = arith.constant 0 : index
    %201 = vector.load %arg15[%c15_356, %c0_357, %c0_358] : memref<20x16x80xbf16, #tpu.memory_space<vmem>>, vector<4x16x64xbf16>
    %c8_359 = arith.constant 8 : index
    %c0_360 = arith.constant 0 : index
    %c64_361 = arith.constant 64 : index
    %202 = vector.load %arg16[%c8_359, %c0_360, %c64_361] : memref<16x16x576xbf16, #tpu.memory_space<vmem>>, vector<4x16x64xbf16>
    tpu.vector_store %arg16[%c8_359, %c0_360, %c64_361], %201 {strides = array<i32>} : memref<16x16x576xbf16, #tpu.memory_space<vmem>>, vector<4x16x64xbf16>,
    %c10_362 = arith.constant 10 : index
    %c0_363 = arith.constant 0 : index
    %c16_364 = arith.constant 16 : index
    %203 = vector.load %arg15[%c10_362, %c0_363, %c16_364] : memref<20x16x80xbf16, #tpu.memory_space<vmem>>, vector<4x16x64xbf16>
    %c8_365 = arith.constant 8 : index
    %c0_366 = arith.constant 0 : index
    %c128_367 = arith.constant 128 : index
    %204 = vector.load %arg16[%c8_365, %c0_366, %c128_367] : memref<16x16x576xbf16, #tpu.memory_space<vmem>>, vector<4x16x64xbf16>
    tpu.vector_store %arg16[%c8_365, %c0_366, %c128_367], %203 {strides = array<i32>} : memref<16x16x576xbf16, #tpu.memory_space<vmem>>, vector<4x16x64xbf16>,
    %c1_368 = arith.constant 1 : index
    %c0_369 = arith.constant 0 : index
    %c0_370 = arith.constant 0 : index
    %205 = vector.load %arg15[%c1_368, %c0_369, %c0_370] : memref<20x16x80xbf16, #tpu.memory_space<vmem>>, vector<4x16x64xbf16>
    %c8_371 = arith.constant 8 : index
    %c0_372 = arith.constant 0 : index
    %c192_373 = arith.constant 192 : index
    %206 = vector.load %arg16[%c8_371, %c0_372, %c192_373] : memref<16x16x576xbf16, #tpu.memory_space<vmem>>, vector<4x16x64xbf16>
    tpu.vector_store %arg16[%c8_371, %c0_372, %c192_373], %205 {strides = array<i32>} : memref<16x16x576xbf16, #tpu.memory_space<vmem>>, vector<4x16x64xbf16>,
    %c6_374 = arith.constant 6 : index
    %c0_375 = arith.constant 0 : index
    %c0_376 = arith.constant 0 : index
    %207 = vector.load %arg15[%c6_374, %c0_375, %c0_376] : memref<20x16x80xbf16, #tpu.memory_space<vmem>>, vector<4x16x64xbf16>
    %c8_377 = arith.constant 8 : index
    %c0_378 = arith.constant 0 : index
    %c256_379 = arith.constant 256 : index
    %208 = vector.load %arg16[%c8_377, %c0_378, %c256_379] : memref<16x16x576xbf16, #tpu.memory_space<vmem>>, vector<4x16x64xbf16>
    tpu.vector_store %arg16[%c8_377, %c0_378, %c256_379], %207 {strides = array<i32>} : memref<16x16x576xbf16, #tpu.memory_space<vmem>>, vector<4x16x64xbf16>,
    %c1_380 = arith.constant 1 : index
    %c0_381 = arith.constant 0 : index
    %c16_382 = arith.constant 16 : index
    %209 = vector.load %arg15[%c1_380, %c0_381, %c16_382] : memref<20x16x80xbf16, #tpu.memory_space<vmem>>, vector<4x16x64xbf16>
    %c8_383 = arith.constant 8 : index
    %c0_384 = arith.constant 0 : index
    %c320_385 = arith.constant 320 : index
    %210 = vector.load %arg16[%c8_383, %c0_384, %c320_385] : memref<16x16x576xbf16, #tpu.memory_space<vmem>>, vector<4x16x64xbf16>
    tpu.vector_store %arg16[%c8_383, %c0_384, %c320_385], %209 {strides = array<i32>} : memref<16x16x576xbf16, #tpu.memory_space<vmem>>, vector<4x16x64xbf16>,
    %c11_386 = arith.constant 11 : index
    %c0_387 = arith.constant 0 : index
    %c0_388 = arith.constant 0 : index
    %211 = vector.load %arg15[%c11_386, %c0_387, %c0_388] : memref<20x16x80xbf16, #tpu.memory_space<vmem>>, vector<4x16x64xbf16>
    %c8_389 = arith.constant 8 : index
    %c0_390 = arith.constant 0 : index
    %c384_391 = arith.constant 384 : index
    %212 = vector.load %arg16[%c8_389, %c0_390, %c384_391] : memref<16x16x576xbf16, #tpu.memory_space<vmem>>, vector<4x16x64xbf16>
    tpu.vector_store %arg16[%c8_389, %c0_390, %c384_391], %211 {strides = array<i32>} : memref<16x16x576xbf16, #tpu.memory_space<vmem>>, vector<4x16x64xbf16>,
    %c16_392 = arith.constant 16 : index
    %c0_393 = arith.constant 0 : index
    %c0_394 = arith.constant 0 : index
    %213 = vector.load %arg15[%c16_392, %c0_393, %c0_394] : memref<20x16x80xbf16, #tpu.memory_space<vmem>>, vector<4x16x64xbf16>
    %c8_395 = arith.constant 8 : index
    %c0_396 = arith.constant 0 : index
    %c448_397 = arith.constant 448 : index
    %214 = vector.load %arg16[%c8_395, %c0_396, %c448_397] : memref<16x16x576xbf16, #tpu.memory_space<vmem>>, vector<4x16x64xbf16>
    tpu.vector_store %arg16[%c8_395, %c0_396, %c448_397], %213 {strides = array<i32>} : memref<16x16x576xbf16, #tpu.memory_space<vmem>>, vector<4x16x64xbf16>,
    %c11_398 = arith.constant 11 : index
    %c0_399 = arith.constant 0 : index
    %c16_400 = arith.constant 16 : index
    %215 = vector.load %arg15[%c11_398, %c0_399, %c16_400] : memref<20x16x80xbf16, #tpu.memory_space<vmem>>, vector<4x16x64xbf16>
    %c8_401 = arith.constant 8 : index
    %c0_402 = arith.constant 0 : index
    %c512_403 = arith.constant 512 : index
    %216 = vector.load %arg16[%c8_401, %c0_402, %c512_403] : memref<16x16x576xbf16, #tpu.memory_space<vmem>>, vector<4x16x64xbf16>
    tpu.vector_store %arg16[%c8_401, %c0_402, %c512_403], %215 {strides = array<i32>} : memref<16x16x576xbf16, #tpu.memory_space<vmem>>, vector<4x16x64xbf16>,
    %c15_404 = arith.constant 15 : index
    %c0_405 = arith.constant 0 : index
    %c0_406 = arith.constant 0 : index
    %217 = vector.load %arg15[%c15_404, %c0_405, %c0_406] : memref<20x16x80xbf16, #tpu.memory_space<vmem>>, vector<4x16x64xbf16>
    %c12_407 = arith.constant 12 : index
    %c0_408 = arith.constant 0 : index
    %c0_409 = arith.constant 0 : index
    %218 = vector.load %arg16[%c12_407, %c0_408, %c0_409] : memref<16x16x576xbf16, #tpu.memory_space<vmem>>, vector<4x16x64xbf16>
    tpu.vector_store %arg16[%c12_407, %c0_408, %c0_409], %217 {strides = array<i32>} : memref<16x16x576xbf16, #tpu.memory_space<vmem>>, vector<4x16x64xbf16>,
    %c10_410 = arith.constant 10 : index
    %c0_411 = arith.constant 0 : index
    %c16_412 = arith.constant 16 : index
    %219 = vector.load %arg15[%c10_410, %c0_411, %c16_412] : memref<20x16x80xbf16, #tpu.memory_space<vmem>>, vector<4x16x64xbf16>
    %c12_413 = arith.constant 12 : index
    %c0_414 = arith.constant 0 : index
    %c64_415 = arith.constant 64 : index
    %220 = vector.load %arg16[%c12_413, %c0_414, %c64_415] : memref<16x16x576xbf16, #tpu.memory_space<vmem>>, vector<4x16x64xbf16>
    tpu.vector_store %arg16[%c12_413, %c0_414, %c64_415], %219 {strides = array<i32>} : memref<16x16x576xbf16, #tpu.memory_space<vmem>>, vector<4x16x64xbf16>,
    %c15_416 = arith.constant 15 : index
    %c0_417 = arith.constant 0 : index
    %c16_418 = arith.constant 16 : index
    %221 = vector.load %arg15[%c15_416, %c0_417, %c16_418] : memref<20x16x80xbf16, #tpu.memory_space<vmem>>, vector<4x16x64xbf16>
    %c12_419 = arith.constant 12 : index
    %c0_420 = arith.constant 0 : index
    %c128_421 = arith.constant 128 : index
    %222 = vector.load %arg16[%c12_419, %c0_420, %c128_421] : memref<16x16x576xbf16, #tpu.memory_space<vmem>>, vector<4x16x64xbf16>
    tpu.vector_store %arg16[%c12_419, %c0_420, %c128_421], %221 {strides = array<i32>} : memref<16x16x576xbf16, #tpu.memory_space<vmem>>, vector<4x16x64xbf16>,
    %c6_422 = arith.constant 6 : index
    %c0_423 = arith.constant 0 : index
    %c0_424 = arith.constant 0 : index
    %223 = vector.load %arg15[%c6_422, %c0_423, %c0_424] : memref<20x16x80xbf16, #tpu.memory_space<vmem>>, vector<4x16x64xbf16>
    %c12_425 = arith.constant 12 : index
    %c0_426 = arith.constant 0 : index
    %c192_427 = arith.constant 192 : index
    %224 = vector.load %arg16[%c12_425, %c0_426, %c192_427] : memref<16x16x576xbf16, #tpu.memory_space<vmem>>, vector<4x16x64xbf16>
    tpu.vector_store %arg16[%c12_425, %c0_426, %c192_427], %223 {strides = array<i32>} : memref<16x16x576xbf16, #tpu.memory_space<vmem>>, vector<4x16x64xbf16>,
    %c1_428 = arith.constant 1 : index
    %c0_429 = arith.constant 0 : index
    %c16_430 = arith.constant 16 : index
    %225 = vector.load %arg15[%c1_428, %c0_429, %c16_430] : memref<20x16x80xbf16, #tpu.memory_space<vmem>>, vector<4x16x64xbf16>
    %c12_431 = arith.constant 12 : index
    %c0_432 = arith.constant 0 : index
    %c256_433 = arith.constant 256 : index
    %226 = vector.load %arg16[%c12_431, %c0_432, %c256_433] : memref<16x16x576xbf16, #tpu.memory_space<vmem>>, vector<4x16x64xbf16>
    tpu.vector_store %arg16[%c12_431, %c0_432, %c256_433], %225 {strides = array<i32>} : memref<16x16x576xbf16, #tpu.memory_space<vmem>>, vector<4x16x64xbf16>,
    %c6_434 = arith.constant 6 : index
    %c0_435 = arith.constant 0 : index
    %c16_436 = arith.constant 16 : index
    %227 = vector.load %arg15[%c6_434, %c0_435, %c16_436] : memref<20x16x80xbf16, #tpu.memory_space<vmem>>, vector<4x16x64xbf16>
    %c12_437 = arith.constant 12 : index
    %c0_438 = arith.constant 0 : index
    %c320_439 = arith.constant 320 : index
    %228 = vector.load %arg16[%c12_437, %c0_438, %c320_439] : memref<16x16x576xbf16, #tpu.memory_space<vmem>>, vector<4x16x64xbf16>
    tpu.vector_store %arg16[%c12_437, %c0_438, %c320_439], %227 {strides = array<i32>} : memref<16x16x576xbf16, #tpu.memory_space<vmem>>, vector<4x16x64xbf16>,
    %c16_440 = arith.constant 16 : index
    %c0_441 = arith.constant 0 : index
    %c0_442 = arith.constant 0 : index
    %229 = vector.load %arg15[%c16_440, %c0_441, %c0_442] : memref<20x16x80xbf16, #tpu.memory_space<vmem>>, vector<4x16x64xbf16>
    %c12_443 = arith.constant 12 : index
    %c0_444 = arith.constant 0 : index
    %c384_445 = arith.constant 384 : index
    %230 = vector.load %arg16[%c12_443, %c0_444, %c384_445] : memref<16x16x576xbf16, #tpu.memory_space<vmem>>, vector<4x16x64xbf16>
    tpu.vector_store %arg16[%c12_443, %c0_444, %c384_445], %229 {strides = array<i32>} : memref<16x16x576xbf16, #tpu.memory_space<vmem>>, vector<4x16x64xbf16>,
    %c11_446 = arith.constant 11 : index
    %c0_447 = arith.constant 0 : index
    %c16_448 = arith.constant 16 : index
    %231 = vector.load %arg15[%c11_446, %c0_447, %c16_448] : memref<20x16x80xbf16, #tpu.memory_space<vmem>>, vector<4x16x64xbf16>
    %c12_449 = arith.constant 12 : index
    %c0_450 = arith.constant 0 : index
    %c448_451 = arith.constant 448 : index
    %232 = vector.load %arg16[%c12_449, %c0_450, %c448_451] : memref<16x16x576xbf16, #tpu.memory_space<vmem>>, vector<4x16x64xbf16>
    tpu.vector_store %arg16[%c12_449, %c0_450, %c448_451], %231 {strides = array<i32>} : memref<16x16x576xbf16, #tpu.memory_space<vmem>>, vector<4x16x64xbf16>,
    %c16_452 = arith.constant 16 : index
    %c0_453 = arith.constant 0 : index
    %c16_454 = arith.constant 16 : index
    %233 = vector.load %arg15[%c16_452, %c0_453, %c16_454] : memref<20x16x80xbf16, #tpu.memory_space<vmem>>, vector<4x16x64xbf16>
    %c12_455 = arith.constant 12 : index
    %c0_456 = arith.constant 0 : index
    %c512_457 = arith.constant 512 : index
    %234 = vector.load %arg16[%c12_455, %c0_456, %c512_457] : memref<16x16x576xbf16, #tpu.memory_space<vmem>>, vector<4x16x64xbf16>
    tpu.vector_store %arg16[%c12_455, %c0_456, %c512_457], %233 {strides = array<i32>} : memref<16x16x576xbf16, #tpu.memory_space<vmem>>, vector<4x16x64xbf16>,
    %c0_458 = arith.constant 0 : index
    %c0_459 = arith.constant 0 : index
    %c0_460 = arith.constant 0 : index
    %235 = vector.load %arg16[%c0_458, %c0_459, %c0_460] : memref<16x16x576xbf16, #tpu.memory_space<vmem>>, vector<16x16x576xbf16>
    %236 = vector.shape_cast %235 : vector<16x16x576xbf16> to vector<256x576xbf16>
    %c0_461 = arith.constant 0 : index
    %c0_462 = arith.constant 0 : index
    %237 = vector.load %arg4[%c0_461, %c0_462] : memref<576x128xbf16, #tpu.memory_space<vmem>>, vector<576x128xbf16>
    %cst_463 = arith.constant dense<0.000000e+00> : vector<256x128xf32>
    %238 = tpu.matmul %236, %237, %cst_463 {dimension_numbers = #tpu.dot_dimension_numbers<[1], [0], [0], [1], [0, 0, 1, 1], [], []>} : vector<256x576xbf16>, vector<576x128xbf16>, vector<256x128xf32> -> vector<256x128xf32>
    %239 = vector.extract_strided_slice %238 {offsets = [0, 0], sizes = [64, 128], strides = [1, 1]} : vector<256x128xf32> to vector<64x128xf32>
    %240 = vector.extract_strided_slice %238 {offsets = [64, 0], sizes = [64, 128], strides = [1, 1]} : vector<256x128xf32> to vector<64x128xf32>
    %241 = arith.maximumf %239, %240 : vector<64x128xf32>
    %242 = vector.extract_strided_slice %238 {offsets = [128, 0], sizes = [64, 128], strides = [1, 1]} : vector<256x128xf32> to vector<64x128xf32>
    %243 = vector.extract_strided_slice %238 {offsets = [192, 0], sizes = [64, 128], strides = [1, 1]} : vector<256x128xf32> to vector<64x128xf32>
    %244 = arith.maximumf %242, %243 : vector<64x128xf32>
    %245 = arith.maximumf %241, %244 : vector<64x128xf32>
    %c0_464 = arith.constant 0 : index
    %c0_465 = arith.constant 0 : index
    %246 = vector.load %arg5[%c0_464, %c0_465] : memref<1x128xf32, #tpu.memory_space<vmem>>, vector<1x128xf32>
    %247 = vector.broadcast %246 : vector<1x128xf32> to vector<64x128xf32>
    %248 = arith.addf %245, %247 : vector<64x128xf32>
    %cst_466 = arith.constant 0.000000e+00 : f32
    %249 = vector.broadcast %cst_466 : f32 to vector<64x128xf32>
    %250 = arith.maximumf %248, %249 : vector<64x128xf32>
    %251 = arith.truncf %250 : vector<64x128xf32> to vector<64x128xbf16>
    %cst_467 = arith.constant 0.000000e+00 : bf16
    %252 = vector.broadcast %cst_467 : bf16 to vector<12x16x96xbf16>
    %c0_468 = arith.constant 0 : index
    %c0_469 = arith.constant 0 : index
    %c0_470 = arith.constant 0 : index
    %253 = vector.load %arg17[%c0_468, %c0_469, %c0_470] : memref<12x16x96xbf16, #tpu.memory_space<vmem>>, vector<12x16x96xbf16>
    tpu.vector_store %arg17[%c0_468, %c0_469, %c0_470], %252 {strides = array<i32>} : memref<12x16x96xbf16, #tpu.memory_space<vmem>>, vector<12x16x96xbf16>,
    %254 = vector.extract_strided_slice %251 {offsets = [0, 0], sizes = [16, 128], strides = [1, 1]} : vector<64x128xbf16> to vector<16x128xbf16>
    %255 = vector.extract_strided_slice %254 {offsets = [0, 0], sizes = [16, 64], strides = [1, 1]} : vector<16x128xbf16> to vector<16x64xbf16>
    %c9_471 = arith.constant 9 : index
    %c0_472 = arith.constant 0 : index
    %c0_473 = arith.constant 0 : index
    %256 = vector.load %arg17[%c9_471, %c0_472, %c0_473] : memref<12x16x96xbf16, #tpu.memory_space<vmem>>, vector<1x16x64xbf16>
    %257 = vector.shape_cast %256 : vector<1x16x64xbf16> to vector<16x64xbf16>
    %258 = vector.shape_cast %255 : vector<16x64xbf16> to vector<1x16x64xbf16>
    tpu.vector_store %arg17[%c9_471, %c0_472, %c0_473], %258 {strides = array<i32>} : memref<12x16x96xbf16, #tpu.memory_space<vmem>>, vector<1x16x64xbf16>,
    %259 = vector.extract_strided_slice %254 {offsets = [0, 64], sizes = [16, 64], strides = [1, 1]} : vector<16x128xbf16> to vector<16x64xbf16>
    %c6_474 = arith.constant 6 : index
    %c0_475 = arith.constant 0 : index
    %c32_476 = arith.constant 32 : index
    %260 = vector.load %arg17[%c6_474, %c0_475, %c32_476] : memref<12x16x96xbf16, #tpu.memory_space<vmem>>, vector<1x16x64xbf16>
    %261 = vector.shape_cast %260 : vector<1x16x64xbf16> to vector<16x64xbf16>
    %262 = vector.shape_cast %259 : vector<16x64xbf16> to vector<1x16x64xbf16>
    tpu.vector_store %arg17[%c6_474, %c0_475, %c32_476], %262 {strides = array<i32>} : memref<12x16x96xbf16, #tpu.memory_space<vmem>>, vector<1x16x64xbf16>,
    %263 = vector.extract_strided_slice %251 {offsets = [16, 0], sizes = [16, 128], strides = [1, 1]} : vector<64x128xbf16> to vector<16x128xbf16>
    %264 = vector.extract_strided_slice %263 {offsets = [0, 0], sizes = [16, 64], strides = [1, 1]} : vector<16x128xbf16> to vector<16x64xbf16>
    %c4_477 = arith.constant 4 : index
    %c0_478 = arith.constant 0 : index
    %c0_479 = arith.constant 0 : index
    %265 = vector.load %arg17[%c4_477, %c0_478, %c0_479] : memref<12x16x96xbf16, #tpu.memory_space<vmem>>, vector<1x16x64xbf16>
    %266 = vector.shape_cast %265 : vector<1x16x64xbf16> to vector<16x64xbf16>
    %267 = vector.shape_cast %264 : vector<16x64xbf16> to vector<1x16x64xbf16>
    tpu.vector_store %arg17[%c4_477, %c0_478, %c0_479], %267 {strides = array<i32>} : memref<12x16x96xbf16, #tpu.memory_space<vmem>>, vector<1x16x64xbf16>,
    %268 = vector.extract_strided_slice %263 {offsets = [0, 64], sizes = [16, 64], strides = [1, 1]} : vector<16x128xbf16> to vector<16x64xbf16>
    %c1_480 = arith.constant 1 : index
    %c0_481 = arith.constant 0 : index
    %c32_482 = arith.constant 32 : index
    %269 = vector.load %arg17[%c1_480, %c0_481, %c32_482] : memref<12x16x96xbf16, #tpu.memory_space<vmem>>, vector<1x16x64xbf16>
    %270 = vector.shape_cast %269 : vector<1x16x64xbf16> to vector<16x64xbf16>
    %271 = vector.shape_cast %268 : vector<16x64xbf16> to vector<1x16x64xbf16>
    tpu.vector_store %arg17[%c1_480, %c0_481, %c32_482], %271 {strides = array<i32>} : memref<12x16x96xbf16, #tpu.memory_space<vmem>>, vector<1x16x64xbf16>,
    %272 = vector.extract_strided_slice %251 {offsets = [32, 0], sizes = [16, 128], strides = [1, 1]} : vector<64x128xbf16> to vector<16x128xbf16>
    %273 = vector.extract_strided_slice %272 {offsets = [0, 0], sizes = [16, 64], strides = [1, 1]} : vector<16x128xbf16> to vector<16x64xbf16>
    %c10_483 = arith.constant 10 : index
    %c0_484 = arith.constant 0 : index
    %c0_485 = arith.constant 0 : index
    %274 = vector.load %arg17[%c10_483, %c0_484, %c0_485] : memref<12x16x96xbf16, #tpu.memory_space<vmem>>, vector<1x16x64xbf16>
    %275 = vector.shape_cast %274 : vector<1x16x64xbf16> to vector<16x64xbf16>
    %276 = vector.shape_cast %273 : vector<16x64xbf16> to vector<1x16x64xbf16>
    tpu.vector_store %arg17[%c10_483, %c0_484, %c0_485], %276 {strides = array<i32>} : memref<12x16x96xbf16, #tpu.memory_space<vmem>>, vector<1x16x64xbf16>,
    %277 = vector.extract_strided_slice %272 {offsets = [0, 64], sizes = [16, 64], strides = [1, 1]} : vector<16x128xbf16> to vector<16x64xbf16>
    %c7_486 = arith.constant 7 : index
    %c0_487 = arith.constant 0 : index
    %c32_488 = arith.constant 32 : index
    %278 = vector.load %arg17[%c7_486, %c0_487, %c32_488] : memref<12x16x96xbf16, #tpu.memory_space<vmem>>, vector<1x16x64xbf16>
    %279 = vector.shape_cast %278 : vector<1x16x64xbf16> to vector<16x64xbf16>
    %280 = vector.shape_cast %277 : vector<16x64xbf16> to vector<1x16x64xbf16>
    tpu.vector_store %arg17[%c7_486, %c0_487, %c32_488], %280 {strides = array<i32>} : memref<12x16x96xbf16, #tpu.memory_space<vmem>>, vector<1x16x64xbf16>,
    %281 = vector.extract_strided_slice %251 {offsets = [48, 0], sizes = [16, 128], strides = [1, 1]} : vector<64x128xbf16> to vector<16x128xbf16>
    %282 = vector.extract_strided_slice %281 {offsets = [0, 0], sizes = [16, 64], strides = [1, 1]} : vector<16x128xbf16> to vector<16x64xbf16>
    %c5_489 = arith.constant 5 : index
    %c0_490 = arith.constant 0 : index
    %c0_491 = arith.constant 0 : index
    %283 = vector.load %arg17[%c5_489, %c0_490, %c0_491] : memref<12x16x96xbf16, #tpu.memory_space<vmem>>, vector<1x16x64xbf16>
    %284 = vector.shape_cast %283 : vector<1x16x64xbf16> to vector<16x64xbf16>
    %285 = vector.shape_cast %282 : vector<16x64xbf16> to vector<1x16x64xbf16>
    tpu.vector_store %arg17[%c5_489, %c0_490, %c0_491], %285 {strides = array<i32>} : memref<12x16x96xbf16, #tpu.memory_space<vmem>>, vector<1x16x64xbf16>,
    %286 = vector.extract_strided_slice %281 {offsets = [0, 64], sizes = [16, 64], strides = [1, 1]} : vector<16x128xbf16> to vector<16x64xbf16>
    %c2_492 = arith.constant 2 : index
    %c0_493 = arith.constant 0 : index
    %c32_494 = arith.constant 32 : index
    %287 = vector.load %arg17[%c2_492, %c0_493, %c32_494] : memref<12x16x96xbf16, #tpu.memory_space<vmem>>, vector<1x16x64xbf16>
    %288 = vector.shape_cast %287 : vector<1x16x64xbf16> to vector<16x64xbf16>
    %289 = vector.shape_cast %286 : vector<16x64xbf16> to vector<1x16x64xbf16>
    tpu.vector_store %arg17[%c2_492, %c0_493, %c32_494], %289 {strides = array<i32>} : memref<12x16x96xbf16, #tpu.memory_space<vmem>>, vector<1x16x64xbf16>,
    %c0_495 = arith.constant 0 : index
    %c0_496 = arith.constant 0 : index
    %c0_497 = arith.constant 0 : index
    %290 = vector.load %arg17[%c0_495, %c0_496, %c0_497] : memref<12x16x96xbf16, #tpu.memory_space<vmem>>, vector<2x16x64xbf16>
    %c0_498 = arith.constant 0 : index
    %c0_499 = arith.constant 0 : index
    %c0_500 = arith.constant 0 : index
    %291 = vector.load %arg18[%c0_498, %c0_499, %c0_500] : memref<8x16x576xbf16, #tpu.memory_space<vmem>>, vector<2x16x64xbf16>
    tpu.vector_store %arg18[%c0_498, %c0_499, %c0_500], %290 {strides = array<i32>} : memref<8x16x576xbf16, #tpu.memory_space<vmem>>, vector<2x16x64xbf16>,
    %c3_501 = arith.constant 3 : index
    %c0_502 = arith.constant 0 : index
    %c0_503 = arith.constant 0 : index
    %292 = vector.load %arg17[%c3_501, %c0_502, %c0_503] : memref<12x16x96xbf16, #tpu.memory_space<vmem>>, vector<2x16x64xbf16>
    %c0_504 = arith.constant 0 : index
    %c0_505 = arith.constant 0 : index
    %c64_506 = arith.constant 64 : index
    %293 = vector.load %arg18[%c0_504, %c0_505, %c64_506] : memref<8x16x576xbf16, #tpu.memory_space<vmem>>, vector<2x16x64xbf16>
    tpu.vector_store %arg18[%c0_504, %c0_505, %c64_506], %292 {strides = array<i32>} : memref<8x16x576xbf16, #tpu.memory_space<vmem>>, vector<2x16x64xbf16>,
    %c0_507 = arith.constant 0 : index
    %c0_508 = arith.constant 0 : index
    %c32_509 = arith.constant 32 : index
    %294 = vector.load %arg17[%c0_507, %c0_508, %c32_509] : memref<12x16x96xbf16, #tpu.memory_space<vmem>>, vector<2x16x64xbf16>
    %c0_510 = arith.constant 0 : index
    %c0_511 = arith.constant 0 : index
    %c128_512 = arith.constant 128 : index
    %295 = vector.load %arg18[%c0_510, %c0_511, %c128_512] : memref<8x16x576xbf16, #tpu.memory_space<vmem>>, vector<2x16x64xbf16>
    tpu.vector_store %arg18[%c0_510, %c0_511, %c128_512], %294 {strides = array<i32>} : memref<8x16x576xbf16, #tpu.memory_space<vmem>>, vector<2x16x64xbf16>,
    %c6_513 = arith.constant 6 : index
    %c0_514 = arith.constant 0 : index
    %c0_515 = arith.constant 0 : index
    %296 = vector.load %arg17[%c6_513, %c0_514, %c0_515] : memref<12x16x96xbf16, #tpu.memory_space<vmem>>, vector<2x16x64xbf16>
    %c0_516 = arith.constant 0 : index
    %c0_517 = arith.constant 0 : index
    %c192_518 = arith.constant 192 : index
    %297 = vector.load %arg18[%c0_516, %c0_517, %c192_518] : memref<8x16x576xbf16, #tpu.memory_space<vmem>>, vector<2x16x64xbf16>
    tpu.vector_store %arg18[%c0_516, %c0_517, %c192_518], %296 {strides = array<i32>} : memref<8x16x576xbf16, #tpu.memory_space<vmem>>, vector<2x16x64xbf16>,
    %c9_519 = arith.constant 9 : index
    %c0_520 = arith.constant 0 : index
    %c0_521 = arith.constant 0 : index
    %298 = vector.load %arg17[%c9_519, %c0_520, %c0_521] : memref<12x16x96xbf16, #tpu.memory_space<vmem>>, vector<2x16x64xbf16>
    %c0_522 = arith.constant 0 : index
    %c0_523 = arith.constant 0 : index
    %c256_524 = arith.constant 256 : index
    %299 = vector.load %arg18[%c0_522, %c0_523, %c256_524] : memref<8x16x576xbf16, #tpu.memory_space<vmem>>, vector<2x16x64xbf16>
    tpu.vector_store %arg18[%c0_522, %c0_523, %c256_524], %298 {strides = array<i32>} : memref<8x16x576xbf16, #tpu.memory_space<vmem>>, vector<2x16x64xbf16>,
    %c6_525 = arith.constant 6 : index
    %c0_526 = arith.constant 0 : index
    %c32_527 = arith.constant 32 : index
    %300 = vector.load %arg17[%c6_525, %c0_526, %c32_527] : memref<12x16x96xbf16, #tpu.memory_space<vmem>>, vector<2x16x64xbf16>
    %c0_528 = arith.constant 0 : index
    %c0_529 = arith.constant 0 : index
    %c320_530 = arith.constant 320 : index
    %301 = vector.load %arg18[%c0_528, %c0_529, %c320_530] : memref<8x16x576xbf16, #tpu.memory_space<vmem>>, vector<2x16x64xbf16>
    tpu.vector_store %arg18[%c0_528, %c0_529, %c320_530], %300 {strides = array<i32>} : memref<8x16x576xbf16, #tpu.memory_space<vmem>>, vector<2x16x64xbf16>,
    %c1_531 = arith.constant 1 : index
    %c0_532 = arith.constant 0 : index
    %c0_533 = arith.constant 0 : index
    %302 = vector.load %arg17[%c1_531, %c0_532, %c0_533] : memref<12x16x96xbf16, #tpu.memory_space<vmem>>, vector<2x16x64xbf16>
    %c0_534 = arith.constant 0 : index
    %c0_535 = arith.constant 0 : index
    %c384_536 = arith.constant 384 : index
    %303 = vector.load %arg18[%c0_534, %c0_535, %c384_536] : memref<8x16x576xbf16, #tpu.memory_space<vmem>>, vector<2x16x64xbf16>
    tpu.vector_store %arg18[%c0_534, %c0_535, %c384_536], %302 {strides = array<i32>} : memref<8x16x576xbf16, #tpu.memory_space<vmem>>, vector<2x16x64xbf16>,
    %c4_537 = arith.constant 4 : index
    %c0_538 = arith.constant 0 : index
    %c0_539 = arith.constant 0 : index
    %304 = vector.load %arg17[%c4_537, %c0_538, %c0_539] : memref<12x16x96xbf16, #tpu.memory_space<vmem>>, vector<2x16x64xbf16>
    %c0_540 = arith.constant 0 : index
    %c0_541 = arith.constant 0 : index
    %c448_542 = arith.constant 448 : index
    %305 = vector.load %arg18[%c0_540, %c0_541, %c448_542] : memref<8x16x576xbf16, #tpu.memory_space<vmem>>, vector<2x16x64xbf16>
    tpu.vector_store %arg18[%c0_540, %c0_541, %c448_542], %304 {strides = array<i32>} : memref<8x16x576xbf16, #tpu.memory_space<vmem>>, vector<2x16x64xbf16>,
    %c1_543 = arith.constant 1 : index
    %c0_544 = arith.constant 0 : index
    %c32_545 = arith.constant 32 : index
    %306 = vector.load %arg17[%c1_543, %c0_544, %c32_545] : memref<12x16x96xbf16, #tpu.memory_space<vmem>>, vector<2x16x64xbf16>
    %c0_546 = arith.constant 0 : index
    %c0_547 = arith.constant 0 : index
    %c512_548 = arith.constant 512 : index
    %307 = vector.load %arg18[%c0_546, %c0_547, %c512_548] : memref<8x16x576xbf16, #tpu.memory_space<vmem>>, vector<2x16x64xbf16>
    tpu.vector_store %arg18[%c0_546, %c0_547, %c512_548], %306 {strides = array<i32>} : memref<8x16x576xbf16, #tpu.memory_space<vmem>>, vector<2x16x64xbf16>,
    %c3_549 = arith.constant 3 : index
    %c0_550 = arith.constant 0 : index
    %c0_551 = arith.constant 0 : index
    %308 = vector.load %arg17[%c3_549, %c0_550, %c0_551] : memref<12x16x96xbf16, #tpu.memory_space<vmem>>, vector<2x16x64xbf16>
    %c2_552 = arith.constant 2 : index
    %c0_553 = arith.constant 0 : index
    %c0_554 = arith.constant 0 : index
    %309 = vector.load %arg18[%c2_552, %c0_553, %c0_554] : memref<8x16x576xbf16, #tpu.memory_space<vmem>>, vector<2x16x64xbf16>
    tpu.vector_store %arg18[%c2_552, %c0_553, %c0_554], %308 {strides = array<i32>} : memref<8x16x576xbf16, #tpu.memory_space<vmem>>, vector<2x16x64xbf16>,
    %c0_555 = arith.constant 0 : index
    %c0_556 = arith.constant 0 : index
    %c32_557 = arith.constant 32 : index
    %310 = vector.load %arg17[%c0_555, %c0_556, %c32_557] : memref<12x16x96xbf16, #tpu.memory_space<vmem>>, vector<2x16x64xbf16>
    %c2_558 = arith.constant 2 : index
    %c0_559 = arith.constant 0 : index
    %c64_560 = arith.constant 64 : index
    %311 = vector.load %arg18[%c2_558, %c0_559, %c64_560] : memref<8x16x576xbf16, #tpu.memory_space<vmem>>, vector<2x16x64xbf16>
    tpu.vector_store %arg18[%c2_558, %c0_559, %c64_560], %310 {strides = array<i32>} : memref<8x16x576xbf16, #tpu.memory_space<vmem>>, vector<2x16x64xbf16>,
    %c3_561 = arith.constant 3 : index
    %c0_562 = arith.constant 0 : index
    %c32_563 = arith.constant 32 : index
    %312 = vector.load %arg17[%c3_561, %c0_562, %c32_563] : memref<12x16x96xbf16, #tpu.memory_space<vmem>>, vector<2x16x64xbf16>
    %c2_564 = arith.constant 2 : index
    %c0_565 = arith.constant 0 : index
    %c128_566 = arith.constant 128 : index
    %313 = vector.load %arg18[%c2_564, %c0_565, %c128_566] : memref<8x16x576xbf16, #tpu.memory_space<vmem>>, vector<2x16x64xbf16>
    tpu.vector_store %arg18[%c2_564, %c0_565, %c128_566], %312 {strides = array<i32>} : memref<8x16x576xbf16, #tpu.memory_space<vmem>>, vector<2x16x64xbf16>,
    %c9_567 = arith.constant 9 : index
    %c0_568 = arith.constant 0 : index
    %c0_569 = arith.constant 0 : index
    %314 = vector.load %arg17[%c9_567, %c0_568, %c0_569] : memref<12x16x96xbf16, #tpu.memory_space<vmem>>, vector<2x16x64xbf16>
    %c2_570 = arith.constant 2 : index
    %c0_571 = arith.constant 0 : index
    %c192_572 = arith.constant 192 : index
    %315 = vector.load %arg18[%c2_570, %c0_571, %c192_572] : memref<8x16x576xbf16, #tpu.memory_space<vmem>>, vector<2x16x64xbf16>
    tpu.vector_store %arg18[%c2_570, %c0_571, %c192_572], %314 {strides = array<i32>} : memref<8x16x576xbf16, #tpu.memory_space<vmem>>, vector<2x16x64xbf16>,
    %c6_573 = arith.constant 6 : index
    %c0_574 = arith.constant 0 : index
    %c32_575 = arith.constant 32 : index
    %316 = vector.load %arg17[%c6_573, %c0_574, %c32_575] : memref<12x16x96xbf16, #tpu.memory_space<vmem>>, vector<2x16x64xbf16>
    %c2_576 = arith.constant 2 : index
    %c0_577 = arith.constant 0 : index
    %c256_578 = arith.constant 256 : index
    %317 = vector.load %arg18[%c2_576, %c0_577, %c256_578] : memref<8x16x576xbf16, #tpu.memory_space<vmem>>, vector<2x16x64xbf16>
    tpu.vector_store %arg18[%c2_576, %c0_577, %c256_578], %316 {strides = array<i32>} : memref<8x16x576xbf16, #tpu.memory_space<vmem>>, vector<2x16x64xbf16>,
    %c9_579 = arith.constant 9 : index
    %c0_580 = arith.constant 0 : index
    %c32_581 = arith.constant 32 : index
    %318 = vector.load %arg17[%c9_579, %c0_580, %c32_581] : memref<12x16x96xbf16, #tpu.memory_space<vmem>>, vector<2x16x64xbf16>
    %c2_582 = arith.constant 2 : index
    %c0_583 = arith.constant 0 : index
    %c320_584 = arith.constant 320 : index
    %319 = vector.load %arg18[%c2_582, %c0_583, %c320_584] : memref<8x16x576xbf16, #tpu.memory_space<vmem>>, vector<2x16x64xbf16>
    tpu.vector_store %arg18[%c2_582, %c0_583, %c320_584], %318 {strides = array<i32>} : memref<8x16x576xbf16, #tpu.memory_space<vmem>>, vector<2x16x64xbf16>,
    %c4_585 = arith.constant 4 : index
    %c0_586 = arith.constant 0 : index
    %c0_587 = arith.constant 0 : index
    %320 = vector.load %arg17[%c4_585, %c0_586, %c0_587] : memref<12x16x96xbf16, #tpu.memory_space<vmem>>, vector<2x16x64xbf16>
    %c2_588 = arith.constant 2 : index
    %c0_589 = arith.constant 0 : index
    %c384_590 = arith.constant 384 : index
    %321 = vector.load %arg18[%c2_588, %c0_589, %c384_590] : memref<8x16x576xbf16, #tpu.memory_space<vmem>>, vector<2x16x64xbf16>
    tpu.vector_store %arg18[%c2_588, %c0_589, %c384_590], %320 {strides = array<i32>} : memref<8x16x576xbf16, #tpu.memory_space<vmem>>, vector<2x16x64xbf16>,
    %c1_591 = arith.constant 1 : index
    %c0_592 = arith.constant 0 : index
    %c32_593 = arith.constant 32 : index
    %322 = vector.load %arg17[%c1_591, %c0_592, %c32_593] : memref<12x16x96xbf16, #tpu.memory_space<vmem>>, vector<2x16x64xbf16>
    %c2_594 = arith.constant 2 : index
    %c0_595 = arith.constant 0 : index
    %c448_596 = arith.constant 448 : index
    %323 = vector.load %arg18[%c2_594, %c0_595, %c448_596] : memref<8x16x576xbf16, #tpu.memory_space<vmem>>, vector<2x16x64xbf16>
    tpu.vector_store %arg18[%c2_594, %c0_595, %c448_596], %322 {strides = array<i32>} : memref<8x16x576xbf16, #tpu.memory_space<vmem>>, vector<2x16x64xbf16>,
    %c4_597 = arith.constant 4 : index
    %c0_598 = arith.constant 0 : index
    %c32_599 = arith.constant 32 : index
    %324 = vector.load %arg17[%c4_597, %c0_598, %c32_599] : memref<12x16x96xbf16, #tpu.memory_space<vmem>>, vector<2x16x64xbf16>
    %c2_600 = arith.constant 2 : index
    %c0_601 = arith.constant 0 : index
    %c512_602 = arith.constant 512 : index
    %325 = vector.load %arg18[%c2_600, %c0_601, %c512_602] : memref<8x16x576xbf16, #tpu.memory_space<vmem>>, vector<2x16x64xbf16>
    tpu.vector_store %arg18[%c2_600, %c0_601, %c512_602], %324 {strides = array<i32>} : memref<8x16x576xbf16, #tpu.memory_space<vmem>>, vector<2x16x64xbf16>,
    %c6_603 = arith.constant 6 : index
    %c0_604 = arith.constant 0 : index
    %c0_605 = arith.constant 0 : index
    %326 = vector.load %arg17[%c6_603, %c0_604, %c0_605] : memref<12x16x96xbf16, #tpu.memory_space<vmem>>, vector<2x16x64xbf16>
    %c4_606 = arith.constant 4 : index
    %c0_607 = arith.constant 0 : index
    %c0_608 = arith.constant 0 : index
    %327 = vector.load %arg18[%c4_606, %c0_607, %c0_608] : memref<8x16x576xbf16, #tpu.memory_space<vmem>>, vector<2x16x64xbf16>
    tpu.vector_store %arg18[%c4_606, %c0_607, %c0_608], %326 {strides = array<i32>} : memref<8x16x576xbf16, #tpu.memory_space<vmem>>, vector<2x16x64xbf16>,
    %c9_609 = arith.constant 9 : index
    %c0_610 = arith.constant 0 : index
    %c0_611 = arith.constant 0 : index
    %328 = vector.load %arg17[%c9_609, %c0_610, %c0_611] : memref<12x16x96xbf16, #tpu.memory_space<vmem>>, vector<2x16x64xbf16>
    %c4_612 = arith.constant 4 : index
    %c0_613 = arith.constant 0 : index
    %c64_614 = arith.constant 64 : index
    %329 = vector.load %arg18[%c4_612, %c0_613, %c64_614] : memref<8x16x576xbf16, #tpu.memory_space<vmem>>, vector<2x16x64xbf16>
    tpu.vector_store %arg18[%c4_612, %c0_613, %c64_614], %328 {strides = array<i32>} : memref<8x16x576xbf16, #tpu.memory_space<vmem>>, vector<2x16x64xbf16>,
    %c6_615 = arith.constant 6 : index
    %c0_616 = arith.constant 0 : index
    %c32_617 = arith.constant 32 : index
    %330 = vector.load %arg17[%c6_615, %c0_616, %c32_617] : memref<12x16x96xbf16, #tpu.memory_space<vmem>>, vector<2x16x64xbf16>
    %c4_618 = arith.constant 4 : index
    %c0_619 = arith.constant 0 : index
    %c128_620 = arith.constant 128 : index
    %331 = vector.load %arg18[%c4_618, %c0_619, %c128_620] : memref<8x16x576xbf16, #tpu.memory_space<vmem>>, vector<2x16x64xbf16>
    tpu.vector_store %arg18[%c4_618, %c0_619, %c128_620], %330 {strides = array<i32>} : memref<8x16x576xbf16, #tpu.memory_space<vmem>>, vector<2x16x64xbf16>,
    %c1_621 = arith.constant 1 : index
    %c0_622 = arith.constant 0 : index
    %c0_623 = arith.constant 0 : index
    %332 = vector.load %arg17[%c1_621, %c0_622, %c0_623] : memref<12x16x96xbf16, #tpu.memory_space<vmem>>, vector<2x16x64xbf16>
    %c4_624 = arith.constant 4 : index
    %c0_625 = arith.constant 0 : index
    %c192_626 = arith.constant 192 : index
    %333 = vector.load %arg18[%c4_624, %c0_625, %c192_626] : memref<8x16x576xbf16, #tpu.memory_space<vmem>>, vector<2x16x64xbf16>
    tpu.vector_store %arg18[%c4_624, %c0_625, %c192_626], %332 {strides = array<i32>} : memref<8x16x576xbf16, #tpu.memory_space<vmem>>, vector<2x16x64xbf16>,
    %c4_627 = arith.constant 4 : index
    %c0_628 = arith.constant 0 : index
    %c0_629 = arith.constant 0 : index
    %334 = vector.load %arg17[%c4_627, %c0_628, %c0_629] : memref<12x16x96xbf16, #tpu.memory_space<vmem>>, vector<2x16x64xbf16>
    %c4_630 = arith.constant 4 : index
    %c0_631 = arith.constant 0 : index
    %c256_632 = arith.constant 256 : index
    %335 = vector.load %arg18[%c4_630, %c0_631, %c256_632] : memref<8x16x576xbf16, #tpu.memory_space<vmem>>, vector<2x16x64xbf16>
    tpu.vector_store %arg18[%c4_630, %c0_631, %c256_632], %334 {strides = array<i32>} : memref<8x16x576xbf16, #tpu.memory_space<vmem>>, vector<2x16x64xbf16>,
    %c1_633 = arith.constant 1 : index
    %c0_634 = arith.constant 0 : index
    %c32_635 = arith.constant 32 : index
    %336 = vector.load %arg17[%c1_633, %c0_634, %c32_635] : memref<12x16x96xbf16, #tpu.memory_space<vmem>>, vector<2x16x64xbf16>
    %c4_636 = arith.constant 4 : index
    %c0_637 = arith.constant 0 : index
    %c320_638 = arith.constant 320 : index
    %337 = vector.load %arg18[%c4_636, %c0_637, %c320_638] : memref<8x16x576xbf16, #tpu.memory_space<vmem>>, vector<2x16x64xbf16>
    tpu.vector_store %arg18[%c4_636, %c0_637, %c320_638], %336 {strides = array<i32>} : memref<8x16x576xbf16, #tpu.memory_space<vmem>>, vector<2x16x64xbf16>,
    %c7_639 = arith.constant 7 : index
    %c0_640 = arith.constant 0 : index
    %c0_641 = arith.constant 0 : index
    %338 = vector.load %arg17[%c7_639, %c0_640, %c0_641] : memref<12x16x96xbf16, #tpu.memory_space<vmem>>, vector<2x16x64xbf16>
    %c4_642 = arith.constant 4 : index
    %c0_643 = arith.constant 0 : index
    %c384_644 = arith.constant 384 : index
    %339 = vector.load %arg18[%c4_642, %c0_643, %c384_644] : memref<8x16x576xbf16, #tpu.memory_space<vmem>>, vector<2x16x64xbf16>
    tpu.vector_store %arg18[%c4_642, %c0_643, %c384_644], %338 {strides = array<i32>} : memref<8x16x576xbf16, #tpu.memory_space<vmem>>, vector<2x16x64xbf16>,
    %c10_645 = arith.constant 10 : index
    %c0_646 = arith.constant 0 : index
    %c0_647 = arith.constant 0 : index
    %340 = vector.load %arg17[%c10_645, %c0_646, %c0_647] : memref<12x16x96xbf16, #tpu.memory_space<vmem>>, vector<2x16x64xbf16>
    %c4_648 = arith.constant 4 : index
    %c0_649 = arith.constant 0 : index
    %c448_650 = arith.constant 448 : index
    %341 = vector.load %arg18[%c4_648, %c0_649, %c448_650] : memref<8x16x576xbf16, #tpu.memory_space<vmem>>, vector<2x16x64xbf16>
    tpu.vector_store %arg18[%c4_648, %c0_649, %c448_650], %340 {strides = array<i32>} : memref<8x16x576xbf16, #tpu.memory_space<vmem>>, vector<2x16x64xbf16>,
    %c7_651 = arith.constant 7 : index
    %c0_652 = arith.constant 0 : index
    %c32_653 = arith.constant 32 : index
    %342 = vector.load %arg17[%c7_651, %c0_652, %c32_653] : memref<12x16x96xbf16, #tpu.memory_space<vmem>>, vector<2x16x64xbf16>
    %c4_654 = arith.constant 4 : index
    %c0_655 = arith.constant 0 : index
    %c512_656 = arith.constant 512 : index
    %343 = vector.load %arg18[%c4_654, %c0_655, %c512_656] : memref<8x16x576xbf16, #tpu.memory_space<vmem>>, vector<2x16x64xbf16>
    tpu.vector_store %arg18[%c4_654, %c0_655, %c512_656], %342 {strides = array<i32>} : memref<8x16x576xbf16, #tpu.memory_space<vmem>>, vector<2x16x64xbf16>,
    %c9_657 = arith.constant 9 : index
    %c0_658 = arith.constant 0 : index
    %c0_659 = arith.constant 0 : index
    %344 = vector.load %arg17[%c9_657, %c0_658, %c0_659] : memref<12x16x96xbf16, #tpu.memory_space<vmem>>, vector<2x16x64xbf16>
    %c6_660 = arith.constant 6 : index
    %c0_661 = arith.constant 0 : index
    %c0_662 = arith.constant 0 : index
    %345 = vector.load %arg18[%c6_660, %c0_661, %c0_662] : memref<8x16x576xbf16, #tpu.memory_space<vmem>>, vector<2x16x64xbf16>
    tpu.vector_store %arg18[%c6_660, %c0_661, %c0_662], %344 {strides = array<i32>} : memref<8x16x576xbf16, #tpu.memory_space<vmem>>, vector<2x16x64xbf16>,
    %c6_663 = arith.constant 6 : index
    %c0_664 = arith.constant 0 : index
    %c32_665 = arith.constant 32 : index
    %346 = vector.load %arg17[%c6_663, %c0_664, %c32_665] : memref<12x16x96xbf16, #tpu.memory_space<vmem>>, vector<2x16x64xbf16>
    %c6_666 = arith.constant 6 : index
    %c0_667 = arith.constant 0 : index
    %c64_668 = arith.constant 64 : index
    %347 = vector.load %arg18[%c6_666, %c0_667, %c64_668] : memref<8x16x576xbf16, #tpu.memory_space<vmem>>, vector<2x16x64xbf16>
    tpu.vector_store %arg18[%c6_666, %c0_667, %c64_668], %346 {strides = array<i32>} : memref<8x16x576xbf16, #tpu.memory_space<vmem>>, vector<2x16x64xbf16>,
    %c9_669 = arith.constant 9 : index
    %c0_670 = arith.constant 0 : index
    %c32_671 = arith.constant 32 : index
    %348 = vector.load %arg17[%c9_669, %c0_670, %c32_671] : memref<12x16x96xbf16, #tpu.memory_space<vmem>>, vector<2x16x64xbf16>
    %c6_672 = arith.constant 6 : index
    %c0_673 = arith.constant 0 : index
    %c128_674 = arith.constant 128 : index
    %349 = vector.load %arg18[%c6_672, %c0_673, %c128_674] : memref<8x16x576xbf16, #tpu.memory_space<vmem>>, vector<2x16x64xbf16>
    tpu.vector_store %arg18[%c6_672, %c0_673, %c128_674], %348 {strides = array<i32>} : memref<8x16x576xbf16, #tpu.memory_space<vmem>>, vector<2x16x64xbf16>,
    %c4_675 = arith.constant 4 : index
    %c0_676 = arith.constant 0 : index
    %c0_677 = arith.constant 0 : index
    %350 = vector.load %arg17[%c4_675, %c0_676, %c0_677] : memref<12x16x96xbf16, #tpu.memory_space<vmem>>, vector<2x16x64xbf16>
    %c6_678 = arith.constant 6 : index
    %c0_679 = arith.constant 0 : index
    %c192_680 = arith.constant 192 : index
    %351 = vector.load %arg18[%c6_678, %c0_679, %c192_680] : memref<8x16x576xbf16, #tpu.memory_space<vmem>>, vector<2x16x64xbf16>
    tpu.vector_store %arg18[%c6_678, %c0_679, %c192_680], %350 {strides = array<i32>} : memref<8x16x576xbf16, #tpu.memory_space<vmem>>, vector<2x16x64xbf16>,
    %c1_681 = arith.constant 1 : index
    %c0_682 = arith.constant 0 : index
    %c32_683 = arith.constant 32 : index
    %352 = vector.load %arg17[%c1_681, %c0_682, %c32_683] : memref<12x16x96xbf16, #tpu.memory_space<vmem>>, vector<2x16x64xbf16>
    %c6_684 = arith.constant 6 : index
    %c0_685 = arith.constant 0 : index
    %c256_686 = arith.constant 256 : index
    %353 = vector.load %arg18[%c6_684, %c0_685, %c256_686] : memref<8x16x576xbf16, #tpu.memory_space<vmem>>, vector<2x16x64xbf16>
    tpu.vector_store %arg18[%c6_684, %c0_685, %c256_686], %352 {strides = array<i32>} : memref<8x16x576xbf16, #tpu.memory_space<vmem>>, vector<2x16x64xbf16>,
    %c4_687 = arith.constant 4 : index
    %c0_688 = arith.constant 0 : index
    %c32_689 = arith.constant 32 : index
    %354 = vector.load %arg17[%c4_687, %c0_688, %c32_689] : memref<12x16x96xbf16, #tpu.memory_space<vmem>>, vector<2x16x64xbf16>
    %c6_690 = arith.constant 6 : index
    %c0_691 = arith.constant 0 : index
    %c320_692 = arith.constant 320 : index
    %355 = vector.load %arg18[%c6_690, %c0_691, %c320_692] : memref<8x16x576xbf16, #tpu.memory_space<vmem>>, vector<2x16x64xbf16>
    tpu.vector_store %arg18[%c6_690, %c0_691, %c320_692], %354 {strides = array<i32>} : memref<8x16x576xbf16, #tpu.memory_space<vmem>>, vector<2x16x64xbf16>,
    %c10_693 = arith.constant 10 : index
    %c0_694 = arith.constant 0 : index
    %c0_695 = arith.constant 0 : index
    %356 = vector.load %arg17[%c10_693, %c0_694, %c0_695] : memref<12x16x96xbf16, #tpu.memory_space<vmem>>, vector<2x16x64xbf16>
    %c6_696 = arith.constant 6 : index
    %c0_697 = arith.constant 0 : index
    %c384_698 = arith.constant 384 : index
    %357 = vector.load %arg18[%c6_696, %c0_697, %c384_698] : memref<8x16x576xbf16, #tpu.memory_space<vmem>>, vector<2x16x64xbf16>
    tpu.vector_store %arg18[%c6_696, %c0_697, %c384_698], %356 {strides = array<i32>} : memref<8x16x576xbf16, #tpu.memory_space<vmem>>, vector<2x16x64xbf16>,
    %c7_699 = arith.constant 7 : index
    %c0_700 = arith.constant 0 : index
    %c32_701 = arith.constant 32 : index
    %358 = vector.load %arg17[%c7_699, %c0_700, %c32_701] : memref<12x16x96xbf16, #tpu.memory_space<vmem>>, vector<2x16x64xbf16>
    %c6_702 = arith.constant 6 : index
    %c0_703 = arith.constant 0 : index
    %c448_704 = arith.constant 448 : index
    %359 = vector.load %arg18[%c6_702, %c0_703, %c448_704] : memref<8x16x576xbf16, #tpu.memory_space<vmem>>, vector<2x16x64xbf16>
    tpu.vector_store %arg18[%c6_702, %c0_703, %c448_704], %358 {strides = array<i32>} : memref<8x16x576xbf16, #tpu.memory_space<vmem>>, vector<2x16x64xbf16>,
    %c10_705 = arith.constant 10 : index
    %c0_706 = arith.constant 0 : index
    %c32_707 = arith.constant 32 : index
    %360 = vector.load %arg17[%c10_705, %c0_706, %c32_707] : memref<12x16x96xbf16, #tpu.memory_space<vmem>>, vector<2x16x64xbf16>
    %c6_708 = arith.constant 6 : index
    %c0_709 = arith.constant 0 : index
    %c512_710 = arith.constant 512 : index
    %361 = vector.load %arg18[%c6_708, %c0_709, %c512_710] : memref<8x16x576xbf16, #tpu.memory_space<vmem>>, vector<2x16x64xbf16>
    tpu.vector_store %arg18[%c6_708, %c0_709, %c512_710], %360 {strides = array<i32>} : memref<8x16x576xbf16, #tpu.memory_space<vmem>>, vector<2x16x64xbf16>,
    %c0_711 = arith.constant 0 : index
    %c0_712 = arith.constant 0 : index
    %c0_713 = arith.constant 0 : index
    %362 = vector.load %arg18[%c0_711, %c0_712, %c0_713] : memref<8x16x576xbf16, #tpu.memory_space<vmem>>, vector<8x16x576xbf16>
    %363 = vector.shape_cast %362 : vector<8x16x576xbf16> to vector<128x576xbf16>
    %c0_714 = arith.constant 0 : index
    %c0_715 = arith.constant 0 : index
    %364 = vector.load %arg6[%c0_714, %c0_715] : memref<576x128xbf16, #tpu.memory_space<vmem>>, vector<576x128xbf16>
    %cst_716 = arith.constant dense<0.000000e+00> : vector<128x128xf32>
    %365 = tpu.matmul %363, %364, %cst_716 {dimension_numbers = #tpu.dot_dimension_numbers<[1], [0], [0], [1], [0, 0, 1, 1], [], []>} : vector<128x576xbf16>, vector<576x128xbf16>, vector<128x128xf32> -> vector<128x128xf32>
    %366 = vector.extract_strided_slice %365 {offsets = [0, 0], sizes = [32, 128], strides = [1, 1]} : vector<128x128xf32> to vector<32x128xf32>
    %367 = vector.extract_strided_slice %365 {offsets = [32, 0], sizes = [32, 128], strides = [1, 1]} : vector<128x128xf32> to vector<32x128xf32>
    %368 = arith.maximumf %366, %367 : vector<32x128xf32>
    %369 = vector.extract_strided_slice %365 {offsets = [64, 0], sizes = [32, 128], strides = [1, 1]} : vector<128x128xf32> to vector<32x128xf32>
    %370 = vector.extract_strided_slice %365 {offsets = [96, 0], sizes = [32, 128], strides = [1, 1]} : vector<128x128xf32> to vector<32x128xf32>
    %371 = arith.maximumf %369, %370 : vector<32x128xf32>
    %372 = arith.maximumf %368, %371 : vector<32x128xf32>
    %c0_717 = arith.constant 0 : index
    %c0_718 = arith.constant 0 : index
    %373 = vector.load %arg7[%c0_717, %c0_718] : memref<1x128xf32, #tpu.memory_space<vmem>>, vector<1x128xf32>
    %374 = vector.broadcast %373 : vector<1x128xf32> to vector<32x128xf32>
    %375 = arith.addf %372, %374 : vector<32x128xf32>
    %cst_719 = arith.constant 0.000000e+00 : f32
    %376 = vector.broadcast %cst_719 : f32 to vector<32x128xf32>
    %377 = arith.maximumf %375, %376 : vector<32x128xf32>
    %378 = arith.truncf %377 : vector<32x128xf32> to vector<32x128xbf16>
    %379 = vector.extract_strided_slice %378 {offsets = [0, 0], sizes = [16, 128], strides = [1, 1]} : vector<32x128xbf16> to vector<16x128xbf16>
    %380 = vector.extract_strided_slice %378 {offsets = [16, 0], sizes = [16, 128], strides = [1, 1]} : vector<32x128xbf16> to vector<16x128xbf16>
    %381 = tpu.concatenate %379, %380 in 1 : vector<16x128xbf16>, vector<16x128xbf16> -> vector<16x256xbf16>
    %c0_720 = arith.constant 0 : index
    %c0_721 = arith.constant 0 : index
    %382 = vector.load %arg8[%c0_720, %c0_721] : memref<256x256xbf16, #tpu.memory_space<vmem>>, vector<256x256xbf16>
    %cst_722 = arith.constant dense<0.000000e+00> : vector<16x256xf32>
    %383 = tpu.matmul %381, %382, %cst_722 {dimension_numbers = #tpu.dot_dimension_numbers<[1], [0], [0], [1], [0, 0, 1, 1], [], []>} : vector<16x256xbf16>, vector<256x256xbf16>, vector<16x256xf32> -> vector<16x256xf32>
    %c0_723 = arith.constant 0 : index
    %c0_724 = arith.constant 0 : index
    %384 = vector.load %arg9[%c0_723, %c0_724] : memref<1x256xf32, #tpu.memory_space<vmem>>, vector<1x256xf32>
    %385 = vector.broadcast %384 : vector<1x256xf32> to vector<16x256xf32>
    %386 = arith.addf %383, %385 : vector<16x256xf32>
    %cst_725 = arith.constant 0.000000e+00 : f32
    %387 = vector.broadcast %cst_725 : f32 to vector<16x256xf32>
    %388 = arith.maximumf %386, %387 : vector<16x256xf32>
    %389 = arith.truncf %388 : vector<16x256xf32> to vector<16x256xbf16>
    %c0_726 = arith.constant 0 : index
    %c0_727 = arith.constant 0 : index
    %390 = vector.load %arg10[%c0_726, %c0_727] : memref<256x64xbf16, #tpu.memory_space<vmem>>, vector<256x64xbf16>
    %cst_728 = arith.constant dense<0.000000e+00> : vector<16x64xf32>
    %391 = tpu.matmul %389, %390, %cst_728 {dimension_numbers = #tpu.dot_dimension_numbers<[1], [0], [0], [1], [0, 0, 1, 1], [], []>} : vector<16x256xbf16>, vector<256x64xbf16>, vector<16x64xf32> -> vector<16x64xf32>
    %c0_729 = arith.constant 0 : index
    %c0_730 = arith.constant 0 : index
    %392 = vector.load %arg11[%c0_729, %c0_730] : memref<1x64xf32, #tpu.memory_space<vmem>>, vector<1x64xf32>
    %393 = vector.broadcast %392 : vector<1x64xf32> to vector<16x64xf32>
    %394 = arith.addf %391, %393 : vector<16x64xf32>
    %cst_731 = arith.constant 0.000000e+00 : f32
    %395 = vector.broadcast %cst_731 : f32 to vector<16x64xf32>
    %396 = arith.maximumf %394, %395 : vector<16x64xf32>
    %c0_732 = arith.constant 0 : index
    %c0_733 = arith.constant 0 : index
    %397 = vector.load %arg12[%c0_732, %c0_733] : memref<1x64xf32, #tpu.memory_space<vmem>>, vector<1x64xf32>
    %398 = vector.broadcast %397 : vector<1x64xf32> to vector<16x64xf32>
    %399 = arith.mulf %396, %398 : vector<16x64xf32>
    %cst_734 = arith.constant dense<0.000000e+00> : vector<16xf32>
    %400 = vector.multi_reduction <add>, %399, %cst_734 [1] : vector<16x64xf32> to vector<16xf32>
    %401 = vector.shape_cast %400 : vector<16xf32> to vector<16x1xf32>
    %c0_735 = arith.constant 0 : index
    %c0_736 = arith.constant 0 : index
    %402 = vector.load %arg13[%c0_735, %c0_736] : memref<16x1xf32, #tpu.memory_space<vmem>>, vector<16x1xf32>
    tpu.vector_store %arg13[%c0_735, %c0_736], %401 {strides = array<i32>} : memref<16x1xf32, #tpu.memory_space<vmem>>, vector<16x1xf32>,
    return
  }
  func.func @transform_0(%arg0: i32) -> (i32, i32, i32) {
    %c0_i32 = arith.constant 0 : i32
    %c0_i32_0 = arith.constant 0 : i32
    %c0_i32_1 = arith.constant 0 : i32
    return %c0_i32, %arg0, %c0_i32_0 : i32, i32, i32
  }
  func.func @transform_1(%arg0: i32) -> (i32, i32) {
    %c0_i32 = arith.constant 0 : i32
    %c0_i32_0 = arith.constant 0 : i32
    %c0_i32_1 = arith.constant 0 : i32
    return %c0_i32, %c0_i32_0 : i32, i32
  }
  func.func @transform_2(%arg0: i32) -> (i32, i32) {
    %c0_i32 = arith.constant 0 : i32
    %c0_i32_0 = arith.constant 0 : i32
    %c0_i32_1 = arith.constant 0 : i32
    return %c0_i32, %c0_i32_0 : i32, i32
  }
  func.func @transform_3(%arg0: i32) -> (i32, i32) {
    %c0_i32 = arith.constant 0 : i32
    %c0_i32_0 = arith.constant 0 : i32
    %c0_i32_1 = arith.constant 0 : i32
    return %c0_i32, %c0_i32_0 : i32, i32
  }
  func.func @transform_4(%arg0: i32) -> (i32, i32) {
    %c0_i32 = arith.constant 0 : i32
    %c0_i32_0 = arith.constant 0 : i32
    %c0_i32_1 = arith.constant 0 : i32
    return %c0_i32, %c0_i32_0 : i32, i32
  }
  func.func @transform_5(%arg0: i32) -> (i32, i32) {
    %c0_i32 = arith.constant 0 : i32
    %c0_i32_0 = arith.constant 0 : i32
    %c0_i32_1 = arith.constant 0 : i32
    return %c0_i32, %c0_i32_0 : i32, i32
  }
  func.func @transform_6(%arg0: i32) -> (i32, i32) {
    %c0_i32 = arith.constant 0 : i32
    %c0_i32_0 = arith.constant 0 : i32
    %c0_i32_1 = arith.constant 0 : i32
    return %c0_i32, %c0_i32_0 : i32, i32
  }
  func.func @transform_7(%arg0: i32) -> (i32, i32) {
    %c0_i32 = arith.constant 0 : i32
    %c0_i32_0 = arith.constant 0 : i32
    %c0_i32_1 = arith.constant 0 : i32
    return %c0_i32, %c0_i32_0 : i32, i32
  }
  func.func @transform_8(%arg0: i32) -> (i32, i32) {
    %c0_i32 = arith.constant 0 : i32
    %c0_i32_0 = arith.constant 0 : i32
    %c0_i32_1 = arith.constant 0 : i32
    return %c0_i32, %c0_i32_0 : i32, i32
  }
  func.func @transform_9(%arg0: i32) -> (i32, i32) {
    %c0_i32 = arith.constant 0 : i32
    %c0_i32_0 = arith.constant 0 : i32
    %c0_i32_1 = arith.constant 0 : i32
    return %c0_i32, %c0_i32_0 : i32, i32
  }
  func.func @transform_10(%arg0: i32) -> (i32, i32) {
    %c0_i32 = arith.constant 0 : i32
    %c0_i32_0 = arith.constant 0 : i32
    %c0_i32_1 = arith.constant 0 : i32
    return %c0_i32, %c0_i32_0 : i32, i32
  }
  func.func @transform_11(%arg0: i32) -> (i32, i32) {
    %c0_i32 = arith.constant 0 : i32
    %c0_i32_0 = arith.constant 0 : i32
    %c0_i32_1 = arith.constant 0 : i32
    return %c0_i32, %c0_i32_0 : i32, i32
  }
  func.func @transform_12(%arg0: i32) -> (i32, i32) {
    %c0_i32 = arith.constant 0 : i32
    %c0_i32_0 = arith.constant 0 : i32
    return %arg0, %c0_i32 : i32, i32
  }
}

</mosaic_0001>

<llo_original>
// kernel: simple_cnn_forward.1
$region0: #{simple_cnn_forward.1}
  #allocation0 [shape = 'u32[]', space=smem, size = 0x4, offset = 0x4, fixed_abs, tag = 'smem constant byte address 0x4 - core index']
  #allocation1 [shape = 'u32[72,128]{1,0:T(1,128)}', space=vmem, size = 0x9000, scoped, tag = 'internal scratch']
  #allocation2 [shape = 'bf16[32,16,72]{2,1,0:T(8,128)(2,1)}', space=vmem, size = 0x20000, scoped, tag = 'scratch operand']
  #allocation3 [shape = 'bf16[20,16,80]{2,1,0:T(8,128)(2,1)}', space=vmem, size = 0x14000, scoped, tag = 'scratch operand']
  #allocation4 [shape = 'bf16[16,16,576]{2,1,0:T(8,128)(2,1)}', space=vmem, size = 0x50000, scoped, tag = 'scratch operand']
  #allocation5 [shape = 'bf16[12,16,96]{2,1,0:T(8,128)(2,1)}', space=vmem, size = 0xc000, scoped, tag = 'scratch operand']
  #allocation6 [shape = 'bf16[8,16,576]{2,1,0:T(8,128)(2,1)}', space=vmem, size = 0x28000, scoped, tag = 'scratch operand']
  %s0 = inlined_call_operand.vmem [shape: bf16[36,16,9], index: 0, kind: input, shape index: {}]
  %s1 = inlined_call_operand.vmem [shape: bf16[72,128], index: 1, kind: input, shape index: {}]
  %s2 = inlined_call_operand.vmem [shape: f32[1,128], index: 2, kind: input, shape index: {}]
  %s3 = inlined_call_operand.vmem [shape: bf16[576,128], index: 3, kind: input, shape index: {}]
  %s4 = inlined_call_operand.vmem [shape: f32[1,128], index: 4, kind: input, shape index: {}]
  %s5 = inlined_call_operand.vmem [shape: bf16[576,128], index: 5, kind: input, shape index: {}]
  %s6 = inlined_call_operand.vmem [shape: f32[1,128], index: 6, kind: input, shape index: {}]
  %s7 = inlined_call_operand.vmem [shape: bf16[256,256], index: 7, kind: input, shape index: {}]
  %s8 = inlined_call_operand.vmem [shape: f32[1,256], index: 8, kind: input, shape index: {}]
  %s9 = inlined_call_operand.vmem [shape: bf16[256,64], index: 9, kind: input, shape index: {}]
  %s10 = inlined_call_operand.vmem [shape: f32[1,64], index: 10, kind: input, shape index: {}]
  %s11 = inlined_call_operand.vmem [shape: f32[1,64], index: 11, kind: input, shape index: {}]
  %s12 = inlined_call_operand.vmem [shape: f32[16,1], index: 12, kind: output, shape index: {}]
  %s13 = sld [smem:[#allocation0]]
  $region58: #{simple_cnn_forward.1} parent=0
    _
  %s15 = ssub.s32 1, %s13
  %s16 = scalar_select 0, %s15, %s13
  // Predicated region
  $region2: #{simple_cnn_forward.1} parent=0 // pred_check
    _
  $region3: #{simple_cnn_forward.1} parent=0 // pred_check_branch
    %18 = sbr.rel (0) target = $region5
  $region4: #{simple_cnn_forward.1} parent=0 // pred_region
    _
  $region5: #{simple_cnn_forward.1} parent=0 // pred_fallthru
    _
  // Predicated region
  $region6: #{simple_cnn_forward.1} parent=0 // pred_check
    _
  $region7: #{simple_cnn_forward.1} parent=0 // pred_check_branch
    %20 = sbr.rel (0) target = $region9
  $region8: #{simple_cnn_forward.1} parent=0 // pred_region
    _
  $region9: #{simple_cnn_forward.1} parent=0 // pred_fallthru
    _
  // Predicated region
  $region10: #{simple_cnn_forward.1} parent=0 // pred_check
    _
  $region11: #{simple_cnn_forward.1} parent=0 // pred_check_branch
    %22 = sbr.rel (0) target = $region13
  $region12: #{simple_cnn_forward.1} parent=0 // pred_region
    _
  $region13: #{simple_cnn_forward.1} parent=0 // pred_fallthru
    _
  // Predicated region
  $region14: #{simple_cnn_forward.1} parent=0 // pred_check
    _
  $region15: #{simple_cnn_forward.1} parent=0 // pred_check_branch
    %24 = sbr.rel (0) target = $region17
  $region16: #{simple_cnn_forward.1} parent=0 // pred_region
    _
  $region17: #{simple_cnn_forward.1} parent=0 // pred_fallthru
    _
  // Predicated region
  $region18: #{simple_cnn_forward.1} parent=0 // pred_check
    _
  $region19: #{simple_cnn_forward.1} parent=0 // pred_check_branch
    %26 = sbr.rel (0) target = $region21
  $region20: #{simple_cnn_forward.1} parent=0 // pred_region
    _
  $region21: #{simple_cnn_forward.1} parent=0 // pred_fallthru
    _
  // Predicated region
  $region22: #{simple_cnn_forward.1} parent=0 // pred_check
    _
  $region23: #{simple_cnn_forward.1} parent=0 // pred_check_branch
    %28 = sbr.rel (0) target = $region25
  $region24: #{simple_cnn_forward.1} parent=0 // pred_region
    _
  $region25: #{simple_cnn_forward.1} parent=0 // pred_fallthru
    _
  // Predicated region
  $region26: #{simple_cnn_forward.1} parent=0 // pred_check
    _
  $region27: #{simple_cnn_forward.1} parent=0 // pred_check_branch
    %30 = sbr.rel (0) target = $region29
  $region28: #{simple_cnn_forward.1} parent=0 // pred_region
    _
  $region29: #{simple_cnn_forward.1} parent=0 // pred_fallthru
    _
  // Predicated region
  $region30: #{simple_cnn_forward.1} parent=0 // pred_check
    _
  $region31: #{simple_cnn_forward.1} parent=0 // pred_check_branch
    %32 = sbr.rel (0) target = $region33
  $region32: #{simple_cnn_forward.1} parent=0 // pred_region
    _
  $region33: #{simple_cnn_forward.1} parent=0 // pred_fallthru
    _
  // Predicated region
  $region34: #{simple_cnn_forward.1} parent=0 // pred_check
    _
  $region35: #{simple_cnn_forward.1} parent=0 // pred_check_branch
    %34 = sbr.rel (0) target = $region37
  $region36: #{simple_cnn_forward.1} parent=0 // pred_region
    _
  $region37: #{simple_cnn_forward.1} parent=0 // pred_fallthru
    _
  // Predicated region
  $region38: #{simple_cnn_forward.1} parent=0 // pred_check
    _
  $region39: #{simple_cnn_forward.1} parent=0 // pred_check_branch
    %36 = sbr.rel (0) target = $region41
  $region40: #{simple_cnn_forward.1} parent=0 // pred_region
    _
  $region41: #{simple_cnn_forward.1} parent=0 // pred_fallthru
    _
  // Predicated region
  $region42: #{simple_cnn_forward.1} parent=0 // pred_check
    _
  $region43: #{simple_cnn_forward.1} parent=0 // pred_check_branch
    %38 = sbr.rel (0) target = $region45
  $region44: #{simple_cnn_forward.1} parent=0 // pred_region
    _
  $region45: #{simple_cnn_forward.1} parent=0 // pred_fallthru
    _
  // Predicated region
  $region46: #{simple_cnn_forward.1} parent=0 // pred_check
    _
  $region47: #{simple_cnn_forward.1} parent=0 // pred_check_branch
    %40 = sbr.rel (0) target = $region49
  $region48: #{simple_cnn_forward.1} parent=0 // pred_region
    _
  $region49: #{simple_cnn_forward.1} parent=0 // pred_fallthru
    _
  %v42 = vld [vmem:[%s0] sm:$0xf]
  %v43 = vld [vmem:[%s0 + $0x4] sm:$0xf]
  %v44 = vld [vmem:[%s0 + $0x8] sm:$0xf]
  %v45 = vld [vmem:[%s0 + $0xc] sm:$0xf]
  %v46 = vld [vmem:[%s0 + $0x10] sm:$0xf]
  %v47 = vld [vmem:[%s0 + $0x14] sm:$0xf]
  %v48 = vld [vmem:[%s0 + $0x18] sm:$0xf]
  %v49 = vld [vmem:[%s0 + $0x1c] sm:$0xf]
  %v50 = vld [vmem:[%s0 + $0x20] sm:$0xf]
  %v51 = vld [vmem:[%s0 + $0x24] sm:$0xf]
  %v52 = vld [vmem:[%s0 + $0x28] sm:$0xf]
  %v53 = vld [vmem:[%s0 + $0x2c] sm:$0xf]
  %v54 = vld [vmem:[%s0 + $0x30] sm:$0xf]
  %v55 = vld [vmem:[%s0 + $0x34] sm:$0xf]
  %v56 = vld [vmem:[%s0 + $0x38] sm:$0xf]
  %v57 = vld [vmem:[%s0 + $0x3c] sm:$0xf]
  %vm58 = vcmask 60416
  %59 = vst.msk [vmem:[#allocation2] sm:$0xf] %vm58, %v42
  %60 = vst.msk [vmem:[#allocation2 + $0x4] sm:$0xf] %vm58, %v43
  %61 = vst.msk [vmem:[#allocation2 + $0x8] sm:$0xf] %vm58, %v44
  %62 = vst.msk [vmem:[#allocation2 + $0xc] sm:$0xf] %vm58, %v45
  %63 = vst.msk [vmem:[#allocation2 + $0x10] sm:$0xf] %vm58, %v46
  %64 = vst.msk [vmem:[#allocation2 + $0x14] sm:$0xf] %vm58, %v47
  %65 = vst.msk [vmem:[#allocation2 + $0x18] sm:$0xf] %vm58, %v48
  %66 = vst.msk [vmem:[#allocation2 + $0x1c] sm:$0xf] %vm58, %v49
  %67 = vst.msk [vmem:[#allocation2 + $0x20] sm:$0xf] %vm58, %v50
  %68 = vst.msk [vmem:[#allocation2 + $0x24] sm:$0xf] %vm58, %v51
  %69 = vst.msk [vmem:[#allocation2 + $0x28] sm:$0xf] %vm58, %v52
  %70 = vst.msk [vmem:[#allocation2 + $0x2c] sm:$0xf] %vm58, %v53
  %71 = vst.msk [vmem:[#allocation2 + $0x30] sm:$0xf] %vm58, %v54
  %72 = vst.msk [vmem:[#allocation2 + $0x34] sm:$0xf] %vm58, %v55
  %73 = vst.msk [vmem:[#allocation2 + $0x38] sm:$0xf] %vm58, %v56
  %74 = vst.msk [vmem:[#allocation2 + $0x3c] sm:$0xf] %vm58, %v57
  %s75 = scalar_lea.vmem %s0, 72
  %v76 = vld [vmem:[%s75] sm:$0xf]
  %v77 = vld [vmem:[%s75 + $0x4] sm:$0xf]
  %v78 = vld [vmem:[%s75 + $0x8] sm:$0xf]
  %v79 = vld [vmem:[%s75 + $0xc] sm:$0xf]
  %v80 = vld [vmem:[%s75 + $0x10] sm:$0xf]
  %v81 = vld [vmem:[%s75 + $0x14] sm:$0xf]
  %v82 = vld [vmem:[%s75 + $0x18] sm:$0xf]
  %v83 = vld [vmem:[%s75 + $0x1c] sm:$0xf]
  %v84 = vld [vmem:[%s75 + $0x20] sm:$0xf]
  %v85 = vld [vmem:[%s75 + $0x24] sm:$0xf]
  %v86 = vld [vmem:[%s75 + $0x28] sm:$0xf]
  %v87 = vld [vmem:[%s75 + $0x2c] sm:$0xf]
  %v88 = vld [vmem:[%s75 + $0x30] sm:$0xf]
  %v89 = vld [vmem:[%s75 + $0x34] sm:$0xf]
  %v90 = vld [vmem:[%s75 + $0x38] sm:$0xf]
  %v91 = vld [vmem:[%s75 + $0x3c] sm:$0xf]
  %108 = vrot.lane.b32.xlu0 %v76, 8
  %v109 = vpop.permute.xlu0 %108
  %110 = vrot.lane.b32.xlu0 %v77, 8
  %v111 = vpop.permute.xlu0 %110
  %112 = vrot.lane.b32.xlu0 %v78, 8
  %v113 = vpop.permute.xlu0 %112
  %114 = vrot.lane.b32.xlu0 %v79, 8
  %v115 = vpop.permute.xlu0 %114
  %116 = vrot.lane.b32.xlu0 %v80, 8
  %v117 = vpop.permute.xlu0 %116
  %118 = vrot.lane.b32.xlu0 %v81, 8
  %v119 = vpop.permute.xlu0 %118
  %120 = vrot.lane.b32.xlu0 %v82, 8
  %v121 = vpop.permute.xlu0 %120
  %122 = vrot.lane.b32.xlu0 %v83, 8
  %v123 = vpop.permute.xlu0 %122
  %124 = vrot.lane.b32.xlu0 %v84, 8
  %v125 = vpop.permute.xlu0 %124
  %126 = vrot.lane.b32.xlu0 %v85, 8
  %v127 = vpop.permute.xlu0 %126
  %128 = vrot.lane.b32.xlu0 %v86, 8
  %v129 = vpop.permute.xlu0 %128
  %130 = vrot.lane.b32.xlu0 %v87, 8
  %v131 = vpop.permute.xlu0 %130
  %132 = vrot.lane.b32.xlu0 %v88, 8
  %v133 = vpop.permute.xlu0 %132
  %134 = vrot.lane.b32.xlu0 %v89, 8
  %v135 = vpop.permute.xlu0 %134
  %136 = vrot.lane.b32.xlu0 %v90, 8
  %v137 = vpop.permute.xlu0 %136
  %138 = vrot.lane.b32.xlu0 %v91, 8
  %v139 = vpop.permute.xlu0 %138
  %vm156 = vcmask 126016
  %157 = vst.msk [vmem:[#allocation2] sm:$0xf] %vm156, %v109
  %158 = vst.msk [vmem:[#allocation2 + $0x4] sm:$0xf] %vm156, %v111
  %159 = vst.msk [vmem:[#allocation2 + $0x8] sm:$0xf] %vm156, %v113
  %160 = vst.msk [vmem:[#allocation2 + $0xc] sm:$0xf] %vm156, %v115
  %161 = vst.msk [vmem:[#allocation2 + $0x10] sm:$0xf] %vm156, %v117
  %162 = vst.msk [vmem:[#allocation2 + $0x14] sm:$0xf] %vm156, %v119
  %163 = vst.msk [vmem:[#allocation2 + $0x18] sm:$0xf] %vm156, %v121
  %164 = vst.msk [vmem:[#allocation2 + $0x1c] sm:$0xf] %vm156, %v123
  %165 = vst.msk [vmem:[#allocation2 + $0x20] sm:$0xf] %vm156, %v125
  %166 = vst.msk [vmem:[#allocation2 + $0x24] sm:$0xf] %vm156, %v127
  %167 = vst.msk [vmem:[#allocation2 + $0x28] sm:$0xf] %vm156, %v129
  %168 = vst.msk [vmem:[#allocation2 + $0x2c] sm:$0xf] %vm156, %v131
  %169 = vst.msk [vmem:[#allocation2 + $0x30] sm:$0xf] %vm156, %v133
  %170 = vst.msk [vmem:[#allocation2 + $0x34] sm:$0xf] %vm156, %v135
  %171 = vst.msk [vmem:[#allocation2 + $0x38] sm:$0xf] %vm156, %v137
  %172 = vst.msk [vmem:[#allocation2 + $0x3c] sm:$0xf] %vm156, %v139
  %v173 = vld [vmem:[%s0] sm:$0xf]
  %v174 = vld [vmem:[%s0 + $0x4] sm:$0xf]
  %v175 = vld [vmem:[%s0 + $0x8] sm:$0xf]
  %v176 = vld [vmem:[%s0 + $0xc] sm:$0xf]
  %v177 = vld [vmem:[%s0 + $0x10] sm:$0xf]
  %v178 = vld [vmem:[%s0 + $0x14] sm:$0xf]
  %v179 = vld [vmem:[%s0 + $0x18] sm:$0xf]
  %v180 = vld [vmem:[%s0 + $0x1c] sm:$0xf]
  %v181 = vld [vmem:[%s0 + $0x20] sm:$0xf]
  %v182 = vld [vmem:[%s0 + $0x24] sm:$0xf]
  %v183 = vld [vmem:[%s0 + $0x28] sm:$0xf]
  %v184 = vld [vmem:[%s0 + $0x2c] sm:$0xf]
  %v185 = vld [vmem:[%s0 + $0x30] sm:$0xf]
  %v186 = vld [vmem:[%s0 + $0x34] sm:$0xf]
  %v187 = vld [vmem:[%s0 + $0x38] sm:$0xf]
  %v188 = vld [vmem:[%s0 + $0x3c] sm:$0xf]
  %205 = vrot.lane.b32.xlu0 %v173, 15
  %v206 = vpop.permute.xlu0 %205
  %207 = vrot.lane.b32.xlu0 %v174, 15
  %v208 = vpop.permute.xlu0 %207
  %209 = vrot.lane.b32.xlu0 %v175, 15
  %v210 = vpop.permute.xlu0 %209
  %211 = vrot.lane.b32.xlu0 %v176, 15
  %v212 = vpop.permute.xlu0 %211
  %213 = vrot.lane.b32.xlu0 %v177, 15
  %v214 = vpop.permute.xlu0 %213
  %215 = vrot.lane.b32.xlu0 %v178, 15
  %v216 = vpop.permute.xlu0 %215
  %217 = vrot.lane.b32.xlu0 %v179, 15
  %v218 = vpop.permute.xlu0 %217
  %219 = vrot.lane.b32.xlu0 %v180, 15
  %v220 = vpop.permute.xlu0 %219
  %221 = vrot.lane.b32.xlu0 %v181, 15
  %v222 = vpop.permute.xlu0 %221
  %223 = vrot.lane.b32.xlu0 %v182, 15
  %v224 = vpop.permute.xlu0 %223
  %225 = vrot.lane.b32.xlu0 %v183, 15
  %v226 = vpop.permute.xlu0 %225
  %227 = vrot.lane.b32.xlu0 %v184, 15
  %v228 = vpop.permute.xlu0 %227
  %229 = vrot.lane.b32.xlu0 %v185, 15
  %v230 = vpop.permute.xlu0 %229
  %231 = vrot.lane.b32.xlu0 %v186, 15
  %v232 = vpop.permute.xlu0 %231
  %233 = vrot.lane.b32.xlu0 %v187, 15
  %v234 = vpop.permute.xlu0 %233
  %235 = vrot.lane.b32.xlu0 %v188, 15
  %v236 = vpop.permute.xlu0 %235
  %vm253 = vcmask 191616
  %254 = vst.msk [vmem:[#allocation2] sm:$0xf] %vm253, %v206
  %255 = vst.msk [vmem:[#allocation2 + $0x4] sm:$0xf] %vm253, %v208
  %256 = vst.msk [vmem:[#allocation2 + $0x8] sm:$0xf] %vm253, %v210
  %257 = vst.msk [vmem:[#allocation2 + $0xc] sm:$0xf] %vm253, %v212
  %258 = vst.msk [vmem:[#allocation2 + $0x10] sm:$0xf] %vm253, %v214
  %259 = vst.msk [vmem:[#allocation2 + $0x14] sm:$0xf] %vm253, %v216
  %260 = vst.msk [vmem:[#allocation2 + $0x18] sm:$0xf] %vm253, %v218
  %261 = vst.msk [vmem:[#allocation2 + $0x1c] sm:$0xf] %vm253, %v220
  %262 = vst.msk [vmem:[#allocation2 + $0x20] sm:$0xf] %vm253, %v222
  %263 = vst.msk [vmem:[#allocation2 + $0x24] sm:$0xf] %vm253, %v224
  %264 = vst.msk [vmem:[#allocation2 + $0x28] sm:$0xf] %vm253, %v226
  %265 = vst.msk [vmem:[#allocation2 + $0x2c] sm:$0xf] %vm253, %v228
  %266 = vst.msk [vmem:[#allocation2 + $0x30] sm:$0xf] %vm253, %v230
  %267 = vst.msk [vmem:[#allocation2 + $0x34] sm:$0xf] %vm253, %v232
  %268 = vst.msk [vmem:[#allocation2 + $0x38] sm:$0xf] %vm253, %v234
  %269 = vst.msk [vmem:[#allocation2 + $0x3c] sm:$0xf] %vm253, %v236
  %s270 = scalar_lea.vmem %s0, 144
  %v271 = vld [vmem:[%s270] sm:$0xf]
  %v272 = vld [vmem:[%s270 + $0x4] sm:$0xf]
  %v273 = vld [vmem:[%s270 + $0x8] sm:$0xf]
  %v274 = vld [vmem:[%s270 + $0xc] sm:$0xf]
  %v275 = vld [vmem:[%s270 + $0x10] sm:$0xf]
  %v276 = vld [vmem:[%s270 + $0x14] sm:$0xf]
  %v277 = vld [vmem:[%s270 + $0x18] sm:$0xf]
  %v278 = vld [vmem:[%s270 + $0x1c] sm:$0xf]
  %v279 = vld [vmem:[%s270 + $0x20] sm:$0xf]
  %v280 = vld [vmem:[%s270 + $0x24] sm:$0xf]
  %v281 = vld [vmem:[%s270 + $0x28] sm:$0xf]
  %v282 = vld [vmem:[%s270 + $0x2c] sm:$0xf]
  %v283 = vld [vmem:[%s270 + $0x30] sm:$0xf]
  %v284 = vld [vmem:[%s270 + $0x34] sm:$0xf]
  %v285 = vld [vmem:[%s270 + $0x38] sm:$0xf]
  %v286 = vld [vmem:[%s270 + $0x3c] sm:$0xf]
  %303 = vrot.lane.b32.xlu0 %v271, 24
  %v304 = vpop.permute.xlu0 %303
  %305 = vrot.lane.b32.xlu0 %v272, 24
  %v306 = vpop.permute.xlu0 %305
  %307 = vrot.lane.b32.xlu0 %v273, 24
  %v308 = vpop.permute.xlu0 %307
  %309 = vrot.lane.b32.xlu0 %v274, 24
  %v310 = vpop.permute.xlu0 %309
  %311 = vrot.lane.b32.xlu0 %v275, 24
  %v312 = vpop.permute.xlu0 %311
  %313 = vrot.lane.b32.xlu0 %v276, 24
  %v314 = vpop.permute.xlu0 %313
  %315 = vrot.lane.b32.xlu0 %v277, 24
  %v316 = vpop.permute.xlu0 %315
  %317 = vrot.lane.b32.xlu0 %v278, 24
  %v318 = vpop.permute.xlu0 %317
  %319 = vrot.lane.b32.xlu0 %v279, 24
  %v320 = vpop.permute.xlu0 %319
  %321 = vrot.lane.b32.xlu0 %v280, 24
  %v322 = vpop.permute.xlu0 %321
  %323 = vrot.lane.b32.xlu0 %v281, 24
  %v324 = vpop.permute.xlu0 %323
  %325 = vrot.lane.b32.xlu0 %v282, 24
  %v326 = vpop.permute.xlu0 %325
  %327 = vrot.lane.b32.xlu0 %v283, 24
  %v328 = vpop.permute.xlu0 %327
  %329 = vrot.lane.b32.xlu0 %v284, 24
  %v330 = vpop.permute.xlu0 %329
  %331 = vrot.lane.b32.xlu0 %v285, 24
  %v332 = vpop.permute.xlu0 %331
  %333 = vrot.lane.b32.xlu0 %v286, 24
  %v334 = vpop.permute.xlu0 %333
  %vm351 = vcmask 257216
  %352 = vst.msk [vmem:[#allocation2] sm:$0xf] %vm351, %v304
  %353 = vst.msk [vmem:[#allocation2 + $0x4] sm:$0xf] %vm351, %v306
  %354 = vst.msk [vmem:[#allocation2 + $0x8] sm:$0xf] %vm351, %v308
  %355 = vst.msk [vmem:[#allocation2 + $0xc] sm:$0xf] %vm351, %v310
  %356 = vst.msk [vmem:[#allocation2 + $0x10] sm:$0xf] %vm351, %v312
  %357 = vst.msk [vmem:[#allocation2 + $0x14] sm:$0xf] %vm351, %v314
  %358 = vst.msk [vmem:[#allocation2 + $0x18] sm:$0xf] %vm351, %v316
  %359 = vst.msk [vmem:[#allocation2 + $0x1c] sm:$0xf] %vm351, %v318
  %360 = vst.msk [vmem:[#allocation2 + $0x20] sm:$0xf] %vm351, %v320
  %361 = vst.msk [vmem:[#allocation2 + $0x24] sm:$0xf] %vm351, %v322
  %362 = vst.msk [vmem:[#allocation2 + $0x28] sm:$0xf] %vm351, %v324
  %363 = vst.msk [vmem:[#allocation2 + $0x2c] sm:$0xf] %vm351, %v326
  %364 = vst.msk [vmem:[#allocation2 + $0x30] sm:$0xf] %vm351, %v328
  %365 = vst.msk [vmem:[#allocation2 + $0x34] sm:$0xf] %vm351, %v330
  %366 = vst.msk [vmem:[#allocation2 + $0x38] sm:$0xf] %vm351, %v332
  %367 = vst.msk [vmem:[#allocation2 + $0x3c] sm:$0xf] %vm351, %v334
  %s368 = scalar_lea.vmem %s0, 216
  %v369 = vld [vmem:[%s368] sm:$0xf]
  %v370 = vld [vmem:[%s368 + $0x4] sm:$0xf]
  %v371 = vld [vmem:[%s368 + $0x8] sm:$0xf]
  %v372 = vld [vmem:[%s368 + $0xc] sm:$0xf]
  %v373 = vld [vmem:[%s368 + $0x10] sm:$0xf]
  %v374 = vld [vmem:[%s368 + $0x14] sm:$0xf]
  %v375 = vld [vmem:[%s368 + $0x18] sm:$0xf]
  %v376 = vld [vmem:[%s368 + $0x1c] sm:$0xf]
  %v377 = vld [vmem:[%s368 + $0x20] sm:$0xf]
  %v378 = vld [vmem:[%s368 + $0x24] sm:$0xf]
  %v379 = vld [vmem:[%s368 + $0x28] sm:$0xf]
  %v380 = vld [vmem:[%s368 + $0x2c] sm:$0xf]
  %v381 = vld [vmem:[%s368 + $0x30] sm:$0xf]
  %v382 = vld [vmem:[%s368 + $0x34] sm:$0xf]
  %v383 = vld [vmem:[%s368 + $0x38] sm:$0xf]
  %v384 = vld [vmem:[%s368 + $0x3c] sm:$0xf]
  %401 = vrot.lane.b32.xlu0 %v369, 32
  %v402 = vpop.permute.xlu0 %401
  %403 = vrot.lane.b32.xlu0 %v370, 32
  %v404 = vpop.permute.xlu0 %403
  %405 = vrot.lane.b32.xlu0 %v371, 32
  %v406 = vpop.permute.xlu0 %405
  %407 = vrot.lane.b32.xlu0 %v372, 32
  %v408 = vpop.permute.xlu0 %407
  %409 = vrot.lane.b32.xlu0 %v373, 32
  %v410 = vpop.permute.xlu0 %409
  %411 = vrot.lane.b32.xlu0 %v374, 32
  %v412 = vpop.permute.xlu0 %411
  %413 = vrot.lane.b32.xlu0 %v375, 32
  %v414 = vpop.permute.xlu0 %413
  %415 = vrot.lane.b32.xlu0 %v376, 32
  %v416 = vpop.permute.xlu0 %415
  %417 = vrot.lane.b32.xlu0 %v377, 32
  %v418 = vpop.permute.xlu0 %417
  %419 = vrot.lane.b32.xlu0 %v378, 32
  %v420 = vpop.permute.xlu0 %419
  %421 = vrot.lane.b32.xlu0 %v379, 32
  %v422 = vpop.permute.xlu0 %421
  %423 = vrot.lane.b32.xlu0 %v380, 32
  %v424 = vpop.permute.xlu0 %423
  %425 = vrot.lane.b32.xlu0 %v381, 32
  %v426 = vpop.permute.xlu0 %425
  %427 = vrot.lane.b32.xlu0 %v382, 32
  %v428 = vpop.permute.xlu0 %427
  %429 = vrot.lane.b32.xlu0 %v383, 32
  %v430 = vpop.permute.xlu0 %429
  %431 = vrot.lane.b32.xlu0 %v384, 32
  %v432 = vpop.permute.xlu0 %431
  %vm449 = vcmask 322816
  %450 = vst.msk [vmem:[#allocation2] sm:$0xf] %vm449, %v402
  %451 = vst.msk [vmem:[#allocation2 + $0x4] sm:$0xf] %vm449, %v404
  %452 = vst.msk [vmem:[#allocation2 + $0x8] sm:$0xf] %vm449, %v406
  %453 = vst.msk [vmem:[#allocation2 + $0xc] sm:$0xf] %vm449, %v408
  %454 = vst.msk [vmem:[#allocation2 + $0x10] sm:$0xf] %vm449, %v410
  %455 = vst.msk [vmem:[#allocation2 + $0x14] sm:$0xf] %vm449, %v412
  %456 = vst.msk [vmem:[#allocation2 + $0x18] sm:$0xf] %vm449, %v414
  %457 = vst.msk [vmem:[#allocation2 + $0x1c] sm:$0xf] %vm449, %v416
  %458 = vst.msk [vmem:[#allocation2 + $0x20] sm:$0xf] %vm449, %v418
  %459 = vst.msk [vmem:[#allocation2 + $0x24] sm:$0xf] %vm449, %v420
  %460 = vst.msk [vmem:[#allocation2 + $0x28] sm:$0xf] %vm449, %v422
  %461 = vst.msk [vmem:[#allocation2 + $0x2c] sm:$0xf] %vm449, %v424
  %462 = vst.msk [vmem:[#allocation2 + $0x30] sm:$0xf] %vm449, %v426
  %463 = vst.msk [vmem:[#allocation2 + $0x34] sm:$0xf] %vm449, %v428
  %464 = vst.msk [vmem:[#allocation2 + $0x38] sm:$0xf] %vm449, %v430
  %465 = vst.msk [vmem:[#allocation2 + $0x3c] sm:$0xf] %vm449, %v432
  %v466 = vld [vmem:[%s270] sm:$0xf]
  %v467 = vld [vmem:[%s270 + $0x4] sm:$0xf]
  %v468 = vld [vmem:[%s270 + $0x8] sm:$0xf]
  %v469 = vld [vmem:[%s270 + $0xc] sm:$0xf]
  %v470 = vld [vmem:[%s270 + $0x10] sm:$0xf]
  %v471 = vld [vmem:[%s270 + $0x14] sm:$0xf]
  %v472 = vld [vmem:[%s270 + $0x18] sm:$0xf]
  %v473 = vld [vmem:[%s270 + $0x1c] sm:$0xf]
  %v474 = vld [vmem:[%s270 + $0x20] sm:$0xf]
  %v475 = vld [vmem:[%s270 + $0x24] sm:$0xf]
  %v476 = vld [vmem:[%s270 + $0x28] sm:$0xf]
  %v477 = vld [vmem:[%s270 + $0x2c] sm:$0xf]
  %v478 = vld [vmem:[%s270 + $0x30] sm:$0xf]
  %v479 = vld [vmem:[%s270 + $0x34] sm:$0xf]
  %v480 = vld [vmem:[%s270 + $0x38] sm:$0xf]
  %v481 = vld [vmem:[%s270 + $0x3c] sm:$0xf]
  %498 = vrot.lane.b32.xlu0 %v466, 39
  %v499 = vpop.permute.xlu0 %498
  %500 = vrot.lane.b32.xlu0 %v467, 39
  %v501 = vpop.permute.xlu0 %500
  %502 = vrot.lane.b32.xlu0 %v468, 39
  %v503 = vpop.permute.xlu0 %502
  %504 = vrot.lane.b32.xlu0 %v469, 39
  %v505 = vpop.permute.xlu0 %504
  %506 = vrot.lane.b32.xlu0 %v470, 39
  %v507 = vpop.permute.xlu0 %506
  %508 = vrot.lane.b32.xlu0 %v471, 39
  %v509 = vpop.permute.xlu0 %508
  %510 = vrot.lane.b32.xlu0 %v472, 39
  %v511 = vpop.permute.xlu0 %510
  %512 = vrot.lane.b32.xlu0 %v473, 39
  %v513 = vpop.permute.xlu0 %512
  %514 = vrot.lane.b32.xlu0 %v474, 39
  %v515 = vpop.permute.xlu0 %514
  %516 = vrot.lane.b32.xlu0 %v475, 39
  %v517 = vpop.permute.xlu0 %516
  %518 = vrot.lane.b32.xlu0 %v476, 39
  %v519 = vpop.permute.xlu0 %518
  %520 = vrot.lane.b32.xlu0 %v477, 39
  %v521 = vpop.permute.xlu0 %520
  %522 = vrot.lane.b32.xlu0 %v478, 39
  %v523 = vpop.permute.xlu0 %522
  %524 = vrot.lane.b32.xlu0 %v479, 39
  %v525 = vpop.permute.xlu0 %524
  %526 = vrot.lane.b32.xlu0 %v480, 39
  %v527 = vpop.permute.xlu0 %526
  %528 = vrot.lane.b32.xlu0 %v481, 39
  %v529 = vpop.permute.xlu0 %528
  %vm546 = vcmask 388416
  %547 = vst.msk [vmem:[#allocation2] sm:$0xf] %vm546, %v499
  %548 = vst.msk [vmem:[#allocation2 + $0x4] sm:$0xf] %vm546, %v501
  %549 = vst.msk [vmem:[#allocation2 + $0x8] sm:$0xf] %vm546, %v503
  %550 = vst.msk [vmem:[#allocation2 + $0xc] sm:$0xf] %vm546, %v505
  %551 = vst.msk [vmem:[#allocation2 + $0x10] sm:$0xf] %vm546, %v507
  %552 = vst.msk [vmem:[#allocation2 + $0x14] sm:$0xf] %vm546, %v509
  %553 = vst.msk [vmem:[#allocation2 + $0x18] sm:$0xf] %vm546, %v511
  %554 = vst.msk [vmem:[#allocation2 + $0x1c] sm:$0xf] %vm546, %v513
  %555 = vst.msk [vmem:[#allocation2 + $0x20] sm:$0xf] %vm546, %v515
  %556 = vst.msk [vmem:[#allocation2 + $0x24] sm:$0xf] %vm546, %v517
  %557 = vst.msk [vmem:[#allocation2 + $0x28] sm:$0xf] %vm546, %v519
  %558 = vst.msk [vmem:[#allocation2 + $0x2c] sm:$0xf] %vm546, %v521
  %559 = vst.msk [vmem:[#allocation2 + $0x30] sm:$0xf] %vm546, %v523
  %560 = vst.msk [vmem:[#allocation2 + $0x34] sm:$0xf] %vm546, %v525
  %561 = vst.msk [vmem:[#allocation2 + $0x38] sm:$0xf] %vm546, %v527
  %562 = vst.msk [vmem:[#allocation2 + $0x3c] sm:$0xf] %vm546, %v529
  %s563 = scalar_lea.vmem %s0, 8
  %v564 = vld [vmem:[%s563] sm:$0xf]
  %v565 = vld [vmem:[%s563 + $0x4] sm:$0xf]
  %v566 = vld [vmem:[%s563 + $0x8] sm:$0xf]
  %v567 = vld [vmem:[%s563 + $0xc] sm:$0xf]
  %v568 = vld [vmem:[%s563 + $0x10] sm:$0xf]
  %v569 = vld [vmem:[%s563 + $0x14] sm:$0xf]
  %v570 = vld [vmem:[%s563 + $0x18] sm:$0xf]
  %v571 = vld [vmem:[%s563 + $0x1c] sm:$0xf]
  %v572 = vld [vmem:[%s563 + $0x20] sm:$0xf]
  %v573 = vld [vmem:[%s563 + $0x24] sm:$0xf]
  %v574 = vld [vmem:[%s563 + $0x28] sm:$0xf]
  %v575 = vld [vmem:[%s563 + $0x2c] sm:$0xf]
  %v576 = vld [vmem:[%s563 + $0x30] sm:$0xf]
  %v577 = vld [vmem:[%s563 + $0x34] sm:$0xf]
  %v578 = vld [vmem:[%s563 + $0x38] sm:$0xf]
  %v579 = vld [vmem:[%s563 + $0x3c] sm:$0xf]
  %596 = vrot.lane.b32.xlu0 %v564, 48
  %v597 = vpop.permute.xlu0 %596
  %598 = vrot.lane.b32.xlu0 %v565, 48
  %v599 = vpop.permute.xlu0 %598
  %600 = vrot.lane.b32.xlu0 %v566, 48
  %v601 = vpop.permute.xlu0 %600
  %602 = vrot.lane.b32.xlu0 %v567, 48
  %v603 = vpop.permute.xlu0 %602
  %604 = vrot.lane.b32.xlu0 %v568, 48
  %v605 = vpop.permute.xlu0 %604
  %606 = vrot.lane.b32.xlu0 %v569, 48
  %v607 = vpop.permute.xlu0 %606
  %608 = vrot.lane.b32.xlu0 %v570, 48
  %v609 = vpop.permute.xlu0 %608
  %610 = vrot.lane.b32.xlu0 %v571, 48
  %v611 = vpop.permute.xlu0 %610
  %612 = vrot.lane.b32.xlu0 %v572, 48
  %v613 = vpop.permute.xlu0 %612
  %614 = vrot.lane.b32.xlu0 %v573, 48
  %v615 = vpop.permute.xlu0 %614
  %616 = vrot.lane.b32.xlu0 %v574, 48
  %v617 = vpop.permute.xlu0 %616
  %618 = vrot.lane.b32.xlu0 %v575, 48
  %v619 = vpop.permute.xlu0 %618
  %620 = vrot.lane.b32.xlu0 %v576, 48
  %v621 = vpop.permute.xlu0 %620
  %622 = vrot.lane.b32.xlu0 %v577, 48
  %v623 = vpop.permute.xlu0 %622
  %624 = vrot.lane.b32.xlu0 %v578, 48
  %v625 = vpop.permute.xlu0 %624
  %626 = vrot.lane.b32.xlu0 %v579, 48
  %v627 = vpop.permute.xlu0 %626
  %vm644 = vcmask 454016
  %645 = vst.msk [vmem:[#allocation2] sm:$0xf] %vm644, %v597
  %646 = vst.msk [vmem:[#allocation2 + $0x4] sm:$0xf] %vm644, %v599
  %647 = vst.msk [vmem:[#allocation2 + $0x8] sm:$0xf] %vm644, %v601
  %648 = vst.msk [vmem:[#allocation2 + $0xc] sm:$0xf] %vm644, %v603
  %649 = vst.msk [vmem:[#allocation2 + $0x10] sm:$0xf] %vm644, %v605
  %650 = vst.msk [vmem:[#allocation2 + $0x14] sm:$0xf] %vm644, %v607
  %651 = vst.msk [vmem:[#allocation2 + $0x18] sm:$0xf] %vm644, %v609
  %652 = vst.msk [vmem:[#allocation2 + $0x1c] sm:$0xf] %vm644, %v611
  %653 = vst.msk [vmem:[#allocation2 + $0x20] sm:$0xf] %vm644, %v613
  %654 = vst.msk [vmem:[#allocation2 + $0x24] sm:$0xf] %vm644, %v615
  %655 = vst.msk [vmem:[#allocation2 + $0x28] sm:$0xf] %vm644, %v617
  %656 = vst.msk [vmem:[#allocation2 + $0x2c] sm:$0xf] %vm644, %v619
  %657 = vst.msk [vmem:[#allocation2 + $0x30] sm:$0xf] %vm644, %v621
  %658 = vst.msk [vmem:[#allocation2 + $0x34] sm:$0xf] %vm644, %v623
  %659 = vst.msk [vmem:[#allocation2 + $0x38] sm:$0xf] %vm644, %v625
  %660 = vst.msk [vmem:[#allocation2 + $0x3c] sm:$0xf] %vm644, %v627
  %s661 = scalar_lea.vmem %s0, 80
  %v662 = vld [vmem:[%s661] sm:$0xf]
  %v663 = vld [vmem:[%s661 + $0x4] sm:$0xf]
  %v664 = vld [vmem:[%s661 + $0x8] sm:$0xf]
  %v665 = vld [vmem:[%s661 + $0xc] sm:$0xf]
  %v666 = vld [vmem:[%s661 + $0x10] sm:$0xf]
  %v667 = vld [vmem:[%s661 + $0x14] sm:$0xf]
  %v668 = vld [vmem:[%s661 + $0x18] sm:$0xf]
  %v669 = vld [vmem:[%s661 + $0x1c] sm:$0xf]
  %v670 = vld [vmem:[%s661 + $0x20] sm:$0xf]
  %v671 = vld [vmem:[%s661 + $0x24] sm:$0xf]
  %v672 = vld [vmem:[%s661 + $0x28] sm:$0xf]
  %v673 = vld [vmem:[%s661 + $0x2c] sm:$0xf]
  %v674 = vld [vmem:[%s661 + $0x30] sm:$0xf]
  %v675 = vld [vmem:[%s661 + $0x34] sm:$0xf]
  %v676 = vld [vmem:[%s661 + $0x38] sm:$0xf]
  %v677 = vld [vmem:[%s661 + $0x3c] sm:$0xf]
  %694 = vrot.lane.b32.xlu0 %v662, 56
  %v695 = vpop.permute.xlu0 %694
  %696 = vrot.lane.b32.xlu0 %v663, 56
  %v697 = vpop.permute.xlu0 %696
  %698 = vrot.lane.b32.xlu0 %v664, 56
  %v699 = vpop.permute.xlu0 %698
  %700 = vrot.lane.b32.xlu0 %v665, 56
  %v701 = vpop.permute.xlu0 %700
  %702 = vrot.lane.b32.xlu0 %v666, 56
  %v703 = vpop.permute.xlu0 %702
  %704 = vrot.lane.b32.xlu0 %v667, 56
  %v705 = vpop.permute.xlu0 %704
  %706 = vrot.lane.b32.xlu0 %v668, 56
  %v707 = vpop.permute.xlu0 %706
  %708 = vrot.lane.b32.xlu0 %v669, 56
  %v709 = vpop.permute.xlu0 %708
  %710 = vrot.lane.b32.xlu0 %v670, 56
  %v711 = vpop.permute.xlu0 %710
  %712 = vrot.lane.b32.xlu0 %v671, 56
  %v713 = vpop.permute.xlu0 %712
  %714 = vrot.lane.b32.xlu0 %v672, 56
  %v715 = vpop.permute.xlu0 %714
  %716 = vrot.lane.b32.xlu0 %v673, 56
  %v717 = vpop.permute.xlu0 %716
  %718 = vrot.lane.b32.xlu0 %v674, 56
  %v719 = vpop.permute.xlu0 %718
  %720 = vrot.lane.b32.xlu0 %v675, 56
  %v721 = vpop.permute.xlu0 %720
  %722 = vrot.lane.b32.xlu0 %v676, 56
  %v723 = vpop.permute.xlu0 %722
  %724 = vrot.lane.b32.xlu0 %v677, 56
  %v725 = vpop.permute.xlu0 %724
  %vm742 = vcmask 519616
  %743 = vst.msk [vmem:[#allocation2] sm:$0xf] %vm742, %v695
  %744 = vst.msk [vmem:[#allocation2 + $0x4] sm:$0xf] %vm742, %v697
  %745 = vst.msk [vmem:[#allocation2 + $0x8] sm:$0xf] %vm742, %v699
  %746 = vst.msk [vmem:[#allocation2 + $0xc] sm:$0xf] %vm742, %v701
  %747 = vst.msk [vmem:[#allocation2 + $0x10] sm:$0xf] %vm742, %v703
  %748 = vst.msk [vmem:[#allocation2 + $0x14] sm:$0xf] %vm742, %v705
  %749 = vst.msk [vmem:[#allocation2 + $0x18] sm:$0xf] %vm742, %v707
  %750 = vst.msk [vmem:[#allocation2 + $0x1c] sm:$0xf] %vm742, %v709
  %751 = vst.msk [vmem:[#allocation2 + $0x20] sm:$0xf] %vm742, %v711
  %752 = vst.msk [vmem:[#allocation2 + $0x24] sm:$0xf] %vm742, %v713
  %753 = vst.msk [vmem:[#allocation2 + $0x28] sm:$0xf] %vm742, %v715
  %754 = vst.msk [vmem:[#allocation2 + $0x2c] sm:$0xf] %vm742, %v717
  %755 = vst.msk [vmem:[#allocation2 + $0x30] sm:$0xf] %vm742, %v719
  %756 = vst.msk [vmem:[#allocation2 + $0x34] sm:$0xf] %vm742, %v721
  %757 = vst.msk [vmem:[#allocation2 + $0x38] sm:$0xf] %vm742, %v723
  %758 = vst.msk [vmem:[#allocation2 + $0x3c] sm:$0xf] %vm742, %v725
  %v759 = vld [vmem:[%s563] sm:$0xf]
  %v760 = vld [vmem:[%s563 + $0x4] sm:$0xf]
  %v761 = vld [vmem:[%s563 + $0x8] sm:$0xf]
  %v762 = vld [vmem:[%s563 + $0xc] sm:$0xf]
  %v763 = vld [vmem:[%s563 + $0x10] sm:$0xf]
  %v764 = vld [vmem:[%s563 + $0x14] sm:$0xf]
  %v765 = vld [vmem:[%s563 + $0x18] sm:$0xf]
  %v766 = vld [vmem:[%s563 + $0x1c] sm:$0xf]
  %v767 = vld [vmem:[%s563 + $0x20] sm:$0xf]
  %v768 = vld [vmem:[%s563 + $0x24] sm:$0xf]
  %v769 = vld [vmem:[%s563 + $0x28] sm:$0xf]
  %v770 = vld [vmem:[%s563 + $0x2c] sm:$0xf]
  %v771 = vld [vmem:[%s563 + $0x30] sm:$0xf]
  %v772 = vld [vmem:[%s563 + $0x34] sm:$0xf]
  %v773 = vld [vmem:[%s563 + $0x38] sm:$0xf]
  %v774 = vld [vmem:[%s563 + $0x3c] sm:$0xf]
  %791 = vrot.lane.b32.xlu0 %v759, 63
  %v792 = vpop.permute.xlu0 %791
  %793 = vrot.lane.b32.xlu0 %v760, 63
  %v794 = vpop.permute.xlu0 %793
  %795 = vrot.lane.b32.xlu0 %v761, 63
  %v796 = vpop.permute.xlu0 %795
  %797 = vrot.lane.b32.xlu0 %v762, 63
  %v798 = vpop.permute.xlu0 %797
  %799 = vrot.lane.b32.xlu0 %v763, 63
  %v800 = vpop.permute.xlu0 %799
  %801 = vrot.lane.b32.xlu0 %v764, 63
  %v802 = vpop.permute.xlu0 %801
  %803 = vrot.lane.b32.xlu0 %v765, 63
  %v804 = vpop.permute.xlu0 %803
  %805 = vrot.lane.b32.xlu0 %v766, 63
  %v806 = vpop.permute.xlu0 %805
  %807 = vrot.lane.b32.xlu0 %v767, 63
  %v808 = vpop.permute.xlu0 %807
  %809 = vrot.lane.b32.xlu0 %v768, 63
  %v810 = vpop.permute.xlu0 %809
  %811 = vrot.lane.b32.xlu0 %v769, 63
  %v812 = vpop.permute.xlu0 %811
  %813 = vrot.lane.b32.xlu0 %v770, 63
  %v814 = vpop.permute.xlu0 %813
  %815 = vrot.lane.b32.xlu0 %v771, 63
  %v816 = vpop.permute.xlu0 %815
  %817 = vrot.lane.b32.xlu0 %v772, 63
  %v818 = vpop.permute.xlu0 %817
  %819 = vrot.lane.b32.xlu0 %v773, 63
  %v820 = vpop.permute.xlu0 %819
  %821 = vrot.lane.b32.xlu0 %v774, 63
  %v822 = vpop.permute.xlu0 %821
  %vm839 = vcmask 585216
  %840 = vst.msk [vmem:[#allocation2] sm:$0xf] %vm839, %v792
  %841 = vst.msk [vmem:[#allocation2 + $0x4] sm:$0xf] %vm839, %v794
  %842 = vst.msk [vmem:[#allocation2 + $0x8] sm:$0xf] %vm839, %v796
  %843 = vst.msk [vmem:[#allocation2 + $0xc] sm:$0xf] %vm839, %v798
  %844 = vst.msk [vmem:[#allocation2 + $0x10] sm:$0xf] %vm839, %v800
  %845 = vst.msk [vmem:[#allocation2 + $0x14] sm:$0xf] %vm839, %v802
  %846 = vst.msk [vmem:[#allocation2 + $0x18] sm:$0xf] %vm839, %v804
  %847 = vst.msk [vmem:[#allocation2 + $0x1c] sm:$0xf] %vm839, %v806
  %848 = vst.msk [vmem:[#allocation2 + $0x20] sm:$0xf] %vm839, %v808
  %849 = vst.msk [vmem:[#allocation2 + $0x24] sm:$0xf] %vm839, %v810
  %850 = vst.msk [vmem:[#allocation2 + $0x28] sm:$0xf] %vm839, %v812
  %851 = vst.msk [vmem:[#allocation2 + $0x2c] sm:$0xf] %vm839, %v814
  %852 = vst.msk [vmem:[#allocation2 + $0x30] sm:$0xf] %vm839, %v816
  %853 = vst.msk [vmem:[#allocation2 + $0x34] sm:$0xf] %vm839, %v818
  %854 = vst.msk [vmem:[#allocation2 + $0x38] sm:$0xf] %vm839, %v820
  %855 = vst.msk [vmem:[#allocation2 + $0x3c] sm:$0xf] %vm839, %v822
  %v856 = vld [vmem:[%s75] sm:$0xf]
  %v857 = vld [vmem:[%s75 + $0x4] sm:$0xf]
  %v858 = vld [vmem:[%s75 + $0x8] sm:$0xf]
  %v859 = vld [vmem:[%s75 + $0xc] sm:$0xf]
  %v860 = vld [vmem:[%s75 + $0x10] sm:$0xf]
  %v861 = vld [vmem:[%s75 + $0x14] sm:$0xf]
  %v862 = vld [vmem:[%s75 + $0x18] sm:$0xf]
  %v863 = vld [vmem:[%s75 + $0x1c] sm:$0xf]
  %v864 = vld [vmem:[%s75 + $0x20] sm:$0xf]
  %v865 = vld [vmem:[%s75 + $0x24] sm:$0xf]
  %v866 = vld [vmem:[%s75 + $0x28] sm:$0xf]
  %v867 = vld [vmem:[%s75 + $0x2c] sm:$0xf]
  %v868 = vld [vmem:[%s75 + $0x30] sm:$0xf]
  %v869 = vld [vmem:[%s75 + $0x34] sm:$0xf]
  %v870 = vld [vmem:[%s75 + $0x38] sm:$0xf]
  %v871 = vld [vmem:[%s75 + $0x3c] sm:$0xf]
  %s872 = scalar_lea.vmem [#allocation2], 64
  %873 = vst.msk [vmem:[%s872] sm:$0xf] %vm58, %v856
  %874 = vst.msk [vmem:[%s872 + $0x4] sm:$0xf] %vm58, %v857
  %875 = vst.msk [vmem:[%s872 + $0x8] sm:$0xf] %vm58, %v858
  %876 = vst.msk [vmem:[%s872 + $0xc] sm:$0xf] %vm58, %v859
  %877 = vst.msk [vmem:[%s872 + $0x10] sm:$0xf] %vm58, %v860
  %878 = vst.msk [vmem:[%s872 + $0x14] sm:$0xf] %vm58, %v861
  %879 = vst.msk [vmem:[%s872 + $0x18] sm:$0xf] %vm58, %v862
  %880 = vst.msk [vmem:[%s872 + $0x1c] sm:$0xf] %vm58, %v863
  %881 = vst.msk [vmem:[%s872 + $0x20] sm:$0xf] %vm58, %v864
  %882 = vst.msk [vmem:[%s872 + $0x24] sm:$0xf] %vm58, %v865
  %883 = vst.msk [vmem:[%s872 + $0x28] sm:$0xf] %vm58, %v866
  %884 = vst.msk [vmem:[%s872 + $0x2c] sm:$0xf] %vm58, %v867
  %885 = vst.msk [vmem:[%s872 + $0x30] sm:$0xf] %vm58, %v868
  %886 = vst.msk [vmem:[%s872 + $0x34] sm:$0xf] %vm58, %v869
  %887 = vst.msk [vmem:[%s872 + $0x38] sm:$0xf] %vm58, %v870
  %888 = vst.msk [vmem:[%s872 + $0x3c] sm:$0xf] %vm58, %v871
  %v889 = vld [vmem:[%s0] sm:$0xf]
  %v890 = vld [vmem:[%s0 + $0x4] sm:$0xf]
  %v891 = vld [vmem:[%s0 + $0x8] sm:$0xf]
  %v892 = vld [vmem:[%s0 + $0xc] sm:$0xf]
  %v893 = vld [vmem:[%s0 + $0x10] sm:$0xf]
  %v894 = vld [vmem:[%s0 + $0x14] sm:$0xf]
  %v895 = vld [vmem:[%s0 + $0x18] sm:$0xf]
  %v896 = vld [vmem:[%s0 + $0x1c] sm:$0xf]
  %v897 = vld [vmem:[%s0 + $0x20] sm:$0xf]
  %v898 = vld [vmem:[%s0 + $0x24] sm:$0xf]
  %v899 = vld [vmem:[%s0 + $0x28] sm:$0xf]
  %v900 = vld [vmem:[%s0 + $0x2c] sm:$0xf]
  %v901 = vld [vmem:[%s0 + $0x30] sm:$0xf]
  %v902 = vld [vmem:[%s0 + $0x34] sm:$0xf]
  %v903 = vld [vmem:[%s0 + $0x38] sm:$0xf]
  %v904 = vld [vmem:[%s0 + $0x3c] sm:$0xf]
  %921 = vrot.lane.b32.xlu0 %v889, 7
  %v922 = vpop.permute.xlu0 %921
  %923 = vrot.lane.b32.xlu0 %v890, 7
  %v924 = vpop.permute.xlu0 %923
  %925 = vrot.lane.b32.xlu0 %v891, 7
  %v926 = vpop.permute.xlu0 %925
  %927 = vrot.lane.b32.xlu0 %v892, 7
  %v928 = vpop.permute.xlu0 %927
  %929 = vrot.lane.b32.xlu0 %v893, 7
  %v930 = vpop.permute.xlu0 %929
  %931 = vrot.lane.b32.xlu0 %v894, 7
  %v932 = vpop.permute.xlu0 %931
  %933 = vrot.lane.b32.xlu0 %v895, 7
  %v934 = vpop.permute.xlu0 %933
  %935 = vrot.lane.b32.xlu0 %v896, 7
  %v936 = vpop.permute.xlu0 %935
  %937 = vrot.lane.b32.xlu0 %v897, 7
  %v938 = vpop.permute.xlu0 %937
  %939 = vrot.lane.b32.xlu0 %v898, 7
  %v940 = vpop.permute.xlu0 %939
  %941 = vrot.lane.b32.xlu0 %v899, 7
  %v942 = vpop.permute.xlu0 %941
  %943 = vrot.lane.b32.xlu0 %v900, 7
  %v944 = vpop.permute.xlu0 %943
  %945 = vrot.lane.b32.xlu0 %v901, 7
  %v946 = vpop.permute.xlu0 %945
  %947 = vrot.lane.b32.xlu0 %v902, 7
  %v948 = vpop.permute.xlu0 %947
  %949 = vrot.lane.b32.xlu0 %v903, 7
  %v950 = vpop.permute.xlu0 %949
  %951 = vrot.lane.b32.xlu0 %v904, 7
  %v952 = vpop.permute.xlu0 %951
  %969 = vst.msk [vmem:[%s872] sm:$0xf] %vm156, %v922
  %970 = vst.msk [vmem:[%s872 + $0x4] sm:$0xf] %vm156, %v924
  %971 = vst.msk [vmem:[%s872 + $0x8] sm:$0xf] %vm156, %v926
  %972 = vst.msk [vmem:[%s872 + $0xc] sm:$0xf] %vm156, %v928
  %973 = vst.msk [vmem:[%s872 + $0x10] sm:$0xf] %vm156, %v930
  %974 = vst.msk [vmem:[%s872 + $0x14] sm:$0xf] %vm156, %v932
  %975 = vst.msk [vmem:[%s872 + $0x18] sm:$0xf] %vm156, %v934
  %976 = vst.msk [vmem:[%s872 + $0x1c] sm:$0xf] %vm156, %v936
  %977 = vst.msk [vmem:[%s872 + $0x20] sm:$0xf] %vm156, %v938
  %978 = vst.msk [vmem:[%s872 + $0x24] sm:$0xf] %vm156, %v940
  %979 = vst.msk [vmem:[%s872 + $0x28] sm:$0xf] %vm156, %v942
  %980 = vst.msk [vmem:[%s872 + $0x2c] sm:$0xf] %vm156, %v944
  %981 = vst.msk [vmem:[%s872 + $0x30] sm:$0xf] %vm156, %v946
  %982 = vst.msk [vmem:[%s872 + $0x34] sm:$0xf] %vm156, %v948
  %983 = vst.msk [vmem:[%s872 + $0x38] sm:$0xf] %vm156, %v950
  %984 = vst.msk [vmem:[%s872 + $0x3c] sm:$0xf] %vm156, %v952
  %v985 = vld [vmem:[%s75] sm:$0xf]
  %v986 = vld [vmem:[%s75 + $0x4] sm:$0xf]
  %v987 = vld [vmem:[%s75 + $0x8] sm:$0xf]
  %v988 = vld [vmem:[%s75 + $0xc] sm:$0xf]
  %v989 = vld [vmem:[%s75 + $0x10] sm:$0xf]
  %v990 = vld [vmem:[%s75 + $0x14] sm:$0xf]
  %v991 = vld [vmem:[%s75 + $0x18] sm:$0xf]
  %v992 = vld [vmem:[%s75 + $0x1c] sm:$0xf]
  %v993 = vld [vmem:[%s75 + $0x20] sm:$0xf]
  %v994 = vld [vmem:[%s75 + $0x24] sm:$0xf]
  %v995 = vld [vmem:[%s75 + $0x28] sm:$0xf]
  %v996 = vld [vmem:[%s75 + $0x2c] sm:$0xf]
  %v997 = vld [vmem:[%s75 + $0x30] sm:$0xf]
  %v998 = vld [vmem:[%s75 + $0x34] sm:$0xf]
  %v999 = vld [vmem:[%s75 + $0x38] sm:$0xf]
  %v1000 = vld [vmem:[%s75 + $0x3c] sm:$0xf]
  %1017 = vrot.lane.b32.xlu0 %v985, 15
  %v1018 = vpop.permute.xlu0 %1017
  %1019 = vrot.lane.b32.xlu0 %v986, 15
  %v1020 = vpop.permute.xlu0 %1019
  %1021 = vrot.lane.b32.xlu0 %v987, 15
  %v1022 = vpop.permute.xlu0 %1021
  %1023 = vrot.lane.b32.xlu0 %v988, 15
  %v1024 = vpop.permute.xlu0 %1023
  %1025 = vrot.lane.b32.xlu0 %v989, 15
  %v1026 = vpop.permute.xlu0 %1025
  %1027 = vrot.lane.b32.xlu0 %v990, 15
  %v1028 = vpop.permute.xlu0 %1027
  %1029 = vrot.lane.b32.xlu0 %v991, 15
  %v1030 = vpop.permute.xlu0 %1029
  %1031 = vrot.lane.b32.xlu0 %v992, 15
  %v1032 = vpop.permute.xlu0 %1031
  %1033 = vrot.lane.b32.xlu0 %v993, 15
  %v1034 = vpop.permute.xlu0 %1033
  %1035 = vrot.lane.b32.xlu0 %v994, 15
  %v1036 = vpop.permute.xlu0 %1035
  %1037 = vrot.lane.b32.xlu0 %v995, 15
  %v1038 = vpop.permute.xlu0 %1037
  %1039 = vrot.lane.b32.xlu0 %v996, 15
  %v1040 = vpop.permute.xlu0 %1039
  %1041 = vrot.lane.b32.xlu0 %v997, 15
  %v1042 = vpop.permute.xlu0 %1041
  %1043 = vrot.lane.b32.xlu0 %v998, 15
  %v1044 = vpop.permute.xlu0 %1043
  %1045 = vrot.lane.b32.xlu0 %v999, 15
  %v1046 = vpop.permute.xlu0 %1045
  %1047 = vrot.lane.b32.xlu0 %v1000, 15
  %v1048 = vpop.permute.xlu0 %1047
  %1065 = vst.msk [vmem:[%s872] sm:$0xf] %vm253, %v1018
  %1066 = vst.msk [vmem:[%s872 + $0x4] sm:$0xf] %vm253, %v1020
  %1067 = vst.msk [vmem:[%s872 + $0x8] sm:$0xf] %vm253, %v1022
  %1068 = vst.msk [vmem:[%s872 + $0xc] sm:$0xf] %vm253, %v1024
  %1069 = vst.msk [vmem:[%s872 + $0x10] sm:$0xf] %vm253, %v1026
  %1070 = vst.msk [vmem:[%s872 + $0x14] sm:$0xf] %vm253, %v1028
  %1071 = vst.msk [vmem:[%s872 + $0x18] sm:$0xf] %vm253, %v1030
  %1072 = vst.msk [vmem:[%s872 + $0x1c] sm:$0xf] %vm253, %v1032
  %1073 = vst.msk [vmem:[%s872 + $0x20] sm:$0xf] %vm253, %v1034
  %1074 = vst.msk [vmem:[%s872 + $0x24] sm:$0xf] %vm253, %v1036
  %1075 = vst.msk [vmem:[%s872 + $0x28] sm:$0xf] %vm253, %v1038
  %1076 = vst.msk [vmem:[%s872 + $0x2c] sm:$0xf] %vm253, %v1040
  %1077 = vst.msk [vmem:[%s872 + $0x30] sm:$0xf] %vm253, %v1042
  %1078 = vst.msk [vmem:[%s872 + $0x34] sm:$0xf] %vm253, %v1044
  %1079 = vst.msk [vmem:[%s872 + $0x38] sm:$0xf] %vm253, %v1046
  %1080 = vst.msk [vmem:[%s872 + $0x3c] sm:$0xf] %vm253, %v1048
  %v1081 = vld [vmem:[%s368] sm:$0xf]
  %v1082 = vld [vmem:[%s368 + $0x4] sm:$0xf]
  %v1083 = vld [vmem:[%s368 + $0x8] sm:$0xf]
  %v1084 = vld [vmem:[%s368 + $0xc] sm:$0xf]
  %v1085 = vld [vmem:[%s368 + $0x10] sm:$0xf]
  %v1086 = vld [vmem:[%s368 + $0x14] sm:$0xf]
  %v1087 = vld [vmem:[%s368 + $0x18] sm:$0xf]
  %v1088 = vld [vmem:[%s368 + $0x1c] sm:$0xf]
  %v1089 = vld [vmem:[%s368 + $0x20] sm:$0xf]
  %v1090 = vld [vmem:[%s368 + $0x24] sm:$0xf]
  %v1091 = vld [vmem:[%s368 + $0x28] sm:$0xf]
  %v1092 = vld [vmem:[%s368 + $0x2c] sm:$0xf]
  %v1093 = vld [vmem:[%s368 + $0x30] sm:$0xf]
  %v1094 = vld [vmem:[%s368 + $0x34] sm:$0xf]
  %v1095 = vld [vmem:[%s368 + $0x38] sm:$0xf]
  %v1096 = vld [vmem:[%s368 + $0x3c] sm:$0xf]
  %1113 = vrot.lane.b32.xlu0 %v1081, 24
  %v1114 = vpop.permute.xlu0 %1113
  %1115 = vrot.lane.b32.xlu0 %v1082, 24
  %v1116 = vpop.permute.xlu0 %1115
  %1117 = vrot.lane.b32.xlu0 %v1083, 24
  %v1118 = vpop.permute.xlu0 %1117
  %1119 = vrot.lane.b32.xlu0 %v1084, 24
  %v1120 = vpop.permute.xlu0 %1119
  %1121 = vrot.lane.b32.xlu0 %v1085, 24
  %v1122 = vpop.permute.xlu0 %1121
  %1123 = vrot.lane.b32.xlu0 %v1086, 24
  %v1124 = vpop.permute.xlu0 %1123
  %1125 = vrot.lane.b32.xlu0 %v1087, 24
  %v1126 = vpop.permute.xlu0 %1125
  %1127 = vrot.lane.b32.xlu0 %v1088, 24
  %v1128 = vpop.permute.xlu0 %1127
  %1129 = vrot.lane.b32.xlu0 %v1089, 24
  %v1130 = vpop.permute.xlu0 %1129
  %1131 = vrot.lane.b32.xlu0 %v1090, 24
  %v1132 = vpop.permute.xlu0 %1131
  %1133 = vrot.lane.b32.xlu0 %v1091, 24
  %v1134 = vpop.permute.xlu0 %1133
  %1135 = vrot.lane.b32.xlu0 %v1092, 24
  %v1136 = vpop.permute.xlu0 %1135
  %1137 = vrot.lane.b32.xlu0 %v1093, 24
  %v1138 = vpop.permute.xlu0 %1137
  %1139 = vrot.lane.b32.xlu0 %v1094, 24
  %v1140 = vpop.permute.xlu0 %1139
  %1141 = vrot.lane.b32.xlu0 %v1095, 24
  %v1142 = vpop.permute.xlu0 %1141
  %1143 = vrot.lane.b32.xlu0 %v1096, 24
  %v1144 = vpop.permute.xlu0 %1143
  %1161 = vst.msk [vmem:[%s872] sm:$0xf] %vm351, %v1114
  %1162 = vst.msk [vmem:[%s872 + $0x4] sm:$0xf] %vm351, %v1116
  %1163 = vst.msk [vmem:[%s872 + $0x8] sm:$0xf] %vm351, %v1118
  %1164 = vst.msk [vmem:[%s872 + $0xc] sm:$0xf] %vm351, %v1120
  %1165 = vst.msk [vmem:[%s872 + $0x10] sm:$0xf] %vm351, %v1122
  %1166 = vst.msk [vmem:[%s872 + $0x14] sm:$0xf] %vm351, %v1124
  %1167 = vst.msk [vmem:[%s872 + $0x18] sm:$0xf] %vm351, %v1126
  %1168 = vst.msk [vmem:[%s872 + $0x1c] sm:$0xf] %vm351, %v1128
  %1169 = vst.msk [vmem:[%s872 + $0x20] sm:$0xf] %vm351, %v1130
  %1170 = vst.msk [vmem:[%s872 + $0x24] sm:$0xf] %vm351, %v1132
  %1171 = vst.msk [vmem:[%s872 + $0x28] sm:$0xf] %vm351, %v1134
  %1172 = vst.msk [vmem:[%s872 + $0x2c] sm:$0xf] %vm351, %v1136
  %1173 = vst.msk [vmem:[%s872 + $0x30] sm:$0xf] %vm351, %v1138
  %1174 = vst.msk [vmem:[%s872 + $0x34] sm:$0xf] %vm351, %v1140
  %1175 = vst.msk [vmem:[%s872 + $0x38] sm:$0xf] %vm351, %v1142
  %1176 = vst.msk [vmem:[%s872 + $0x3c] sm:$0xf] %vm351, %v1144
  %v1177 = vld [vmem:[%s270] sm:$0xf]
  %v1178 = vld [vmem:[%s270 + $0x4] sm:$0xf]
  %v1179 = vld [vmem:[%s270 + $0x8] sm:$0xf]
  %v1180 = vld [vmem:[%s270 + $0xc] sm:$0xf]
  %v1181 = vld [vmem:[%s270 + $0x10] sm:$0xf]
  %v1182 = vld [vmem:[%s270 + $0x14] sm:$0xf]
  %v1183 = vld [vmem:[%s270 + $0x18] sm:$0xf]
  %v1184 = vld [vmem:[%s270 + $0x1c] sm:$0xf]
  %v1185 = vld [vmem:[%s270 + $0x20] sm:$0xf]
  %v1186 = vld [vmem:[%s270 + $0x24] sm:$0xf]
  %v1187 = vld [vmem:[%s270 + $0x28] sm:$0xf]
  %v1188 = vld [vmem:[%s270 + $0x2c] sm:$0xf]
  %v1189 = vld [vmem:[%s270 + $0x30] sm:$0xf]
  %v1190 = vld [vmem:[%s270 + $0x34] sm:$0xf]
  %v1191 = vld [vmem:[%s270 + $0x38] sm:$0xf]
  %v1192 = vld [vmem:[%s270 + $0x3c] sm:$0xf]
  %1209 = vrot.lane.b32.xlu0 %v1177, 31
  %v1210 = vpop.permute.xlu0 %1209
  %1211 = vrot.lane.b32.xlu0 %v1178, 31
  %v1212 = vpop.permute.xlu0 %1211
  %1213 = vrot.lane.b32.xlu0 %v1179, 31
  %v1214 = vpop.permute.xlu0 %1213
  %1215 = vrot.lane.b32.xlu0 %v1180, 31
  %v1216 = vpop.permute.xlu0 %1215
  %1217 = vrot.lane.b32.xlu0 %v1181, 31
  %v1218 = vpop.permute.xlu0 %1217
  %1219 = vrot.lane.b32.xlu0 %v1182, 31
  %v1220 = vpop.permute.xlu0 %1219
  %1221 = vrot.lane.b32.xlu0 %v1183, 31
  %v1222 = vpop.permute.xlu0 %1221
  %1223 = vrot.lane.b32.xlu0 %v1184, 31
  %v1224 = vpop.permute.xlu0 %1223
  %1225 = vrot.lane.b32.xlu0 %v1185, 31
  %v1226 = vpop.permute.xlu0 %1225
  %1227 = vrot.lane.b32.xlu0 %v1186, 31
  %v1228 = vpop.permute.xlu0 %1227
  %1229 = vrot.lane.b32.xlu0 %v1187, 31
  %v1230 = vpop.permute.xlu0 %1229
  %1231 = vrot.lane.b32.xlu0 %v1188, 31
  %v1232 = vpop.permute.xlu0 %1231
  %1233 = vrot.lane.b32.xlu0 %v1189, 31
  %v1234 = vpop.permute.xlu0 %1233
  %1235 = vrot.lane.b32.xlu0 %v1190, 31
  %v1236 = vpop.permute.xlu0 %1235
  %1237 = vrot.lane.b32.xlu0 %v1191, 31
  %v1238 = vpop.permute.xlu0 %1237
  %1239 = vrot.lane.b32.xlu0 %v1192, 31
  %v1240 = vpop.permute.xlu0 %1239
  %1257 = vst.msk [vmem:[%s872] sm:$0xf] %vm449, %v1210
  %1258 = vst.msk [vmem:[%s872 + $0x4] sm:$0xf] %vm449, %v1212
  %1259 = vst.msk [vmem:[%s872 + $0x8] sm:$0xf] %vm449, %v1214
  %1260 = vst.msk [vmem:[%s872 + $0xc] sm:$0xf] %vm449, %v1216
  %1261 = vst.msk [vmem:[%s872 + $0x10] sm:$0xf] %vm449, %v1218
  %1262 = vst.msk [vmem:[%s872 + $0x14] sm:$0xf] %vm449, %v1220
  %1263 = vst.msk [vmem:[%s872 + $0x18] sm:$0xf] %vm449, %v1222
  %1264 = vst.msk [vmem:[%s872 + $0x1c] sm:$0xf] %vm449, %v1224
  %1265 = vst.msk [vmem:[%s872 + $0x20] sm:$0xf] %vm449, %v1226
  %1266 = vst.msk [vmem:[%s872 + $0x24] sm:$0xf] %vm449, %v1228
  %1267 = vst.msk [vmem:[%s872 + $0x28] sm:$0xf] %vm449, %v1230
  %1268 = vst.msk [vmem:[%s872 + $0x2c] sm:$0xf] %vm449, %v1232
  %1269 = vst.msk [vmem:[%s872 + $0x30] sm:$0xf] %vm449, %v1234
  %1270 = vst.msk [vmem:[%s872 + $0x34] sm:$0xf] %vm449, %v1236
  %1271 = vst.msk [vmem:[%s872 + $0x38] sm:$0xf] %vm449, %v1238
  %1272 = vst.msk [vmem:[%s872 + $0x3c] sm:$0xf] %vm449, %v1240
  %v1273 = vld [vmem:[%s368] sm:$0xf]
  %v1274 = vld [vmem:[%s368 + $0x4] sm:$0xf]
  %v1275 = vld [vmem:[%s368 + $0x8] sm:$0xf]
  %v1276 = vld [vmem:[%s368 + $0xc] sm:$0xf]
  %v1277 = vld [vmem:[%s368 + $0x10] sm:$0xf]
  %v1278 = vld [vmem:[%s368 + $0x14] sm:$0xf]
  %v1279 = vld [vmem:[%s368 + $0x18] sm:$0xf]
  %v1280 = vld [vmem:[%s368 + $0x1c] sm:$0xf]
  %v1281 = vld [vmem:[%s368 + $0x20] sm:$0xf]
  %v1282 = vld [vmem:[%s368 + $0x24] sm:$0xf]
  %v1283 = vld [vmem:[%s368 + $0x28] sm:$0xf]
  %v1284 = vld [vmem:[%s368 + $0x2c] sm:$0xf]
  %v1285 = vld [vmem:[%s368 + $0x30] sm:$0xf]
  %v1286 = vld [vmem:[%s368 + $0x34] sm:$0xf]
  %v1287 = vld [vmem:[%s368 + $0x38] sm:$0xf]
  %v1288 = vld [vmem:[%s368 + $0x3c] sm:$0xf]
  %1305 = vrot.lane.b32.xlu0 %v1273, 39
  %v1306 = vpop.permute.xlu0 %1305
  %1307 = vrot.lane.b32.xlu0 %v1274, 39
  %v1308 = vpop.permute.xlu0 %1307
  %1309 = vrot.lane.b32.xlu0 %v1275, 39
  %v1310 = vpop.permute.xlu0 %1309
  %1311 = vrot.lane.b32.xlu0 %v1276, 39
  %v1312 = vpop.permute.xlu0 %1311
  %1313 = vrot.lane.b32.xlu0 %v1277, 39
  %v1314 = vpop.permute.xlu0 %1313
  %1315 = vrot.lane.b32.xlu0 %v1278, 39
  %v1316 = vpop.permute.xlu0 %1315
  %1317 = vrot.lane.b32.xlu0 %v1279, 39
  %v1318 = vpop.permute.xlu0 %1317
  %1319 = vrot.lane.b32.xlu0 %v1280, 39
  %v1320 = vpop.permute.xlu0 %1319
  %1321 = vrot.lane.b32.xlu0 %v1281, 39
  %v1322 = vpop.permute.xlu0 %1321
  %1323 = vrot.lane.b32.xlu0 %v1282, 39
  %v1324 = vpop.permute.xlu0 %1323
  %1325 = vrot.lane.b32.xlu0 %v1283, 39
  %v1326 = vpop.permute.xlu0 %1325
  %1327 = vrot.lane.b32.xlu0 %v1284, 39
  %v1328 = vpop.permute.xlu0 %1327
  %1329 = vrot.lane.b32.xlu0 %v1285, 39
  %v1330 = vpop.permute.xlu0 %1329
  %1331 = vrot.lane.b32.xlu0 %v1286, 39
  %v1332 = vpop.permute.xlu0 %1331
  %1333 = vrot.lane.b32.xlu0 %v1287, 39
  %v1334 = vpop.permute.xlu0 %1333
  %1335 = vrot.lane.b32.xlu0 %v1288, 39
  %v1336 = vpop.permute.xlu0 %1335
  %1353 = vst.msk [vmem:[%s872] sm:$0xf] %vm546, %v1306
  %1354 = vst.msk [vmem:[%s872 + $0x4] sm:$0xf] %vm546, %v1308
  %1355 = vst.msk [vmem:[%s872 + $0x8] sm:$0xf] %vm546, %v1310
  %1356 = vst.msk [vmem:[%s872 + $0xc] sm:$0xf] %vm546, %v1312
  %1357 = vst.msk [vmem:[%s872 + $0x10] sm:$0xf] %vm546, %v1314
  %1358 = vst.msk [vmem:[%s872 + $0x14] sm:$0xf] %vm546, %v1316
  %1359 = vst.msk [vmem:[%s872 + $0x18] sm:$0xf] %vm546, %v1318
  %1360 = vst.msk [vmem:[%s872 + $0x1c] sm:$0xf] %vm546, %v1320
  %1361 = vst.msk [vmem:[%s872 + $0x20] sm:$0xf] %vm546, %v1322
  %1362 = vst.msk [vmem:[%s872 + $0x24] sm:$0xf] %vm546, %v1324
  %1363 = vst.msk [vmem:[%s872 + $0x28] sm:$0xf] %vm546, %v1326
  %1364 = vst.msk [vmem:[%s872 + $0x2c] sm:$0xf] %vm546, %v1328
  %1365 = vst.msk [vmem:[%s872 + $0x30] sm:$0xf] %vm546, %v1330
  %1366 = vst.msk [vmem:[%s872 + $0x34] sm:$0xf] %vm546, %v1332
  %1367 = vst.msk [vmem:[%s872 + $0x38] sm:$0xf] %vm546, %v1334
  %1368 = vst.msk [vmem:[%s872 + $0x3c] sm:$0xf] %vm546, %v1336
  %v1369 = vld [vmem:[%s661] sm:$0xf]
  %v1370 = vld [vmem:[%s661 + $0x4] sm:$0xf]
  %v1371 = vld [vmem:[%s661 + $0x8] sm:$0xf]
  %v1372 = vld [vmem:[%s661 + $0xc] sm:$0xf]
  %v1373 = vld [vmem:[%s661 + $0x10] sm:$0xf]
  %v1374 = vld [vmem:[%s661 + $0x14] sm:$0xf]
  %v1375 = vld [vmem:[%s661 + $0x18] sm:$0xf]
  %v1376 = vld [vmem:[%s661 + $0x1c] sm:$0xf]
  %v1377 = vld [vmem:[%s661 + $0x20] sm:$0xf]
  %v1378 = vld [vmem:[%s661 + $0x24] sm:$0xf]
  %v1379 = vld [vmem:[%s661 + $0x28] sm:$0xf]
  %v1380 = vld [vmem:[%s661 + $0x2c] sm:$0xf]
  %v1381 = vld [vmem:[%s661 + $0x30] sm:$0xf]
  %v1382 = vld [vmem:[%s661 + $0x34] sm:$0xf]
  %v1383 = vld [vmem:[%s661 + $0x38] sm:$0xf]
  %v1384 = vld [vmem:[%s661 + $0x3c] sm:$0xf]
  %1401 = vrot.lane.b32.xlu0 %v1369, 48
  %v1402 = vpop.permute.xlu0 %1401
  %1403 = vrot.lane.b32.xlu0 %v1370, 48
  %v1404 = vpop.permute.xlu0 %1403
  %1405 = vrot.lane.b32.xlu0 %v1371, 48
  %v1406 = vpop.permute.xlu0 %1405
  %1407 = vrot.lane.b32.xlu0 %v1372, 48
  %v1408 = vpop.permute.xlu0 %1407
  %1409 = vrot.lane.b32.xlu0 %v1373, 48
  %v1410 = vpop.permute.xlu0 %1409
  %1411 = vrot.lane.b32.xlu0 %v1374, 48
  %v1412 = vpop.permute.xlu0 %1411
  %1413 = vrot.lane.b32.xlu0 %v1375, 48
  %v1414 = vpop.permute.xlu0 %1413
  %1415 = vrot.lane.b32.xlu0 %v1376, 48
  %v1416 = vpop.permute.xlu0 %1415
  %1417 = vrot.lane.b32.xlu0 %v1377, 48
  %v1418 = vpop.permute.xlu0 %1417
  %1419 = vrot.lane.b32.xlu0 %v1378, 48
  %v1420 = vpop.permute.xlu0 %1419
  %1421 = vrot.lane.b32.xlu0 %v1379, 48
  %v1422 = vpop.permute.xlu0 %1421
  %1423 = vrot.lane.b32.xlu0 %v1380, 48
  %v1424 = vpop.permute.xlu0 %1423
  %1425 = vrot.lane.b32.xlu0 %v1381, 48
  %v1426 = vpop.permute.xlu0 %1425
  %1427 = vrot.lane.b32.xlu0 %v1382, 48
  %v1428 = vpop.permute.xlu0 %1427
  %1429 = vrot.lane.b32.xlu0 %v1383, 48
  %v1430 = vpop.permute.xlu0 %1429
  %1431 = vrot.lane.b32.xlu0 %v1384, 48
  %v1432 = vpop.permute.xlu0 %1431
  %1449 = vst.msk [vmem:[%s872] sm:$0xf] %vm644, %v1402
  %1450 = vst.msk [vmem:[%s872 + $0x4] sm:$0xf] %vm644, %v1404
  %1451 = vst.msk [vmem:[%s872 + $0x8] sm:$0xf] %vm644, %v1406
  %1452 = vst.msk [vmem:[%s872 + $0xc] sm:$0xf] %vm644, %v1408
  %1453 = vst.msk [vmem:[%s872 + $0x10] sm:$0xf] %vm644, %v1410
  %1454 = vst.msk [vmem:[%s872 + $0x14] sm:$0xf] %vm644, %v1412
  %1455 = vst.msk [vmem:[%s872 + $0x18] sm:$0xf] %vm644, %v1414
  %1456 = vst.msk [vmem:[%s872 + $0x1c] sm:$0xf] %vm644, %v1416
  %1457 = vst.msk [vmem:[%s872 + $0x20] sm:$0xf] %vm644, %v1418
  %1458 = vst.msk [vmem:[%s872 + $0x24] sm:$0xf] %vm644, %v1420
  %1459 = vst.msk [vmem:[%s872 + $0x28] sm:$0xf] %vm644, %v1422
  %1460 = vst.msk [vmem:[%s872 + $0x2c] sm:$0xf] %vm644, %v1424
  %1461 = vst.msk [vmem:[%s872 + $0x30] sm:$0xf] %vm644, %v1426
  %1462 = vst.msk [vmem:[%s872 + $0x34] sm:$0xf] %vm644, %v1428
  %1463 = vst.msk [vmem:[%s872 + $0x38] sm:$0xf] %vm644, %v1430
  %1464 = vst.msk [vmem:[%s872 + $0x3c] sm:$0xf] %vm644, %v1432
  %v1465 = vld [vmem:[%s563] sm:$0xf]
  %v1466 = vld [vmem:[%s563 + $0x4] sm:$0xf]
  %v1467 = vld [vmem:[%s563 + $0x8] sm:$0xf]
  %v1468 = vld [vmem:[%s563 + $0xc] sm:$0xf]
  %v1469 = vld [vmem:[%s563 + $0x10] sm:$0xf]
  %v1470 = vld [vmem:[%s563 + $0x14] sm:$0xf]
  %v1471 = vld [vmem:[%s563 + $0x18] sm:$0xf]
  %v1472 = vld [vmem:[%s563 + $0x1c] sm:$0xf]
  %v1473 = vld [vmem:[%s563 + $0x20] sm:$0xf]
  %v1474 = vld [vmem:[%s563 + $0x24] sm:$0xf]
  %v1475 = vld [vmem:[%s563 + $0x28] sm:$0xf]
  %v1476 = vld [vmem:[%s563 + $0x2c] sm:$0xf]
  %v1477 = vld [vmem:[%s563 + $0x30] sm:$0xf]
  %v1478 = vld [vmem:[%s563 + $0x34] sm:$0xf]
  %v1479 = vld [vmem:[%s563 + $0x38] sm:$0xf]
  %v1480 = vld [vmem:[%s563 + $0x3c] sm:$0xf]
  %1497 = vrot.lane.b32.xlu0 %v1465, 55
  %v1498 = vpop.permute.xlu0 %1497
  %1499 = vrot.lane.b32.xlu0 %v1466, 55
  %v1500 = vpop.permute.xlu0 %1499
  %1501 = vrot.lane.b32.xlu0 %v1467, 55
  %v1502 = vpop.permute.xlu0 %1501
  %1503 = vrot.lane.b32.xlu0 %v1468, 55
  %v1504 = vpop.permute.xlu0 %1503
  %1505 = vrot.lane.b32.xlu0 %v1469, 55
  %v1506 = vpop.permute.xlu0 %1505
  %1507 = vrot.lane.b32.xlu0 %v1470, 55
  %v1508 = vpop.permute.xlu0 %1507
  %1509 = vrot.lane.b32.xlu0 %v1471, 55
  %v1510 = vpop.permute.xlu0 %1509
  %1511 = vrot.lane.b32.xlu0 %v1472, 55
  %v1512 = vpop.permute.xlu0 %1511
  %1513 = vrot.lane.b32.xlu0 %v1473, 55
  %v1514 = vpop.permute.xlu0 %1513
  %1515 = vrot.lane.b32.xlu0 %v1474, 55
  %v1516 = vpop.permute.xlu0 %1515
  %1517 = vrot.lane.b32.xlu0 %v1475, 55
  %v1518 = vpop.permute.xlu0 %1517
  %1519 = vrot.lane.b32.xlu0 %v1476, 55
  %v1520 = vpop.permute.xlu0 %1519
  %1521 = vrot.lane.b32.xlu0 %v1477, 55
  %v1522 = vpop.permute.xlu0 %1521
  %1523 = vrot.lane.b32.xlu0 %v1478, 55
  %v1524 = vpop.permute.xlu0 %1523
  %1525 = vrot.lane.b32.xlu0 %v1479, 55
  %v1526 = vpop.permute.xlu0 %1525
  %1527 = vrot.lane.b32.xlu0 %v1480, 55
  %v1528 = vpop.permute.xlu0 %1527
  %1545 = vst.msk [vmem:[%s872] sm:$0xf] %vm742, %v1498
  %1546 = vst.msk [vmem:[%s872 + $0x4] sm:$0xf] %vm742, %v1500
  %1547 = vst.msk [vmem:[%s872 + $0x8] sm:$0xf] %vm742, %v1502
  %1548 = vst.msk [vmem:[%s872 + $0xc] sm:$0xf] %vm742, %v1504
  %1549 = vst.msk [vmem:[%s872 + $0x10] sm:$0xf] %vm742, %v1506
  %1550 = vst.msk [vmem:[%s872 + $0x14] sm:$0xf] %vm742, %v1508
  %1551 = vst.msk [vmem:[%s872 + $0x18] sm:$0xf] %vm742, %v1510
  %1552 = vst.msk [vmem:[%s872 + $0x1c] sm:$0xf] %vm742, %v1512
  %1553 = vst.msk [vmem:[%s872 + $0x20] sm:$0xf] %vm742, %v1514
  %1554 = vst.msk [vmem:[%s872 + $0x24] sm:$0xf] %vm742, %v1516
  %1555 = vst.msk [vmem:[%s872 + $0x28] sm:$0xf] %vm742, %v1518
  %1556 = vst.msk [vmem:[%s872 + $0x2c] sm:$0xf] %vm742, %v1520
  %1557 = vst.msk [vmem:[%s872 + $0x30] sm:$0xf] %vm742, %v1522
  %1558 = vst.msk [vmem:[%s872 + $0x34] sm:$0xf] %vm742, %v1524
  %1559 = vst.msk [vmem:[%s872 + $0x38] sm:$0xf] %vm742, %v1526
  %1560 = vst.msk [vmem:[%s872 + $0x3c] sm:$0xf] %vm742, %v1528
  %v1561 = vld [vmem:[%s661] sm:$0xf]
  %v1562 = vld [vmem:[%s661 + $0x4] sm:$0xf]
  %v1563 = vld [vmem:[%s661 + $0x8] sm:$0xf]
  %v1564 = vld [vmem:[%s661 + $0xc] sm:$0xf]
  %v1565 = vld [vmem:[%s661 + $0x10] sm:$0xf]
  %v1566 = vld [vmem:[%s661 + $0x14] sm:$0xf]
  %v1567 = vld [vmem:[%s661 + $0x18] sm:$0xf]
  %v1568 = vld [vmem:[%s661 + $0x1c] sm:$0xf]
  %v1569 = vld [vmem:[%s661 + $0x20] sm:$0xf]
  %v1570 = vld [vmem:[%s661 + $0x24] sm:$0xf]
  %v1571 = vld [vmem:[%s661 + $0x28] sm:$0xf]
  %v1572 = vld [vmem:[%s661 + $0x2c] sm:$0xf]
  %v1573 = vld [vmem:[%s661 + $0x30] sm:$0xf]
  %v1574 = vld [vmem:[%s661 + $0x34] sm:$0xf]
  %v1575 = vld [vmem:[%s661 + $0x38] sm:$0xf]
  %v1576 = vld [vmem:[%s661 + $0x3c] sm:$0xf]
  %1593 = vrot.lane.b32.xlu0 %v1561, 63
  %v1594 = vpop.permute.xlu0 %1593
  %1595 = vrot.lane.b32.xlu0 %v1562, 63
  %v1596 = vpop.permute.xlu0 %1595
  %1597 = vrot.lane.b32.xlu0 %v1563, 63
  %v1598 = vpop.permute.xlu0 %1597
  %1599 = vrot.lane.b32.xlu0 %v1564, 63
  %v1600 = vpop.permute.xlu0 %1599
  %1601 = vrot.lane.b32.xlu0 %v1565, 63
  %v1602 = vpop.permute.xlu0 %1601
  %1603 = vrot.lane.b32.xlu0 %v1566, 63
  %v1604 = vpop.permute.xlu0 %1603
  %1605 = vrot.lane.b32.xlu0 %v1567, 63
  %v1606 = vpop.permute.xlu0 %1605
  %1607 = vrot.lane.b32.xlu0 %v1568, 63
  %v1608 = vpop.permute.xlu0 %1607
  %1609 = vrot.lane.b32.xlu0 %v1569, 63
  %v1610 = vpop.permute.xlu0 %1609
  %1611 = vrot.lane.b32.xlu0 %v1570, 63
  %v1612 = vpop.permute.xlu0 %1611
  %1613 = vrot.lane.b32.xlu0 %v1571, 63
  %v1614 = vpop.permute.xlu0 %1613
  %1615 = vrot.lane.b32.xlu0 %v1572, 63
  %v1616 = vpop.permute.xlu0 %1615
  %1617 = vrot.lane.b32.xlu0 %v1573, 63
  %v1618 = vpop.permute.xlu0 %1617
  %1619 = vrot.lane.b32.xlu0 %v1574, 63
  %v1620 = vpop.permute.xlu0 %1619
  %1621 = vrot.lane.b32.xlu0 %v1575, 63
  %v1622 = vpop.permute.xlu0 %1621
  %1623 = vrot.lane.b32.xlu0 %v1576, 63
  %v1624 = vpop.permute.xlu0 %1623
  %1641 = vst.msk [vmem:[%s872] sm:$0xf] %vm839, %v1594
  %1642 = vst.msk [vmem:[%s872 + $0x4] sm:$0xf] %vm839, %v1596
  %1643 = vst.msk [vmem:[%s872 + $0x8] sm:$0xf] %vm839, %v1598
  %1644 = vst.msk [vmem:[%s872 + $0xc] sm:$0xf] %vm839, %v1600
  %1645 = vst.msk [vmem:[%s872 + $0x10] sm:$0xf] %vm839, %v1602
  %1646 = vst.msk [vmem:[%s872 + $0x14] sm:$0xf] %vm839, %v1604
  %1647 = vst.msk [vmem:[%s872 + $0x18] sm:$0xf] %vm839, %v1606
  %1648 = vst.msk [vmem:[%s872 + $0x1c] sm:$0xf] %vm839, %v1608
  %1649 = vst.msk [vmem:[%s872 + $0x20] sm:$0xf] %vm839, %v1610
  %1650 = vst.msk [vmem:[%s872 + $0x24] sm:$0xf] %vm839, %v1612
  %1651 = vst.msk [vmem:[%s872 + $0x28] sm:$0xf] %vm839, %v1614
  %1652 = vst.msk [vmem:[%s872 + $0x2c] sm:$0xf] %vm839, %v1616
  %1653 = vst.msk [vmem:[%s872 + $0x30] sm:$0xf] %vm839, %v1618
  %1654 = vst.msk [vmem:[%s872 + $0x34] sm:$0xf] %vm839, %v1620
  %1655 = vst.msk [vmem:[%s872 + $0x38] sm:$0xf] %vm839, %v1622
  %1656 = vst.msk [vmem:[%s872 + $0x3c] sm:$0xf] %vm839, %v1624
  %v1657 = vld [vmem:[%s270] sm:$0xf]
  %v1658 = vld [vmem:[%s270 + $0x4] sm:$0xf]
  %v1659 = vld [vmem:[%s270 + $0x8] sm:$0xf]
  %v1660 = vld [vmem:[%s270 + $0xc] sm:$0xf]
  %v1661 = vld [vmem:[%s270 + $0x10] sm:$0xf]
  %v1662 = vld [vmem:[%s270 + $0x14] sm:$0xf]
  %v1663 = vld [vmem:[%s270 + $0x18] sm:$0xf]
  %v1664 = vld [vmem:[%s270 + $0x1c] sm:$0xf]
  %v1665 = vld [vmem:[%s270 + $0x20] sm:$0xf]
  %v1666 = vld [vmem:[%s270 + $0x24] sm:$0xf]
  %v1667 = vld [vmem:[%s270 + $0x28] sm:$0xf]
  %v1668 = vld [vmem:[%s270 + $0x2c] sm:$0xf]
  %v1669 = vld [vmem:[%s270 + $0x30] sm:$0xf]
  %v1670 = vld [vmem:[%s270 + $0x34] sm:$0xf]
  %v1671 = vld [vmem:[%s270 + $0x38] sm:$0xf]
  %v1672 = vld [vmem:[%s270 + $0x3c] sm:$0xf]
  %s1673 = scalar_lea.vmem [#allocation2], 128
  %1674 = vst.msk [vmem:[%s1673] sm:$0xf] %vm58, %v1657
  %1675 = vst.msk [vmem:[%s1673 + $0x4] sm:$0xf] %vm58, %v1658
  %1676 = vst.msk [vmem:[%s1673 + $0x8] sm:$0xf] %vm58, %v1659
  %1677 = vst.msk [vmem:[%s1673 + $0xc] sm:$0xf] %vm58, %v1660
  %1678 = vst.msk [vmem:[%s1673 + $0x10] sm:$0xf] %vm58, %v1661
  %1679 = vst.msk [vmem:[%s1673 + $0x14] sm:$0xf] %vm58, %v1662
  %1680 = vst.msk [vmem:[%s1673 + $0x18] sm:$0xf] %vm58, %v1663
  %1681 = vst.msk [vmem:[%s1673 + $0x1c] sm:$0xf] %vm58, %v1664
  %1682 = vst.msk [vmem:[%s1673 + $0x20] sm:$0xf] %vm58, %v1665
  %1683 = vst.msk [vmem:[%s1673 + $0x24] sm:$0xf] %vm58, %v1666
  %1684 = vst.msk [vmem:[%s1673 + $0x28] sm:$0xf] %vm58, %v1667
  %1685 = vst.msk [vmem:[%s1673 + $0x2c] sm:$0xf] %vm58, %v1668
  %1686 = vst.msk [vmem:[%s1673 + $0x30] sm:$0xf] %vm58, %v1669
  %1687 = vst.msk [vmem:[%s1673 + $0x34] sm:$0xf] %vm58, %v1670
  %1688 = vst.msk [vmem:[%s1673 + $0x38] sm:$0xf] %vm58, %v1671
  %1689 = vst.msk [vmem:[%s1673 + $0x3c] sm:$0xf] %vm58, %v1672
  %v1690 = vld [vmem:[%s368] sm:$0xf]
  %v1691 = vld [vmem:[%s368 + $0x4] sm:$0xf]
  %v1692 = vld [vmem:[%s368 + $0x8] sm:$0xf]
  %v1693 = vld [vmem:[%s368 + $0xc] sm:$0xf]
  %v1694 = vld [vmem:[%s368 + $0x10] sm:$0xf]
  %v1695 = vld [vmem:[%s368 + $0x14] sm:$0xf]
  %v1696 = vld [vmem:[%s368 + $0x18] sm:$0xf]
  %v1697 = vld [vmem:[%s368 + $0x1c] sm:$0xf]
  %v1698 = vld [vmem:[%s368 + $0x20] sm:$0xf]
  %v1699 = vld [vmem:[%s368 + $0x24] sm:$0xf]
  %v1700 = vld [vmem:[%s368 + $0x28] sm:$0xf]
  %v1701 = vld [vmem:[%s368 + $0x2c] sm:$0xf]
  %v1702 = vld [vmem:[%s368 + $0x30] sm:$0xf]
  %v1703 = vld [vmem:[%s368 + $0x34] sm:$0xf]
  %v1704 = vld [vmem:[%s368 + $0x38] sm:$0xf]
  %v1705 = vld [vmem:[%s368 + $0x3c] sm:$0xf]
  %1722 = vrot.lane.b32.xlu0 %v1690, 8
  %v1723 = vpop.permute.xlu0 %1722
  %1724 = vrot.lane.b32.xlu0 %v1691, 8
  %v1725 = vpop.permute.xlu0 %1724
  %1726 = vrot.lane.b32.xlu0 %v1692, 8
  %v1727 = vpop.permute.xlu0 %1726
  %1728 = vrot.lane.b32.xlu0 %v1693, 8
  %v1729 = vpop.permute.xlu0 %1728
  %1730 = vrot.lane.b32.xlu0 %v1694, 8
  %v1731 = vpop.permute.xlu0 %1730
  %1732 = vrot.lane.b32.xlu0 %v1695, 8
  %v1733 = vpop.permute.xlu0 %1732
  %1734 = vrot.lane.b32.xlu0 %v1696, 8
  %v1735 = vpop.permute.xlu0 %1734
  %1736 = vrot.lane.b32.xlu0 %v1697, 8
  %v1737 = vpop.permute.xlu0 %1736
  %1738 = vrot.lane.b32.xlu0 %v1698, 8
  %v1739 = vpop.permute.xlu0 %1738
  %1740 = vrot.lane.b32.xlu0 %v1699, 8
  %v1741 = vpop.permute.xlu0 %1740
  %1742 = vrot.lane.b32.xlu0 %v1700, 8
  %v1743 = vpop.permute.xlu0 %1742
  %1744 = vrot.lane.b32.xlu0 %v1701, 8
  %v1745 = vpop.permute.xlu0 %1744
  %1746 = vrot.lane.b32.xlu0 %v1702, 8
  %v1747 = vpop.permute.xlu0 %1746
  %1748 = vrot.lane.b32.xlu0 %v1703, 8
  %v1749 = vpop.permute.xlu0 %1748
  %1750 = vrot.lane.b32.xlu0 %v1704, 8
  %v1751 = vpop.permute.xlu0 %1750
  %1752 = vrot.lane.b32.xlu0 %v1705, 8
  %v1753 = vpop.permute.xlu0 %1752
  %1770 = vst.msk [vmem:[%s1673] sm:$0xf] %vm156, %v1723
  %1771 = vst.msk [vmem:[%s1673 + $0x4] sm:$0xf] %vm156, %v1725
  %1772 = vst.msk [vmem:[%s1673 + $0x8] sm:$0xf] %vm156, %v1727
  %1773 = vst.msk [vmem:[%s1673 + $0xc] sm:$0xf] %vm156, %v1729
  %1774 = vst.msk [vmem:[%s1673 + $0x10] sm:$0xf] %vm156, %v1731
  %1775 = vst.msk [vmem:[%s1673 + $0x14] sm:$0xf] %vm156, %v1733
  %1776 = vst.msk [vmem:[%s1673 + $0x18] sm:$0xf] %vm156, %v1735
  %1777 = vst.msk [vmem:[%s1673 + $0x1c] sm:$0xf] %vm156, %v1737
  %1778 = vst.msk [vmem:[%s1673 + $0x20] sm:$0xf] %vm156, %v1739
  %1779 = vst.msk [vmem:[%s1673 + $0x24] sm:$0xf] %vm156, %v1741
  %1780 = vst.msk [vmem:[%s1673 + $0x28] sm:$0xf] %vm156, %v1743
  %1781 = vst.msk [vmem:[%s1673 + $0x2c] sm:$0xf] %vm156, %v1745
  %1782 = vst.msk [vmem:[%s1673 + $0x30] sm:$0xf] %vm156, %v1747
  %1783 = vst.msk [vmem:[%s1673 + $0x34] sm:$0xf] %vm156, %v1749
  %1784 = vst.msk [vmem:[%s1673 + $0x38] sm:$0xf] %vm156, %v1751
  %1785 = vst.msk [vmem:[%s1673 + $0x3c] sm:$0xf] %vm156, %v1753
  %v1786 = vld [vmem:[%s270] sm:$0xf]
  %v1787 = vld [vmem:[%s270 + $0x4] sm:$0xf]
  %v1788 = vld [vmem:[%s270 + $0x8] sm:$0xf]
  %v1789 = vld [vmem:[%s270 + $0xc] sm:$0xf]
  %v1790 = vld [vmem:[%s270 + $0x10] sm:$0xf]
  %v1791 = vld [vmem:[%s270 + $0x14] sm:$0xf]
  %v1792 = vld [vmem:[%s270 + $0x18] sm:$0xf]
  %v1793 = vld [vmem:[%s270 + $0x1c] sm:$0xf]
  %v1794 = vld [vmem:[%s270 + $0x20] sm:$0xf]
  %v1795 = vld [vmem:[%s270 + $0x24] sm:$0xf]
  %v1796 = vld [vmem:[%s270 + $0x28] sm:$0xf]
  %v1797 = vld [vmem:[%s270 + $0x2c] sm:$0xf]
  %v1798 = vld [vmem:[%s270 + $0x30] sm:$0xf]
  %v1799 = vld [vmem:[%s270 + $0x34] sm:$0xf]
  %v1800 = vld [vmem:[%s270 + $0x38] sm:$0xf]
  %v1801 = vld [vmem:[%s270 + $0x3c] sm:$0xf]
  %1818 = vrot.lane.b32.xlu0 %v1786, 15
  %v1819 = vpop.permute.xlu0 %1818
  %1820 = vrot.lane.b32.xlu0 %v1787, 15
  %v1821 = vpop.permute.xlu0 %1820
  %1822 = vrot.lane.b32.xlu0 %v1788, 15
  %v1823 = vpop.permute.xlu0 %1822
  %1824 = vrot.lane.b32.xlu0 %v1789, 15
  %v1825 = vpop.permute.xlu0 %1824
  %1826 = vrot.lane.b32.xlu0 %v1790, 15
  %v1827 = vpop.permute.xlu0 %1826
  %1828 = vrot.lane.b32.xlu0 %v1791, 15
  %v1829 = vpop.permute.xlu0 %1828
  %1830 = vrot.lane.b32.xlu0 %v1792, 15
  %v1831 = vpop.permute.xlu0 %1830
  %1832 = vrot.lane.b32.xlu0 %v1793, 15
  %v1833 = vpop.permute.xlu0 %1832
  %1834 = vrot.lane.b32.xlu0 %v1794, 15
  %v1835 = vpop.permute.xlu0 %1834
  %1836 = vrot.lane.b32.xlu0 %v1795, 15
  %v1837 = vpop.permute.xlu0 %1836
  %1838 = vrot.lane.b32.xlu0 %v1796, 15
  %v1839 = vpop.permute.xlu0 %1838
  %1840 = vrot.lane.b32.xlu0 %v1797, 15
  %v1841 = vpop.permute.xlu0 %1840
  %1842 = vrot.lane.b32.xlu0 %v1798, 15
  %v1843 = vpop.permute.xlu0 %1842
  %1844 = vrot.lane.b32.xlu0 %v1799, 15
  %v1845 = vpop.permute.xlu0 %1844
  %1846 = vrot.lane.b32.xlu0 %v1800, 15
  %v1847 = vpop.permute.xlu0 %1846
  %1848 = vrot.lane.b32.xlu0 %v1801, 15
  %v1849 = vpop.permute.xlu0 %1848
  %1866 = vst.msk [vmem:[%s1673] sm:$0xf] %vm253, %v1819
  %1867 = vst.msk [vmem:[%s1673 + $0x4] sm:$0xf] %vm253, %v1821
  %1868 = vst.msk [vmem:[%s1673 + $0x8] sm:$0xf] %vm253, %v1823
  %1869 = vst.msk [vmem:[%s1673 + $0xc] sm:$0xf] %vm253, %v1825
  %1870 = vst.msk [vmem:[%s1673 + $0x10] sm:$0xf] %vm253, %v1827
  %1871 = vst.msk [vmem:[%s1673 + $0x14] sm:$0xf] %vm253, %v1829
  %1872 = vst.msk [vmem:[%s1673 + $0x18] sm:$0xf] %vm253, %v1831
  %1873 = vst.msk [vmem:[%s1673 + $0x1c] sm:$0xf] %vm253, %v1833
  %1874 = vst.msk [vmem:[%s1673 + $0x20] sm:$0xf] %vm253, %v1835
  %1875 = vst.msk [vmem:[%s1673 + $0x24] sm:$0xf] %vm253, %v1837
  %1876 = vst.msk [vmem:[%s1673 + $0x28] sm:$0xf] %vm253, %v1839
  %1877 = vst.msk [vmem:[%s1673 + $0x2c] sm:$0xf] %vm253, %v1841
  %1878 = vst.msk [vmem:[%s1673 + $0x30] sm:$0xf] %vm253, %v1843
  %1879 = vst.msk [vmem:[%s1673 + $0x34] sm:$0xf] %vm253, %v1845
  %1880 = vst.msk [vmem:[%s1673 + $0x38] sm:$0xf] %vm253, %v1847
  %1881 = vst.msk [vmem:[%s1673 + $0x3c] sm:$0xf] %vm253, %v1849
  %v1882 = vld [vmem:[%s563] sm:$0xf]
  %v1883 = vld [vmem:[%s563 + $0x4] sm:$0xf]
  %v1884 = vld [vmem:[%s563 + $0x8] sm:$0xf]
  %v1885 = vld [vmem:[%s563 + $0xc] sm:$0xf]
  %v1886 = vld [vmem:[%s563 + $0x10] sm:$0xf]
  %v1887 = vld [vmem:[%s563 + $0x14] sm:$0xf]
  %v1888 = vld [vmem:[%s563 + $0x18] sm:$0xf]
  %v1889 = vld [vmem:[%s563 + $0x1c] sm:$0xf]
  %v1890 = vld [vmem:[%s563 + $0x20] sm:$0xf]
  %v1891 = vld [vmem:[%s563 + $0x24] sm:$0xf]
  %v1892 = vld [vmem:[%s563 + $0x28] sm:$0xf]
  %v1893 = vld [vmem:[%s563 + $0x2c] sm:$0xf]
  %v1894 = vld [vmem:[%s563 + $0x30] sm:$0xf]
  %v1895 = vld [vmem:[%s563 + $0x34] sm:$0xf]
  %v1896 = vld [vmem:[%s563 + $0x38] sm:$0xf]
  %v1897 = vld [vmem:[%s563 + $0x3c] sm:$0xf]
  %1914 = vrot.lane.b32.xlu0 %v1882, 24
  %v1915 = vpop.permute.xlu0 %1914
  %1916 = vrot.lane.b32.xlu0 %v1883, 24
  %v1917 = vpop.permute.xlu0 %1916
  %1918 = vrot.lane.b32.xlu0 %v1884, 24
  %v1919 = vpop.permute.xlu0 %1918
  %1920 = vrot.lane.b32.xlu0 %v1885, 24
  %v1921 = vpop.permute.xlu0 %1920
  %1922 = vrot.lane.b32.xlu0 %v1886, 24
  %v1923 = vpop.permute.xlu0 %1922
  %1924 = vrot.lane.b32.xlu0 %v1887, 24
  %v1925 = vpop.permute.xlu0 %1924
  %1926 = vrot.lane.b32.xlu0 %v1888, 24
  %v1927 = vpop.permute.xlu0 %1926
  %1928 = vrot.lane.b32.xlu0 %v1889, 24
  %v1929 = vpop.permute.xlu0 %1928
  %1930 = vrot.lane.b32.xlu0 %v1890, 24
  %v1931 = vpop.permute.xlu0 %1930
  %1932 = vrot.lane.b32.xlu0 %v1891, 24
  %v1933 = vpop.permute.xlu0 %1932
  %1934 = vrot.lane.b32.xlu0 %v1892, 24
  %v1935 = vpop.permute.xlu0 %1934
  %1936 = vrot.lane.b32.xlu0 %v1893, 24
  %v1937 = vpop.permute.xlu0 %1936
  %1938 = vrot.lane.b32.xlu0 %v1894, 24
  %v1939 = vpop.permute.xlu0 %1938
  %1940 = vrot.lane.b32.xlu0 %v1895, 24
  %v1941 = vpop.permute.xlu0 %1940
  %1942 = vrot.lane.b32.xlu0 %v1896, 24
  %v1943 = vpop.permute.xlu0 %1942
  %1944 = vrot.lane.b32.xlu0 %v1897, 24
  %v1945 = vpop.permute.xlu0 %1944
  %1962 = vst.msk [vmem:[%s1673] sm:$0xf] %vm351, %v1915
  %1963 = vst.msk [vmem:[%s1673 + $0x4] sm:$0xf] %vm351, %v1917
  %1964 = vst.msk [vmem:[%s1673 + $0x8] sm:$0xf] %vm351, %v1919
  %1965 = vst.msk [vmem:[%s1673 + $0xc] sm:$0xf] %vm351, %v1921
  %1966 = vst.msk [vmem:[%s1673 + $0x10] sm:$0xf] %vm351, %v1923
  %1967 = vst.msk [vmem:[%s1673 + $0x14] sm:$0xf] %vm351, %v1925
  %1968 = vst.msk [vmem:[%s1673 + $0x18] sm:$0xf] %vm351, %v1927
  %1969 = vst.msk [vmem:[%s1673 + $0x1c] sm:$0xf] %vm351, %v1929
  %1970 = vst.msk [vmem:[%s1673 + $0x20] sm:$0xf] %vm351, %v1931
  %1971 = vst.msk [vmem:[%s1673 + $0x24] sm:$0xf] %vm351, %v1933
  %1972 = vst.msk [vmem:[%s1673 + $0x28] sm:$0xf] %vm351, %v1935
  %1973 = vst.msk [vmem:[%s1673 + $0x2c] sm:$0xf] %vm351, %v1937
  %1974 = vst.msk [vmem:[%s1673 + $0x30] sm:$0xf] %vm351, %v1939
  %1975 = vst.msk [vmem:[%s1673 + $0x34] sm:$0xf] %vm351, %v1941
  %1976 = vst.msk [vmem:[%s1673 + $0x38] sm:$0xf] %vm351, %v1943
  %1977 = vst.msk [vmem:[%s1673 + $0x3c] sm:$0xf] %vm351, %v1945
  %v1978 = vld [vmem:[%s661] sm:$0xf]
  %v1979 = vld [vmem:[%s661 + $0x4] sm:$0xf]
  %v1980 = vld [vmem:[%s661 + $0x8] sm:$0xf]
  %v1981 = vld [vmem:[%s661 + $0xc] sm:$0xf]
  %v1982 = vld [vmem:[%s661 + $0x10] sm:$0xf]
  %v1983 = vld [vmem:[%s661 + $0x14] sm:$0xf]
  %v1984 = vld [vmem:[%s661 + $0x18] sm:$0xf]
  %v1985 = vld [vmem:[%s661 + $0x1c] sm:$0xf]
  %v1986 = vld [vmem:[%s661 + $0x20] sm:$0xf]
  %v1987 = vld [vmem:[%s661 + $0x24] sm:$0xf]
  %v1988 = vld [vmem:[%s661 + $0x28] sm:$0xf]
  %v1989 = vld [vmem:[%s661 + $0x2c] sm:$0xf]
  %v1990 = vld [vmem:[%s661 + $0x30] sm:$0xf]
  %v1991 = vld [vmem:[%s661 + $0x34] sm:$0xf]
  %v1992 = vld [vmem:[%s661 + $0x38] sm:$0xf]
  %v1993 = vld [vmem:[%s661 + $0x3c] sm:$0xf]
  %2010 = vrot.lane.b32.xlu0 %v1978, 32
  %v2011 = vpop.permute.xlu0 %2010
  %2012 = vrot.lane.b32.xlu0 %v1979, 32
  %v2013 = vpop.permute.xlu0 %2012
  %2014 = vrot.lane.b32.xlu0 %v1980, 32
  %v2015 = vpop.permute.xlu0 %2014
  %2016 = vrot.lane.b32.xlu0 %v1981, 32
  %v2017 = vpop.permute.xlu0 %2016
  %2018 = vrot.lane.b32.xlu0 %v1982, 32
  %v2019 = vpop.permute.xlu0 %2018
  %2020 = vrot.lane.b32.xlu0 %v1983, 32
  %v2021 = vpop.permute.xlu0 %2020
  %2022 = vrot.lane.b32.xlu0 %v1984, 32
  %v2023 = vpop.permute.xlu0 %2022
  %2024 = vrot.lane.b32.xlu0 %v1985, 32
  %v2025 = vpop.permute.xlu0 %2024
  %2026 = vrot.lane.b32.xlu0 %v1986, 32
  %v2027 = vpop.permute.xlu0 %2026
  %2028 = vrot.lane.b32.xlu0 %v1987, 32
  %v2029 = vpop.permute.xlu0 %2028
  %2030 = vrot.lane.b32.xlu0 %v1988, 32
  %v2031 = vpop.permute.xlu0 %2030
  %2032 = vrot.lane.b32.xlu0 %v1989, 32
  %v2033 = vpop.permute.xlu0 %2032
  %2034 = vrot.lane.b32.xlu0 %v1990, 32
  %v2035 = vpop.permute.xlu0 %2034
  %2036 = vrot.lane.b32.xlu0 %v1991, 32
  %v2037 = vpop.permute.xlu0 %2036
  %2038 = vrot.lane.b32.xlu0 %v1992, 32
  %v2039 = vpop.permute.xlu0 %2038
  %2040 = vrot.lane.b32.xlu0 %v1993, 32
  %v2041 = vpop.permute.xlu0 %2040
  %2058 = vst.msk [vmem:[%s1673] sm:$0xf] %vm449, %v2011
  %2059 = vst.msk [vmem:[%s1673 + $0x4] sm:$0xf] %vm449, %v2013
  %2060 = vst.msk [vmem:[%s1673 + $0x8] sm:$0xf] %vm449, %v2015
  %2061 = vst.msk [vmem:[%s1673 + $0xc] sm:$0xf] %vm449, %v2017
  %2062 = vst.msk [vmem:[%s1673 + $0x10] sm:$0xf] %vm449, %v2019
  %2063 = vst.msk [vmem:[%s1673 + $0x14] sm:$0xf] %vm449, %v2021
  %2064 = vst.msk [vmem:[%s1673 + $0x18] sm:$0xf] %vm449, %v2023
  %2065 = vst.msk [vmem:[%s1673 + $0x1c] sm:$0xf] %vm449, %v2025
  %2066 = vst.msk [vmem:[%s1673 + $0x20] sm:$0xf] %vm449, %v2027
  %2067 = vst.msk [vmem:[%s1673 + $0x24] sm:$0xf] %vm449, %v2029
  %2068 = vst.msk [vmem:[%s1673 + $0x28] sm:$0xf] %vm449, %v2031
  %2069 = vst.msk [vmem:[%s1673 + $0x2c] sm:$0xf] %vm449, %v2033
  %2070 = vst.msk [vmem:[%s1673 + $0x30] sm:$0xf] %vm449, %v2035
  %2071 = vst.msk [vmem:[%s1673 + $0x34] sm:$0xf] %vm449, %v2037
  %2072 = vst.msk [vmem:[%s1673 + $0x38] sm:$0xf] %vm449, %v2039
  %2073 = vst.msk [vmem:[%s1673 + $0x3c] sm:$0xf] %vm449, %v2041
  %v2074 = vld [vmem:[%s563] sm:$0xf]
  %v2075 = vld [vmem:[%s563 + $0x4] sm:$0xf]
  %v2076 = vld [vmem:[%s563 + $0x8] sm:$0xf]
  %v2077 = vld [vmem:[%s563 + $0xc] sm:$0xf]
  %v2078 = vld [vmem:[%s563 + $0x10] sm:$0xf]
  %v2079 = vld [vmem:[%s563 + $0x14] sm:$0xf]
  %v2080 = vld [vmem:[%s563 + $0x18] sm:$0xf]
  %v2081 = vld [vmem:[%s563 + $0x1c] sm:$0xf]
  %v2082 = vld [vmem:[%s563 + $0x20] sm:$0xf]
  %v2083 = vld [vmem:[%s563 + $0x24] sm:$0xf]
  %v2084 = vld [vmem:[%s563 + $0x28] sm:$0xf]
  %v2085 = vld [vmem:[%s563 + $0x2c] sm:$0xf]
  %v2086 = vld [vmem:[%s563 + $0x30] sm:$0xf]
  %v2087 = vld [vmem:[%s563 + $0x34] sm:$0xf]
  %v2088 = vld [vmem:[%s563 + $0x38] sm:$0xf]
  %v2089 = vld [vmem:[%s563 + $0x3c] sm:$0xf]
  %2106 = vrot.lane.b32.xlu0 %v2074, 39
  %v2107 = vpop.permute.xlu0 %2106
  %2108 = vrot.lane.b32.xlu0 %v2075, 39
  %v2109 = vpop.permute.xlu0 %2108
  %2110 = vrot.lane.b32.xlu0 %v2076, 39
  %v2111 = vpop.permute.xlu0 %2110
  %2112 = vrot.lane.b32.xlu0 %v2077, 39
  %v2113 = vpop.permute.xlu0 %2112
  %2114 = vrot.lane.b32.xlu0 %v2078, 39
  %v2115 = vpop.permute.xlu0 %2114
  %2116 = vrot.lane.b32.xlu0 %v2079, 39
  %v2117 = vpop.permute.xlu0 %2116
  %2118 = vrot.lane.b32.xlu0 %v2080, 39
  %v2119 = vpop.permute.xlu0 %2118
  %2120 = vrot.lane.b32.xlu0 %v2081, 39
  %v2121 = vpop.permute.xlu0 %2120
  %2122 = vrot.lane.b32.xlu0 %v2082, 39
  %v2123 = vpop.permute.xlu0 %2122
  %2124 = vrot.lane.b32.xlu0 %v2083, 39
  %v2125 = vpop.permute.xlu0 %2124
  %2126 = vrot.lane.b32.xlu0 %v2084, 39
  %v2127 = vpop.permute.xlu0 %2126
  %2128 = vrot.lane.b32.xlu0 %v2085, 39
  %v2129 = vpop.permute.xlu0 %2128
  %2130 = vrot.lane.b32.xlu0 %v2086, 39
  %v2131 = vpop.permute.xlu0 %2130
  %2132 = vrot.lane.b32.xlu0 %v2087, 39
  %v2133 = vpop.permute.xlu0 %2132
  %2134 = vrot.lane.b32.xlu0 %v2088, 39
  %v2135 = vpop.permute.xlu0 %2134
  %2136 = vrot.lane.b32.xlu0 %v2089, 39
  %v2137 = vpop.permute.xlu0 %2136
  %2154 = vst.msk [vmem:[%s1673] sm:$0xf] %vm546, %v2107
  %2155 = vst.msk [vmem:[%s1673 + $0x4] sm:$0xf] %vm546, %v2109
  %2156 = vst.msk [vmem:[%s1673 + $0x8] sm:$0xf] %vm546, %v2111
  %2157 = vst.msk [vmem:[%s1673 + $0xc] sm:$0xf] %vm546, %v2113
  %2158 = vst.msk [vmem:[%s1673 + $0x10] sm:$0xf] %vm546, %v2115
  %2159 = vst.msk [vmem:[%s1673 + $0x14] sm:$0xf] %vm546, %v2117
  %2160 = vst.msk [vmem:[%s1673 + $0x18] sm:$0xf] %vm546, %v2119
  %2161 = vst.msk [vmem:[%s1673 + $0x1c] sm:$0xf] %vm546, %v2121
  %2162 = vst.msk [vmem:[%s1673 + $0x20] sm:$0xf] %vm546, %v2123
  %2163 = vst.msk [vmem:[%s1673 + $0x24] sm:$0xf] %vm546, %v2125
  %2164 = vst.msk [vmem:[%s1673 + $0x28] sm:$0xf] %vm546, %v2127
  %2165 = vst.msk [vmem:[%s1673 + $0x2c] sm:$0xf] %vm546, %v2129
  %2166 = vst.msk [vmem:[%s1673 + $0x30] sm:$0xf] %vm546, %v2131
  %2167 = vst.msk [vmem:[%s1673 + $0x34] sm:$0xf] %vm546, %v2133
  %2168 = vst.msk [vmem:[%s1673 + $0x38] sm:$0xf] %vm546, %v2135
  %2169 = vst.msk [vmem:[%s1673 + $0x3c] sm:$0xf] %vm546, %v2137
  %s2170 = scalar_lea.vmem %s0, 152
  %v2171 = vld [vmem:[%s2170] sm:$0xf]
  %v2172 = vld [vmem:[%s2170 + $0x4] sm:$0xf]
  %v2173 = vld [vmem:[%s2170 + $0x8] sm:$0xf]
  %v2174 = vld [vmem:[%s2170 + $0xc] sm:$0xf]
  %v2175 = vld [vmem:[%s2170 + $0x10] sm:$0xf]
  %v2176 = vld [vmem:[%s2170 + $0x14] sm:$0xf]
  %v2177 = vld [vmem:[%s2170 + $0x18] sm:$0xf]
  %v2178 = vld [vmem:[%s2170 + $0x1c] sm:$0xf]
  %v2179 = vld [vmem:[%s2170 + $0x20] sm:$0xf]
  %v2180 = vld [vmem:[%s2170 + $0x24] sm:$0xf]
  %v2181 = vld [vmem:[%s2170 + $0x28] sm:$0xf]
  %v2182 = vld [vmem:[%s2170 + $0x2c] sm:$0xf]
  %v2183 = vld [vmem:[%s2170 + $0x30] sm:$0xf]
  %v2184 = vld [vmem:[%s2170 + $0x34] sm:$0xf]
  %v2185 = vld [vmem:[%s2170 + $0x38] sm:$0xf]
  %v2186 = vld [vmem:[%s2170 + $0x3c] sm:$0xf]
  %2203 = vrot.lane.b32.xlu0 %v2171, 48
  %v2204 = vpop.permute.xlu0 %2203
  %2205 = vrot.lane.b32.xlu0 %v2172, 48
  %v2206 = vpop.permute.xlu0 %2205
  %2207 = vrot.lane.b32.xlu0 %v2173, 48
  %v2208 = vpop.permute.xlu0 %2207
  %2209 = vrot.lane.b32.xlu0 %v2174, 48
  %v2210 = vpop.permute.xlu0 %2209
  %2211 = vrot.lane.b32.xlu0 %v2175, 48
  %v2212 = vpop.permute.xlu0 %2211
  %2213 = vrot.lane.b32.xlu0 %v2176, 48
  %v2214 = vpop.permute.xlu0 %2213
  %2215 = vrot.lane.b32.xlu0 %v2177, 48
  %v2216 = vpop.permute.xlu0 %2215
  %2217 = vrot.lane.b32.xlu0 %v2178, 48
  %v2218 = vpop.permute.xlu0 %2217
  %2219 = vrot.lane.b32.xlu0 %v2179, 48
  %v2220 = vpop.permute.xlu0 %2219
  %2221 = vrot.lane.b32.xlu0 %v2180, 48
  %v2222 = vpop.permute.xlu0 %2221
  %2223 = vrot.lane.b32.xlu0 %v2181, 48
  %v2224 = vpop.permute.xlu0 %2223
  %2225 = vrot.lane.b32.xlu0 %v2182, 48
  %v2226 = vpop.permute.xlu0 %2225
  %2227 = vrot.lane.b32.xlu0 %v2183, 48
  %v2228 = vpop.permute.xlu0 %2227
  %2229 = vrot.lane.b32.xlu0 %v2184, 48
  %v2230 = vpop.permute.xlu0 %2229
  %2231 = vrot.lane.b32.xlu0 %v2185, 48
  %v2232 = vpop.permute.xlu0 %2231
  %2233 = vrot.lane.b32.xlu0 %v2186, 48
  %v2234 = vpop.permute.xlu0 %2233
  %2251 = vst.msk [vmem:[%s1673] sm:$0xf] %vm644, %v2204
  %2252 = vst.msk [vmem:[%s1673 + $0x4] sm:$0xf] %vm644, %v2206
  %2253 = vst.msk [vmem:[%s1673 + $0x8] sm:$0xf] %vm644, %v2208
  %2254 = vst.msk [vmem:[%s1673 + $0xc] sm:$0xf] %vm644, %v2210
  %2255 = vst.msk [vmem:[%s1673 + $0x10] sm:$0xf] %vm644, %v2212
  %2256 = vst.msk [vmem:[%s1673 + $0x14] sm:$0xf] %vm644, %v2214
  %2257 = vst.msk [vmem:[%s1673 + $0x18] sm:$0xf] %vm644, %v2216
  %2258 = vst.msk [vmem:[%s1673 + $0x1c] sm:$0xf] %vm644, %v2218
  %2259 = vst.msk [vmem:[%s1673 + $0x20] sm:$0xf] %vm644, %v2220
  %2260 = vst.msk [vmem:[%s1673 + $0x24] sm:$0xf] %vm644, %v2222
  %2261 = vst.msk [vmem:[%s1673 + $0x28] sm:$0xf] %vm644, %v2224
  %2262 = vst.msk [vmem:[%s1673 + $0x2c] sm:$0xf] %vm644, %v2226
  %2263 = vst.msk [vmem:[%s1673 + $0x30] sm:$0xf] %vm644, %v2228
  %2264 = vst.msk [vmem:[%s1673 + $0x34] sm:$0xf] %vm644, %v2230
  %2265 = vst.msk [vmem:[%s1673 + $0x38] sm:$0xf] %vm644, %v2232
  %2266 = vst.msk [vmem:[%s1673 + $0x3c] sm:$0xf] %vm644, %v2234
  %s2267 = scalar_lea.vmem %s0, 224
  %v2268 = vld [vmem:[%s2267] sm:$0xf]
  %v2269 = vld [vmem:[%s2267 + $0x4] sm:$0xf]
  %v2270 = vld [vmem:[%s2267 + $0x8] sm:$0xf]
  %v2271 = vld [vmem:[%s2267 + $0xc] sm:$0xf]
  %v2272 = vld [vmem:[%s2267 + $0x10] sm:$0xf]
  %v2273 = vld [vmem:[%s2267 + $0x14] sm:$0xf]
  %v2274 = vld [vmem:[%s2267 + $0x18] sm:$0xf]
  %v2275 = vld [vmem:[%s2267 + $0x1c] sm:$0xf]
  %v2276 = vld [vmem:[%s2267 + $0x20] sm:$0xf]
  %v2277 = vld [vmem:[%s2267 + $0x24] sm:$0xf]
  %v2278 = vld [vmem:[%s2267 + $0x28] sm:$0xf]
  %v2279 = vld [vmem:[%s2267 + $0x2c] sm:$0xf]
  %v2280 = vld [vmem:[%s2267 + $0x30] sm:$0xf]
  %v2281 = vld [vmem:[%s2267 + $0x34] sm:$0xf]
  %v2282 = vld [vmem:[%s2267 + $0x38] sm:$0xf]
  %v2283 = vld [vmem:[%s2267 + $0x3c] sm:$0xf]
  %2300 = vrot.lane.b32.xlu0 %v2268, 56
  %v2301 = vpop.permute.xlu0 %2300
  %2302 = vrot.lane.b32.xlu0 %v2269, 56
  %v2303 = vpop.permute.xlu0 %2302
  %2304 = vrot.lane.b32.xlu0 %v2270, 56
  %v2305 = vpop.permute.xlu0 %2304
  %2306 = vrot.lane.b32.xlu0 %v2271, 56
  %v2307 = vpop.permute.xlu0 %2306
  %2308 = vrot.lane.b32.xlu0 %v2272, 56
  %v2309 = vpop.permute.xlu0 %2308
  %2310 = vrot.lane.b32.xlu0 %v2273, 56
  %v2311 = vpop.permute.xlu0 %2310
  %2312 = vrot.lane.b32.xlu0 %v2274, 56
  %v2313 = vpop.permute.xlu0 %2312
  %2314 = vrot.lane.b32.xlu0 %v2275, 56
  %v2315 = vpop.permute.xlu0 %2314
  %2316 = vrot.lane.b32.xlu0 %v2276, 56
  %v2317 = vpop.permute.xlu0 %2316
  %2318 = vrot.lane.b32.xlu0 %v2277, 56
  %v2319 = vpop.permute.xlu0 %2318
  %2320 = vrot.lane.b32.xlu0 %v2278, 56
  %v2321 = vpop.permute.xlu0 %2320
  %2322 = vrot.lane.b32.xlu0 %v2279, 56
  %v2323 = vpop.permute.xlu0 %2322
  %2324 = vrot.lane.b32.xlu0 %v2280, 56
  %v2325 = vpop.permute.xlu0 %2324
  %2326 = vrot.lane.b32.xlu0 %v2281, 56
  %v2327 = vpop.permute.xlu0 %2326
  %2328 = vrot.lane.b32.xlu0 %v2282, 56
  %v2329 = vpop.permute.xlu0 %2328
  %2330 = vrot.lane.b32.xlu0 %v2283, 56
  %v2331 = vpop.permute.xlu0 %2330
  %2348 = vst.msk [vmem:[%s1673] sm:$0xf] %vm742, %v2301
  %2349 = vst.msk [vmem:[%s1673 + $0x4] sm:$0xf] %vm742, %v2303
  %2350 = vst.msk [vmem:[%s1673 + $0x8] sm:$0xf] %vm742, %v2305
  %2351 = vst.msk [vmem:[%s1673 + $0xc] sm:$0xf] %vm742, %v2307
  %2352 = vst.msk [vmem:[%s1673 + $0x10] sm:$0xf] %vm742, %v2309
  %2353 = vst.msk [vmem:[%s1673 + $0x14] sm:$0xf] %vm742, %v2311
  %2354 = vst.msk [vmem:[%s1673 + $0x18] sm:$0xf] %vm742, %v2313
  %2355 = vst.msk [vmem:[%s1673 + $0x1c] sm:$0xf] %vm742, %v2315
  %2356 = vst.msk [vmem:[%s1673 + $0x20] sm:$0xf] %vm742, %v2317
  %2357 = vst.msk [vmem:[%s1673 + $0x24] sm:$0xf] %vm742, %v2319
  %2358 = vst.msk [vmem:[%s1673 + $0x28] sm:$0xf] %vm742, %v2321
  %2359 = vst.msk [vmem:[%s1673 + $0x2c] sm:$0xf] %vm742, %v2323
  %2360 = vst.msk [vmem:[%s1673 + $0x30] sm:$0xf] %vm742, %v2325
  %2361 = vst.msk [vmem:[%s1673 + $0x34] sm:$0xf] %vm742, %v2327
  %2362 = vst.msk [vmem:[%s1673 + $0x38] sm:$0xf] %vm742, %v2329
  %2363 = vst.msk [vmem:[%s1673 + $0x3c] sm:$0xf] %vm742, %v2331
  %v2364 = vld [vmem:[%s2170] sm:$0xf]
  %v2365 = vld [vmem:[%s2170 + $0x4] sm:$0xf]
  %v2366 = vld [vmem:[%s2170 + $0x8] sm:$0xf]
  %v2367 = vld [vmem:[%s2170 + $0xc] sm:$0xf]
  %v2368 = vld [vmem:[%s2170 + $0x10] sm:$0xf]
  %v2369 = vld [vmem:[%s2170 + $0x14] sm:$0xf]
  %v2370 = vld [vmem:[%s2170 + $0x18] sm:$0xf]
  %v2371 = vld [vmem:[%s2170 + $0x1c] sm:$0xf]
  %v2372 = vld [vmem:[%s2170 + $0x20] sm:$0xf]
  %v2373 = vld [vmem:[%s2170 + $0x24] sm:$0xf]
  %v2374 = vld [vmem:[%s2170 + $0x28] sm:$0xf]
  %v2375 = vld [vmem:[%s2170 + $0x2c] sm:$0xf]
  %v2376 = vld [vmem:[%s2170 + $0x30] sm:$0xf]
  %v2377 = vld [vmem:[%s2170 + $0x34] sm:$0xf]
  %v2378 = vld [vmem:[%s2170 + $0x38] sm:$0xf]
  %v2379 = vld [vmem:[%s2170 + $0x3c] sm:$0xf]
  %2396 = vrot.lane.b32.xlu0 %v2364, 63
  %v2397 = vpop.permute.xlu0 %2396
  %2398 = vrot.lane.b32.xlu0 %v2365, 63
  %v2399 = vpop.permute.xlu0 %2398
  %2400 = vrot.lane.b32.xlu0 %v2366, 63
  %v2401 = vpop.permute.xlu0 %2400
  %2402 = vrot.lane.b32.xlu0 %v2367, 63
  %v2403 = vpop.permute.xlu0 %2402
  %2404 = vrot.lane.b32.xlu0 %v2368, 63
  %v2405 = vpop.permute.xlu0 %2404
  %2406 = vrot.lane.b32.xlu0 %v2369, 63
  %v2407 = vpop.permute.xlu0 %2406
  %2408 = vrot.lane.b32.xlu0 %v2370, 63
  %v2409 = vpop.permute.xlu0 %2408
  %2410 = vrot.lane.b32.xlu0 %v2371, 63
  %v2411 = vpop.permute.xlu0 %2410
  %2412 = vrot.lane.b32.xlu0 %v2372, 63
  %v2413 = vpop.permute.xlu0 %2412
  %2414 = vrot.lane.b32.xlu0 %v2373, 63
  %v2415 = vpop.permute.xlu0 %2414
  %2416 = vrot.lane.b32.xlu0 %v2374, 63
  %v2417 = vpop.permute.xlu0 %2416
  %2418 = vrot.lane.b32.xlu0 %v2375, 63
  %v2419 = vpop.permute.xlu0 %2418
  %2420 = vrot.lane.b32.xlu0 %v2376, 63
  %v2421 = vpop.permute.xlu0 %2420
  %2422 = vrot.lane.b32.xlu0 %v2377, 63
  %v2423 = vpop.permute.xlu0 %2422
  %2424 = vrot.lane.b32.xlu0 %v2378, 63
  %v2425 = vpop.permute.xlu0 %2424
  %2426 = vrot.lane.b32.xlu0 %v2379, 63
  %v2427 = vpop.permute.xlu0 %2426
  %2444 = vst.msk [vmem:[%s1673] sm:$0xf] %vm839, %v2397
  %2445 = vst.msk [vmem:[%s1673 + $0x4] sm:$0xf] %vm839, %v2399
  %2446 = vst.msk [vmem:[%s1673 + $0x8] sm:$0xf] %vm839, %v2401
  %2447 = vst.msk [vmem:[%s1673 + $0xc] sm:$0xf] %vm839, %v2403
  %2448 = vst.msk [vmem:[%s1673 + $0x10] sm:$0xf] %vm839, %v2405
  %2449 = vst.msk [vmem:[%s1673 + $0x14] sm:$0xf] %vm839, %v2407
  %2450 = vst.msk [vmem:[%s1673 + $0x18] sm:$0xf] %vm839, %v2409
  %2451 = vst.msk [vmem:[%s1673 + $0x1c] sm:$0xf] %vm839, %v2411
  %2452 = vst.msk [vmem:[%s1673 + $0x20] sm:$0xf] %vm839, %v2413
  %2453 = vst.msk [vmem:[%s1673 + $0x24] sm:$0xf] %vm839, %v2415
  %2454 = vst.msk [vmem:[%s1673 + $0x28] sm:$0xf] %vm839, %v2417
  %2455 = vst.msk [vmem:[%s1673 + $0x2c] sm:$0xf] %vm839, %v2419
  %2456 = vst.msk [vmem:[%s1673 + $0x30] sm:$0xf] %vm839, %v2421
  %2457 = vst.msk [vmem:[%s1673 + $0x34] sm:$0xf] %vm839, %v2423
  %2458 = vst.msk [vmem:[%s1673 + $0x38] sm:$0xf] %vm839, %v2425
  %2459 = vst.msk [vmem:[%s1673 + $0x3c] sm:$0xf] %vm839, %v2427
  %v2460 = vld [vmem:[%s368] sm:$0xf]
  %v2461 = vld [vmem:[%s368 + $0x4] sm:$0xf]
  %v2462 = vld [vmem:[%s368 + $0x8] sm:$0xf]
  %v2463 = vld [vmem:[%s368 + $0xc] sm:$0xf]
  %v2464 = vld [vmem:[%s368 + $0x10] sm:$0xf]
  %v2465 = vld [vmem:[%s368 + $0x14] sm:$0xf]
  %v2466 = vld [vmem:[%s368 + $0x18] sm:$0xf]
  %v2467 = vld [vmem:[%s368 + $0x1c] sm:$0xf]
  %v2468 = vld [vmem:[%s368 + $0x20] sm:$0xf]
  %v2469 = vld [vmem:[%s368 + $0x24] sm:$0xf]
  %v2470 = vld [vmem:[%s368 + $0x28] sm:$0xf]
  %v2471 = vld [vmem:[%s368 + $0x2c] sm:$0xf]
  %v2472 = vld [vmem:[%s368 + $0x30] sm:$0xf]
  %v2473 = vld [vmem:[%s368 + $0x34] sm:$0xf]
  %v2474 = vld [vmem:[%s368 + $0x38] sm:$0xf]
  %v2475 = vld [vmem:[%s368 + $0x3c] sm:$0xf]
  %s2476 = scalar_lea.vmem [#allocation2], 192
  %2477 = vst.msk [vmem:[%s2476] sm:$0xf] %vm58, %v2460
  %2478 = vst.msk [vmem:[%s2476 + $0x4] sm:$0xf] %vm58, %v2461
  %2479 = vst.msk [vmem:[%s2476 + $0x8] sm:$0xf] %vm58, %v2462
  %2480 = vst.msk [vmem:[%s2476 + $0xc] sm:$0xf] %vm58, %v2463
  %2481 = vst.msk [vmem:[%s2476 + $0x10] sm:$0xf] %vm58, %v2464
  %2482 = vst.msk [vmem:[%s2476 + $0x14] sm:$0xf] %vm58, %v2465
  %2483 = vst.msk [vmem:[%s2476 + $0x18] sm:$0xf] %vm58, %v2466
  %2484 = vst.msk [vmem:[%s2476 + $0x1c] sm:$0xf] %vm58, %v2467
  %2485 = vst.msk [vmem:[%s2476 + $0x20] sm:$0xf] %vm58, %v2468
  %2486 = vst.msk [vmem:[%s2476 + $0x24] sm:$0xf] %vm58, %v2469
  %2487 = vst.msk [vmem:[%s2476 + $0x28] sm:$0xf] %vm58, %v2470
  %2488 = vst.msk [vmem:[%s2476 + $0x2c] sm:$0xf] %vm58, %v2471
  %2489 = vst.msk [vmem:[%s2476 + $0x30] sm:$0xf] %vm58, %v2472
  %2490 = vst.msk [vmem:[%s2476 + $0x34] sm:$0xf] %vm58, %v2473
  %2491 = vst.msk [vmem:[%s2476 + $0x38] sm:$0xf] %vm58, %v2474
  %2492 = vst.msk [vmem:[%s2476 + $0x3c] sm:$0xf] %vm58, %v2475
  %v2493 = vld [vmem:[%s270] sm:$0xf]
  %v2494 = vld [vmem:[%s270 + $0x4] sm:$0xf]
  %v2495 = vld [vmem:[%s270 + $0x8] sm:$0xf]
  %v2496 = vld [vmem:[%s270 + $0xc] sm:$0xf]
  %v2497 = vld [vmem:[%s270 + $0x10] sm:$0xf]
  %v2498 = vld [vmem:[%s270 + $0x14] sm:$0xf]
  %v2499 = vld [vmem:[%s270 + $0x18] sm:$0xf]
  %v2500 = vld [vmem:[%s270 + $0x1c] sm:$0xf]
  %v2501 = vld [vmem:[%s270 + $0x20] sm:$0xf]
  %v2502 = vld [vmem:[%s270 + $0x24] sm:$0xf]
  %v2503 = vld [vmem:[%s270 + $0x28] sm:$0xf]
  %v2504 = vld [vmem:[%s270 + $0x2c] sm:$0xf]
  %v2505 = vld [vmem:[%s270 + $0x30] sm:$0xf]
  %v2506 = vld [vmem:[%s270 + $0x34] sm:$0xf]
  %v2507 = vld [vmem:[%s270 + $0x38] sm:$0xf]
  %v2508 = vld [vmem:[%s270 + $0x3c] sm:$0xf]
  %2525 = vrot.lane.b32.xlu0 %v2493, 7
  %v2526 = vpop.permute.xlu0 %2525
  %2527 = vrot.lane.b32.xlu0 %v2494, 7
  %v2528 = vpop.permute.xlu0 %2527
  %2529 = vrot.lane.b32.xlu0 %v2495, 7
  %v2530 = vpop.permute.xlu0 %2529
  %2531 = vrot.lane.b32.xlu0 %v2496, 7
  %v2532 = vpop.permute.xlu0 %2531
  %2533 = vrot.lane.b32.xlu0 %v2497, 7
  %v2534 = vpop.permute.xlu0 %2533
  %2535 = vrot.lane.b32.xlu0 %v2498, 7
  %v2536 = vpop.permute.xlu0 %2535
  %2537 = vrot.lane.b32.xlu0 %v2499, 7
  %v2538 = vpop.permute.xlu0 %2537
  %2539 = vrot.lane.b32.xlu0 %v2500, 7
  %v2540 = vpop.permute.xlu0 %2539
  %2541 = vrot.lane.b32.xlu0 %v2501, 7
  %v2542 = vpop.permute.xlu0 %2541
  %2543 = vrot.lane.b32.xlu0 %v2502, 7
  %v2544 = vpop.permute.xlu0 %2543
  %2545 = vrot.lane.b32.xlu0 %v2503, 7
  %v2546 = vpop.permute.xlu0 %2545
  %2547 = vrot.lane.b32.xlu0 %v2504, 7
  %v2548 = vpop.permute.xlu0 %2547
  %2549 = vrot.lane.b32.xlu0 %v2505, 7
  %v2550 = vpop.permute.xlu0 %2549
  %2551 = vrot.lane.b32.xlu0 %v2506, 7
  %v2552 = vpop.permute.xlu0 %2551
  %2553 = vrot.lane.b32.xlu0 %v2507, 7
  %v2554 = vpop.permute.xlu0 %2553
  %2555 = vrot.lane.b32.xlu0 %v2508, 7
  %v2556 = vpop.permute.xlu0 %2555
  %2573 = vst.msk [vmem:[%s2476] sm:$0xf] %vm156, %v2526
  %2574 = vst.msk [vmem:[%s2476 + $0x4] sm:$0xf] %vm156, %v2528
  %2575 = vst.msk [vmem:[%s2476 + $0x8] sm:$0xf] %vm156, %v2530
  %2576 = vst.msk [vmem:[%s2476 + $0xc] sm:$0xf] %vm156, %v2532
  %2577 = vst.msk [vmem:[%s2476 + $0x10] sm:$0xf] %vm156, %v2534
  %2578 = vst.msk [vmem:[%s2476 + $0x14] sm:$0xf] %vm156, %v2536
  %2579 = vst.msk [vmem:[%s2476 + $0x18] sm:$0xf] %vm156, %v2538
  %2580 = vst.msk [vmem:[%s2476 + $0x1c] sm:$0xf] %vm156, %v2540
  %2581 = vst.msk [vmem:[%s2476 + $0x20] sm:$0xf] %vm156, %v2542
  %2582 = vst.msk [vmem:[%s2476 + $0x24] sm:$0xf] %vm156, %v2544
  %2583 = vst.msk [vmem:[%s2476 + $0x28] sm:$0xf] %vm156, %v2546
  %2584 = vst.msk [vmem:[%s2476 + $0x2c] sm:$0xf] %vm156, %v2548
  %2585 = vst.msk [vmem:[%s2476 + $0x30] sm:$0xf] %vm156, %v2550
  %2586 = vst.msk [vmem:[%s2476 + $0x34] sm:$0xf] %vm156, %v2552
  %2587 = vst.msk [vmem:[%s2476 + $0x38] sm:$0xf] %vm156, %v2554
  %2588 = vst.msk [vmem:[%s2476 + $0x3c] sm:$0xf] %vm156, %v2556
  %v2589 = vld [vmem:[%s368] sm:$0xf]
  %v2590 = vld [vmem:[%s368 + $0x4] sm:$0xf]
  %v2591 = vld [vmem:[%s368 + $0x8] sm:$0xf]
  %v2592 = vld [vmem:[%s368 + $0xc] sm:$0xf]
  %v2593 = vld [vmem:[%s368 + $0x10] sm:$0xf]
  %v2594 = vld [vmem:[%s368 + $0x14] sm:$0xf]
  %v2595 = vld [vmem:[%s368 + $0x18] sm:$0xf]
  %v2596 = vld [vmem:[%s368 + $0x1c] sm:$0xf]
  %v2597 = vld [vmem:[%s368 + $0x20] sm:$0xf]
  %v2598 = vld [vmem:[%s368 + $0x24] sm:$0xf]
  %v2599 = vld [vmem:[%s368 + $0x28] sm:$0xf]
  %v2600 = vld [vmem:[%s368 + $0x2c] sm:$0xf]
  %v2601 = vld [vmem:[%s368 + $0x30] sm:$0xf]
  %v2602 = vld [vmem:[%s368 + $0x34] sm:$0xf]
  %v2603 = vld [vmem:[%s368 + $0x38] sm:$0xf]
  %v2604 = vld [vmem:[%s368 + $0x3c] sm:$0xf]
  %2621 = vrot.lane.b32.xlu0 %v2589, 15
  %v2622 = vpop.permute.xlu0 %2621
  %2623 = vrot.lane.b32.xlu0 %v2590, 15
  %v2624 = vpop.permute.xlu0 %2623
  %2625 = vrot.lane.b32.xlu0 %v2591, 15
  %v2626 = vpop.permute.xlu0 %2625
  %2627 = vrot.lane.b32.xlu0 %v2592, 15
  %v2628 = vpop.permute.xlu0 %2627
  %2629 = vrot.lane.b32.xlu0 %v2593, 15
  %v2630 = vpop.permute.xlu0 %2629
  %2631 = vrot.lane.b32.xlu0 %v2594, 15
  %v2632 = vpop.permute.xlu0 %2631
  %2633 = vrot.lane.b32.xlu0 %v2595, 15
  %v2634 = vpop.permute.xlu0 %2633
  %2635 = vrot.lane.b32.xlu0 %v2596, 15
  %v2636 = vpop.permute.xlu0 %2635
  %2637 = vrot.lane.b32.xlu0 %v2597, 15
  %v2638 = vpop.permute.xlu0 %2637
  %2639 = vrot.lane.b32.xlu0 %v2598, 15
  %v2640 = vpop.permute.xlu0 %2639
  %2641 = vrot.lane.b32.xlu0 %v2599, 15
  %v2642 = vpop.permute.xlu0 %2641
  %2643 = vrot.lane.b32.xlu0 %v2600, 15
  %v2644 = vpop.permute.xlu0 %2643
  %2645 = vrot.lane.b32.xlu0 %v2601, 15
  %v2646 = vpop.permute.xlu0 %2645
  %2647 = vrot.lane.b32.xlu0 %v2602, 15
  %v2648 = vpop.permute.xlu0 %2647
  %2649 = vrot.lane.b32.xlu0 %v2603, 15
  %v2650 = vpop.permute.xlu0 %2649
  %2651 = vrot.lane.b32.xlu0 %v2604, 15
  %v2652 = vpop.permute.xlu0 %2651
  %2669 = vst.msk [vmem:[%s2476] sm:$0xf] %vm253, %v2622
  %2670 = vst.msk [vmem:[%s2476 + $0x4] sm:$0xf] %vm253, %v2624
  %2671 = vst.msk [vmem:[%s2476 + $0x8] sm:$0xf] %vm253, %v2626
  %2672 = vst.msk [vmem:[%s2476 + $0xc] sm:$0xf] %vm253, %v2628
  %2673 = vst.msk [vmem:[%s2476 + $0x10] sm:$0xf] %vm253, %v2630
  %2674 = vst.msk [vmem:[%s2476 + $0x14] sm:$0xf] %vm253, %v2632
  %2675 = vst.msk [vmem:[%s2476 + $0x18] sm:$0xf] %vm253, %v2634
  %2676 = vst.msk [vmem:[%s2476 + $0x1c] sm:$0xf] %vm253, %v2636
  %2677 = vst.msk [vmem:[%s2476 + $0x20] sm:$0xf] %vm253, %v2638
  %2678 = vst.msk [vmem:[%s2476 + $0x24] sm:$0xf] %vm253, %v2640
  %2679 = vst.msk [vmem:[%s2476 + $0x28] sm:$0xf] %vm253, %v2642
  %2680 = vst.msk [vmem:[%s2476 + $0x2c] sm:$0xf] %vm253, %v2644
  %2681 = vst.msk [vmem:[%s2476 + $0x30] sm:$0xf] %vm253, %v2646
  %2682 = vst.msk [vmem:[%s2476 + $0x34] sm:$0xf] %vm253, %v2648
  %2683 = vst.msk [vmem:[%s2476 + $0x38] sm:$0xf] %vm253, %v2650
  %2684 = vst.msk [vmem:[%s2476 + $0x3c] sm:$0xf] %vm253, %v2652
  %v2685 = vld [vmem:[%s661] sm:$0xf]
  %v2686 = vld [vmem:[%s661 + $0x4] sm:$0xf]
  %v2687 = vld [vmem:[%s661 + $0x8] sm:$0xf]
  %v2688 = vld [vmem:[%s661 + $0xc] sm:$0xf]
  %v2689 = vld [vmem:[%s661 + $0x10] sm:$0xf]
  %v2690 = vld [vmem:[%s661 + $0x14] sm:$0xf]
  %v2691 = vld [vmem:[%s661 + $0x18] sm:$0xf]
  %v2692 = vld [vmem:[%s661 + $0x1c] sm:$0xf]
  %v2693 = vld [vmem:[%s661 + $0x20] sm:$0xf]
  %v2694 = vld [vmem:[%s661 + $0x24] sm:$0xf]
  %v2695 = vld [vmem:[%s661 + $0x28] sm:$0xf]
  %v2696 = vld [vmem:[%s661 + $0x2c] sm:$0xf]
  %v2697 = vld [vmem:[%s661 + $0x30] sm:$0xf]
  %v2698 = vld [vmem:[%s661 + $0x34] sm:$0xf]
  %v2699 = vld [vmem:[%s661 + $0x38] sm:$0xf]
  %v2700 = vld [vmem:[%s661 + $0x3c] sm:$0xf]
  %2717 = vrot.lane.b32.xlu0 %v2685, 24
  %v2718 = vpop.permute.xlu0 %2717
  %2719 = vrot.lane.b32.xlu0 %v2686, 24
  %v2720 = vpop.permute.xlu0 %2719
  %2721 = vrot.lane.b32.xlu0 %v2687, 24
  %v2722 = vpop.permute.xlu0 %2721
  %2723 = vrot.lane.b32.xlu0 %v2688, 24
  %v2724 = vpop.permute.xlu0 %2723
  %2725 = vrot.lane.b32.xlu0 %v2689, 24
  %v2726 = vpop.permute.xlu0 %2725
  %2727 = vrot.lane.b32.xlu0 %v2690, 24
  %v2728 = vpop.permute.xlu0 %2727
  %2729 = vrot.lane.b32.xlu0 %v2691, 24
  %v2730 = vpop.permute.xlu0 %2729
  %2731 = vrot.lane.b32.xlu0 %v2692, 24
  %v2732 = vpop.permute.xlu0 %2731
  %2733 = vrot.lane.b32.xlu0 %v2693, 24
  %v2734 = vpop.permute.xlu0 %2733
  %2735 = vrot.lane.b32.xlu0 %v2694, 24
  %v2736 = vpop.permute.xlu0 %2735
  %2737 = vrot.lane.b32.xlu0 %v2695, 24
  %v2738 = vpop.permute.xlu0 %2737
  %2739 = vrot.lane.b32.xlu0 %v2696, 24
  %v2740 = vpop.permute.xlu0 %2739
  %2741 = vrot.lane.b32.xlu0 %v2697, 24
  %v2742 = vpop.permute.xlu0 %2741
  %2743 = vrot.lane.b32.xlu0 %v2698, 24
  %v2744 = vpop.permute.xlu0 %2743
  %2745 = vrot.lane.b32.xlu0 %v2699, 24
  %v2746 = vpop.permute.xlu0 %2745
  %2747 = vrot.lane.b32.xlu0 %v2700, 24
  %v2748 = vpop.permute.xlu0 %2747
  %2765 = vst.msk [vmem:[%s2476] sm:$0xf] %vm351, %v2718
  %2766 = vst.msk [vmem:[%s2476 + $0x4] sm:$0xf] %vm351, %v2720
  %2767 = vst.msk [vmem:[%s2476 + $0x8] sm:$0xf] %vm351, %v2722
  %2768 = vst.msk [vmem:[%s2476 + $0xc] sm:$0xf] %vm351, %v2724
  %2769 = vst.msk [vmem:[%s2476 + $0x10] sm:$0xf] %vm351, %v2726
  %2770 = vst.msk [vmem:[%s2476 + $0x14] sm:$0xf] %vm351, %v2728
  %2771 = vst.msk [vmem:[%s2476 + $0x18] sm:$0xf] %vm351, %v2730
  %2772 = vst.msk [vmem:[%s2476 + $0x1c] sm:$0xf] %vm351, %v2732
  %2773 = vst.msk [vmem:[%s2476 + $0x20] sm:$0xf] %vm351, %v2734
  %2774 = vst.msk [vmem:[%s2476 + $0x24] sm:$0xf] %vm351, %v2736
  %2775 = vst.msk [vmem:[%s2476 + $0x28] sm:$0xf] %vm351, %v2738
  %2776 = vst.msk [vmem:[%s2476 + $0x2c] sm:$0xf] %vm351, %v2740
  %2777 = vst.msk [vmem:[%s2476 + $0x30] sm:$0xf] %vm351, %v2742
  %2778 = vst.msk [vmem:[%s2476 + $0x34] sm:$0xf] %vm351, %v2744
  %2779 = vst.msk [vmem:[%s2476 + $0x38] sm:$0xf] %vm351, %v2746
  %2780 = vst.msk [vmem:[%s2476 + $0x3c] sm:$0xf] %vm351, %v2748
  %v2781 = vld [vmem:[%s563] sm:$0xf]
  %v2782 = vld [vmem:[%s563 + $0x4] sm:$0xf]
  %v2783 = vld [vmem:[%s563 + $0x8] sm:$0xf]
  %v2784 = vld [vmem:[%s563 + $0xc] sm:$0xf]
  %v2785 = vld [vmem:[%s563 + $0x10] sm:$0xf]
  %v2786 = vld [vmem:[%s563 + $0x14] sm:$0xf]
  %v2787 = vld [vmem:[%s563 + $0x18] sm:$0xf]
  %v2788 = vld [vmem:[%s563 + $0x1c] sm:$0xf]
  %v2789 = vld [vmem:[%s563 + $0x20] sm:$0xf]
  %v2790 = vld [vmem:[%s563 + $0x24] sm:$0xf]
  %v2791 = vld [vmem:[%s563 + $0x28] sm:$0xf]
  %v2792 = vld [vmem:[%s563 + $0x2c] sm:$0xf]
  %v2793 = vld [vmem:[%s563 + $0x30] sm:$0xf]
  %v2794 = vld [vmem:[%s563 + $0x34] sm:$0xf]
  %v2795 = vld [vmem:[%s563 + $0x38] sm:$0xf]
  %v2796 = vld [vmem:[%s563 + $0x3c] sm:$0xf]
  %2813 = vrot.lane.b32.xlu0 %v2781, 31
  %v2814 = vpop.permute.xlu0 %2813
  %2815 = vrot.lane.b32.xlu0 %v2782, 31
  %v2816 = vpop.permute.xlu0 %2815
  %2817 = vrot.lane.b32.xlu0 %v2783, 31
  %v2818 = vpop.permute.xlu0 %2817
  %2819 = vrot.lane.b32.xlu0 %v2784, 31
  %v2820 = vpop.permute.xlu0 %2819
  %2821 = vrot.lane.b32.xlu0 %v2785, 31
  %v2822 = vpop.permute.xlu0 %2821
  %2823 = vrot.lane.b32.xlu0 %v2786, 31
  %v2824 = vpop.permute.xlu0 %2823
  %2825 = vrot.lane.b32.xlu0 %v2787, 31
  %v2826 = vpop.permute.xlu0 %2825
  %2827 = vrot.lane.b32.xlu0 %v2788, 31
  %v2828 = vpop.permute.xlu0 %2827
  %2829 = vrot.lane.b32.xlu0 %v2789, 31
  %v2830 = vpop.permute.xlu0 %2829
  %2831 = vrot.lane.b32.xlu0 %v2790, 31
  %v2832 = vpop.permute.xlu0 %2831
  %2833 = vrot.lane.b32.xlu0 %v2791, 31
  %v2834 = vpop.permute.xlu0 %2833
  %2835 = vrot.lane.b32.xlu0 %v2792, 31
  %v2836 = vpop.permute.xlu0 %2835
  %2837 = vrot.lane.b32.xlu0 %v2793, 31
  %v2838 = vpop.permute.xlu0 %2837
  %2839 = vrot.lane.b32.xlu0 %v2794, 31
  %v2840 = vpop.permute.xlu0 %2839
  %2841 = vrot.lane.b32.xlu0 %v2795, 31
  %v2842 = vpop.permute.xlu0 %2841
  %2843 = vrot.lane.b32.xlu0 %v2796, 31
  %v2844 = vpop.permute.xlu0 %2843
  %2861 = vst.msk [vmem:[%s2476] sm:$0xf] %vm449, %v2814
  %2862 = vst.msk [vmem:[%s2476 + $0x4] sm:$0xf] %vm449, %v2816
  %2863 = vst.msk [vmem:[%s2476 + $0x8] sm:$0xf] %vm449, %v2818
  %2864 = vst.msk [vmem:[%s2476 + $0xc] sm:$0xf] %vm449, %v2820
  %2865 = vst.msk [vmem:[%s2476 + $0x10] sm:$0xf] %vm449, %v2822
  %2866 = vst.msk [vmem:[%s2476 + $0x14] sm:$0xf] %vm449, %v2824
  %2867 = vst.msk [vmem:[%s2476 + $0x18] sm:$0xf] %vm449, %v2826
  %2868 = vst.msk [vmem:[%s2476 + $0x1c] sm:$0xf] %vm449, %v2828
  %2869 = vst.msk [vmem:[%s2476 + $0x20] sm:$0xf] %vm449, %v2830
  %2870 = vst.msk [vmem:[%s2476 + $0x24] sm:$0xf] %vm449, %v2832
  %2871 = vst.msk [vmem:[%s2476 + $0x28] sm:$0xf] %vm449, %v2834
  %2872 = vst.msk [vmem:[%s2476 + $0x2c] sm:$0xf] %vm449, %v2836
  %2873 = vst.msk [vmem:[%s2476 + $0x30] sm:$0xf] %vm449, %v2838
  %2874 = vst.msk [vmem:[%s2476 + $0x34] sm:$0xf] %vm449, %v2840
  %2875 = vst.msk [vmem:[%s2476 + $0x38] sm:$0xf] %vm449, %v2842
  %2876 = vst.msk [vmem:[%s2476 + $0x3c] sm:$0xf] %vm449, %v2844
  %v2877 = vld [vmem:[%s661] sm:$0xf]
  %v2878 = vld [vmem:[%s661 + $0x4] sm:$0xf]
  %v2879 = vld [vmem:[%s661 + $0x8] sm:$0xf]
  %v2880 = vld [vmem:[%s661 + $0xc] sm:$0xf]
  %v2881 = vld [vmem:[%s661 + $0x10] sm:$0xf]
  %v2882 = vld [vmem:[%s661 + $0x14] sm:$0xf]
  %v2883 = vld [vmem:[%s661 + $0x18] sm:$0xf]
  %v2884 = vld [vmem:[%s661 + $0x1c] sm:$0xf]
  %v2885 = vld [vmem:[%s661 + $0x20] sm:$0xf]
  %v2886 = vld [vmem:[%s661 + $0x24] sm:$0xf]
  %v2887 = vld [vmem:[%s661 + $0x28] sm:$0xf]
  %v2888 = vld [vmem:[%s661 + $0x2c] sm:$0xf]
  %v2889 = vld [vmem:[%s661 + $0x30] sm:$0xf]
  %v2890 = vld [vmem:[%s661 + $0x34] sm:$0xf]
  %v2891 = vld [vmem:[%s661 + $0x38] sm:$0xf]
  %v2892 = vld [vmem:[%s661 + $0x3c] sm:$0xf]
  %2909 = vrot.lane.b32.xlu0 %v2877, 39
  %v2910 = vpop.permute.xlu0 %2909
  %2911 = vrot.lane.b32.xlu0 %v2878, 39
  %v2912 = vpop.permute.xlu0 %2911
  %2913 = vrot.lane.b32.xlu0 %v2879, 39
  %v2914 = vpop.permute.xlu0 %2913
  %2915 = vrot.lane.b32.xlu0 %v2880, 39
  %v2916 = vpop.permute.xlu0 %2915
  %2917 = vrot.lane.b32.xlu0 %v2881, 39
  %v2918 = vpop.permute.xlu0 %2917
  %2919 = vrot.lane.b32.xlu0 %v2882, 39
  %v2920 = vpop.permute.xlu0 %2919
  %2921 = vrot.lane.b32.xlu0 %v2883, 39
  %v2922 = vpop.permute.xlu0 %2921
  %2923 = vrot.lane.b32.xlu0 %v2884, 39
  %v2924 = vpop.permute.xlu0 %2923
  %2925 = vrot.lane.b32.xlu0 %v2885, 39
  %v2926 = vpop.permute.xlu0 %2925
  %2927 = vrot.lane.b32.xlu0 %v2886, 39
  %v2928 = vpop.permute.xlu0 %2927
  %2929 = vrot.lane.b32.xlu0 %v2887, 39
  %v2930 = vpop.permute.xlu0 %2929
  %2931 = vrot.lane.b32.xlu0 %v2888, 39
  %v2932 = vpop.permute.xlu0 %2931
  %2933 = vrot.lane.b32.xlu0 %v2889, 39
  %v2934 = vpop.permute.xlu0 %2933
  %2935 = vrot.lane.b32.xlu0 %v2890, 39
  %v2936 = vpop.permute.xlu0 %2935
  %2937 = vrot.lane.b32.xlu0 %v2891, 39
  %v2938 = vpop.permute.xlu0 %2937
  %2939 = vrot.lane.b32.xlu0 %v2892, 39
  %v2940 = vpop.permute.xlu0 %2939
  %2957 = vst.msk [vmem:[%s2476] sm:$0xf] %vm546, %v2910
  %2958 = vst.msk [vmem:[%s2476 + $0x4] sm:$0xf] %vm546, %v2912
  %2959 = vst.msk [vmem:[%s2476 + $0x8] sm:$0xf] %vm546, %v2914
  %2960 = vst.msk [vmem:[%s2476 + $0xc] sm:$0xf] %vm546, %v2916
  %2961 = vst.msk [vmem:[%s2476 + $0x10] sm:$0xf] %vm546, %v2918
  %2962 = vst.msk [vmem:[%s2476 + $0x14] sm:$0xf] %vm546, %v2920
  %2963 = vst.msk [vmem:[%s2476 + $0x18] sm:$0xf] %vm546, %v2922
  %2964 = vst.msk [vmem:[%s2476 + $0x1c] sm:$0xf] %vm546, %v2924
  %2965 = vst.msk [vmem:[%s2476 + $0x20] sm:$0xf] %vm546, %v2926
  %2966 = vst.msk [vmem:[%s2476 + $0x24] sm:$0xf] %vm546, %v2928
  %2967 = vst.msk [vmem:[%s2476 + $0x28] sm:$0xf] %vm546, %v2930
  %2968 = vst.msk [vmem:[%s2476 + $0x2c] sm:$0xf] %vm546, %v2932
  %2969 = vst.msk [vmem:[%s2476 + $0x30] sm:$0xf] %vm546, %v2934
  %2970 = vst.msk [vmem:[%s2476 + $0x34] sm:$0xf] %vm546, %v2936
  %2971 = vst.msk [vmem:[%s2476 + $0x38] sm:$0xf] %vm546, %v2938
  %2972 = vst.msk [vmem:[%s2476 + $0x3c] sm:$0xf] %vm546, %v2940
  %v2973 = vld [vmem:[%s2267] sm:$0xf]
  %v2974 = vld [vmem:[%s2267 + $0x4] sm:$0xf]
  %v2975 = vld [vmem:[%s2267 + $0x8] sm:$0xf]
  %v2976 = vld [vmem:[%s2267 + $0xc] sm:$0xf]
  %v2977 = vld [vmem:[%s2267 + $0x10] sm:$0xf]
  %v2978 = vld [vmem:[%s2267 + $0x14] sm:$0xf]
  %v2979 = vld [vmem:[%s2267 + $0x18] sm:$0xf]
  %v2980 = vld [vmem:[%s2267 + $0x1c] sm:$0xf]
  %v2981 = vld [vmem:[%s2267 + $0x20] sm:$0xf]
  %v2982 = vld [vmem:[%s2267 + $0x24] sm:$0xf]
  %v2983 = vld [vmem:[%s2267 + $0x28] sm:$0xf]
  %v2984 = vld [vmem:[%s2267 + $0x2c] sm:$0xf]
  %v2985 = vld [vmem:[%s2267 + $0x30] sm:$0xf]
  %v2986 = vld [vmem:[%s2267 + $0x34] sm:$0xf]
  %v2987 = vld [vmem:[%s2267 + $0x38] sm:$0xf]
  %v2988 = vld [vmem:[%s2267 + $0x3c] sm:$0xf]
  %3005 = vrot.lane.b32.xlu0 %v2973, 48
  %v3006 = vpop.permute.xlu0 %3005
  %3007 = vrot.lane.b32.xlu0 %v2974, 48
  %v3008 = vpop.permute.xlu0 %3007
  %3009 = vrot.lane.b32.xlu0 %v2975, 48
  %v3010 = vpop.permute.xlu0 %3009
  %3011 = vrot.lane.b32.xlu0 %v2976, 48
  %v3012 = vpop.permute.xlu0 %3011
  %3013 = vrot.lane.b32.xlu0 %v2977, 48
  %v3014 = vpop.permute.xlu0 %3013
  %3015 = vrot.lane.b32.xlu0 %v2978, 48
  %v3016 = vpop.permute.xlu0 %3015
  %3017 = vrot.lane.b32.xlu0 %v2979, 48
  %v3018 = vpop.permute.xlu0 %3017
  %3019 = vrot.lane.b32.xlu0 %v2980, 48
  %v3020 = vpop.permute.xlu0 %3019
  %3021 = vrot.lane.b32.xlu0 %v2981, 48
  %v3022 = vpop.permute.xlu0 %3021
  %3023 = vrot.lane.b32.xlu0 %v2982, 48
  %v3024 = vpop.permute.xlu0 %3023
  %3025 = vrot.lane.b32.xlu0 %v2983, 48
  %v3026 = vpop.permute.xlu0 %3025
  %3027 = vrot.lane.b32.xlu0 %v2984, 48
  %v3028 = vpop.permute.xlu0 %3027
  %3029 = vrot.lane.b32.xlu0 %v2985, 48
  %v3030 = vpop.permute.xlu0 %3029
  %3031 = vrot.lane.b32.xlu0 %v2986, 48
  %v3032 = vpop.permute.xlu0 %3031
  %3033 = vrot.lane.b32.xlu0 %v2987, 48
  %v3034 = vpop.permute.xlu0 %3033
  %3035 = vrot.lane.b32.xlu0 %v2988, 48
  %v3036 = vpop.permute.xlu0 %3035
  %3053 = vst.msk [vmem:[%s2476] sm:$0xf] %vm644, %v3006
  %3054 = vst.msk [vmem:[%s2476 + $0x4] sm:$0xf] %vm644, %v3008
  %3055 = vst.msk [vmem:[%s2476 + $0x8] sm:$0xf] %vm644, %v3010
  %3056 = vst.msk [vmem:[%s2476 + $0xc] sm:$0xf] %vm644, %v3012
  %3057 = vst.msk [vmem:[%s2476 + $0x10] sm:$0xf] %vm644, %v3014
  %3058 = vst.msk [vmem:[%s2476 + $0x14] sm:$0xf] %vm644, %v3016
  %3059 = vst.msk [vmem:[%s2476 + $0x18] sm:$0xf] %vm644, %v3018
  %3060 = vst.msk [vmem:[%s2476 + $0x1c] sm:$0xf] %vm644, %v3020
  %3061 = vst.msk [vmem:[%s2476 + $0x20] sm:$0xf] %vm644, %v3022
  %3062 = vst.msk [vmem:[%s2476 + $0x24] sm:$0xf] %vm644, %v3024
  %3063 = vst.msk [vmem:[%s2476 + $0x28] sm:$0xf] %vm644, %v3026
  %3064 = vst.msk [vmem:[%s2476 + $0x2c] sm:$0xf] %vm644, %v3028
  %3065 = vst.msk [vmem:[%s2476 + $0x30] sm:$0xf] %vm644, %v3030
  %3066 = vst.msk [vmem:[%s2476 + $0x34] sm:$0xf] %vm644, %v3032
  %3067 = vst.msk [vmem:[%s2476 + $0x38] sm:$0xf] %vm644, %v3034
  %3068 = vst.msk [vmem:[%s2476 + $0x3c] sm:$0xf] %vm644, %v3036
  %v3069 = vld [vmem:[%s2170] sm:$0xf]
  %v3070 = vld [vmem:[%s2170 + $0x4] sm:$0xf]
  %v3071 = vld [vmem:[%s2170 + $0x8] sm:$0xf]
  %v3072 = vld [vmem:[%s2170 + $0xc] sm:$0xf]
  %v3073 = vld [vmem:[%s2170 + $0x10] sm:$0xf]
  %v3074 = vld [vmem:[%s2170 + $0x14] sm:$0xf]
  %v3075 = vld [vmem:[%s2170 + $0x18] sm:$0xf]
  %v3076 = vld [vmem:[%s2170 + $0x1c] sm:$0xf]
  %v3077 = vld [vmem:[%s2170 + $0x20] sm:$0xf]
  %v3078 = vld [vmem:[%s2170 + $0x24] sm:$0xf]
  %v3079 = vld [vmem:[%s2170 + $0x28] sm:$0xf]
  %v3080 = vld [vmem:[%s2170 + $0x2c] sm:$0xf]
  %v3081 = vld [vmem:[%s2170 + $0x30] sm:$0xf]
  %v3082 = vld [vmem:[%s2170 + $0x34] sm:$0xf]
  %v3083 = vld [vmem:[%s2170 + $0x38] sm:$0xf]
  %v3084 = vld [vmem:[%s2170 + $0x3c] sm:$0xf]
  %3101 = vrot.lane.b32.xlu0 %v3069, 55
  %v3102 = vpop.permute.xlu0 %3101
  %3103 = vrot.lane.b32.xlu0 %v3070, 55
  %v3104 = vpop.permute.xlu0 %3103
  %3105 = vrot.lane.b32.xlu0 %v3071, 55
  %v3106 = vpop.permute.xlu0 %3105
  %3107 = vrot.lane.b32.xlu0 %v3072, 55
  %v3108 = vpop.permute.xlu0 %3107
  %3109 = vrot.lane.b32.xlu0 %v3073, 55
  %v3110 = vpop.permute.xlu0 %3109
  %3111 = vrot.lane.b32.xlu0 %v3074, 55
  %v3112 = vpop.permute.xlu0 %3111
  %3113 = vrot.lane.b32.xlu0 %v3075, 55
  %v3114 = vpop.permute.xlu0 %3113
  %3115 = vrot.lane.b32.xlu0 %v3076, 55
  %v3116 = vpop.permute.xlu0 %3115
  %3117 = vrot.lane.b32.xlu0 %v3077, 55
  %v3118 = vpop.permute.xlu0 %3117
  %3119 = vrot.lane.b32.xlu0 %v3078, 55
  %v3120 = vpop.permute.xlu0 %3119
  %3121 = vrot.lane.b32.xlu0 %v3079, 55
  %v3122 = vpop.permute.xlu0 %3121
  %3123 = vrot.lane.b32.xlu0 %v3080, 55
  %v3124 = vpop.permute.xlu0 %3123
  %3125 = vrot.lane.b32.xlu0 %v3081, 55
  %v3126 = vpop.permute.xlu0 %3125
  %3127 = vrot.lane.b32.xlu0 %v3082, 55
  %v3128 = vpop.permute.xlu0 %3127
  %3129 = vrot.lane.b32.xlu0 %v3083, 55
  %v3130 = vpop.permute.xlu0 %3129
  %3131 = vrot.lane.b32.xlu0 %v3084, 55
  %v3132 = vpop.permute.xlu0 %3131
  %3149 = vst.msk [vmem:[%s2476] sm:$0xf] %vm742, %v3102
  %3150 = vst.msk [vmem:[%s2476 + $0x4] sm:$0xf] %vm742, %v3104
  %3151 = vst.msk [vmem:[%s2476 + $0x8] sm:$0xf] %vm742, %v3106
  %3152 = vst.msk [vmem:[%s2476 + $0xc] sm:$0xf] %vm742, %v3108
  %3153 = vst.msk [vmem:[%s2476 + $0x10] sm:$0xf] %vm742, %v3110
  %3154 = vst.msk [vmem:[%s2476 + $0x14] sm:$0xf] %vm742, %v3112
  %3155 = vst.msk [vmem:[%s2476 + $0x18] sm:$0xf] %vm742, %v3114
  %3156 = vst.msk [vmem:[%s2476 + $0x1c] sm:$0xf] %vm742, %v3116
  %3157 = vst.msk [vmem:[%s2476 + $0x20] sm:$0xf] %vm742, %v3118
  %3158 = vst.msk [vmem:[%s2476 + $0x24] sm:$0xf] %vm742, %v3120
  %3159 = vst.msk [vmem:[%s2476 + $0x28] sm:$0xf] %vm742, %v3122
  %3160 = vst.msk [vmem:[%s2476 + $0x2c] sm:$0xf] %vm742, %v3124
  %3161 = vst.msk [vmem:[%s2476 + $0x30] sm:$0xf] %vm742, %v3126
  %3162 = vst.msk [vmem:[%s2476 + $0x34] sm:$0xf] %vm742, %v3128
  %3163 = vst.msk [vmem:[%s2476 + $0x38] sm:$0xf] %vm742, %v3130
  %3164 = vst.msk [vmem:[%s2476 + $0x3c] sm:$0xf] %vm742, %v3132
  %v3165 = vld [vmem:[%s2267] sm:$0xf]
  %v3166 = vld [vmem:[%s2267 + $0x4] sm:$0xf]
  %v3167 = vld [vmem:[%s2267 + $0x8] sm:$0xf]
  %v3168 = vld [vmem:[%s2267 + $0xc] sm:$0xf]
  %v3169 = vld [vmem:[%s2267 + $0x10] sm:$0xf]
  %v3170 = vld [vmem:[%s2267 + $0x14] sm:$0xf]
  %v3171 = vld [vmem:[%s2267 + $0x18] sm:$0xf]
  %v3172 = vld [vmem:[%s2267 + $0x1c] sm:$0xf]
  %v3173 = vld [vmem:[%s2267 + $0x20] sm:$0xf]
  %v3174 = vld [vmem:[%s2267 + $0x24] sm:$0xf]
  %v3175 = vld [vmem:[%s2267 + $0x28] sm:$0xf]
  %v3176 = vld [vmem:[%s2267 + $0x2c] sm:$0xf]
  %v3177 = vld [vmem:[%s2267 + $0x30] sm:$0xf]
  %v3178 = vld [vmem:[%s2267 + $0x34] sm:$0xf]
  %v3179 = vld [vmem:[%s2267 + $0x38] sm:$0xf]
  %v3180 = vld [vmem:[%s2267 + $0x3c] sm:$0xf]
  %3197 = vrot.lane.b32.xlu0 %v3165, 63
  %v3198 = vpop.permute.xlu0 %3197
  %3199 = vrot.lane.b32.xlu0 %v3166, 63
  %v3200 = vpop.permute.xlu0 %3199
  %3201 = vrot.lane.b32.xlu0 %v3167, 63
  %v3202 = vpop.permute.xlu0 %3201
  %3203 = vrot.lane.b32.xlu0 %v3168, 63
  %v3204 = vpop.permute.xlu0 %3203
  %3205 = vrot.lane.b32.xlu0 %v3169, 63
  %v3206 = vpop.permute.xlu0 %3205
  %3207 = vrot.lane.b32.xlu0 %v3170, 63
  %v3208 = vpop.permute.xlu0 %3207
  %3209 = vrot.lane.b32.xlu0 %v3171, 63
  %v3210 = vpop.permute.xlu0 %3209
  %3211 = vrot.lane.b32.xlu0 %v3172, 63
  %v3212 = vpop.permute.xlu0 %3211
  %3213 = vrot.lane.b32.xlu0 %v3173, 63
  %v3214 = vpop.permute.xlu0 %3213
  %3215 = vrot.lane.b32.xlu0 %v3174, 63
  %v3216 = vpop.permute.xlu0 %3215
  %3217 = vrot.lane.b32.xlu0 %v3175, 63
  %v3218 = vpop.permute.xlu0 %3217
  %3219 = vrot.lane.b32.xlu0 %v3176, 63
  %v3220 = vpop.permute.xlu0 %3219
  %3221 = vrot.lane.b32.xlu0 %v3177, 63
  %v3222 = vpop.permute.xlu0 %3221
  %3223 = vrot.lane.b32.xlu0 %v3178, 63
  %v3224 = vpop.permute.xlu0 %3223
  %3225 = vrot.lane.b32.xlu0 %v3179, 63
  %v3226 = vpop.permute.xlu0 %3225
  %3227 = vrot.lane.b32.xlu0 %v3180, 63
  %v3228 = vpop.permute.xlu0 %3227
  %3245 = vst.msk [vmem:[%s2476] sm:$0xf] %vm839, %v3198
  %3246 = vst.msk [vmem:[%s2476 + $0x4] sm:$0xf] %vm839, %v3200
  %3247 = vst.msk [vmem:[%s2476 + $0x8] sm:$0xf] %vm839, %v3202
  %3248 = vst.msk [vmem:[%s2476 + $0xc] sm:$0xf] %vm839, %v3204
  %3249 = vst.msk [vmem:[%s2476 + $0x10] sm:$0xf] %vm839, %v3206
  %3250 = vst.msk [vmem:[%s2476 + $0x14] sm:$0xf] %vm839, %v3208
  %3251 = vst.msk [vmem:[%s2476 + $0x18] sm:$0xf] %vm839, %v3210
  %3252 = vst.msk [vmem:[%s2476 + $0x1c] sm:$0xf] %vm839, %v3212
  %3253 = vst.msk [vmem:[%s2476 + $0x20] sm:$0xf] %vm839, %v3214
  %3254 = vst.msk [vmem:[%s2476 + $0x24] sm:$0xf] %vm839, %v3216
  %3255 = vst.msk [vmem:[%s2476 + $0x28] sm:$0xf] %vm839, %v3218
  %3256 = vst.msk [vmem:[%s2476 + $0x2c] sm:$0xf] %vm839, %v3220
  %3257 = vst.msk [vmem:[%s2476 + $0x30] sm:$0xf] %vm839, %v3222
  %3258 = vst.msk [vmem:[%s2476 + $0x34] sm:$0xf] %vm839, %v3224
  %3259 = vst.msk [vmem:[%s2476 + $0x38] sm:$0xf] %vm839, %v3226
  %3260 = vst.msk [vmem:[%s2476 + $0x3c] sm:$0xf] %vm839, %v3228
  %v3261 = vld [vmem:[#allocation2] sm:$0xf]
  %v3262 = vld [vmem:[#allocation2 + $0x4] sm:$0xf]
  %v3263 = vld [vmem:[#allocation2 + $0x8] sm:$0xf]
  %v3264 = vld [vmem:[#allocation2 + $0xc] sm:$0xf]
  %v3265 = vld [vmem:[#allocation2 + $0x10] sm:$0xf]
  %v3266 = vld [vmem:[#allocation2 + $0x14] sm:$0xf]
  %v3267 = vld [vmem:[#allocation2 + $0x18] sm:$0xf]
  %v3268 = vld [vmem:[#allocation2 + $0x1c] sm:$0xf]
  %v3269 = vld [vmem:[#allocation2 + $0x20] sm:$0xf]
  %v3270 = vld [vmem:[#allocation2 + $0x24] sm:$0xf]
  %v3271 = vld [vmem:[#allocation2 + $0x28] sm:$0xf]
  %v3272 = vld [vmem:[#allocation2 + $0x2c] sm:$0xf]
  %v3273 = vld [vmem:[#allocation2 + $0x30] sm:$0xf]
  %v3274 = vld [vmem:[#allocation2 + $0x34] sm:$0xf]
  %v3275 = vld [vmem:[#allocation2 + $0x38] sm:$0xf]
  %v3276 = vld [vmem:[#allocation2 + $0x3c] sm:$0xf]
  %v3277 = vld [vmem:[#allocation2 + $0x40] sm:$0xf]
  %v3278 = vld [vmem:[#allocation2 + $0x44] sm:$0xf]
  %v3279 = vld [vmem:[#allocation2 + $0x48] sm:$0xf]
  %v3280 = vld [vmem:[#allocation2 + $0x4c] sm:$0xf]
  %v3281 = vld [vmem:[#allocation2 + $0x50] sm:$0xf]
  %v3282 = vld [vmem:[#allocation2 + $0x54] sm:$0xf]
  %v3283 = vld [vmem:[#allocation2 + $0x58] sm:$0xf]
  %v3284 = vld [vmem:[#allocation2 + $0x5c] sm:$0xf]
  %v3285 = vld [vmem:[#allocation2 + $0x60] sm:$0xf]
  %v3286 = vld [vmem:[#allocation2 + $0x64] sm:$0xf]
  %v3287 = vld [vmem:[#allocation2 + $0x68] sm:$0xf]
  %v3288 = vld [vmem:[#allocation2 + $0x6c] sm:$0xf]
  %v3289 = vld [vmem:[#allocation2 + $0x70] sm:$0xf]
  %v3290 = vld [vmem:[#allocation2 + $0x74] sm:$0xf]
  %v3291 = vld [vmem:[#allocation2 + $0x78] sm:$0xf]
  %v3292 = vld [vmem:[#allocation2 + $0x7c] sm:$0xf]
  %v3293 = vld [vmem:[#allocation2 + $0x80] sm:$0xf]
  %v3294 = vld [vmem:[#allocation2 + $0x84] sm:$0xf]
  %v3295 = vld [vmem:[#allocation2 + $0x88] sm:$0xf]
  %v3296 = vld [vmem:[#allocation2 + $0x8c] sm:$0xf]
  %v3297 = vld [vmem:[#allocation2 + $0x90] sm:$0xf]
  %v3298 = vld [vmem:[#allocation2 + $0x94] sm:$0xf]
  %v3299 = vld [vmem:[#allocation2 + $0x98] sm:$0xf]
  %v3300 = vld [vmem:[#allocation2 + $0x9c] sm:$0xf]
  %v3301 = vld [vmem:[#allocation2 + $0xa0] sm:$0xf]
  %v3302 = vld [vmem:[#allocation2 + $0xa4] sm:$0xf]
  %v3303 = vld [vmem:[#allocation2 + $0xa8] sm:$0xf]
  %v3304 = vld [vmem:[#allocation2 + $0xac] sm:$0xf]
  %v3305 = vld [vmem:[#allocation2 + $0xb0] sm:$0xf]
  %v3306 = vld [vmem:[#allocation2 + $0xb4] sm:$0xf]
  %v3307 = vld [vmem:[#allocation2 + $0xb8] sm:$0xf]
  %v3308 = vld [vmem:[#allocation2 + $0xbc] sm:$0xf]
  %v3309 = vld [vmem:[#allocation2 + $0xc0] sm:$0xf]
  %v3310 = vld [vmem:[#allocation2 + $0xc4] sm:$0xf]
  %v3311 = vld [vmem:[#allocation2 + $0xc8] sm:$0xf]
  %v3312 = vld [vmem:[#allocation2 + $0xcc] sm:$0xf]
  %v3313 = vld [vmem:[#allocation2 + $0xd0] sm:$0xf]
  %v3314 = vld [vmem:[#allocation2 + $0xd4] sm:$0xf]
  %v3315 = vld [vmem:[#allocation2 + $0xd8] sm:$0xf]
  %v3316 = vld [vmem:[#allocation2 + $0xdc] sm:$0xf]
  %v3317 = vld [vmem:[#allocation2 + $0xe0] sm:$0xf]
  %v3318 = vld [vmem:[#allocation2 + $0xe4] sm:$0xf]
  %v3319 = vld [vmem:[#allocation2 + $0xe8] sm:$0xf]
  %v3320 = vld [vmem:[#allocation2 + $0xec] sm:$0xf]
  %v3321 = vld [vmem:[#allocation2 + $0xf0] sm:$0xf]
  %v3322 = vld [vmem:[#allocation2 + $0xf4] sm:$0xf]
  %v3323 = vld [vmem:[#allocation2 + $0xf8] sm:$0xf]
  %v3324 = vld [vmem:[#allocation2 + $0xfc] sm:$0xf]
  %v3325 = vld [vmem:[%s1] sm:$0xf]
  %v3326 = vld [vmem:[%s1 + $0x4] sm:$0xf]
  %v3327 = vld [vmem:[%s1 + $0x8] sm:$0xf]
  %v3328 = vld [vmem:[%s1 + $0xc] sm:$0xf]
  %v3329 = vld [vmem:[%s1 + $0x10] sm:$0xf]
  %v3330 = vld [vmem:[%s1 + $0x14] sm:$0xf]
  %v3331 = vld [vmem:[%s1 + $0x18] sm:$0xf]
  %v3332 = vld [vmem:[%s1 + $0x1c] sm:$0xf]
  %v3333 = vld [vmem:[%s1 + $0x20] sm:$0xf]
  %v3398 = vunpack.c.l.b16 %v3261
  %v3399 = vunpack.c.l.b16 %v3262
  %v3400 = vunpack.c.l.b16 %v3263
  %v3401 = vunpack.c.l.b16 %v3264
  %v3402 = vunpack.c.l.b16 %v3265
  %v3403 = vunpack.c.l.b16 %v3266
  %v3404 = vunpack.c.l.b16 %v3267
  %v3405 = vunpack.c.l.b16 %v3268
  %v3406 = vunpack.c.l.b16 %v3269
  %v3407 = vunpack.c.l.b16 %v3270
  %v3408 = vunpack.c.l.b16 %v3271
  %v3409 = vunpack.c.l.b16 %v3272
  %v3410 = vunpack.c.l.b16 %v3273
  %v3411 = vunpack.c.l.b16 %v3274
  %v3412 = vunpack.c.l.b16 %v3275
  %v3413 = vunpack.c.l.b16 %v3276
  %v3414 = vunpack.c.l.b16 %v3277
  %v3415 = vunpack.c.l.b16 %v3278
  %v3416 = vunpack.c.l.b16 %v3279
  %v3417 = vunpack.c.l.b16 %v3280
  %v3418 = vunpack.c.l.b16 %v3281
  %v3419 = vunpack.c.l.b16 %v3282
  %v3420 = vunpack.c.l.b16 %v3283
  %v3421 = vunpack.c.l.b16 %v3284
  %v3422 = vunpack.c.l.b16 %v3285
  %v3423 = vunpack.c.l.b16 %v3286
  %v3424 = vunpack.c.l.b16 %v3287
  %v3425 = vunpack.c.l.b16 %v3288
  %v3426 = vunpack.c.l.b16 %v3289
  %v3427 = vunpack.c.l.b16 %v3290
  %v3428 = vunpack.c.l.b16 %v3291
  %v3429 = vunpack.c.l.b16 %v3292
  %v3430 = vunpack.c.l.b16 %v3293
  %v3431 = vunpack.c.l.b16 %v3294
  %v3432 = vunpack.c.l.b16 %v3295
  %v3433 = vunpack.c.l.b16 %v3296
  %v3434 = vunpack.c.l.b16 %v3297
  %v3435 = vunpack.c.l.b16 %v3298
  %v3436 = vunpack.c.l.b16 %v3299
  %v3437 = vunpack.c.l.b16 %v3300
  %v3438 = vunpack.c.l.b16 %v3301
  %v3439 = vunpack.c.l.b16 %v3302
  %v3440 = vunpack.c.l.b16 %v3303
  %v3441 = vunpack.c.l.b16 %v3304
  %v3442 = vunpack.c.l.b16 %v3305
  %v3443 = vunpack.c.l.b16 %v3306
  %v3444 = vunpack.c.l.b16 %v3307
  %v3445 = vunpack.c.l.b16 %v3308
  %v3446 = vunpack.c.l.b16 %v3309
  %v3447 = vunpack.c.l.b16 %v3310
  %v3448 = vunpack.c.l.b16 %v3311
  %v3449 = vunpack.c.l.b16 %v3312
  %v3450 = vunpack.c.l.b16 %v3313
  %v3451 = vunpack.c.l.b16 %v3314
  %v3452 = vunpack.c.l.b16 %v3315
  %v3453 = vunpack.c.l.b16 %v3316
  %v3454 = vunpack.c.l.b16 %v3317
  %v3455 = vunpack.c.l.b16 %v3318
  %v3456 = vunpack.c.l.b16 %v3319
  %v3457 = vunpack.c.l.b16 %v3320
  %v3458 = vunpack.c.l.b16 %v3321
  %v3459 = vunpack.c.l.b16 %v3322
  %v3460 = vunpack.c.l.b16 %v3323
  %v3461 = vunpack.c.l.b16 %v3324
  %v3462 = vpack.c.b16 %v3399, %v3398
  %v3463 = vpack.c.b16 %v3401, %v3400
  %v3464 = vpack.c.b16 %v3403, %v3402
  %v3465 = vpack.c.b16 %v3405, %v3404
  %v3466 = vpack.c.b16 %v3407, %v3406
  %v3467 = vpack.c.b16 %v3409, %v3408
  %v3468 = vpack.c.b16 %v3411, %v3410
  %v3469 = vpack.c.b16 %v3413, %v3412
  %v3470 = vpack.c.b16 %v3415, %v3414
  %v3471 = vpack.c.b16 %v3417, %v3416
  %v3472 = vpack.c.b16 %v3419, %v3418
  %v3473 = vpack.c.b16 %v3421, %v3420
  %v3474 = vpack.c.b16 %v3423, %v3422
  %v3475 = vpack.c.b16 %v3425, %v3424
  %v3476 = vpack.c.b16 %v3427, %v3426
  %v3477 = vpack.c.b16 %v3429, %v3428
  %v3478 = vpack.c.b16 %v3431, %v3430
  %v3479 = vpack.c.b16 %v3433, %v3432
  %v3480 = vpack.c.b16 %v3435, %v3434
  %v3481 = vpack.c.b16 %v3437, %v3436
  %v3482 = vpack.c.b16 %v3439, %v3438
  %v3483 = vpack.c.b16 %v3441, %v3440
  %v3484 = vpack.c.b16 %v3443, %v3442
  %v3485 = vpack.c.b16 %v3445, %v3444
  %v3486 = vpack.c.b16 %v3447, %v3446
  %v3487 = vpack.c.b16 %v3449, %v3448
  %v3488 = vpack.c.b16 %v3451, %v3450
  %v3489 = vpack.c.b16 %v3453, %v3452
  %v3490 = vpack.c.b16 %v3455, %v3454
  %v3491 = vpack.c.b16 %v3457, %v3456
  %v3492 = vpack.c.b16 %v3459, %v3458
  %v3493 = vpack.c.b16 %v3461, %v3460
  %v3503 = vunpack.c.l.b16 %v3325
  %v3504 = vunpack.c.l.b16 %v3326
  %v3505 = vunpack.c.l.b16 %v3327
  %v3506 = vunpack.c.l.b16 %v3328
  %v3507 = vunpack.c.l.b16 %v3329
  %v3508 = vunpack.c.l.b16 %v3330
  %v3509 = vunpack.c.l.b16 %v3331
  %v3510 = vunpack.c.l.b16 %v3332
  %v3511 = vunpack.c.l.b16 %v3333
  %v3512 = vpack.c.b16 %v3504, %v3503
  %v3513 = vpack.c.b16 %v3506, %v3505
  %v3514 = vpack.c.b16 %v3508, %v3507
  %v3515 = vpack.c.b16 %v3510, %v3509
  %v3516 = vpack.c.b16 %v3511, %v3511
  %vm3521 = vcmask 588800
  %v3523 = vsel %vm3521, %v3462, 0
  %v3526 = vsel %vm3521, %v3463, 0
  %v3529 = vsel %vm3521, %v3464, 0
  %v3532 = vsel %vm3521, %v3465, 0
  %v3535 = vsel %vm3521, %v3466, 0
  %v3538 = vsel %vm3521, %v3467, 0
  %v3541 = vsel %vm3521, %v3468, 0
  %v3544 = vsel %vm3521, %v3469, 0
  %v3547 = vsel %vm3521, %v3470, 0
  %v3550 = vsel %vm3521, %v3471, 0
  %v3553 = vsel %vm3521, %v3472, 0
  %v3556 = vsel %vm3521, %v3473, 0
  %v3559 = vsel %vm3521, %v3474, 0
  %v3562 = vsel %vm3521, %v3475, 0
  %v3565 = vsel %vm3521, %v3476, 0
  %v3568 = vsel %vm3521, %v3477, 0
  %v3571 = vsel %vm3521, %v3478, 0
  %v3574 = vsel %vm3521, %v3479, 0
  %v3577 = vsel %vm3521, %v3480, 0
  %v3580 = vsel %vm3521, %v3481, 0
  %v3583 = vsel %vm3521, %v3482, 0
  %v3586 = vsel %vm3521, %v3483, 0
  %v3589 = vsel %vm3521, %v3484, 0
  %v3592 = vsel %vm3521, %v3485, 0
  %v3595 = vsel %vm3521, %v3486, 0
  %v3598 = vsel %vm3521, %v3487, 0
  %v3601 = vsel %vm3521, %v3488, 0
  %v3604 = vsel %vm3521, %v3489, 0
  %v3607 = vsel %vm3521, %v3490, 0
  %v3610 = vsel %vm3521, %v3491, 0
  %v3613 = vsel %vm3521, %v3492, 0
  %v3616 = vsel %vm3521, %v3493, 0
  %vm3618 = vcmask 1043456
  %v3620 = vsel %vm3618, %v3516, 0
  %3622 = vmatpush.bf16.msra.mxu0 0
  %3623 = vmatpush.bf16.msra.mxu0 0
  %3624 = vmatpush.bf16.msra.mxu0 0
  %3625 = vmatpush.bf16.msra.mxu0 %v3620
  %3626 = vmatpush.bf16.msra.mxu0 %v3515
  %3627 = vmatpush.bf16.msra.mxu0 %v3514
  %3628 = vmatpush.bf16.msra.mxu0 %v3513
  %3629 = vmatpush.bf16.msra.mxu0 %v3512
  %3630 = vmatmul.bf16.gmra.mxu0 %v3523
  %v3631 = vpop.f32.mrf.mxu0
  %v3632 = vadd.f32 0.0, %v3631
  %v3633 = vpop.f32.mrf.mxu0
  %v3634 = vadd.f32 0.0, %v3633
  %3635 = vmatmul.bf16.gmra.mxu0 %v3526
  %v3636 = vpop.f32.mrf.mxu0
  %v3637 = vadd.f32 0.0, %v3636
  %v3638 = vpop.f32.mrf.mxu0
  %v3639 = vadd.f32 0.0, %v3638
  %3640 = vmatmul.bf16.gmra.mxu0 %v3529
  %v3641 = vpop.f32.mrf.mxu0
  %v3642 = vadd.f32 0.0, %v3641
  %v3643 = vpop.f32.mrf.mxu0
  %v3644 = vadd.f32 0.0, %v3643
  %3645 = vmatmul.bf16.gmra.mxu0 %v3532
  %v3646 = vpop.f32.mrf.mxu0
  %v3647 = vadd.f32 0.0, %v3646
  %v3648 = vpop.f32.mrf.mxu0
  %v3649 = vadd.f32 0.0, %v3648
  %3650 = vmatmul.bf16.gmra.mxu0 %v3535
  %v3651 = vpop.f32.mrf.mxu0
  %v3652 = vadd.f32 0.0, %v3651
  %v3653 = vpop.f32.mrf.mxu0
  %v3654 = vadd.f32 0.0, %v3653
  %3655 = vmatmul.bf16.gmra.mxu0 %v3538
  %v3656 = vpop.f32.mrf.mxu0
  %v3657 = vadd.f32 0.0, %v3656
  %v3658 = vpop.f32.mrf.mxu0
  %v3659 = vadd.f32 0.0, %v3658
  %3660 = vmatmul.bf16.gmra.mxu0 %v3541
  %v3661 = vpop.f32.mrf.mxu0
  %v3662 = vadd.f32 0.0, %v3661
  %v3663 = vpop.f32.mrf.mxu0
  %v3664 = vadd.f32 0.0, %v3663
  %3665 = vmatmul.bf16.gmra.mxu0 %v3544
  %v3666 = vpop.f32.mrf.mxu0
  %v3667 = vadd.f32 0.0, %v3666
  %v3668 = vpop.f32.mrf.mxu0
  %v3669 = vadd.f32 0.0, %v3668
  %3670 = vmatmul.bf16.gmra.mxu0 %v3547
  %v3671 = vpop.f32.mrf.mxu0
  %v3672 = vadd.f32 0.0, %v3671
  %v3673 = vpop.f32.mrf.mxu0
  %v3674 = vadd.f32 0.0, %v3673
  %3675 = vmatmul.bf16.gmra.mxu0 %v3550
  %v3676 = vpop.f32.mrf.mxu0
  %v3677 = vadd.f32 0.0, %v3676
  %v3678 = vpop.f32.mrf.mxu0
  %v3679 = vadd.f32 0.0, %v3678
  %3680 = vmatmul.bf16.gmra.mxu0 %v3553
  %v3681 = vpop.f32.mrf.mxu0
  %v3682 = vadd.f32 0.0, %v3681
  %v3683 = vpop.f32.mrf.mxu0
  %v3684 = vadd.f32 0.0, %v3683
  %3685 = vmatmul.bf16.gmra.mxu0 %v3556
  %v3686 = vpop.f32.mrf.mxu0
  %v3687 = vadd.f32 0.0, %v3686
  %v3688 = vpop.f32.mrf.mxu0
  %v3689 = vadd.f32 0.0, %v3688
  %3690 = vmatmul.bf16.gmra.mxu0 %v3559
  %v3691 = vpop.f32.mrf.mxu0
  %v3692 = vadd.f32 0.0, %v3691
  %v3693 = vpop.f32.mrf.mxu0
  %v3694 = vadd.f32 0.0, %v3693
  %3695 = vmatmul.bf16.gmra.mxu0 %v3562
  %v3696 = vpop.f32.mrf.mxu0
  %v3697 = vadd.f32 0.0, %v3696
  %v3698 = vpop.f32.mrf.mxu0
  %v3699 = vadd.f32 0.0, %v3698
  %3700 = vmatmul.bf16.gmra.mxu0 %v3565
  %v3701 = vpop.f32.mrf.mxu0
  %v3702 = vadd.f32 0.0, %v3701
  %v3703 = vpop.f32.mrf.mxu0
  %v3704 = vadd.f32 0.0, %v3703
  %3705 = vmatmul.bf16.gmra.mxu0 %v3568
  %v3706 = vpop.f32.mrf.mxu0
  %v3707 = vadd.f32 0.0, %v3706
  %v3708 = vpop.f32.mrf.mxu0
  %v3709 = vadd.f32 0.0, %v3708
  %3710 = vmatmul.bf16.gmra.mxu0 %v3571
  %v3711 = vpop.f32.mrf.mxu0
  %v3712 = vadd.f32 0.0, %v3711
  %v3713 = vpop.f32.mrf.mxu0
  %v3714 = vadd.f32 0.0, %v3713
  %3715 = vmatmul.bf16.gmra.mxu0 %v3574
  %v3716 = vpop.f32.mrf.mxu0
  %v3717 = vadd.f32 0.0, %v3716
  %v3718 = vpop.f32.mrf.mxu0
  %v3719 = vadd.f32 0.0, %v3718
  %3720 = vmatmul.bf16.gmra.mxu0 %v3577
  %v3721 = vpop.f32.mrf.mxu0
  %v3722 = vadd.f32 0.0, %v3721
  %v3723 = vpop.f32.mrf.mxu0
  %v3724 = vadd.f32 0.0, %v3723
  %3725 = vmatmul.bf16.gmra.mxu0 %v3580
  %v3726 = vpop.f32.mrf.mxu0
  %v3727 = vadd.f32 0.0, %v3726
  %v3728 = vpop.f32.mrf.mxu0
  %v3729 = vadd.f32 0.0, %v3728
  %3730 = vmatmul.bf16.gmra.mxu0 %v3583
  %v3731 = vpop.f32.mrf.mxu0
  %v3732 = vadd.f32 0.0, %v3731
  %v3733 = vpop.f32.mrf.mxu0
  %v3734 = vadd.f32 0.0, %v3733
  %3735 = vmatmul.bf16.gmra.mxu0 %v3586
  %v3736 = vpop.f32.mrf.mxu0
  %v3737 = vadd.f32 0.0, %v3736
  %v3738 = vpop.f32.mrf.mxu0
  %v3739 = vadd.f32 0.0, %v3738
  %3740 = vmatmul.bf16.gmra.mxu0 %v3589
  %v3741 = vpop.f32.mrf.mxu0
  %v3742 = vadd.f32 0.0, %v3741
  %v3743 = vpop.f32.mrf.mxu0
  %v3744 = vadd.f32 0.0, %v3743
  %3745 = vmatmul.bf16.gmra.mxu0 %v3592
  %v3746 = vpop.f32.mrf.mxu0
  %v3747 = vadd.f32 0.0, %v3746
  %v3748 = vpop.f32.mrf.mxu0
  %v3749 = vadd.f32 0.0, %v3748
  %3750 = vmatmul.bf16.gmra.mxu0 %v3595
  %v3751 = vpop.f32.mrf.mxu0
  %v3752 = vadd.f32 0.0, %v3751
  %v3753 = vpop.f32.mrf.mxu0
  %v3754 = vadd.f32 0.0, %v3753
  %3755 = vmatmul.bf16.gmra.mxu0 %v3598
  %v3756 = vpop.f32.mrf.mxu0
  %v3757 = vadd.f32 0.0, %v3756
  %v3758 = vpop.f32.mrf.mxu0
  %v3759 = vadd.f32 0.0, %v3758
  %3760 = vmatmul.bf16.gmra.mxu0 %v3601
  %v3761 = vpop.f32.mrf.mxu0
  %v3762 = vadd.f32 0.0, %v3761
  %v3763 = vpop.f32.mrf.mxu0
  %v3764 = vadd.f32 0.0, %v3763
  %3765 = vmatmul.bf16.gmra.mxu0 %v3604
  %v3766 = vpop.f32.mrf.mxu0
  %v3767 = vadd.f32 0.0, %v3766
  %v3768 = vpop.f32.mrf.mxu0
  %v3769 = vadd.f32 0.0, %v3768
  %3770 = vmatmul.bf16.gmra.mxu0 %v3607
  %v3771 = vpop.f32.mrf.mxu0
  %v3772 = vadd.f32 0.0, %v3771
  %v3773 = vpop.f32.mrf.mxu0
  %v3774 = vadd.f32 0.0, %v3773
  %3775 = vmatmul.bf16.gmra.mxu0 %v3610
  %v3776 = vpop.f32.mrf.mxu0
  %v3777 = vadd.f32 0.0, %v3776
  %v3778 = vpop.f32.mrf.mxu0
  %v3779 = vadd.f32 0.0, %v3778
  %3780 = vmatmul.bf16.gmra.mxu0 %v3613
  %v3781 = vpop.f32.mrf.mxu0
  %v3782 = vadd.f32 0.0, %v3781
  %v3783 = vpop.f32.mrf.mxu0
  %v3784 = vadd.f32 0.0, %v3783
  %3785 = vmatmul.bf16.gmra.mxu0 %v3616
  %v3786 = vpop.f32.mrf.mxu0
  %v3787 = vadd.f32 0.0, %v3786
  %v3788 = vpop.f32.mrf.mxu0
  %v3789 = vadd.f32 0.0, %v3788
  %3790 = vdwg.mxu0
  %v3791 = vmax.f32 %v3632, %v3672
  %v3792 = vmax.f32 %v3634, %v3674
  %v3793 = vmax.f32 %v3637, %v3677
  %v3794 = vmax.f32 %v3639, %v3679
  %v3795 = vmax.f32 %v3642, %v3682
  %v3796 = vmax.f32 %v3644, %v3684
  %v3797 = vmax.f32 %v3647, %v3687
  %v3798 = vmax.f32 %v3649, %v3689
  %v3799 = vmax.f32 %v3652, %v3692
  %v3800 = vmax.f32 %v3654, %v3694
  %v3801 = vmax.f32 %v3657, %v3697
  %v3802 = vmax.f32 %v3659, %v3699
  %v3803 = vmax.f32 %v3662, %v3702
  %v3804 = vmax.f32 %v3664, %v3704
  %v3805 = vmax.f32 %v3667, %v3707
  %v3806 = vmax.f32 %v3669, %v3709
  %v3807 = vmax.f32 %v3712, %v3752
  %v3808 = vmax.f32 %v3714, %v3754
  %v3809 = vmax.f32 %v3717, %v3757
  %v3810 = vmax.f32 %v3719, %v3759
  %v3811 = vmax.f32 %v3722, %v3762
  %v3812 = vmax.f32 %v3724, %v3764
  %v3813 = vmax.f32 %v3727, %v3767
  %v3814 = vmax.f32 %v3729, %v3769
  %v3815 = vmax.f32 %v3732, %v3772
  %v3816 = vmax.f32 %v3734, %v3774
  %v3817 = vmax.f32 %v3737, %v3777
  %v3818 = vmax.f32 %v3739, %v3779
  %v3819 = vmax.f32 %v3742, %v3782
  %v3820 = vmax.f32 %v3744, %v3784
  %v3821 = vmax.f32 %v3747, %v3787
  %v3822 = vmax.f32 %v3749, %v3789
  %v3823 = vmax.f32 %v3791, %v3807
  %v3824 = vmax.f32 %v3792, %v3808
  %v3825 = vmax.f32 %v3793, %v3809
  %v3826 = vmax.f32 %v3794, %v3810
  %v3827 = vmax.f32 %v3795, %v3811
  %v3828 = vmax.f32 %v3796, %v3812
  %v3829 = vmax.f32 %v3797, %v3813
  %v3830 = vmax.f32 %v3798, %v3814
  %v3831 = vmax.f32 %v3799, %v3815
  %v3832 = vmax.f32 %v3800, %v3816
  %v3833 = vmax.f32 %v3801, %v3817
  %v3834 = vmax.f32 %v3802, %v3818
  %v3835 = vmax.f32 %v3803, %v3819
  %v3836 = vmax.f32 %v3804, %v3820
  %v3837 = vmax.f32 %v3805, %v3821
  %v3838 = vmax.f32 %v3806, %v3822
  %v3839 = vld [vmem:[%s2] sm:$0x1]
  %v3841 = vperm.slane %v3839, 0
  %v3843 = vadd.f32 %v3823, %v3841
  %v3844 = vadd.f32 %v3824, %v3841
  %v3845 = vadd.f32 %v3825, %v3841
  %v3846 = vadd.f32 %v3826, %v3841
  %v3847 = vadd.f32 %v3827, %v3841
  %v3848 = vadd.f32 %v3828, %v3841
  %v3849 = vadd.f32 %v3829, %v3841
  %v3850 = vadd.f32 %v3830, %v3841
  %v3851 = vadd.f32 %v3831, %v3841
  %v3852 = vadd.f32 %v3832, %v3841
  %v3853 = vadd.f32 %v3833, %v3841
  %v3854 = vadd.f32 %v3834, %v3841
  %v3855 = vadd.f32 %v3835, %v3841
  %v3856 = vadd.f32 %v3836, %v3841
  %v3857 = vadd.f32 %v3837, %v3841
  %v3858 = vadd.f32 %v3838, %v3841
  %v3859 = vmax.f32 %v3843, 0.0
  %v3860 = vmax.f32 %v3844, 0.0
  %v3861 = vmax.f32 %v3845, 0.0
  %v3862 = vmax.f32 %v3846, 0.0
  %v3863 = vmax.f32 %v3847, 0.0
  %v3864 = vmax.f32 %v3848, 0.0
  %v3865 = vmax.f32 %v3849, 0.0
  %v3866 = vmax.f32 %v3850, 0.0
  %v3867 = vmax.f32 %v3851, 0.0
  %v3868 = vmax.f32 %v3852, 0.0
  %v3869 = vmax.f32 %v3853, 0.0
  %v3870 = vmax.f32 %v3854, 0.0
  %v3871 = vmax.f32 %v3855, 0.0
  %v3872 = vmax.f32 %v3856, 0.0
  %v3873 = vmax.f32 %v3857, 0.0
  %v3874 = vmax.f32 %v3858, 0.0
  %v3875 = vpack.c.bf16 %v3859, %v3859
  %v3876 = vpack.c.bf16 %v3860, %v3860
  %v3877 = vpack.c.bf16 %v3861, %v3861
  %v3878 = vpack.c.bf16 %v3862, %v3862
  %v3879 = vpack.c.bf16 %v3863, %v3863
  %v3880 = vpack.c.bf16 %v3864, %v3864
  %v3881 = vpack.c.bf16 %v3865, %v3865
  %v3882 = vpack.c.bf16 %v3866, %v3866
  %v3883 = vpack.c.bf16 %v3867, %v3867
  %v3884 = vpack.c.bf16 %v3868, %v3868
  %v3885 = vpack.c.bf16 %v3869, %v3869
  %v3886 = vpack.c.bf16 %v3870, %v3870
  %v3887 = vpack.c.bf16 %v3871, %v3871
  %v3888 = vpack.c.bf16 %v3872, %v3872
  %v3889 = vpack.c.bf16 %v3873, %v3873
  %v3890 = vpack.c.bf16 %v3874, %v3874
  %vm3891 = vcmask 650240
  %3892 = vst.msk [vmem:[#allocation3] sm:$0xf] %vm3891, 0
  %3893 = vst.msk [vmem:[#allocation3 + $0x4] sm:$0xf] %vm3891, 0
  %3894 = vst.msk [vmem:[#allocation3 + $0x8] sm:$0xf] %vm3891, 0
  %3895 = vst.msk [vmem:[#allocation3 + $0xc] sm:$0xf] %vm3891, 0
  %3896 = vst.msk [vmem:[#allocation3 + $0x10] sm:$0xf] %vm3891, 0
  %3897 = vst.msk [vmem:[#allocation3 + $0x14] sm:$0xf] %vm3891, 0
  %3898 = vst.msk [vmem:[#allocation3 + $0x18] sm:$0xf] %vm3891, 0
  %3899 = vst.msk [vmem:[#allocation3 + $0x1c] sm:$0xf] %vm3891, 0
  %3900 = vst.msk [vmem:[#allocation3 + $0x20] sm:$0xf] %vm3891, 0
  %3901 = vst.msk [vmem:[#allocation3 + $0x24] sm:$0xf] %vm3891, 0
  %3902 = vst.msk [vmem:[#allocation3 + $0x28] sm:$0xf] %vm3891, 0
  %3903 = vst.msk [vmem:[#allocation3 + $0x2c] sm:$0xf] %vm3891, 0
  %3904 = vst.msk [vmem:[#allocation3 + $0x30] sm:$0xf] %vm3891, 0
  %3905 = vst.msk [vmem:[#allocation3 + $0x34] sm:$0xf] %vm3891, 0
  %3906 = vst.msk [vmem:[#allocation3 + $0x38] sm:$0xf] %vm3891, 0
  %3907 = vst.msk [vmem:[#allocation3 + $0x3c] sm:$0xf] %vm3891, 0
  %3908 = vst.msk [vmem:[#allocation3 + $0x40] sm:$0xf] %vm3891, 0
  %3909 = vst.msk [vmem:[#allocation3 + $0x44] sm:$0xf] %vm3891, 0
  %3910 = vst.msk [vmem:[#allocation3 + $0x48] sm:$0xf] %vm3891, 0
  %3911 = vst.msk [vmem:[#allocation3 + $0x4c] sm:$0xf] %vm3891, 0
  %3912 = vst.msk [vmem:[#allocation3 + $0x50] sm:$0xf] %vm3891, 0
  %3913 = vst.msk [vmem:[#allocation3 + $0x54] sm:$0xf] %vm3891, 0
  %3914 = vst.msk [vmem:[#allocation3 + $0x58] sm:$0xf] %vm3891, 0
  %3915 = vst.msk [vmem:[#allocation3 + $0x5c] sm:$0xf] %vm3891, 0
  %3916 = vst.msk [vmem:[#allocation3 + $0x60] sm:$0xf] %vm3891, 0
  %3917 = vst.msk [vmem:[#allocation3 + $0x64] sm:$0xf] %vm3891, 0
  %3918 = vst.msk [vmem:[#allocation3 + $0x68] sm:$0xf] %vm3891, 0
  %3919 = vst.msk [vmem:[#allocation3 + $0x6c] sm:$0xf] %vm3891, 0
  %3920 = vst.msk [vmem:[#allocation3 + $0x70] sm:$0xf] %vm3891, 0
  %3921 = vst.msk [vmem:[#allocation3 + $0x74] sm:$0xf] %vm3891, 0
  %3922 = vst.msk [vmem:[#allocation3 + $0x78] sm:$0xf] %vm3891, 0
  %3923 = vst.msk [vmem:[#allocation3 + $0x7c] sm:$0xf] %vm3891, 0
  %3924 = vst.msk [vmem:[#allocation3 + $0x80] sm:$0xf] %vm3891, 0
  %3925 = vst.msk [vmem:[#allocation3 + $0x84] sm:$0xf] %vm3891, 0
  %3926 = vst.msk [vmem:[#allocation3 + $0x88] sm:$0xf] %vm3891, 0
  %3927 = vst.msk [vmem:[#allocation3 + $0x8c] sm:$0xf] %vm3891, 0
  %3928 = vst.msk [vmem:[#allocation3 + $0x90] sm:$0xf] %vm3891, 0
  %3929 = vst.msk [vmem:[#allocation3 + $0x94] sm:$0xf] %vm3891, 0
  %3930 = vst.msk [vmem:[#allocation3 + $0x98] sm:$0xf] %vm3891, 0
  %3931 = vst.msk [vmem:[#allocation3 + $0x9c] sm:$0xf] %vm3891, 0
  %s3932 = scalar_lea.vmem [#allocation3], 120
  %vm3933 = vcmask 519168
  %3934 = vst.msk [vmem:[%s3932] sm:$0xf] %vm3933, %v3875
  %3935 = vst.msk [vmem:[%s3932 + $0x4] sm:$0xf] %vm3933, %v3876
  %3938 = vrot.lane.b32.xlu0 %v3875, 80
  %v3939 = vpop.permute.xlu0 %3938
  %3940 = vrot.lane.b32.xlu0 %v3876, 80
  %v3941 = vpop.permute.xlu0 %3940
  %s3944 = scalar_lea.vmem [#allocation3], 80
  %vm3945 = vcmask 650368
  %3946 = vst.msk [vmem:[%s3944] sm:$0xf] %vm3945, %v3939
  %3947 = vst.msk [vmem:[%s3944 + $0x4] sm:$0xf] %vm3945, %v3941
  %s3948 = scalar_lea.vmem [#allocation3], 48
  %3949 = vst.msk [vmem:[%s3948] sm:$0xf] %vm3933, %v3877
  %3950 = vst.msk [vmem:[%s3948 + $0x4] sm:$0xf] %vm3933, %v3878
  %3953 = vrot.lane.b32.xlu0 %v3877, 80
  %v3954 = vpop.permute.xlu0 %3953
  %3955 = vrot.lane.b32.xlu0 %v3878, 80
  %v3956 = vpop.permute.xlu0 %3955
  %s3959 = scalar_lea.vmem [#allocation3], 8
  %3960 = vst.msk [vmem:[%s3959] sm:$0xf] %vm3945, %v3954
  %3961 = vst.msk [vmem:[%s3959 + $0x4] sm:$0xf] %vm3945, %v3956
  %s3962 = scalar_lea.vmem [#allocation3], 128
  %3963 = vst.msk [vmem:[%s3962] sm:$0xf] %vm3933, %v3879
  %3964 = vst.msk [vmem:[%s3962 + $0x4] sm:$0xf] %vm3933, %v3880
  %3967 = vrot.lane.b32.xlu0 %v3879, 80
  %v3968 = vpop.permute.xlu0 %3967
  %3969 = vrot.lane.b32.xlu0 %v3880, 80
  %v3970 = vpop.permute.xlu0 %3969
  %s3973 = scalar_lea.vmem [#allocation3], 88
  %3974 = vst.msk [vmem:[%s3973] sm:$0xf] %vm3945, %v3968
  %3975 = vst.msk [vmem:[%s3973 + $0x4] sm:$0xf] %vm3945, %v3970
  %s3976 = scalar_lea.vmem [#allocation3], 56
  %3977 = vst.msk [vmem:[%s3976] sm:$0xf] %vm3933, %v3881
  %3978 = vst.msk [vmem:[%s3976 + $0x4] sm:$0xf] %vm3933, %v3882
  %3981 = vrot.lane.b32.xlu0 %v3881, 80
  %v3982 = vpop.permute.xlu0 %3981
  %3983 = vrot.lane.b32.xlu0 %v3882, 80
  %v3984 = vpop.permute.xlu0 %3983
  %s3987 = scalar_lea.vmem [#allocation3], 16
  %3988 = vst.msk [vmem:[%s3987] sm:$0xf] %vm3945, %v3982
  %3989 = vst.msk [vmem:[%s3987 + $0x4] sm:$0xf] %vm3945, %v3984
  %s3990 = scalar_lea.vmem [#allocation3], 136
  %3991 = vst.msk [vmem:[%s3990] sm:$0xf] %vm3933, %v3883
  %3992 = vst.msk [vmem:[%s3990 + $0x4] sm:$0xf] %vm3933, %v3884
  %3995 = vrot.lane.b32.xlu0 %v3883, 80
  %v3996 = vpop.permute.xlu0 %3995
  %3997 = vrot.lane.b32.xlu0 %v3884, 80
  %v3998 = vpop.permute.xlu0 %3997
  %s4001 = scalar_lea.vmem [#allocation3], 96
  %4002 = vst.msk [vmem:[%s4001] sm:$0xf] %vm3945, %v3996
  %4003 = vst.msk [vmem:[%s4001 + $0x4] sm:$0xf] %vm3945, %v3998
  %s4004 = scalar_lea.vmem [#allocation3], 64
  %4005 = vst.msk [vmem:[%s4004] sm:$0xf] %vm3933, %v3885
  %4006 = vst.msk [vmem:[%s4004 + $0x4] sm:$0xf] %vm3933, %v3886
  %4009 = vrot.lane.b32.xlu0 %v3885, 80
  %v4010 = vpop.permute.xlu0 %4009
  %4011 = vrot.lane.b32.xlu0 %v3886, 80
  %v4012 = vpop.permute.xlu0 %4011
  %s4015 = scalar_lea.vmem [#allocation3], 24
  %4016 = vst.msk [vmem:[%s4015] sm:$0xf] %vm3945, %v4010
  %4017 = vst.msk [vmem:[%s4015 + $0x4] sm:$0xf] %vm3945, %v4012
  %s4018 = scalar_lea.vmem [#allocation3], 144
  %4019 = vst.msk [vmem:[%s4018] sm:$0xf] %vm3933, %v3887
  %4020 = vst.msk [vmem:[%s4018 + $0x4] sm:$0xf] %vm3933, %v3888
  %4023 = vrot.lane.b32.xlu0 %v3887, 80
  %v4024 = vpop.permute.xlu0 %4023
  %4025 = vrot.lane.b32.xlu0 %v3888, 80
  %v4026 = vpop.permute.xlu0 %4025
  %s4029 = scalar_lea.vmem [#allocation3], 104
  %4030 = vst.msk [vmem:[%s4029] sm:$0xf] %vm3945, %v4024
  %4031 = vst.msk [vmem:[%s4029 + $0x4] sm:$0xf] %vm3945, %v4026
  %s4032 = scalar_lea.vmem [#allocation3], 72
  %4033 = vst.msk [vmem:[%s4032] sm:$0xf] %vm3933, %v3889
  %4034 = vst.msk [vmem:[%s4032 + $0x4] sm:$0xf] %vm3933, %v3890
  %4037 = vrot.lane.b32.xlu0 %v3889, 80
  %v4038 = vpop.permute.xlu0 %4037
  %4039 = vrot.lane.b32.xlu0 %v3890, 80
  %v4040 = vpop.permute.xlu0 %4039
  %s4043 = scalar_lea.vmem [#allocation3], 32
  %4044 = vst.msk [vmem:[%s4043] sm:$0xf] %vm3945, %v4038
  %4045 = vst.msk [vmem:[%s4043 + $0x4] sm:$0xf] %vm3945, %v4040
  %v4046 = vld [vmem:[#allocation3] sm:$0xf]
  %v4047 = vld [vmem:[#allocation3 + $0x4] sm:$0xf]
  %v4048 = vld [vmem:[#allocation3 + $0x8] sm:$0xf]
  %v4049 = vld [vmem:[#allocation3 + $0xc] sm:$0xf]
  %v4050 = vld [vmem:[#allocation3 + $0x10] sm:$0xf]
  %v4051 = vld [vmem:[#allocation3 + $0x14] sm:$0xf]
  %v4052 = vld [vmem:[#allocation3 + $0x18] sm:$0xf]
  %v4053 = vld [vmem:[#allocation3 + $0x1c] sm:$0xf]
  %4054 = vst.msk [vmem:[#allocation4] sm:$0xf] %vm3933, %v4046
  %4055 = vst.msk [vmem:[#allocation4 + $0x14] sm:$0xf] %vm3933, %v4047
  %4056 = vst.msk [vmem:[#allocation4 + $0x28] sm:$0xf] %vm3933, %v4048
  %4057 = vst.msk [vmem:[#allocation4 + $0x3c] sm:$0xf] %vm3933, %v4049
  %4058 = vst.msk [vmem:[#allocation4 + $0x50] sm:$0xf] %vm3933, %v4050
  %4059 = vst.msk [vmem:[#allocation4 + $0x64] sm:$0xf] %vm3933, %v4051
  %4060 = vst.msk [vmem:[#allocation4 + $0x78] sm:$0xf] %vm3933, %v4052
  %4061 = vst.msk [vmem:[#allocation4 + $0x8c] sm:$0xf] %vm3933, %v4053
  %s4062 = scalar_lea.vmem [#allocation3], 40
  %v4063 = vld [vmem:[%s4062] sm:$0xf]
  %v4064 = vld [vmem:[%s4062 + $0x4] sm:$0xf]
  %v4065 = vld [vmem:[%s4062 + $0x8] sm:$0xf]
  %v4066 = vld [vmem:[%s4062 + $0xc] sm:$0xf]
  %v4067 = vld [vmem:[%s4062 + $0x10] sm:$0xf]
  %v4068 = vld [vmem:[%s4062 + $0x14] sm:$0xf]
  %v4069 = vld [vmem:[%s4062 + $0x18] sm:$0xf]
  %v4070 = vld [vmem:[%s4062 + $0x1c] sm:$0xf]
  %4079 = vrot.lane.b32.xlu0 %v4063, 64
  %v4080 = vpop.permute.xlu0 %4079
  %4081 = vrot.lane.b32.xlu0 %v4064, 64
  %v4082 = vpop.permute.xlu0 %4081
  %4083 = vrot.lane.b32.xlu0 %v4065, 64
  %v4084 = vpop.permute.xlu0 %4083
  %4085 = vrot.lane.b32.xlu0 %v4066, 64
  %v4086 = vpop.permute.xlu0 %4085
  %4087 = vrot.lane.b32.xlu0 %v4067, 64
  %v4088 = vpop.permute.xlu0 %4087
  %4089 = vrot.lane.b32.xlu0 %v4068, 64
  %v4090 = vpop.permute.xlu0 %4089
  %4091 = vrot.lane.b32.xlu0 %v4069, 64
  %v4092 = vpop.permute.xlu0 %4091
  %4093 = vrot.lane.b32.xlu0 %v4070, 64
  %v4094 = vpop.permute.xlu0 %4093
  %vm4103 = vcmask 1043968
  %4104 = vst.msk [vmem:[#allocation4] sm:$0xf] %vm4103, %v4080
  %4105 = vst.msk [vmem:[#allocation4 + $0x14] sm:$0xf] %vm4103, %v4082
  %4106 = vst.msk [vmem:[#allocation4 + $0x28] sm:$0xf] %vm4103, %v4084
  %4107 = vst.msk [vmem:[#allocation4 + $0x3c] sm:$0xf] %vm4103, %v4086
  %4108 = vst.msk [vmem:[#allocation4 + $0x50] sm:$0xf] %vm4103, %v4088
  %4109 = vst.msk [vmem:[#allocation4 + $0x64] sm:$0xf] %vm4103, %v4090
  %4110 = vst.msk [vmem:[#allocation4 + $0x78] sm:$0xf] %vm4103, %v4092
  %4111 = vst.msk [vmem:[#allocation4 + $0x8c] sm:$0xf] %vm4103, %v4094
  %v4112 = vld [vmem:[#allocation3] sm:$0xf]
  %v4113 = vld [vmem:[#allocation3 + $0x4] sm:$0xf]
  %v4114 = vld [vmem:[#allocation3 + $0x8] sm:$0xf]
  %v4115 = vld [vmem:[#allocation3 + $0xc] sm:$0xf]
  %v4116 = vld [vmem:[#allocation3 + $0x10] sm:$0xf]
  %v4117 = vld [vmem:[#allocation3 + $0x14] sm:$0xf]
  %v4118 = vld [vmem:[#allocation3 + $0x18] sm:$0xf]
  %v4119 = vld [vmem:[#allocation3 + $0x1c] sm:$0xf]
  %4128 = vrot.lane.b32.xlu0 %v4112, 112
  %v4129 = vpop.permute.xlu0 %4128
  %4130 = vrot.lane.b32.xlu0 %v4113, 112
  %v4131 = vpop.permute.xlu0 %4130
  %4132 = vrot.lane.b32.xlu0 %v4114, 112
  %v4133 = vpop.permute.xlu0 %4132
  %4134 = vrot.lane.b32.xlu0 %v4115, 112
  %v4135 = vpop.permute.xlu0 %4134
  %4136 = vrot.lane.b32.xlu0 %v4116, 112
  %v4137 = vpop.permute.xlu0 %4136
  %4138 = vrot.lane.b32.xlu0 %v4117, 112
  %v4139 = vpop.permute.xlu0 %4138
  %4140 = vrot.lane.b32.xlu0 %v4118, 112
  %v4141 = vpop.permute.xlu0 %4140
  %4142 = vrot.lane.b32.xlu0 %v4119, 112
  %v4143 = vpop.permute.xlu0 %4142
  %4152 = vst.msk [vmem:[#allocation4 + $0x4] sm:$0xf] %vm3933, %v4129
  %4153 = vst.msk [vmem:[#allocation4 + $0x18] sm:$0xf] %vm3933, %v4131
  %4154 = vst.msk [vmem:[#allocation4 + $0x2c] sm:$0xf] %vm3933, %v4133
  %4155 = vst.msk [vmem:[#allocation4 + $0x40] sm:$0xf] %vm3933, %v4135
  %4156 = vst.msk [vmem:[#allocation4 + $0x54] sm:$0xf] %vm3933, %v4137
  %4157 = vst.msk [vmem:[#allocation4 + $0x68] sm:$0xf] %vm3933, %v4139
  %4158 = vst.msk [vmem:[#allocation4 + $0x7c] sm:$0xf] %vm3933, %v4141
  %4159 = vst.msk [vmem:[#allocation4 + $0x90] sm:$0xf] %vm3933, %v4143
  %v4160 = vld [vmem:[%s3944] sm:$0xf]
  %v4161 = vld [vmem:[%s3944 + $0x4] sm:$0xf]
  %v4162 = vld [vmem:[%s3944 + $0x8] sm:$0xf]
  %v4163 = vld [vmem:[%s3944 + $0xc] sm:$0xf]
  %v4164 = vld [vmem:[%s3944 + $0x10] sm:$0xf]
  %v4165 = vld [vmem:[%s3944 + $0x14] sm:$0xf]
  %v4166 = vld [vmem:[%s3944 + $0x18] sm:$0xf]
  %v4167 = vld [vmem:[%s3944 + $0x1c] sm:$0xf]
  %4176 = vrot.lane.b32.xlu0 %v4160, 64
  %v4177 = vpop.permute.xlu0 %4176
  %4178 = vrot.lane.b32.xlu0 %v4161, 64
  %v4179 = vpop.permute.xlu0 %4178
  %4180 = vrot.lane.b32.xlu0 %v4162, 64
  %v4181 = vpop.permute.xlu0 %4180
  %4182 = vrot.lane.b32.xlu0 %v4163, 64
  %v4183 = vpop.permute.xlu0 %4182
  %4184 = vrot.lane.b32.xlu0 %v4164, 64
  %v4185 = vpop.permute.xlu0 %4184
  %4186 = vrot.lane.b32.xlu0 %v4165, 64
  %v4187 = vpop.permute.xlu0 %4186
  %4188 = vrot.lane.b32.xlu0 %v4166, 64
  %v4189 = vpop.permute.xlu0 %4188
  %4190 = vrot.lane.b32.xlu0 %v4167, 64
  %v4191 = vpop.permute.xlu0 %4190
  %4200 = vst.msk [vmem:[#allocation4 + $0x4] sm:$0xf] %vm4103, %v4177
  %4201 = vst.msk [vmem:[#allocation4 + $0x18] sm:$0xf] %vm4103, %v4179
  %4202 = vst.msk [vmem:[#allocation4 + $0x2c] sm:$0xf] %vm4103, %v4181
  %4203 = vst.msk [vmem:[#allocation4 + $0x40] sm:$0xf] %vm4103, %v4183
  %4204 = vst.msk [vmem:[#allocation4 + $0x54] sm:$0xf] %vm4103, %v4185
  %4205 = vst.msk [vmem:[#allocation4 + $0x68] sm:$0xf] %vm4103, %v4187
  %4206 = vst.msk [vmem:[#allocation4 + $0x7c] sm:$0xf] %vm4103, %v4189
  %4207 = vst.msk [vmem:[#allocation4 + $0x90] sm:$0xf] %vm4103, %v4191
  %v4208 = vld [vmem:[%s3932] sm:$0xf]
  %v4209 = vld [vmem:[%s3932 + $0x4] sm:$0xf]
  %v4210 = vld [vmem:[%s3932 + $0x8] sm:$0xf]
  %v4211 = vld [vmem:[%s3932 + $0xc] sm:$0xf]
  %v4212 = vld [vmem:[%s3932 + $0x10] sm:$0xf]
  %v4213 = vld [vmem:[%s3932 + $0x14] sm:$0xf]
  %v4214 = vld [vmem:[%s3932 + $0x18] sm:$0xf]
  %v4215 = vld [vmem:[%s3932 + $0x1c] sm:$0xf]
  %4216 = vst.msk [vmem:[#allocation4 + $0x8] sm:$0xf] %vm3933, %v4208
  %4217 = vst.msk [vmem:[#allocation4 + $0x1c] sm:$0xf] %vm3933, %v4209
  %4218 = vst.msk [vmem:[#allocation4 + $0x30] sm:$0xf] %vm3933, %v4210
  %4219 = vst.msk [vmem:[#allocation4 + $0x44] sm:$0xf] %vm3933, %v4211
  %4220 = vst.msk [vmem:[#allocation4 + $0x58] sm:$0xf] %vm3933, %v4212
  %4221 = vst.msk [vmem:[#allocation4 + $0x6c] sm:$0xf] %vm3933, %v4213
  %4222 = vst.msk [vmem:[#allocation4 + $0x80] sm:$0xf] %vm3933, %v4214
  %4223 = vst.msk [vmem:[#allocation4 + $0x94] sm:$0xf] %vm3933, %v4215
  %v4224 = vld [vmem:[%s3944] sm:$0xf]
  %v4225 = vld [vmem:[%s3944 + $0x4] sm:$0xf]
  %v4226 = vld [vmem:[%s3944 + $0x8] sm:$0xf]
  %v4227 = vld [vmem:[%s3944 + $0xc] sm:$0xf]
  %v4228 = vld [vmem:[%s3944 + $0x10] sm:$0xf]
  %v4229 = vld [vmem:[%s3944 + $0x14] sm:$0xf]
  %v4230 = vld [vmem:[%s3944 + $0x18] sm:$0xf]
  %v4231 = vld [vmem:[%s3944 + $0x1c] sm:$0xf]
  %4240 = vrot.lane.b32.xlu0 %v4224, 48
  %v4241 = vpop.permute.xlu0 %4240
  %4242 = vrot.lane.b32.xlu0 %v4225, 48
  %v4243 = vpop.permute.xlu0 %4242
  %4244 = vrot.lane.b32.xlu0 %v4226, 48
  %v4245 = vpop.permute.xlu0 %4244
  %4246 = vrot.lane.b32.xlu0 %v4227, 48
  %v4247 = vpop.permute.xlu0 %4246
  %4248 = vrot.lane.b32.xlu0 %v4228, 48
  %v4249 = vpop.permute.xlu0 %4248
  %4250 = vrot.lane.b32.xlu0 %v4229, 48
  %v4251 = vpop.permute.xlu0 %4250
  %4252 = vrot.lane.b32.xlu0 %v4230, 48
  %v4253 = vpop.permute.xlu0 %4252
  %4254 = vrot.lane.b32.xlu0 %v4231, 48
  %v4255 = vpop.permute.xlu0 %4254
  %4264 = vst.msk [vmem:[#allocation4 + $0x8] sm:$0xf] %vm4103, %v4241
  %4265 = vst.msk [vmem:[#allocation4 + $0x1c] sm:$0xf] %vm4103, %v4243
  %4266 = vst.msk [vmem:[#allocation4 + $0x30] sm:$0xf] %vm4103, %v4245
  %4267 = vst.msk [vmem:[#allocation4 + $0x44] sm:$0xf] %vm4103, %v4247
  %4268 = vst.msk [vmem:[#allocation4 + $0x58] sm:$0xf] %vm4103, %v4249
  %4269 = vst.msk [vmem:[#allocation4 + $0x6c] sm:$0xf] %vm4103, %v4251
  %4270 = vst.msk [vmem:[#allocation4 + $0x80] sm:$0xf] %vm4103, %v4253
  %4271 = vst.msk [vmem:[#allocation4 + $0x94] sm:$0xf] %vm4103, %v4255
  %v4272 = vld [vmem:[%s3959] sm:$0xf]
  %v4273 = vld [vmem:[%s3959 + $0x4] sm:$0xf]
  %v4274 = vld [vmem:[%s3959 + $0x8] sm:$0xf]
  %v4275 = vld [vmem:[%s3959 + $0xc] sm:$0xf]
  %v4276 = vld [vmem:[%s3959 + $0x10] sm:$0xf]
  %v4277 = vld [vmem:[%s3959 + $0x14] sm:$0xf]
  %v4278 = vld [vmem:[%s3959 + $0x18] sm:$0xf]
  %v4279 = vld [vmem:[%s3959 + $0x1c] sm:$0xf]
  %4280 = vst.msk [vmem:[#allocation4 + $0xc] sm:$0xf] %vm3933, %v4272
  %4281 = vst.msk [vmem:[#allocation4 + $0x20] sm:$0xf] %vm3933, %v4273
  %4282 = vst.msk [vmem:[#allocation4 + $0x34] sm:$0xf] %vm3933, %v4274
  %4283 = vst.msk [vmem:[#allocation4 + $0x48] sm:$0xf] %vm3933, %v4275
  %4284 = vst.msk [vmem:[#allocation4 + $0x5c] sm:$0xf] %vm3933, %v4276
  %4285 = vst.msk [vmem:[#allocation4 + $0x70] sm:$0xf] %vm3933, %v4277
  %4286 = vst.msk [vmem:[#allocation4 + $0x84] sm:$0xf] %vm3933, %v4278
  %4287 = vst.msk [vmem:[#allocation4 + $0x98] sm:$0xf] %vm3933, %v4279
  %v4288 = vld [vmem:[%s3948] sm:$0xf]
  %v4289 = vld [vmem:[%s3948 + $0x4] sm:$0xf]
  %v4290 = vld [vmem:[%s3948 + $0x8] sm:$0xf]
  %v4291 = vld [vmem:[%s3948 + $0xc] sm:$0xf]
  %v4292 = vld [vmem:[%s3948 + $0x10] sm:$0xf]
  %v4293 = vld [vmem:[%s3948 + $0x14] sm:$0xf]
  %v4294 = vld [vmem:[%s3948 + $0x18] sm:$0xf]
  %v4295 = vld [vmem:[%s3948 + $0x1c] sm:$0xf]
  %4304 = vrot.lane.b32.xlu0 %v4288, 64
  %v4305 = vpop.permute.xlu0 %4304
  %4306 = vrot.lane.b32.xlu0 %v4289, 64
  %v4307 = vpop.permute.xlu0 %4306
  %4308 = vrot.lane.b32.xlu0 %v4290, 64
  %v4309 = vpop.permute.xlu0 %4308
  %4310 = vrot.lane.b32.xlu0 %v4291, 64
  %v4311 = vpop.permute.xlu0 %4310
  %4312 = vrot.lane.b32.xlu0 %v4292, 64
  %v4313 = vpop.permute.xlu0 %4312
  %4314 = vrot.lane.b32.xlu0 %v4293, 64
  %v4315 = vpop.permute.xlu0 %4314
  %4316 = vrot.lane.b32.xlu0 %v4294, 64
  %v4317 = vpop.permute.xlu0 %4316
  %4318 = vrot.lane.b32.xlu0 %v4295, 64
  %v4319 = vpop.permute.xlu0 %4318
  %4328 = vst.msk [vmem:[#allocation4 + $0xc] sm:$0xf] %vm4103, %v4305
  %4329 = vst.msk [vmem:[#allocation4 + $0x20] sm:$0xf] %vm4103, %v4307
  %4330 = vst.msk [vmem:[#allocation4 + $0x34] sm:$0xf] %vm4103, %v4309
  %4331 = vst.msk [vmem:[#allocation4 + $0x48] sm:$0xf] %vm4103, %v4311
  %4332 = vst.msk [vmem:[#allocation4 + $0x5c] sm:$0xf] %vm4103, %v4313
  %4333 = vst.msk [vmem:[#allocation4 + $0x70] sm:$0xf] %vm4103, %v4315
  %4334 = vst.msk [vmem:[#allocation4 + $0x84] sm:$0xf] %vm4103, %v4317
  %4335 = vst.msk [vmem:[#allocation4 + $0x98] sm:$0xf] %vm4103, %v4319
  %v4336 = vld [vmem:[%s3959] sm:$0xf]
  %v4337 = vld [vmem:[%s3959 + $0x4] sm:$0xf]
  %v4338 = vld [vmem:[%s3959 + $0x8] sm:$0xf]
  %v4339 = vld [vmem:[%s3959 + $0xc] sm:$0xf]
  %v4340 = vld [vmem:[%s3959 + $0x10] sm:$0xf]
  %v4341 = vld [vmem:[%s3959 + $0x14] sm:$0xf]
  %v4342 = vld [vmem:[%s3959 + $0x18] sm:$0xf]
  %v4343 = vld [vmem:[%s3959 + $0x1c] sm:$0xf]
  %4352 = vrot.lane.b32.xlu0 %v4336, 112
  %v4353 = vpop.permute.xlu0 %4352
  %4354 = vrot.lane.b32.xlu0 %v4337, 112
  %v4355 = vpop.permute.xlu0 %4354
  %4356 = vrot.lane.b32.xlu0 %v4338, 112
  %v4357 = vpop.permute.xlu0 %4356
  %4358 = vrot.lane.b32.xlu0 %v4339, 112
  %v4359 = vpop.permute.xlu0 %4358
  %4360 = vrot.lane.b32.xlu0 %v4340, 112
  %v4361 = vpop.permute.xlu0 %4360
  %4362 = vrot.lane.b32.xlu0 %v4341, 112
  %v4363 = vpop.permute.xlu0 %4362
  %4364 = vrot.lane.b32.xlu0 %v4342, 112
  %v4365 = vpop.permute.xlu0 %4364
  %4366 = vrot.lane.b32.xlu0 %v4343, 112
  %v4367 = vpop.permute.xlu0 %4366
  %4376 = vst.msk [vmem:[#allocation4 + $0x10] sm:$0xf] %vm3933, %v4353
  %4377 = vst.msk [vmem:[#allocation4 + $0x24] sm:$0xf] %vm3933, %v4355
  %4378 = vst.msk [vmem:[#allocation4 + $0x38] sm:$0xf] %vm3933, %v4357
  %4379 = vst.msk [vmem:[#allocation4 + $0x4c] sm:$0xf] %vm3933, %v4359
  %4380 = vst.msk [vmem:[#allocation4 + $0x60] sm:$0xf] %vm3933, %v4361
  %4381 = vst.msk [vmem:[#allocation4 + $0x74] sm:$0xf] %vm3933, %v4363
  %4382 = vst.msk [vmem:[#allocation4 + $0x88] sm:$0xf] %vm3933, %v4365
  %4383 = vst.msk [vmem:[#allocation4 + $0x9c] sm:$0xf] %vm3933, %v4367
  %v4384 = vld [vmem:[%s4062] sm:$0xf]
  %v4385 = vld [vmem:[%s4062 + $0x4] sm:$0xf]
  %v4386 = vld [vmem:[%s4062 + $0x8] sm:$0xf]
  %v4387 = vld [vmem:[%s4062 + $0xc] sm:$0xf]
  %v4388 = vld [vmem:[%s4062 + $0x10] sm:$0xf]
  %v4389 = vld [vmem:[%s4062 + $0x14] sm:$0xf]
  %v4390 = vld [vmem:[%s4062 + $0x18] sm:$0xf]
  %v4391 = vld [vmem:[%s4062 + $0x1c] sm:$0xf]
  %s4392 = scalar_lea.vmem [#allocation4], 160
  %4393 = vst.msk [vmem:[%s4392] sm:$0xf] %vm3933, %v4384
  %4394 = vst.msk [vmem:[%s4392 + $0x14] sm:$0xf] %vm3933, %v4385
  %4395 = vst.msk [vmem:[%s4392 + $0x28] sm:$0xf] %vm3933, %v4386
  %4396 = vst.msk [vmem:[%s4392 + $0x3c] sm:$0xf] %vm3933, %v4387
  %4397 = vst.msk [vmem:[%s4392 + $0x50] sm:$0xf] %vm3933, %v4388
  %4398 = vst.msk [vmem:[%s4392 + $0x64] sm:$0xf] %vm3933, %v4389
  %4399 = vst.msk [vmem:[%s4392 + $0x78] sm:$0xf] %vm3933, %v4390
  %4400 = vst.msk [vmem:[%s4392 + $0x8c] sm:$0xf] %vm3933, %v4391
  %v4401 = vld [vmem:[#allocation3] sm:$0xf]
  %v4402 = vld [vmem:[#allocation3 + $0x4] sm:$0xf]
  %v4403 = vld [vmem:[#allocation3 + $0x8] sm:$0xf]
  %v4404 = vld [vmem:[#allocation3 + $0xc] sm:$0xf]
  %v4405 = vld [vmem:[#allocation3 + $0x10] sm:$0xf]
  %v4406 = vld [vmem:[#allocation3 + $0x14] sm:$0xf]
  %v4407 = vld [vmem:[#allocation3 + $0x18] sm:$0xf]
  %v4408 = vld [vmem:[#allocation3 + $0x1c] sm:$0xf]
  %4417 = vrot.lane.b32.xlu0 %v4401, 48
  %v4418 = vpop.permute.xlu0 %4417
  %4419 = vrot.lane.b32.xlu0 %v4402, 48
  %v4420 = vpop.permute.xlu0 %4419
  %4421 = vrot.lane.b32.xlu0 %v4403, 48
  %v4422 = vpop.permute.xlu0 %4421
  %4423 = vrot.lane.b32.xlu0 %v4404, 48
  %v4424 = vpop.permute.xlu0 %4423
  %4425 = vrot.lane.b32.xlu0 %v4405, 48
  %v4426 = vpop.permute.xlu0 %4425
  %4427 = vrot.lane.b32.xlu0 %v4406, 48
  %v4428 = vpop.permute.xlu0 %4427
  %4429 = vrot.lane.b32.xlu0 %v4407, 48
  %v4430 = vpop.permute.xlu0 %4429
  %4431 = vrot.lane.b32.xlu0 %v4408, 48
  %v4432 = vpop.permute.xlu0 %4431
  %4441 = vst.msk [vmem:[%s4392] sm:$0xf] %vm4103, %v4418
  %4442 = vst.msk [vmem:[%s4392 + $0x14] sm:$0xf] %vm4103, %v4420
  %4443 = vst.msk [vmem:[%s4392 + $0x28] sm:$0xf] %vm4103, %v4422
  %4444 = vst.msk [vmem:[%s4392 + $0x3c] sm:$0xf] %vm4103, %v4424
  %4445 = vst.msk [vmem:[%s4392 + $0x50] sm:$0xf] %vm4103, %v4426
  %4446 = vst.msk [vmem:[%s4392 + $0x64] sm:$0xf] %vm4103, %v4428
  %4447 = vst.msk [vmem:[%s4392 + $0x78] sm:$0xf] %vm4103, %v4430
  %4448 = vst.msk [vmem:[%s4392 + $0x8c] sm:$0xf] %vm4103, %v4432
  %v4449 = vld [vmem:[%s4062] sm:$0xf]
  %v4450 = vld [vmem:[%s4062 + $0x4] sm:$0xf]
  %v4451 = vld [vmem:[%s4062 + $0x8] sm:$0xf]
  %v4452 = vld [vmem:[%s4062 + $0xc] sm:$0xf]
  %v4453 = vld [vmem:[%s4062 + $0x10] sm:$0xf]
  %v4454 = vld [vmem:[%s4062 + $0x14] sm:$0xf]
  %v4455 = vld [vmem:[%s4062 + $0x18] sm:$0xf]
  %v4456 = vld [vmem:[%s4062 + $0x1c] sm:$0xf]
  %4465 = vrot.lane.b32.xlu0 %v4449, 112
  %v4466 = vpop.permute.xlu0 %4465
  %4467 = vrot.lane.b32.xlu0 %v4450, 112
  %v4468 = vpop.permute.xlu0 %4467
  %4469 = vrot.lane.b32.xlu0 %v4451, 112
  %v4470 = vpop.permute.xlu0 %4469
  %4471 = vrot.lane.b32.xlu0 %v4452, 112
  %v4472 = vpop.permute.xlu0 %4471
  %4473 = vrot.lane.b32.xlu0 %v4453, 112
  %v4474 = vpop.permute.xlu0 %4473
  %4475 = vrot.lane.b32.xlu0 %v4454, 112
  %v4476 = vpop.permute.xlu0 %4475
  %4477 = vrot.lane.b32.xlu0 %v4455, 112
  %v4478 = vpop.permute.xlu0 %4477
  %4479 = vrot.lane.b32.xlu0 %v4456, 112
  %v4480 = vpop.permute.xlu0 %4479
  %4489 = vst.msk [vmem:[%s4392 + $0x4] sm:$0xf] %vm3933, %v4466
  %4490 = vst.msk [vmem:[%s4392 + $0x18] sm:$0xf] %vm3933, %v4468
  %4491 = vst.msk [vmem:[%s4392 + $0x2c] sm:$0xf] %vm3933, %v4470
  %4492 = vst.msk [vmem:[%s4392 + $0x40] sm:$0xf] %vm3933, %v4472
  %4493 = vst.msk [vmem:[%s4392 + $0x54] sm:$0xf] %vm3933, %v4474
  %4494 = vst.msk [vmem:[%s4392 + $0x68] sm:$0xf] %vm3933, %v4476
  %4495 = vst.msk [vmem:[%s4392 + $0x7c] sm:$0xf] %vm3933, %v4478
  %4496 = vst.msk [vmem:[%s4392 + $0x90] sm:$0xf] %vm3933, %v4480
  %v4497 = vld [vmem:[%s3932] sm:$0xf]
  %v4498 = vld [vmem:[%s3932 + $0x4] sm:$0xf]
  %v4499 = vld [vmem:[%s3932 + $0x8] sm:$0xf]
  %v4500 = vld [vmem:[%s3932 + $0xc] sm:$0xf]
  %v4501 = vld [vmem:[%s3932 + $0x10] sm:$0xf]
  %v4502 = vld [vmem:[%s3932 + $0x14] sm:$0xf]
  %v4503 = vld [vmem:[%s3932 + $0x18] sm:$0xf]
  %v4504 = vld [vmem:[%s3932 + $0x1c] sm:$0xf]
  %4513 = vrot.lane.b32.xlu0 %v4497, 64
  %v4514 = vpop.permute.xlu0 %4513
  %4515 = vrot.lane.b32.xlu0 %v4498, 64
  %v4516 = vpop.permute.xlu0 %4515
  %4517 = vrot.lane.b32.xlu0 %v4499, 64
  %v4518 = vpop.permute.xlu0 %4517
  %4519 = vrot.lane.b32.xlu0 %v4500, 64
  %v4520 = vpop.permute.xlu0 %4519
  %4521 = vrot.lane.b32.xlu0 %v4501, 64
  %v4522 = vpop.permute.xlu0 %4521
  %4523 = vrot.lane.b32.xlu0 %v4502, 64
  %v4524 = vpop.permute.xlu0 %4523
  %4525 = vrot.lane.b32.xlu0 %v4503, 64
  %v4526 = vpop.permute.xlu0 %4525
  %4527 = vrot.lane.b32.xlu0 %v4504, 64
  %v4528 = vpop.permute.xlu0 %4527
  %4537 = vst.msk [vmem:[%s4392 + $0x4] sm:$0xf] %vm4103, %v4514
  %4538 = vst.msk [vmem:[%s4392 + $0x18] sm:$0xf] %vm4103, %v4516
  %4539 = vst.msk [vmem:[%s4392 + $0x2c] sm:$0xf] %vm4103, %v4518
  %4540 = vst.msk [vmem:[%s4392 + $0x40] sm:$0xf] %vm4103, %v4520
  %4541 = vst.msk [vmem:[%s4392 + $0x54] sm:$0xf] %vm4103, %v4522
  %4542 = vst.msk [vmem:[%s4392 + $0x68] sm:$0xf] %vm4103, %v4524
  %4543 = vst.msk [vmem:[%s4392 + $0x7c] sm:$0xf] %vm4103, %v4526
  %4544 = vst.msk [vmem:[%s4392 + $0x90] sm:$0xf] %vm4103, %v4528
  %v4545 = vld [vmem:[%s3944] sm:$0xf]
  %v4546 = vld [vmem:[%s3944 + $0x4] sm:$0xf]
  %v4547 = vld [vmem:[%s3944 + $0x8] sm:$0xf]
  %v4548 = vld [vmem:[%s3944 + $0xc] sm:$0xf]
  %v4549 = vld [vmem:[%s3944 + $0x10] sm:$0xf]
  %v4550 = vld [vmem:[%s3944 + $0x14] sm:$0xf]
  %v4551 = vld [vmem:[%s3944 + $0x18] sm:$0xf]
  %v4552 = vld [vmem:[%s3944 + $0x1c] sm:$0xf]
  %4561 = vrot.lane.b32.xlu0 %v4545, 112
  %v4562 = vpop.permute.xlu0 %4561
  %4563 = vrot.lane.b32.xlu0 %v4546, 112
  %v4564 = vpop.permute.xlu0 %4563
  %4565 = vrot.lane.b32.xlu0 %v4547, 112
  %v4566 = vpop.permute.xlu0 %4565
  %4567 = vrot.lane.b32.xlu0 %v4548, 112
  %v4568 = vpop.permute.xlu0 %4567
  %4569 = vrot.lane.b32.xlu0 %v4549, 112
  %v4570 = vpop.permute.xlu0 %4569
  %4571 = vrot.lane.b32.xlu0 %v4550, 112
  %v4572 = vpop.permute.xlu0 %4571
  %4573 = vrot.lane.b32.xlu0 %v4551, 112
  %v4574 = vpop.permute.xlu0 %4573
  %4575 = vrot.lane.b32.xlu0 %v4552, 112
  %v4576 = vpop.permute.xlu0 %4575
  %4585 = vst.msk [vmem:[%s4392 + $0x8] sm:$0xf] %vm3933, %v4562
  %4586 = vst.msk [vmem:[%s4392 + $0x1c] sm:$0xf] %vm3933, %v4564
  %4587 = vst.msk [vmem:[%s4392 + $0x30] sm:$0xf] %vm3933, %v4566
  %4588 = vst.msk [vmem:[%s4392 + $0x44] sm:$0xf] %vm3933, %v4568
  %4589 = vst.msk [vmem:[%s4392 + $0x58] sm:$0xf] %vm3933, %v4570
  %4590 = vst.msk [vmem:[%s4392 + $0x6c] sm:$0xf] %vm3933, %v4572
  %4591 = vst.msk [vmem:[%s4392 + $0x80] sm:$0xf] %vm3933, %v4574
  %4592 = vst.msk [vmem:[%s4392 + $0x94] sm:$0xf] %vm3933, %v4576
  %v4593 = vld [vmem:[%s3932] sm:$0xf]
  %v4594 = vld [vmem:[%s3932 + $0x4] sm:$0xf]
  %v4595 = vld [vmem:[%s3932 + $0x8] sm:$0xf]
  %v4596 = vld [vmem:[%s3932 + $0xc] sm:$0xf]
  %v4597 = vld [vmem:[%s3932 + $0x10] sm:$0xf]
  %v4598 = vld [vmem:[%s3932 + $0x14] sm:$0xf]
  %v4599 = vld [vmem:[%s3932 + $0x18] sm:$0xf]
  %v4600 = vld [vmem:[%s3932 + $0x1c] sm:$0xf]
  %4609 = vrot.lane.b32.xlu0 %v4593, 48
  %v4610 = vpop.permute.xlu0 %4609
  %4611 = vrot.lane.b32.xlu0 %v4594, 48
  %v4612 = vpop.permute.xlu0 %4611
  %4613 = vrot.lane.b32.xlu0 %v4595, 48
  %v4614 = vpop.permute.xlu0 %4613
  %4615 = vrot.lane.b32.xlu0 %v4596, 48
  %v4616 = vpop.permute.xlu0 %4615
  %4617 = vrot.lane.b32.xlu0 %v4597, 48
  %v4618 = vpop.permute.xlu0 %4617
  %4619 = vrot.lane.b32.xlu0 %v4598, 48
  %v4620 = vpop.permute.xlu0 %4619
  %4621 = vrot.lane.b32.xlu0 %v4599, 48
  %v4622 = vpop.permute.xlu0 %4621
  %4623 = vrot.lane.b32.xlu0 %v4600, 48
  %v4624 = vpop.permute.xlu0 %4623
  %4633 = vst.msk [vmem:[%s4392 + $0x8] sm:$0xf] %vm4103, %v4610
  %4634 = vst.msk [vmem:[%s4392 + $0x1c] sm:$0xf] %vm4103, %v4612
  %4635 = vst.msk [vmem:[%s4392 + $0x30] sm:$0xf] %vm4103, %v4614
  %4636 = vst.msk [vmem:[%s4392 + $0x44] sm:$0xf] %vm4103, %v4616
  %4637 = vst.msk [vmem:[%s4392 + $0x58] sm:$0xf] %vm4103, %v4618
  %4638 = vst.msk [vmem:[%s4392 + $0x6c] sm:$0xf] %vm4103, %v4620
  %4639 = vst.msk [vmem:[%s4392 + $0x80] sm:$0xf] %vm4103, %v4622
  %4640 = vst.msk [vmem:[%s4392 + $0x94] sm:$0xf] %vm4103, %v4624
  %v4641 = vld [vmem:[%s3948] sm:$0xf]
  %v4642 = vld [vmem:[%s3948 + $0x4] sm:$0xf]
  %v4643 = vld [vmem:[%s3948 + $0x8] sm:$0xf]
  %v4644 = vld [vmem:[%s3948 + $0xc] sm:$0xf]
  %v4645 = vld [vmem:[%s3948 + $0x10] sm:$0xf]
  %v4646 = vld [vmem:[%s3948 + $0x14] sm:$0xf]
  %v4647 = vld [vmem:[%s3948 + $0x18] sm:$0xf]
  %v4648 = vld [vmem:[%s3948 + $0x1c] sm:$0xf]
  %4649 = vst.msk [vmem:[%s4392 + $0xc] sm:$0xf] %vm3933, %v4641
  %4650 = vst.msk [vmem:[%s4392 + $0x20] sm:$0xf] %vm3933, %v4642
  %4651 = vst.msk [vmem:[%s4392 + $0x34] sm:$0xf] %vm3933, %v4643
  %4652 = vst.msk [vmem:[%s4392 + $0x48] sm:$0xf] %vm3933, %v4644
  %4653 = vst.msk [vmem:[%s4392 + $0x5c] sm:$0xf] %vm3933, %v4645
  %4654 = vst.msk [vmem:[%s4392 + $0x70] sm:$0xf] %vm3933, %v4646
  %4655 = vst.msk [vmem:[%s4392 + $0x84] sm:$0xf] %vm3933, %v4647
  %4656 = vst.msk [vmem:[%s4392 + $0x98] sm:$0xf] %vm3933, %v4648
  %v4657 = vld [vmem:[%s3959] sm:$0xf]
  %v4658 = vld [vmem:[%s3959 + $0x4] sm:$0xf]
  %v4659 = vld [vmem:[%s3959 + $0x8] sm:$0xf]
  %v4660 = vld [vmem:[%s3959 + $0xc] sm:$0xf]
  %v4661 = vld [vmem:[%s3959 + $0x10] sm:$0xf]
  %v4662 = vld [vmem:[%s3959 + $0x14] sm:$0xf]
  %v4663 = vld [vmem:[%s3959 + $0x18] sm:$0xf]
  %v4664 = vld [vmem:[%s3959 + $0x1c] sm:$0xf]
  %4673 = vrot.lane.b32.xlu0 %v4657, 48
  %v4674 = vpop.permute.xlu0 %4673
  %4675 = vrot.lane.b32.xlu0 %v4658, 48
  %v4676 = vpop.permute.xlu0 %4675
  %4677 = vrot.lane.b32.xlu0 %v4659, 48
  %v4678 = vpop.permute.xlu0 %4677
  %4679 = vrot.lane.b32.xlu0 %v4660, 48
  %v4680 = vpop.permute.xlu0 %4679
  %4681 = vrot.lane.b32.xlu0 %v4661, 48
  %v4682 = vpop.permute.xlu0 %4681
  %4683 = vrot.lane.b32.xlu0 %v4662, 48
  %v4684 = vpop.permute.xlu0 %4683
  %4685 = vrot.lane.b32.xlu0 %v4663, 48
  %v4686 = vpop.permute.xlu0 %4685
  %4687 = vrot.lane.b32.xlu0 %v4664, 48
  %v4688 = vpop.permute.xlu0 %4687
  %4697 = vst.msk [vmem:[%s4392 + $0xc] sm:$0xf] %vm4103, %v4674
  %4698 = vst.msk [vmem:[%s4392 + $0x20] sm:$0xf] %vm4103, %v4676
  %4699 = vst.msk [vmem:[%s4392 + $0x34] sm:$0xf] %vm4103, %v4678
  %4700 = vst.msk [vmem:[%s4392 + $0x48] sm:$0xf] %vm4103, %v4680
  %4701 = vst.msk [vmem:[%s4392 + $0x5c] sm:$0xf] %vm4103, %v4682
  %4702 = vst.msk [vmem:[%s4392 + $0x70] sm:$0xf] %vm4103, %v4684
  %4703 = vst.msk [vmem:[%s4392 + $0x84] sm:$0xf] %vm4103, %v4686
  %4704 = vst.msk [vmem:[%s4392 + $0x98] sm:$0xf] %vm4103, %v4688
  %v4705 = vld [vmem:[%s3948] sm:$0xf]
  %v4706 = vld [vmem:[%s3948 + $0x4] sm:$0xf]
  %v4707 = vld [vmem:[%s3948 + $0x8] sm:$0xf]
  %v4708 = vld [vmem:[%s3948 + $0xc] sm:$0xf]
  %v4709 = vld [vmem:[%s3948 + $0x10] sm:$0xf]
  %v4710 = vld [vmem:[%s3948 + $0x14] sm:$0xf]
  %v4711 = vld [vmem:[%s3948 + $0x18] sm:$0xf]
  %v4712 = vld [vmem:[%s3948 + $0x1c] sm:$0xf]
  %4721 = vrot.lane.b32.xlu0 %v4705, 112
  %v4722 = vpop.permute.xlu0 %4721
  %4723 = vrot.lane.b32.xlu0 %v4706, 112
  %v4724 = vpop.permute.xlu0 %4723
  %4725 = vrot.lane.b32.xlu0 %v4707, 112
  %v4726 = vpop.permute.xlu0 %4725
  %4727 = vrot.lane.b32.xlu0 %v4708, 112
  %v4728 = vpop.permute.xlu0 %4727
  %4729 = vrot.lane.b32.xlu0 %v4709, 112
  %v4730 = vpop.permute.xlu0 %4729
  %4731 = vrot.lane.b32.xlu0 %v4710, 112
  %v4732 = vpop.permute.xlu0 %4731
  %4733 = vrot.lane.b32.xlu0 %v4711, 112
  %v4734 = vpop.permute.xlu0 %4733
  %4735 = vrot.lane.b32.xlu0 %v4712, 112
  %v4736 = vpop.permute.xlu0 %4735
  %4745 = vst.msk [vmem:[%s4392 + $0x10] sm:$0xf] %vm3933, %v4722
  %4746 = vst.msk [vmem:[%s4392 + $0x24] sm:$0xf] %vm3933, %v4724
  %4747 = vst.msk [vmem:[%s4392 + $0x38] sm:$0xf] %vm3933, %v4726
  %4748 = vst.msk [vmem:[%s4392 + $0x4c] sm:$0xf] %vm3933, %v4728
  %4749 = vst.msk [vmem:[%s4392 + $0x60] sm:$0xf] %vm3933, %v4730
  %4750 = vst.msk [vmem:[%s4392 + $0x74] sm:$0xf] %vm3933, %v4732
  %4751 = vst.msk [vmem:[%s4392 + $0x88] sm:$0xf] %vm3933, %v4734
  %4752 = vst.msk [vmem:[%s4392 + $0x9c] sm:$0xf] %vm3933, %v4736
  %v4753 = vld [vmem:[%s3944] sm:$0xf]
  %v4754 = vld [vmem:[%s3944 + $0x4] sm:$0xf]
  %v4755 = vld [vmem:[%s3944 + $0x8] sm:$0xf]
  %v4756 = vld [vmem:[%s3944 + $0xc] sm:$0xf]
  %v4757 = vld [vmem:[%s3944 + $0x10] sm:$0xf]
  %v4758 = vld [vmem:[%s3944 + $0x14] sm:$0xf]
  %v4759 = vld [vmem:[%s3944 + $0x18] sm:$0xf]
  %v4760 = vld [vmem:[%s3944 + $0x1c] sm:$0xf]
  %s4761 = scalar_lea.vmem [#allocation4], 320
  %4762 = vst.msk [vmem:[%s4761] sm:$0xf] %vm3933, %v4753
  %4763 = vst.msk [vmem:[%s4761 + $0x14] sm:$0xf] %vm3933, %v4754
  %4764 = vst.msk [vmem:[%s4761 + $0x28] sm:$0xf] %vm3933, %v4755
  %4765 = vst.msk [vmem:[%s4761 + $0x3c] sm:$0xf] %vm3933, %v4756
  %4766 = vst.msk [vmem:[%s4761 + $0x50] sm:$0xf] %vm3933, %v4757
  %4767 = vst.msk [vmem:[%s4761 + $0x64] sm:$0xf] %vm3933, %v4758
  %4768 = vst.msk [vmem:[%s4761 + $0x78] sm:$0xf] %vm3933, %v4759
  %4769 = vst.msk [vmem:[%s4761 + $0x8c] sm:$0xf] %vm3933, %v4760
  %v4770 = vld [vmem:[%s3932] sm:$0xf]
  %v4771 = vld [vmem:[%s3932 + $0x4] sm:$0xf]
  %v4772 = vld [vmem:[%s3932 + $0x8] sm:$0xf]
  %v4773 = vld [vmem:[%s3932 + $0xc] sm:$0xf]
  %v4774 = vld [vmem:[%s3932 + $0x10] sm:$0xf]
  %v4775 = vld [vmem:[%s3932 + $0x14] sm:$0xf]
  %v4776 = vld [vmem:[%s3932 + $0x18] sm:$0xf]
  %v4777 = vld [vmem:[%s3932 + $0x1c] sm:$0xf]
  %4786 = vrot.lane.b32.xlu0 %v4770, 64
  %v4787 = vpop.permute.xlu0 %4786
  %4788 = vrot.lane.b32.xlu0 %v4771, 64
  %v4789 = vpop.permute.xlu0 %4788
  %4790 = vrot.lane.b32.xlu0 %v4772, 64
  %v4791 = vpop.permute.xlu0 %4790
  %4792 = vrot.lane.b32.xlu0 %v4773, 64
  %v4793 = vpop.permute.xlu0 %4792
  %4794 = vrot.lane.b32.xlu0 %v4774, 64
  %v4795 = vpop.permute.xlu0 %4794
  %4796 = vrot.lane.b32.xlu0 %v4775, 64
  %v4797 = vpop.permute.xlu0 %4796
  %4798 = vrot.lane.b32.xlu0 %v4776, 64
  %v4799 = vpop.permute.xlu0 %4798
  %4800 = vrot.lane.b32.xlu0 %v4777, 64
  %v4801 = vpop.permute.xlu0 %4800
  %4810 = vst.msk [vmem:[%s4761] sm:$0xf] %vm4103, %v4787
  %4811 = vst.msk [vmem:[%s4761 + $0x14] sm:$0xf] %vm4103, %v4789
  %4812 = vst.msk [vmem:[%s4761 + $0x28] sm:$0xf] %vm4103, %v4791
  %4813 = vst.msk [vmem:[%s4761 + $0x3c] sm:$0xf] %vm4103, %v4793
  %4814 = vst.msk [vmem:[%s4761 + $0x50] sm:$0xf] %vm4103, %v4795
  %4815 = vst.msk [vmem:[%s4761 + $0x64] sm:$0xf] %vm4103, %v4797
  %4816 = vst.msk [vmem:[%s4761 + $0x78] sm:$0xf] %vm4103, %v4799
  %4817 = vst.msk [vmem:[%s4761 + $0x8c] sm:$0xf] %vm4103, %v4801
  %v4818 = vld [vmem:[%s3944] sm:$0xf]
  %v4819 = vld [vmem:[%s3944 + $0x4] sm:$0xf]
  %v4820 = vld [vmem:[%s3944 + $0x8] sm:$0xf]
  %v4821 = vld [vmem:[%s3944 + $0xc] sm:$0xf]
  %v4822 = vld [vmem:[%s3944 + $0x10] sm:$0xf]
  %v4823 = vld [vmem:[%s3944 + $0x14] sm:$0xf]
  %v4824 = vld [vmem:[%s3944 + $0x18] sm:$0xf]
  %v4825 = vld [vmem:[%s3944 + $0x1c] sm:$0xf]
  %4834 = vrot.lane.b32.xlu0 %v4818, 112
  %v4835 = vpop.permute.xlu0 %4834
  %4836 = vrot.lane.b32.xlu0 %v4819, 112
  %v4837 = vpop.permute.xlu0 %4836
  %4838 = vrot.lane.b32.xlu0 %v4820, 112
  %v4839 = vpop.permute.xlu0 %4838
  %4840 = vrot.lane.b32.xlu0 %v4821, 112
  %v4841 = vpop.permute.xlu0 %4840
  %4842 = vrot.lane.b32.xlu0 %v4822, 112
  %v4843 = vpop.permute.xlu0 %4842
  %4844 = vrot.lane.b32.xlu0 %v4823, 112
  %v4845 = vpop.permute.xlu0 %4844
  %4846 = vrot.lane.b32.xlu0 %v4824, 112
  %v4847 = vpop.permute.xlu0 %4846
  %4848 = vrot.lane.b32.xlu0 %v4825, 112
  %v4849 = vpop.permute.xlu0 %4848
  %4858 = vst.msk [vmem:[%s4761 + $0x4] sm:$0xf] %vm3933, %v4835
  %4859 = vst.msk [vmem:[%s4761 + $0x18] sm:$0xf] %vm3933, %v4837
  %4860 = vst.msk [vmem:[%s4761 + $0x2c] sm:$0xf] %vm3933, %v4839
  %4861 = vst.msk [vmem:[%s4761 + $0x40] sm:$0xf] %vm3933, %v4841
  %4862 = vst.msk [vmem:[%s4761 + $0x54] sm:$0xf] %vm3933, %v4843
  %4863 = vst.msk [vmem:[%s4761 + $0x68] sm:$0xf] %vm3933, %v4845
  %4864 = vst.msk [vmem:[%s4761 + $0x7c] sm:$0xf] %vm3933, %v4847
  %4865 = vst.msk [vmem:[%s4761 + $0x90] sm:$0xf] %vm3933, %v4849
  %v4866 = vld [vmem:[%s3959] sm:$0xf]
  %v4867 = vld [vmem:[%s3959 + $0x4] sm:$0xf]
  %v4868 = vld [vmem:[%s3959 + $0x8] sm:$0xf]
  %v4869 = vld [vmem:[%s3959 + $0xc] sm:$0xf]
  %v4870 = vld [vmem:[%s3959 + $0x10] sm:$0xf]
  %v4871 = vld [vmem:[%s3959 + $0x14] sm:$0xf]
  %v4872 = vld [vmem:[%s3959 + $0x18] sm:$0xf]
  %v4873 = vld [vmem:[%s3959 + $0x1c] sm:$0xf]
  %4882 = vrot.lane.b32.xlu0 %v4866, 64
  %v4883 = vpop.permute.xlu0 %4882
  %4884 = vrot.lane.b32.xlu0 %v4867, 64
  %v4885 = vpop.permute.xlu0 %4884
  %4886 = vrot.lane.b32.xlu0 %v4868, 64
  %v4887 = vpop.permute.xlu0 %4886
  %4888 = vrot.lane.b32.xlu0 %v4869, 64
  %v4889 = vpop.permute.xlu0 %4888
  %4890 = vrot.lane.b32.xlu0 %v4870, 64
  %v4891 = vpop.permute.xlu0 %4890
  %4892 = vrot.lane.b32.xlu0 %v4871, 64
  %v4893 = vpop.permute.xlu0 %4892
  %4894 = vrot.lane.b32.xlu0 %v4872, 64
  %v4895 = vpop.permute.xlu0 %4894
  %4896 = vrot.lane.b32.xlu0 %v4873, 64
  %v4897 = vpop.permute.xlu0 %4896
  %4906 = vst.msk [vmem:[%s4761 + $0x4] sm:$0xf] %vm4103, %v4883
  %4907 = vst.msk [vmem:[%s4761 + $0x18] sm:$0xf] %vm4103, %v4885
  %4908 = vst.msk [vmem:[%s4761 + $0x2c] sm:$0xf] %vm4103, %v4887
  %4909 = vst.msk [vmem:[%s4761 + $0x40] sm:$0xf] %vm4103, %v4889
  %4910 = vst.msk [vmem:[%s4761 + $0x54] sm:$0xf] %vm4103, %v4891
  %4911 = vst.msk [vmem:[%s4761 + $0x68] sm:$0xf] %vm4103, %v4893
  %4912 = vst.msk [vmem:[%s4761 + $0x7c] sm:$0xf] %vm4103, %v4895
  %4913 = vst.msk [vmem:[%s4761 + $0x90] sm:$0xf] %vm4103, %v4897
  %v4914 = vld [vmem:[%s3948] sm:$0xf]
  %v4915 = vld [vmem:[%s3948 + $0x4] sm:$0xf]
  %v4916 = vld [vmem:[%s3948 + $0x8] sm:$0xf]
  %v4917 = vld [vmem:[%s3948 + $0xc] sm:$0xf]
  %v4918 = vld [vmem:[%s3948 + $0x10] sm:$0xf]
  %v4919 = vld [vmem:[%s3948 + $0x14] sm:$0xf]
  %v4920 = vld [vmem:[%s3948 + $0x18] sm:$0xf]
  %v4921 = vld [vmem:[%s3948 + $0x1c] sm:$0xf]
  %4922 = vst.msk [vmem:[%s4761 + $0x8] sm:$0xf] %vm3933, %v4914
  %4923 = vst.msk [vmem:[%s4761 + $0x1c] sm:$0xf] %vm3933, %v4915
  %4924 = vst.msk [vmem:[%s4761 + $0x30] sm:$0xf] %vm3933, %v4916
  %4925 = vst.msk [vmem:[%s4761 + $0x44] sm:$0xf] %vm3933, %v4917
  %4926 = vst.msk [vmem:[%s4761 + $0x58] sm:$0xf] %vm3933, %v4918
  %4927 = vst.msk [vmem:[%s4761 + $0x6c] sm:$0xf] %vm3933, %v4919
  %4928 = vst.msk [vmem:[%s4761 + $0x80] sm:$0xf] %vm3933, %v4920
  %4929 = vst.msk [vmem:[%s4761 + $0x94] sm:$0xf] %vm3933, %v4921
  %v4930 = vld [vmem:[%s3959] sm:$0xf]
  %v4931 = vld [vmem:[%s3959 + $0x4] sm:$0xf]
  %v4932 = vld [vmem:[%s3959 + $0x8] sm:$0xf]
  %v4933 = vld [vmem:[%s3959 + $0xc] sm:$0xf]
  %v4934 = vld [vmem:[%s3959 + $0x10] sm:$0xf]
  %v4935 = vld [vmem:[%s3959 + $0x14] sm:$0xf]
  %v4936 = vld [vmem:[%s3959 + $0x18] sm:$0xf]
  %v4937 = vld [vmem:[%s3959 + $0x1c] sm:$0xf]
  %4946 = vrot.lane.b32.xlu0 %v4930, 48
  %v4947 = vpop.permute.xlu0 %4946
  %4948 = vrot.lane.b32.xlu0 %v4931, 48
  %v4949 = vpop.permute.xlu0 %4948
  %4950 = vrot.lane.b32.xlu0 %v4932, 48
  %v4951 = vpop.permute.xlu0 %4950
  %4952 = vrot.lane.b32.xlu0 %v4933, 48
  %v4953 = vpop.permute.xlu0 %4952
  %4954 = vrot.lane.b32.xlu0 %v4934, 48
  %v4955 = vpop.permute.xlu0 %4954
  %4956 = vrot.lane.b32.xlu0 %v4935, 48
  %v4957 = vpop.permute.xlu0 %4956
  %4958 = vrot.lane.b32.xlu0 %v4936, 48
  %v4959 = vpop.permute.xlu0 %4958
  %4960 = vrot.lane.b32.xlu0 %v4937, 48
  %v4961 = vpop.permute.xlu0 %4960
  %4970 = vst.msk [vmem:[%s4761 + $0x8] sm:$0xf] %vm4103, %v4947
  %4971 = vst.msk [vmem:[%s4761 + $0x1c] sm:$0xf] %vm4103, %v4949
  %4972 = vst.msk [vmem:[%s4761 + $0x30] sm:$0xf] %vm4103, %v4951
  %4973 = vst.msk [vmem:[%s4761 + $0x44] sm:$0xf] %vm4103, %v4953
  %4974 = vst.msk [vmem:[%s4761 + $0x58] sm:$0xf] %vm4103, %v4955
  %4975 = vst.msk [vmem:[%s4761 + $0x6c] sm:$0xf] %vm4103, %v4957
  %4976 = vst.msk [vmem:[%s4761 + $0x80] sm:$0xf] %vm4103, %v4959
  %4977 = vst.msk [vmem:[%s4761 + $0x94] sm:$0xf] %vm4103, %v4961
  %v4978 = vld [vmem:[%s3973] sm:$0xf]
  %v4979 = vld [vmem:[%s3973 + $0x4] sm:$0xf]
  %v4980 = vld [vmem:[%s3973 + $0x8] sm:$0xf]
  %v4981 = vld [vmem:[%s3973 + $0xc] sm:$0xf]
  %v4982 = vld [vmem:[%s3973 + $0x10] sm:$0xf]
  %v4983 = vld [vmem:[%s3973 + $0x14] sm:$0xf]
  %v4984 = vld [vmem:[%s3973 + $0x18] sm:$0xf]
  %v4985 = vld [vmem:[%s3973 + $0x1c] sm:$0xf]
  %4986 = vst.msk [vmem:[%s4761 + $0xc] sm:$0xf] %vm3933, %v4978
  %4987 = vst.msk [vmem:[%s4761 + $0x20] sm:$0xf] %vm3933, %v4979
  %4988 = vst.msk [vmem:[%s4761 + $0x34] sm:$0xf] %vm3933, %v4980
  %4989 = vst.msk [vmem:[%s4761 + $0x48] sm:$0xf] %vm3933, %v4981
  %4990 = vst.msk [vmem:[%s4761 + $0x5c] sm:$0xf] %vm3933, %v4982
  %4991 = vst.msk [vmem:[%s4761 + $0x70] sm:$0xf] %vm3933, %v4983
  %4992 = vst.msk [vmem:[%s4761 + $0x84] sm:$0xf] %vm3933, %v4984
  %4993 = vst.msk [vmem:[%s4761 + $0x98] sm:$0xf] %vm3933, %v4985
  %v4994 = vld [vmem:[%s3962] sm:$0xf]
  %v4995 = vld [vmem:[%s3962 + $0x4] sm:$0xf]
  %v4996 = vld [vmem:[%s3962 + $0x8] sm:$0xf]
  %v4997 = vld [vmem:[%s3962 + $0xc] sm:$0xf]
  %v4998 = vld [vmem:[%s3962 + $0x10] sm:$0xf]
  %v4999 = vld [vmem:[%s3962 + $0x14] sm:$0xf]
  %v5000 = vld [vmem:[%s3962 + $0x18] sm:$0xf]
  %v5001 = vld [vmem:[%s3962 + $0x1c] sm:$0xf]
  %5010 = vrot.lane.b32.xlu0 %v4994, 64
  %v5011 = vpop.permute.xlu0 %5010
  %5012 = vrot.lane.b32.xlu0 %v4995, 64
  %v5013 = vpop.permute.xlu0 %5012
  %5014 = vrot.lane.b32.xlu0 %v4996, 64
  %v5015 = vpop.permute.xlu0 %5014
  %5016 = vrot.lane.b32.xlu0 %v4997, 64
  %v5017 = vpop.permute.xlu0 %5016
  %5018 = vrot.lane.b32.xlu0 %v4998, 64
  %v5019 = vpop.permute.xlu0 %5018
  %5020 = vrot.lane.b32.xlu0 %v4999, 64
  %v5021 = vpop.permute.xlu0 %5020
  %5022 = vrot.lane.b32.xlu0 %v5000, 64
  %v5023 = vpop.permute.xlu0 %5022
  %5024 = vrot.lane.b32.xlu0 %v5001, 64
  %v5025 = vpop.permute.xlu0 %5024
  %5034 = vst.msk [vmem:[%s4761 + $0xc] sm:$0xf] %vm4103, %v5011
  %5035 = vst.msk [vmem:[%s4761 + $0x20] sm:$0xf] %vm4103, %v5013
  %5036 = vst.msk [vmem:[%s4761 + $0x34] sm:$0xf] %vm4103, %v5015
  %5037 = vst.msk [vmem:[%s4761 + $0x48] sm:$0xf] %vm4103, %v5017
  %5038 = vst.msk [vmem:[%s4761 + $0x5c] sm:$0xf] %vm4103, %v5019
  %5039 = vst.msk [vmem:[%s4761 + $0x70] sm:$0xf] %vm4103, %v5021
  %5040 = vst.msk [vmem:[%s4761 + $0x84] sm:$0xf] %vm4103, %v5023
  %5041 = vst.msk [vmem:[%s4761 + $0x98] sm:$0xf] %vm4103, %v5025
  %v5042 = vld [vmem:[%s3973] sm:$0xf]
  %v5043 = vld [vmem:[%s3973 + $0x4] sm:$0xf]
  %v5044 = vld [vmem:[%s3973 + $0x8] sm:$0xf]
  %v5045 = vld [vmem:[%s3973 + $0xc] sm:$0xf]
  %v5046 = vld [vmem:[%s3973 + $0x10] sm:$0xf]
  %v5047 = vld [vmem:[%s3973 + $0x14] sm:$0xf]
  %v5048 = vld [vmem:[%s3973 + $0x18] sm:$0xf]
  %v5049 = vld [vmem:[%s3973 + $0x1c] sm:$0xf]
  %5058 = vrot.lane.b32.xlu0 %v5042, 112
  %v5059 = vpop.permute.xlu0 %5058
  %5060 = vrot.lane.b32.xlu0 %v5043, 112
  %v5061 = vpop.permute.xlu0 %5060
  %5062 = vrot.lane.b32.xlu0 %v5044, 112
  %v5063 = vpop.permute.xlu0 %5062
  %5064 = vrot.lane.b32.xlu0 %v5045, 112
  %v5065 = vpop.permute.xlu0 %5064
  %5066 = vrot.lane.b32.xlu0 %v5046, 112
  %v5067 = vpop.permute.xlu0 %5066
  %5068 = vrot.lane.b32.xlu0 %v5047, 112
  %v5069 = vpop.permute.xlu0 %5068
  %5070 = vrot.lane.b32.xlu0 %v5048, 112
  %v5071 = vpop.permute.xlu0 %5070
  %5072 = vrot.lane.b32.xlu0 %v5049, 112
  %v5073 = vpop.permute.xlu0 %5072
  %5082 = vst.msk [vmem:[%s4761 + $0x10] sm:$0xf] %vm3933, %v5059
  %5083 = vst.msk [vmem:[%s4761 + $0x24] sm:$0xf] %vm3933, %v5061
  %5084 = vst.msk [vmem:[%s4761 + $0x38] sm:$0xf] %vm3933, %v5063
  %5085 = vst.msk [vmem:[%s4761 + $0x4c] sm:$0xf] %vm3933, %v5065
  %5086 = vst.msk [vmem:[%s4761 + $0x60] sm:$0xf] %vm3933, %v5067
  %5087 = vst.msk [vmem:[%s4761 + $0x74] sm:$0xf] %vm3933, %v5069
  %5088 = vst.msk [vmem:[%s4761 + $0x88] sm:$0xf] %vm3933, %v5071
  %5089 = vst.msk [vmem:[%s4761 + $0x9c] sm:$0xf] %vm3933, %v5073
  %v5090 = vld [vmem:[%s3932] sm:$0xf]
  %v5091 = vld [vmem:[%s3932 + $0x4] sm:$0xf]
  %v5092 = vld [vmem:[%s3932 + $0x8] sm:$0xf]
  %v5093 = vld [vmem:[%s3932 + $0xc] sm:$0xf]
  %v5094 = vld [vmem:[%s3932 + $0x10] sm:$0xf]
  %v5095 = vld [vmem:[%s3932 + $0x14] sm:$0xf]
  %v5096 = vld [vmem:[%s3932 + $0x18] sm:$0xf]
  %v5097 = vld [vmem:[%s3932 + $0x1c] sm:$0xf]
  %s5098 = scalar_lea.vmem [#allocation4], 480
  %5099 = vst.msk [vmem:[%s5098] sm:$0xf] %vm3933, %v5090
  %5100 = vst.msk [vmem:[%s5098 + $0x14] sm:$0xf] %vm3933, %v5091
  %5101 = vst.msk [vmem:[%s5098 + $0x28] sm:$0xf] %vm3933, %v5092
  %5102 = vst.msk [vmem:[%s5098 + $0x3c] sm:$0xf] %vm3933, %v5093
  %5103 = vst.msk [vmem:[%s5098 + $0x50] sm:$0xf] %vm3933, %v5094
  %5104 = vst.msk [vmem:[%s5098 + $0x64] sm:$0xf] %vm3933, %v5095
  %5105 = vst.msk [vmem:[%s5098 + $0x78] sm:$0xf] %vm3933, %v5096
  %5106 = vst.msk [vmem:[%s5098 + $0x8c] sm:$0xf] %vm3933, %v5097
  %v5107 = vld [vmem:[%s3944] sm:$0xf]
  %v5108 = vld [vmem:[%s3944 + $0x4] sm:$0xf]
  %v5109 = vld [vmem:[%s3944 + $0x8] sm:$0xf]
  %v5110 = vld [vmem:[%s3944 + $0xc] sm:$0xf]
  %v5111 = vld [vmem:[%s3944 + $0x10] sm:$0xf]
  %v5112 = vld [vmem:[%s3944 + $0x14] sm:$0xf]
  %v5113 = vld [vmem:[%s3944 + $0x18] sm:$0xf]
  %v5114 = vld [vmem:[%s3944 + $0x1c] sm:$0xf]
  %5123 = vrot.lane.b32.xlu0 %v5107, 48
  %v5124 = vpop.permute.xlu0 %5123
  %5125 = vrot.lane.b32.xlu0 %v5108, 48
  %v5126 = vpop.permute.xlu0 %5125
  %5127 = vrot.lane.b32.xlu0 %v5109, 48
  %v5128 = vpop.permute.xlu0 %5127
  %5129 = vrot.lane.b32.xlu0 %v5110, 48
  %v5130 = vpop.permute.xlu0 %5129
  %5131 = vrot.lane.b32.xlu0 %v5111, 48
  %v5132 = vpop.permute.xlu0 %5131
  %5133 = vrot.lane.b32.xlu0 %v5112, 48
  %v5134 = vpop.permute.xlu0 %5133
  %5135 = vrot.lane.b32.xlu0 %v5113, 48
  %v5136 = vpop.permute.xlu0 %5135
  %5137 = vrot.lane.b32.xlu0 %v5114, 48
  %v5138 = vpop.permute.xlu0 %5137
  %5147 = vst.msk [vmem:[%s5098] sm:$0xf] %vm4103, %v5124
  %5148 = vst.msk [vmem:[%s5098 + $0x14] sm:$0xf] %vm4103, %v5126
  %5149 = vst.msk [vmem:[%s5098 + $0x28] sm:$0xf] %vm4103, %v5128
  %5150 = vst.msk [vmem:[%s5098 + $0x3c] sm:$0xf] %vm4103, %v5130
  %5151 = vst.msk [vmem:[%s5098 + $0x50] sm:$0xf] %vm4103, %v5132
  %5152 = vst.msk [vmem:[%s5098 + $0x64] sm:$0xf] %vm4103, %v5134
  %5153 = vst.msk [vmem:[%s5098 + $0x78] sm:$0xf] %vm4103, %v5136
  %5154 = vst.msk [vmem:[%s5098 + $0x8c] sm:$0xf] %vm4103, %v5138
  %v5155 = vld [vmem:[%s3932] sm:$0xf]
  %v5156 = vld [vmem:[%s3932 + $0x4] sm:$0xf]
  %v5157 = vld [vmem:[%s3932 + $0x8] sm:$0xf]
  %v5158 = vld [vmem:[%s3932 + $0xc] sm:$0xf]
  %v5159 = vld [vmem:[%s3932 + $0x10] sm:$0xf]
  %v5160 = vld [vmem:[%s3932 + $0x14] sm:$0xf]
  %v5161 = vld [vmem:[%s3932 + $0x18] sm:$0xf]
  %v5162 = vld [vmem:[%s3932 + $0x1c] sm:$0xf]
  %5171 = vrot.lane.b32.xlu0 %v5155, 112
  %v5172 = vpop.permute.xlu0 %5171
  %5173 = vrot.lane.b32.xlu0 %v5156, 112
  %v5174 = vpop.permute.xlu0 %5173
  %5175 = vrot.lane.b32.xlu0 %v5157, 112
  %v5176 = vpop.permute.xlu0 %5175
  %5177 = vrot.lane.b32.xlu0 %v5158, 112
  %v5178 = vpop.permute.xlu0 %5177
  %5179 = vrot.lane.b32.xlu0 %v5159, 112
  %v5180 = vpop.permute.xlu0 %5179
  %5181 = vrot.lane.b32.xlu0 %v5160, 112
  %v5182 = vpop.permute.xlu0 %5181
  %5183 = vrot.lane.b32.xlu0 %v5161, 112
  %v5184 = vpop.permute.xlu0 %5183
  %5185 = vrot.lane.b32.xlu0 %v5162, 112
  %v5186 = vpop.permute.xlu0 %5185
  %5195 = vst.msk [vmem:[%s5098 + $0x4] sm:$0xf] %vm3933, %v5172
  %5196 = vst.msk [vmem:[%s5098 + $0x18] sm:$0xf] %vm3933, %v5174
  %5197 = vst.msk [vmem:[%s5098 + $0x2c] sm:$0xf] %vm3933, %v5176
  %5198 = vst.msk [vmem:[%s5098 + $0x40] sm:$0xf] %vm3933, %v5178
  %5199 = vst.msk [vmem:[%s5098 + $0x54] sm:$0xf] %vm3933, %v5180
  %5200 = vst.msk [vmem:[%s5098 + $0x68] sm:$0xf] %vm3933, %v5182
  %5201 = vst.msk [vmem:[%s5098 + $0x7c] sm:$0xf] %vm3933, %v5184
  %5202 = vst.msk [vmem:[%s5098 + $0x90] sm:$0xf] %vm3933, %v5186
  %v5203 = vld [vmem:[%s3948] sm:$0xf]
  %v5204 = vld [vmem:[%s3948 + $0x4] sm:$0xf]
  %v5205 = vld [vmem:[%s3948 + $0x8] sm:$0xf]
  %v5206 = vld [vmem:[%s3948 + $0xc] sm:$0xf]
  %v5207 = vld [vmem:[%s3948 + $0x10] sm:$0xf]
  %v5208 = vld [vmem:[%s3948 + $0x14] sm:$0xf]
  %v5209 = vld [vmem:[%s3948 + $0x18] sm:$0xf]
  %v5210 = vld [vmem:[%s3948 + $0x1c] sm:$0xf]
  %5219 = vrot.lane.b32.xlu0 %v5203, 64
  %v5220 = vpop.permute.xlu0 %5219
  %5221 = vrot.lane.b32.xlu0 %v5204, 64
  %v5222 = vpop.permute.xlu0 %5221
  %5223 = vrot.lane.b32.xlu0 %v5205, 64
  %v5224 = vpop.permute.xlu0 %5223
  %5225 = vrot.lane.b32.xlu0 %v5206, 64
  %v5226 = vpop.permute.xlu0 %5225
  %5227 = vrot.lane.b32.xlu0 %v5207, 64
  %v5228 = vpop.permute.xlu0 %5227
  %5229 = vrot.lane.b32.xlu0 %v5208, 64
  %v5230 = vpop.permute.xlu0 %5229
  %5231 = vrot.lane.b32.xlu0 %v5209, 64
  %v5232 = vpop.permute.xlu0 %5231
  %5233 = vrot.lane.b32.xlu0 %v5210, 64
  %v5234 = vpop.permute.xlu0 %5233
  %5243 = vst.msk [vmem:[%s5098 + $0x4] sm:$0xf] %vm4103, %v5220
  %5244 = vst.msk [vmem:[%s5098 + $0x18] sm:$0xf] %vm4103, %v5222
  %5245 = vst.msk [vmem:[%s5098 + $0x2c] sm:$0xf] %vm4103, %v5224
  %5246 = vst.msk [vmem:[%s5098 + $0x40] sm:$0xf] %vm4103, %v5226
  %5247 = vst.msk [vmem:[%s5098 + $0x54] sm:$0xf] %vm4103, %v5228
  %5248 = vst.msk [vmem:[%s5098 + $0x68] sm:$0xf] %vm4103, %v5230
  %5249 = vst.msk [vmem:[%s5098 + $0x7c] sm:$0xf] %vm4103, %v5232
  %5250 = vst.msk [vmem:[%s5098 + $0x90] sm:$0xf] %vm4103, %v5234
  %v5251 = vld [vmem:[%s3959] sm:$0xf]
  %v5252 = vld [vmem:[%s3959 + $0x4] sm:$0xf]
  %v5253 = vld [vmem:[%s3959 + $0x8] sm:$0xf]
  %v5254 = vld [vmem:[%s3959 + $0xc] sm:$0xf]
  %v5255 = vld [vmem:[%s3959 + $0x10] sm:$0xf]
  %v5256 = vld [vmem:[%s3959 + $0x14] sm:$0xf]
  %v5257 = vld [vmem:[%s3959 + $0x18] sm:$0xf]
  %v5258 = vld [vmem:[%s3959 + $0x1c] sm:$0xf]
  %5267 = vrot.lane.b32.xlu0 %v5251, 112
  %v5268 = vpop.permute.xlu0 %5267
  %5269 = vrot.lane.b32.xlu0 %v5252, 112
  %v5270 = vpop.permute.xlu0 %5269
  %5271 = vrot.lane.b32.xlu0 %v5253, 112
  %v5272 = vpop.permute.xlu0 %5271
  %5273 = vrot.lane.b32.xlu0 %v5254, 112
  %v5274 = vpop.permute.xlu0 %5273
  %5275 = vrot.lane.b32.xlu0 %v5255, 112
  %v5276 = vpop.permute.xlu0 %5275
  %5277 = vrot.lane.b32.xlu0 %v5256, 112
  %v5278 = vpop.permute.xlu0 %5277
  %5279 = vrot.lane.b32.xlu0 %v5257, 112
  %v5280 = vpop.permute.xlu0 %5279
  %5281 = vrot.lane.b32.xlu0 %v5258, 112
  %v5282 = vpop.permute.xlu0 %5281
  %5291 = vst.msk [vmem:[%s5098 + $0x8] sm:$0xf] %vm3933, %v5268
  %5292 = vst.msk [vmem:[%s5098 + $0x1c] sm:$0xf] %vm3933, %v5270
  %5293 = vst.msk [vmem:[%s5098 + $0x30] sm:$0xf] %vm3933, %v5272
  %5294 = vst.msk [vmem:[%s5098 + $0x44] sm:$0xf] %vm3933, %v5274
  %5295 = vst.msk [vmem:[%s5098 + $0x58] sm:$0xf] %vm3933, %v5276
  %5296 = vst.msk [vmem:[%s5098 + $0x6c] sm:$0xf] %vm3933, %v5278
  %5297 = vst.msk [vmem:[%s5098 + $0x80] sm:$0xf] %vm3933, %v5280
  %5298 = vst.msk [vmem:[%s5098 + $0x94] sm:$0xf] %vm3933, %v5282
  %v5299 = vld [vmem:[%s3948] sm:$0xf]
  %v5300 = vld [vmem:[%s3948 + $0x4] sm:$0xf]
  %v5301 = vld [vmem:[%s3948 + $0x8] sm:$0xf]
  %v5302 = vld [vmem:[%s3948 + $0xc] sm:$0xf]
  %v5303 = vld [vmem:[%s3948 + $0x10] sm:$0xf]
  %v5304 = vld [vmem:[%s3948 + $0x14] sm:$0xf]
  %v5305 = vld [vmem:[%s3948 + $0x18] sm:$0xf]
  %v5306 = vld [vmem:[%s3948 + $0x1c] sm:$0xf]
  %5315 = vrot.lane.b32.xlu0 %v5299, 48
  %v5316 = vpop.permute.xlu0 %5315
  %5317 = vrot.lane.b32.xlu0 %v5300, 48
  %v5318 = vpop.permute.xlu0 %5317
  %5319 = vrot.lane.b32.xlu0 %v5301, 48
  %v5320 = vpop.permute.xlu0 %5319
  %5321 = vrot.lane.b32.xlu0 %v5302, 48
  %v5322 = vpop.permute.xlu0 %5321
  %5323 = vrot.lane.b32.xlu0 %v5303, 48
  %v5324 = vpop.permute.xlu0 %5323
  %5325 = vrot.lane.b32.xlu0 %v5304, 48
  %v5326 = vpop.permute.xlu0 %5325
  %5327 = vrot.lane.b32.xlu0 %v5305, 48
  %v5328 = vpop.permute.xlu0 %5327
  %5329 = vrot.lane.b32.xlu0 %v5306, 48
  %v5330 = vpop.permute.xlu0 %5329
  %5339 = vst.msk [vmem:[%s5098 + $0x8] sm:$0xf] %vm4103, %v5316
  %5340 = vst.msk [vmem:[%s5098 + $0x1c] sm:$0xf] %vm4103, %v5318
  %5341 = vst.msk [vmem:[%s5098 + $0x30] sm:$0xf] %vm4103, %v5320
  %5342 = vst.msk [vmem:[%s5098 + $0x44] sm:$0xf] %vm4103, %v5322
  %5343 = vst.msk [vmem:[%s5098 + $0x58] sm:$0xf] %vm4103, %v5324
  %5344 = vst.msk [vmem:[%s5098 + $0x6c] sm:$0xf] %vm4103, %v5326
  %5345 = vst.msk [vmem:[%s5098 + $0x80] sm:$0xf] %vm4103, %v5328
  %5346 = vst.msk [vmem:[%s5098 + $0x94] sm:$0xf] %vm4103, %v5330
  %v5347 = vld [vmem:[%s3962] sm:$0xf]
  %v5348 = vld [vmem:[%s3962 + $0x4] sm:$0xf]
  %v5349 = vld [vmem:[%s3962 + $0x8] sm:$0xf]
  %v5350 = vld [vmem:[%s3962 + $0xc] sm:$0xf]
  %v5351 = vld [vmem:[%s3962 + $0x10] sm:$0xf]
  %v5352 = vld [vmem:[%s3962 + $0x14] sm:$0xf]
  %v5353 = vld [vmem:[%s3962 + $0x18] sm:$0xf]
  %v5354 = vld [vmem:[%s3962 + $0x1c] sm:$0xf]
  %5355 = vst.msk [vmem:[%s5098 + $0xc] sm:$0xf] %vm3933, %v5347
  %5356 = vst.msk [vmem:[%s5098 + $0x20] sm:$0xf] %vm3933, %v5348
  %5357 = vst.msk [vmem:[%s5098 + $0x34] sm:$0xf] %vm3933, %v5349
  %5358 = vst.msk [vmem:[%s5098 + $0x48] sm:$0xf] %vm3933, %v5350
  %5359 = vst.msk [vmem:[%s5098 + $0x5c] sm:$0xf] %vm3933, %v5351
  %5360 = vst.msk [vmem:[%s5098 + $0x70] sm:$0xf] %vm3933, %v5352
  %5361 = vst.msk [vmem:[%s5098 + $0x84] sm:$0xf] %vm3933, %v5353
  %5362 = vst.msk [vmem:[%s5098 + $0x98] sm:$0xf] %vm3933, %v5354
  %v5363 = vld [vmem:[%s3973] sm:$0xf]
  %v5364 = vld [vmem:[%s3973 + $0x4] sm:$0xf]
  %v5365 = vld [vmem:[%s3973 + $0x8] sm:$0xf]
  %v5366 = vld [vmem:[%s3973 + $0xc] sm:$0xf]
  %v5367 = vld [vmem:[%s3973 + $0x10] sm:$0xf]
  %v5368 = vld [vmem:[%s3973 + $0x14] sm:$0xf]
  %v5369 = vld [vmem:[%s3973 + $0x18] sm:$0xf]
  %v5370 = vld [vmem:[%s3973 + $0x1c] sm:$0xf]
  %5379 = vrot.lane.b32.xlu0 %v5363, 48
  %v5380 = vpop.permute.xlu0 %5379
  %5381 = vrot.lane.b32.xlu0 %v5364, 48
  %v5382 = vpop.permute.xlu0 %5381
  %5383 = vrot.lane.b32.xlu0 %v5365, 48
  %v5384 = vpop.permute.xlu0 %5383
  %5385 = vrot.lane.b32.xlu0 %v5366, 48
  %v5386 = vpop.permute.xlu0 %5385
  %5387 = vrot.lane.b32.xlu0 %v5367, 48
  %v5388 = vpop.permute.xlu0 %5387
  %5389 = vrot.lane.b32.xlu0 %v5368, 48
  %v5390 = vpop.permute.xlu0 %5389
  %5391 = vrot.lane.b32.xlu0 %v5369, 48
  %v5392 = vpop.permute.xlu0 %5391
  %5393 = vrot.lane.b32.xlu0 %v5370, 48
  %v5394 = vpop.permute.xlu0 %5393
  %5403 = vst.msk [vmem:[%s5098 + $0xc] sm:$0xf] %vm4103, %v5380
  %5404 = vst.msk [vmem:[%s5098 + $0x20] sm:$0xf] %vm4103, %v5382
  %5405 = vst.msk [vmem:[%s5098 + $0x34] sm:$0xf] %vm4103, %v5384
  %5406 = vst.msk [vmem:[%s5098 + $0x48] sm:$0xf] %vm4103, %v5386
  %5407 = vst.msk [vmem:[%s5098 + $0x5c] sm:$0xf] %vm4103, %v5388
  %5408 = vst.msk [vmem:[%s5098 + $0x70] sm:$0xf] %vm4103, %v5390
  %5409 = vst.msk [vmem:[%s5098 + $0x84] sm:$0xf] %vm4103, %v5392
  %5410 = vst.msk [vmem:[%s5098 + $0x98] sm:$0xf] %vm4103, %v5394
  %v5411 = vld [vmem:[%s3962] sm:$0xf]
  %v5412 = vld [vmem:[%s3962 + $0x4] sm:$0xf]
  %v5413 = vld [vmem:[%s3962 + $0x8] sm:$0xf]
  %v5414 = vld [vmem:[%s3962 + $0xc] sm:$0xf]
  %v5415 = vld [vmem:[%s3962 + $0x10] sm:$0xf]
  %v5416 = vld [vmem:[%s3962 + $0x14] sm:$0xf]
  %v5417 = vld [vmem:[%s3962 + $0x18] sm:$0xf]
  %v5418 = vld [vmem:[%s3962 + $0x1c] sm:$0xf]
  %5427 = vrot.lane.b32.xlu0 %v5411, 112
  %v5428 = vpop.permute.xlu0 %5427
  %5429 = vrot.lane.b32.xlu0 %v5412, 112
  %v5430 = vpop.permute.xlu0 %5429
  %5431 = vrot.lane.b32.xlu0 %v5413, 112
  %v5432 = vpop.permute.xlu0 %5431
  %5433 = vrot.lane.b32.xlu0 %v5414, 112
  %v5434 = vpop.permute.xlu0 %5433
  %5435 = vrot.lane.b32.xlu0 %v5415, 112
  %v5436 = vpop.permute.xlu0 %5435
  %5437 = vrot.lane.b32.xlu0 %v5416, 112
  %v5438 = vpop.permute.xlu0 %5437
  %5439 = vrot.lane.b32.xlu0 %v5417, 112
  %v5440 = vpop.permute.xlu0 %5439
  %5441 = vrot.lane.b32.xlu0 %v5418, 112
  %v5442 = vpop.permute.xlu0 %5441
  %5451 = vst.msk [vmem:[%s5098 + $0x10] sm:$0xf] %vm3933, %v5428
  %5452 = vst.msk [vmem:[%s5098 + $0x24] sm:$0xf] %vm3933, %v5430
  %5453 = vst.msk [vmem:[%s5098 + $0x38] sm:$0xf] %vm3933, %v5432
  %5454 = vst.msk [vmem:[%s5098 + $0x4c] sm:$0xf] %vm3933, %v5434
  %5455 = vst.msk [vmem:[%s5098 + $0x60] sm:$0xf] %vm3933, %v5436
  %5456 = vst.msk [vmem:[%s5098 + $0x74] sm:$0xf] %vm3933, %v5438
  %5457 = vst.msk [vmem:[%s5098 + $0x88] sm:$0xf] %vm3933, %v5440
  %5458 = vst.msk [vmem:[%s5098 + $0x9c] sm:$0xf] %vm3933, %v5442
  %v5459 = vld [vmem:[#allocation4] sm:$0xff]
  %v5460 = vld [vmem:[#allocation4 + $0x8] sm:$0xff]
  %v5461 = vld [vmem:[#allocation4 + $0x10] sm:$0xf]
  %v5462 = vld [vmem:[#allocation4 + $0x14] sm:$0xff]
  %v5463 = vld [vmem:[#allocation4 + $0x1c] sm:$0xff]
  %v5464 = vld [vmem:[#allocation4 + $0x24] sm:$0xf]
  %v5465 = vld [vmem:[#allocation4 + $0x28] sm:$0xff]
  %v5466 = vld [vmem:[#allocation4 + $0x30] sm:$0xff]
  %v5467 = vld [vmem:[#allocation4 + $0x38] sm:$0xf]
  %v5468 = vld [vmem:[#allocation4 + $0x3c] sm:$0xff]
  %v5469 = vld [vmem:[#allocation4 + $0x44] sm:$0xff]
  %v5470 = vld [vmem:[#allocation4 + $0x4c] sm:$0xf]
  %v5471 = vld [vmem:[#allocation4 + $0x50] sm:$0xff]
  %v5472 = vld [vmem:[#allocation4 + $0x58] sm:$0xff]
  %v5473 = vld [vmem:[#allocation4 + $0x60] sm:$0xf]
  %v5474 = vld [vmem:[#allocation4 + $0x64] sm:$0xff]
  %v5475 = vld [vmem:[#allocation4 + $0x6c] sm:$0xff]
  %v5476 = vld [vmem:[#allocation4 + $0x74] sm:$0xf]
  %v5477 = vld [vmem:[#allocation4 + $0x78] sm:$0xff]
  %v5478 = vld [vmem:[#allocation4 + $0x80] sm:$0xff]
  %v5479 = vld [vmem:[#allocation4 + $0x88] sm:$0xf]
  %v5480 = vld [vmem:[#allocation4 + $0x8c] sm:$0xff]
  %v5481 = vld [vmem:[#allocation4 + $0x94] sm:$0xff]
  %v5482 = vld [vmem:[#allocation4 + $0x9c] sm:$0xf]
  %v5483 = vld [vmem:[#allocation4 + $0xa0] sm:$0xff]
  %v5484 = vld [vmem:[#allocation4 + $0xa8] sm:$0xff]
  %v5485 = vld [vmem:[#allocation4 + $0xb0] sm:$0xf]
  %v5486 = vld [vmem:[#allocation4 + $0xb4] sm:$0xff]
  %v5487 = vld [vmem:[#allocation4 + $0xbc] sm:$0xff]
  %v5488 = vld [vmem:[#allocation4 + $0xc4] sm:$0xf]
  %v5489 = vld [vmem:[#allocation4 + $0xc8] sm:$0xff]
  %v5490 = vld [vmem:[#allocation4 + $0xd0] sm:$0xff]
  %v5491 = vld [vmem:[#allocation4 + $0xd8] sm:$0xf]
  %v5492 = vld [vmem:[#allocation4 + $0xdc] sm:$0xff]
  %v5493 = vld [vmem:[#allocation4 + $0xe4] sm:$0xff]
  %v5494 = vld [vmem:[#allocation4 + $0xec] sm:$0xf]
  %v5495 = vld [vmem:[#allocation4 + $0xf0] sm:$0xff]
  %v5496 = vld [vmem:[#allocation4 + $0xf8] sm:$0xff]
  %v5497 = vld [vmem:[#allocation4 + $0x100] sm:$0xf]
  %v5498 = vld [vmem:[#allocation4 + $0x104] sm:$0xff]
  %v5499 = vld [vmem:[#allocation4 + $0x10c] sm:$0xff]
  %v5500 = vld [vmem:[#allocation4 + $0x114] sm:$0xf]
  %v5501 = vld [vmem:[#allocation4 + $0x118] sm:$0xff]
  %v5502 = vld [vmem:[#allocation4 + $0x120] sm:$0xff]
  %v5503 = vld [vmem:[#allocation4 + $0x128] sm:$0xf]
  %v5504 = vld [vmem:[#allocation4 + $0x12c] sm:$0xff]
  %v5505 = vld [vmem:[#allocation4 + $0x134] sm:$0xff]
  %v5506 = vld [vmem:[#allocation4 + $0x13c] sm:$0xf]
  %v5507 = vld [vmem:[#allocation4 + $0x140] sm:$0xff]
  %v5508 = vld [vmem:[#allocation4 + $0x148] sm:$0xff]
  %v5509 = vld [vmem:[#allocation4 + $0x150] sm:$0xf]
  %v5510 = vld [vmem:[#allocation4 + $0x154] sm:$0xff]
  %v5511 = vld [vmem:[#allocation4 + $0x15c] sm:$0xff]
  %v5512 = vld [vmem:[#allocation4 + $0x164] sm:$0xf]
  %v5513 = vld [vmem:[#allocation4 + $0x168] sm:$0xff]
  %v5514 = vld [vmem:[#allocation4 + $0x170] sm:$0xff]
  %v5515 = vld [vmem:[#allocation4 + $0x178] sm:$0xf]
  %v5516 = vld [vmem:[#allocation4 + $0x17c] sm:$0xff]
  %v5517 = vld [vmem:[#allocation4 + $0x184] sm:$0xff]
  %v5518 = vld [vmem:[#allocation4 + $0x18c] sm:$0xf]
  %v5519 = vld [vmem:[#allocation4 + $0x190] sm:$0xff]
  %v5520 = vld [vmem:[#allocation4 + $0x198] sm:$0xff]
  %v5521 = vld [vmem:[#allocation4 + $0x1a0] sm:$0xf]
  %v5522 = vld [vmem:[#allocation4 + $0x1a4] sm:$0xff]
  %v5523 = vld [vmem:[#allocation4 + $0x1ac] sm:$0xff]
  %v5524 = vld [vmem:[#allocation4 + $0x1b4] sm:$0xf]
  %v5525 = vld [vmem:[#allocation4 + $0x1b8] sm:$0xff]
  %v5526 = vld [vmem:[#allocation4 + $0x1c0] sm:$0xff]
  %v5527 = vld [vmem:[#allocation4 + $0x1c8] sm:$0xf]
  %v5528 = vld [vmem:[#allocation4 + $0x1cc] sm:$0xff]
  %v5529 = vld [vmem:[#allocation4 + $0x1d4] sm:$0xff]
  %v5530 = vld [vmem:[#allocation4 + $0x1dc] sm:$0xf]
  %v5531 = vld [vmem:[#allocation4 + $0x1e0] sm:$0xff]
  %v5532 = vld [vmem:[#allocation4 + $0x1e8] sm:$0xff]
  %v5533 = vld [vmem:[#allocation4 + $0x1f0] sm:$0xf]
  %v5534 = vld [vmem:[#allocation4 + $0x1f4] sm:$0xff]
  %v5535 = vld [vmem:[#allocation4 + $0x1fc] sm:$0xff]
  %v5536 = vld [vmem:[#allocation4 + $0x204] sm:$0xf]
  %v5537 = vld [vmem:[#allocation4 + $0x208] sm:$0xff]
  %v5538 = vld [vmem:[#allocation4 + $0x210] sm:$0xff]
  %v5539 = vld [vmem:[#allocation4 + $0x218] sm:$0xf]
  %v5540 = vld [vmem:[#allocation4 + $0x21c] sm:$0xff]
  %v5541 = vld [vmem:[#allocation4 + $0x224] sm:$0xff]
  %v5542 = vld [vmem:[#allocation4 + $0x22c] sm:$0xf]
  %v5543 = vld [vmem:[#allocation4 + $0x230] sm:$0xff]
  %v5544 = vld [vmem:[#allocation4 + $0x238] sm:$0xff]
  %v5545 = vld [vmem:[#allocation4 + $0x240] sm:$0xf]
  %v5546 = vld [vmem:[#allocation4 + $0x244] sm:$0xff]
  %v5547 = vld [vmem:[#allocation4 + $0x24c] sm:$0xff]
  %v5548 = vld [vmem:[#allocation4 + $0x254] sm:$0xf]
  %v5549 = vld [vmem:[#allocation4 + $0x258] sm:$0xff]
  %v5550 = vld [vmem:[#allocation4 + $0x260] sm:$0xff]
  %v5551 = vld [vmem:[#allocation4 + $0x268] sm:$0xf]
  %v5552 = vld [vmem:[#allocation4 + $0x26c] sm:$0xff]
  %v5553 = vld [vmem:[#allocation4 + $0x274] sm:$0xff]
  %v5554 = vld [vmem:[#allocation4 + $0x27c] sm:$0xf]
  %v5555 = vld [vmem:[%s3] sm:$0xf]
  %v5556 = vld [vmem:[%s3 + $0x4] sm:$0xf]
  %v5557 = vld [vmem:[%s3 + $0x8] sm:$0xf]
  %v5558 = vld [vmem:[%s3 + $0xc] sm:$0xf]
  %v5559 = vld [vmem:[%s3 + $0x10] sm:$0xf]
  %v5560 = vld [vmem:[%s3 + $0x14] sm:$0xf]
  %v5561 = vld [vmem:[%s3 + $0x18] sm:$0xf]
  %v5562 = vld [vmem:[%s3 + $0x1c] sm:$0xf]
  %v5563 = vld [vmem:[%s3 + $0x20] sm:$0xf]
  %v5564 = vld [vmem:[%s3 + $0x24] sm:$0xf]
  %v5565 = vld [vmem:[%s3 + $0x28] sm:$0xf]
  %v5566 = vld [vmem:[%s3 + $0x2c] sm:$0xf]
  %v5567 = vld [vmem:[%s3 + $0x30] sm:$0xf]
  %v5568 = vld [vmem:[%s3 + $0x34] sm:$0xf]
  %v5569 = vld [vmem:[%s3 + $0x38] sm:$0xf]
  %v5570 = vld [vmem:[%s3 + $0x3c] sm:$0xf]
  %v5571 = vld [vmem:[%s3 + $0x40] sm:$0xf]
  %v5572 = vld [vmem:[%s3 + $0x44] sm:$0xf]
  %v5573 = vld [vmem:[%s3 + $0x48] sm:$0xf]
  %v5574 = vld [vmem:[%s3 + $0x4c] sm:$0xf]
  %v5575 = vld [vmem:[%s3 + $0x50] sm:$0xf]
  %v5576 = vld [vmem:[%s3 + $0x54] sm:$0xf]
  %v5577 = vld [vmem:[%s3 + $0x58] sm:$0xf]
  %v5578 = vld [vmem:[%s3 + $0x5c] sm:$0xf]
  %v5579 = vld [vmem:[%s3 + $0x60] sm:$0xf]
  %v5580 = vld [vmem:[%s3 + $0x64] sm:$0xf]
  %v5581 = vld [vmem:[%s3 + $0x68] sm:$0xf]
  %v5582 = vld [vmem:[%s3 + $0x6c] sm:$0xf]
  %v5583 = vld [vmem:[%s3 + $0x70] sm:$0xf]
  %v5584 = vld [vmem:[%s3 + $0x74] sm:$0xf]
  %v5585 = vld [vmem:[%s3 + $0x78] sm:$0xf]
  %v5586 = vld [vmem:[%s3 + $0x7c] sm:$0xf]
  %v5587 = vld [vmem:[%s3 + $0x80] sm:$0xf]
  %v5588 = vld [vmem:[%s3 + $0x84] sm:$0xf]
  %v5589 = vld [vmem:[%s3 + $0x88] sm:$0xf]
  %v5590 = vld [vmem:[%s3 + $0x8c] sm:$0xf]
  %v5591 = vld [vmem:[%s3 + $0x90] sm:$0xf]
  %v5592 = vld [vmem:[%s3 + $0x94] sm:$0xf]
  %v5593 = vld [vmem:[%s3 + $0x98] sm:$0xf]
  %v5594 = vld [vmem:[%s3 + $0x9c] sm:$0xf]
  %v5595 = vld [vmem:[%s3 + $0xa0] sm:$0xf]
  %v5596 = vld [vmem:[%s3 + $0xa4] sm:$0xf]
  %v5597 = vld [vmem:[%s3 + $0xa8] sm:$0xf]
  %v5598 = vld [vmem:[%s3 + $0xac] sm:$0xf]
  %v5599 = vld [vmem:[%s3 + $0xb0] sm:$0xf]
  %v5600 = vld [vmem:[%s3 + $0xb4] sm:$0xf]
  %v5601 = vld [vmem:[%s3 + $0xb8] sm:$0xf]
  %v5602 = vld [vmem:[%s3 + $0xbc] sm:$0xf]
  %v5603 = vld [vmem:[%s3 + $0xc0] sm:$0xf]
  %v5604 = vld [vmem:[%s3 + $0xc4] sm:$0xf]
  %v5605 = vld [vmem:[%s3 + $0xc8] sm:$0xf]
  %v5606 = vld [vmem:[%s3 + $0xcc] sm:$0xf]
  %v5607 = vld [vmem:[%s3 + $0xd0] sm:$0xf]
  %v5608 = vld [vmem:[%s3 + $0xd4] sm:$0xf]
  %v5609 = vld [vmem:[%s3 + $0xd8] sm:$0xf]
  %v5610 = vld [vmem:[%s3 + $0xdc] sm:$0xf]
  %v5611 = vld [vmem:[%s3 + $0xe0] sm:$0xf]
  %v5612 = vld [vmem:[%s3 + $0xe4] sm:$0xf]
  %v5613 = vld [vmem:[%s3 + $0xe8] sm:$0xf]
  %v5614 = vld [vmem:[%s3 + $0xec] sm:$0xf]
  %v5615 = vld [vmem:[%s3 + $0xf0] sm:$0xf]
  %v5616 = vld [vmem:[%s3 + $0xf4] sm:$0xf]
  %v5617 = vld [vmem:[%s3 + $0xf8] sm:$0xf]
  %v5618 = vld [vmem:[%s3 + $0xfc] sm:$0xf]
  %v5619 = vld [vmem:[%s3 + $0x100] sm:$0xf]
  %v5620 = vld [vmem:[%s3 + $0x104] sm:$0xf]
  %v5621 = vld [vmem:[%s3 + $0x108] sm:$0xf]
  %v5622 = vld [vmem:[%s3 + $0x10c] sm:$0xf]
  %v5623 = vld [vmem:[%s3 + $0x110] sm:$0xf]
  %v5624 = vld [vmem:[%s3 + $0x114] sm:$0xf]
  %v5625 = vld [vmem:[%s3 + $0x118] sm:$0xf]
  %v5626 = vld [vmem:[%s3 + $0x11c] sm:$0xf]
  %v5723 = vunpack.c.l.b16 %v5459
  %v5724 = vunpack.c.h.b16 %v5459
  %v5725 = vunpack.c.l.b16 %v5460
  %v5726 = vunpack.c.h.b16 %v5460
  %v5727 = vunpack.c.l.b16 %v5461
  %v5728 = vunpack.c.l.b16 %v5462
  %v5729 = vunpack.c.h.b16 %v5462
  %v5730 = vunpack.c.l.b16 %v5463
  %v5731 = vunpack.c.h.b16 %v5463
  %v5732 = vunpack.c.l.b16 %v5464
  %v5733 = vunpack.c.l.b16 %v5465
  %v5734 = vunpack.c.h.b16 %v5465
  %v5735 = vunpack.c.l.b16 %v5466
  %v5736 = vunpack.c.h.b16 %v5466
  %v5737 = vunpack.c.l.b16 %v5467
  %v5738 = vunpack.c.l.b16 %v5468
  %v5739 = vunpack.c.h.b16 %v5468
  %v5740 = vunpack.c.l.b16 %v5469
  %v5741 = vunpack.c.h.b16 %v5469
  %v5742 = vunpack.c.l.b16 %v5470
  %v5743 = vunpack.c.l.b16 %v5471
  %v5744 = vunpack.c.h.b16 %v5471
  %v5745 = vunpack.c.l.b16 %v5472
  %v5746 = vunpack.c.h.b16 %v5472
  %v5747 = vunpack.c.l.b16 %v5473
  %v5748 = vunpack.c.l.b16 %v5474
  %v5749 = vunpack.c.h.b16 %v5474
  %v5750 = vunpack.c.l.b16 %v5475
  %v5751 = vunpack.c.h.b16 %v5475
  %v5752 = vunpack.c.l.b16 %v5476
  %v5753 = vunpack.c.l.b16 %v5477
  %v5754 = vunpack.c.h.b16 %v5477
  %v5755 = vunpack.c.l.b16 %v5478
  %v5756 = vunpack.c.h.b16 %v5478
  %v5757 = vunpack.c.l.b16 %v5479
  %v5758 = vunpack.c.l.b16 %v5480
  %v5759 = vunpack.c.h.b16 %v5480
  %v5760 = vunpack.c.l.b16 %v5481
  %v5761 = vunpack.c.h.b16 %v5481
  %v5762 = vunpack.c.l.b16 %v5482
  %v5763 = vunpack.c.l.b16 %v5483
  %v5764 = vunpack.c.h.b16 %v5483
  %v5765 = vunpack.c.l.b16 %v5484
  %v5766 = vunpack.c.h.b16 %v5484
  %v5767 = vunpack.c.l.b16 %v5485
  %v5768 = vunpack.c.l.b16 %v5486
  %v5769 = vunpack.c.h.b16 %v5486
  %v5770 = vunpack.c.l.b16 %v5487
  %v5771 = vunpack.c.h.b16 %v5487
  %v5772 = vunpack.c.l.b16 %v5488
  %v5773 = vunpack.c.l.b16 %v5489
  %v5774 = vunpack.c.h.b16 %v5489
  %v5775 = vunpack.c.l.b16 %v5490
  %v5776 = vunpack.c.h.b16 %v5490
  %v5777 = vunpack.c.l.b16 %v5491
  %v5778 = vunpack.c.l.b16 %v5492
  %v5779 = vunpack.c.h.b16 %v5492
  %v5780 = vunpack.c.l.b16 %v5493
  %v5781 = vunpack.c.h.b16 %v5493
  %v5782 = vunpack.c.l.b16 %v5494
  %v5783 = vunpack.c.l.b16 %v5495
  %v5784 = vunpack.c.h.b16 %v5495
  %v5785 = vunpack.c.l.b16 %v5496
  %v5786 = vunpack.c.h.b16 %v5496
  %v5787 = vunpack.c.l.b16 %v5497
  %v5788 = vunpack.c.l.b16 %v5498
  %v5789 = vunpack.c.h.b16 %v5498
  %v5790 = vunpack.c.l.b16 %v5499
  %v5791 = vunpack.c.h.b16 %v5499
  %v5792 = vunpack.c.l.b16 %v5500
  %v5793 = vunpack.c.l.b16 %v5501
  %v5794 = vunpack.c.h.b16 %v5501
  %v5795 = vunpack.c.l.b16 %v5502
  %v5796 = vunpack.c.h.b16 %v5502
  %v5797 = vunpack.c.l.b16 %v5503
  %v5798 = vunpack.c.l.b16 %v5504
  %v5799 = vunpack.c.h.b16 %v5504
  %v5800 = vunpack.c.l.b16 %v5505
  %v5801 = vunpack.c.h.b16 %v5505
  %v5802 = vunpack.c.l.b16 %v5506
  %v5803 = vunpack.c.l.b16 %v5507
  %v5804 = vunpack.c.h.b16 %v5507
  %v5805 = vunpack.c.l.b16 %v5508
  %v5806 = vunpack.c.h.b16 %v5508
  %v5807 = vunpack.c.l.b16 %v5509
  %v5808 = vunpack.c.l.b16 %v5510
  %v5809 = vunpack.c.h.b16 %v5510
  %v5810 = vunpack.c.l.b16 %v5511
  %v5811 = vunpack.c.h.b16 %v5511
  %v5812 = vunpack.c.l.b16 %v5512
  %v5813 = vunpack.c.l.b16 %v5513
  %v5814 = vunpack.c.h.b16 %v5513
  %v5815 = vunpack.c.l.b16 %v5514
  %v5816 = vunpack.c.h.b16 %v5514
  %v5817 = vunpack.c.l.b16 %v5515
  %v5818 = vunpack.c.l.b16 %v5516
  %v5819 = vunpack.c.h.b16 %v5516
  %v5820 = vunpack.c.l.b16 %v5517
  %v5821 = vunpack.c.h.b16 %v5517
  %v5822 = vunpack.c.l.b16 %v5518
  %v5823 = vunpack.c.l.b16 %v5519
  %v5824 = vunpack.c.h.b16 %v5519
  %v5825 = vunpack.c.l.b16 %v5520
  %v5826 = vunpack.c.h.b16 %v5520
  %v5827 = vunpack.c.l.b16 %v5521
  %v5828 = vunpack.c.l.b16 %v5522
  %v5829 = vunpack.c.h.b16 %v5522
  %v5830 = vunpack.c.l.b16 %v5523
  %v5831 = vunpack.c.h.b16 %v5523
  %v5832 = vunpack.c.l.b16 %v5524
  %v5833 = vunpack.c.l.b16 %v5525
  %v5834 = vunpack.c.h.b16 %v5525
  %v5835 = vunpack.c.l.b16 %v5526
  %v5836 = vunpack.c.h.b16 %v5526
  %v5837 = vunpack.c.l.b16 %v5527
  %v5838 = vunpack.c.l.b16 %v5528
  %v5839 = vunpack.c.h.b16 %v5528
  %v5840 = vunpack.c.l.b16 %v5529
  %v5841 = vunpack.c.h.b16 %v5529
  %v5842 = vunpack.c.l.b16 %v5530
  %v5843 = vunpack.c.l.b16 %v5531
  %v5844 = vunpack.c.h.b16 %v5531
  %v5845 = vunpack.c.l.b16 %v5532
  %v5846 = vunpack.c.h.b16 %v5532
  %v5847 = vunpack.c.l.b16 %v5533
  %v5848 = vunpack.c.l.b16 %v5534
  %v5849 = vunpack.c.h.b16 %v5534
  %v5850 = vunpack.c.l.b16 %v5535
  %v5851 = vunpack.c.h.b16 %v5535
  %v5852 = vunpack.c.l.b16 %v5536
  %v5853 = vunpack.c.l.b16 %v5537
  %v5854 = vunpack.c.h.b16 %v5537
  %v5855 = vunpack.c.l.b16 %v5538
  %v5856 = vunpack.c.h.b16 %v5538
  %v5857 = vunpack.c.l.b16 %v5539
  %v5858 = vunpack.c.l.b16 %v5540
  %v5859 = vunpack.c.h.b16 %v5540
  %v5860 = vunpack.c.l.b16 %v5541
  %v5861 = vunpack.c.h.b16 %v5541
  %v5862 = vunpack.c.l.b16 %v5542
  %v5863 = vunpack.c.l.b16 %v5543
  %v5864 = vunpack.c.h.b16 %v5543
  %v5865 = vunpack.c.l.b16 %v5544
  %v5866 = vunpack.c.h.b16 %v5544
  %v5867 = vunpack.c.l.b16 %v5545
  %v5868 = vunpack.c.l.b16 %v5546
  %v5869 = vunpack.c.h.b16 %v5546
  %v5870 = vunpack.c.l.b16 %v5547
  %v5871 = vunpack.c.h.b16 %v5547
  %v5872 = vunpack.c.l.b16 %v5548
  %v5873 = vunpack.c.l.b16 %v5549
  %v5874 = vunpack.c.h.b16 %v5549
  %v5875 = vunpack.c.l.b16 %v5550
  %v5876 = vunpack.c.h.b16 %v5550
  %v5877 = vunpack.c.l.b16 %v5551
  %v5878 = vunpack.c.l.b16 %v5552
  %v5879 = vunpack.c.h.b16 %v5552
  %v5880 = vunpack.c.l.b16 %v5553
  %v5881 = vunpack.c.h.b16 %v5553
  %v5882 = vunpack.c.l.b16 %v5554
  %v5883 = vpack.c.b16 %v5728, %v5723
  %v5884 = vpack.c.b16 %v5729, %v5724
  %v5885 = vpack.c.b16 %v5730, %v5725
  %v5886 = vpack.c.b16 %v5731, %v5726
  %v5887 = vpack.c.b16 %v5732, %v5727
  %v5888 = vpack.c.b16 %v5738, %v5733
  %v5889 = vpack.c.b16 %v5739, %v5734
  %v5890 = vpack.c.b16 %v5740, %v5735
  %v5891 = vpack.c.b16 %v5741, %v5736
  %v5892 = vpack.c.b16 %v5742, %v5737
  %v5893 = vpack.c.b16 %v5748, %v5743
  %v5894 = vpack.c.b16 %v5749, %v5744
  %v5895 = vpack.c.b16 %v5750, %v5745
  %v5896 = vpack.c.b16 %v5751, %v5746
  %v5897 = vpack.c.b16 %v5752, %v5747
  %v5898 = vpack.c.b16 %v5758, %v5753
  %v5899 = vpack.c.b16 %v5759, %v5754
  %v5900 = vpack.c.b16 %v5760, %v5755
  %v5901 = vpack.c.b16 %v5761, %v5756
  %v5902 = vpack.c.b16 %v5762, %v5757
  %v5903 = vpack.c.b16 %v5768, %v5763
  %v5904 = vpack.c.b16 %v5769, %v5764
  %v5905 = vpack.c.b16 %v5770, %v5765
  %v5906 = vpack.c.b16 %v5771, %v5766
  %v5907 = vpack.c.b16 %v5772, %v5767
  %v5908 = vpack.c.b16 %v5778, %v5773
  %v5909 = vpack.c.b16 %v5779, %v5774
  %v5910 = vpack.c.b16 %v5780, %v5775
  %v5911 = vpack.c.b16 %v5781, %v5776
  %v5912 = vpack.c.b16 %v5782, %v5777
  %v5913 = vpack.c.b16 %v5788, %v5783
  %v5914 = vpack.c.b16 %v5789, %v5784
  %v5915 = vpack.c.b16 %v5790, %v5785
  %v5916 = vpack.c.b16 %v5791, %v5786
  %v5917 = vpack.c.b16 %v5792, %v5787
  %v5918 = vpack.c.b16 %v5798, %v5793
  %v5919 = vpack.c.b16 %v5799, %v5794
  %v5920 = vpack.c.b16 %v5800, %v5795
  %v5921 = vpack.c.b16 %v5801, %v5796
  %v5922 = vpack.c.b16 %v5802, %v5797
  %v5923 = vpack.c.b16 %v5808, %v5803
  %v5924 = vpack.c.b16 %v5809, %v5804
  %v5925 = vpack.c.b16 %v5810, %v5805
  %v5926 = vpack.c.b16 %v5811, %v5806
  %v5927 = vpack.c.b16 %v5812, %v5807
  %v5928 = vpack.c.b16 %v5818, %v5813
  %v5929 = vpack.c.b16 %v5819, %v5814
  %v5930 = vpack.c.b16 %v5820, %v5815
  %v5931 = vpack.c.b16 %v5821, %v5816
  %v5932 = vpack.c.b16 %v5822, %v5817
  %v5933 = vpack.c.b16 %v5828, %v5823
  %v5934 = vpack.c.b16 %v5829, %v5824
  %v5935 = vpack.c.b16 %v5830, %v5825
  %v5936 = vpack.c.b16 %v5831, %v5826
  %v5937 = vpack.c.b16 %v5832, %v5827
  %v5938 = vpack.c.b16 %v5838, %v5833
  %v5939 = vpack.c.b16 %v5839, %v5834
  %v5940 = vpack.c.b16 %v5840, %v5835
  %v5941 = vpack.c.b16 %v5841, %v5836
  %v5942 = vpack.c.b16 %v5842, %v5837
  %v5943 = vpack.c.b16 %v5848, %v5843
  %v5944 = vpack.c.b16 %v5849, %v5844
  %v5945 = vpack.c.b16 %v5850, %v5845
  %v5946 = vpack.c.b16 %v5851, %v5846
  %v5947 = vpack.c.b16 %v5852, %v5847
  %v5948 = vpack.c.b16 %v5858, %v5853
  %v5949 = vpack.c.b16 %v5859, %v5854
  %v5950 = vpack.c.b16 %v5860, %v5855
  %v5951 = vpack.c.b16 %v5861, %v5856
  %v5952 = vpack.c.b16 %v5862, %v5857
  %v5953 = vpack.c.b16 %v5868, %v5863
  %v5954 = vpack.c.b16 %v5869, %v5864
  %v5955 = vpack.c.b16 %v5870, %v5865
  %v5956 = vpack.c.b16 %v5871, %v5866
  %v5957 = vpack.c.b16 %v5872, %v5867
  %v5958 = vpack.c.b16 %v5878, %v5873
  %v5959 = vpack.c.b16 %v5879, %v5874
  %v5960 = vpack.c.b16 %v5880, %v5875
  %v5961 = vpack.c.b16 %v5881, %v5876
  %v5962 = vpack.c.b16 %v5882, %v5877
  %v6099 = vunpack.c.l.b16 %v5555
  %v6100 = vunpack.c.l.b16 %v5556
  %v6101 = vunpack.c.l.b16 %v5557
  %v6102 = vunpack.c.l.b16 %v5558
  %v6103 = vunpack.c.l.b16 %v5559
  %v6104 = vunpack.c.l.b16 %v5560
  %v6105 = vunpack.c.l.b16 %v5561
  %v6106 = vunpack.c.l.b16 %v5562
  %v6107 = vunpack.c.l.b16 %v5563
  %v6108 = vunpack.c.l.b16 %v5564
  %v6109 = vunpack.c.l.b16 %v5565
  %v6110 = vunpack.c.l.b16 %v5566
  %v6111 = vunpack.c.l.b16 %v5567
  %v6112 = vunpack.c.l.b16 %v5568
  %v6113 = vunpack.c.l.b16 %v5569
  %v6114 = vunpack.c.l.b16 %v5570
  %v6115 = vunpack.c.l.b16 %v5571
  %v6116 = vunpack.c.l.b16 %v5572
  %v6117 = vunpack.c.l.b16 %v5573
  %v6118 = vunpack.c.l.b16 %v5574
  %v6119 = vunpack.c.l.b16 %v5575
  %v6120 = vunpack.c.l.b16 %v5576
  %v6121 = vunpack.c.l.b16 %v5577
  %v6122 = vunpack.c.l.b16 %v5578
  %v6123 = vunpack.c.l.b16 %v5579
  %v6124 = vunpack.c.l.b16 %v5580
  %v6125 = vunpack.c.l.b16 %v5581
  %v6126 = vunpack.c.l.b16 %v5582
  %v6127 = vunpack.c.l.b16 %v5583
  %v6128 = vunpack.c.l.b16 %v5584
  %v6129 = vunpack.c.l.b16 %v5585
  %v6130 = vunpack.c.l.b16 %v5586
  %v6131 = vunpack.c.l.b16 %v5587
  %v6132 = vunpack.c.l.b16 %v5588
  %v6133 = vunpack.c.l.b16 %v5589
  %v6134 = vunpack.c.l.b16 %v5590
  %v6135 = vunpack.c.l.b16 %v5591
  %v6136 = vunpack.c.l.b16 %v5592
  %v6137 = vunpack.c.l.b16 %v5593
  %v6138 = vunpack.c.l.b16 %v5594
  %v6139 = vunpack.c.l.b16 %v5595
  %v6140 = vunpack.c.l.b16 %v5596
  %v6141 = vunpack.c.l.b16 %v5597
  %v6142 = vunpack.c.l.b16 %v5598
  %v6143 = vunpack.c.l.b16 %v5599
  %v6144 = vunpack.c.l.b16 %v5600
  %v6145 = vunpack.c.l.b16 %v5601
  %v6146 = vunpack.c.l.b16 %v5602
  %v6147 = vunpack.c.l.b16 %v5603
  %v6148 = vunpack.c.l.b16 %v5604
  %v6149 = vunpack.c.l.b16 %v5605
  %v6150 = vunpack.c.l.b16 %v5606
  %v6151 = vunpack.c.l.b16 %v5607
  %v6152 = vunpack.c.l.b16 %v5608
  %v6153 = vunpack.c.l.b16 %v5609
  %v6154 = vunpack.c.l.b16 %v5610
  %v6155 = vunpack.c.l.b16 %v5611
  %v6156 = vunpack.c.l.b16 %v5612
  %v6157 = vunpack.c.l.b16 %v5613
  %v6158 = vunpack.c.l.b16 %v5614
  %v6159 = vunpack.c.l.b16 %v5615
  %v6160 = vunpack.c.l.b16 %v5616
  %v6161 = vunpack.c.l.b16 %v5617
  %v6162 = vunpack.c.l.b16 %v5618
  %v6163 = vunpack.c.l.b16 %v5619
  %v6164 = vunpack.c.l.b16 %v5620
  %v6165 = vunpack.c.l.b16 %v5621
  %v6166 = vunpack.c.l.b16 %v5622
  %v6167 = vunpack.c.l.b16 %v5623
  %v6168 = vunpack.c.l.b16 %v5624
  %v6169 = vunpack.c.l.b16 %v5625
  %v6170 = vunpack.c.l.b16 %v5626
  %v6171 = vpack.c.b16 %v6100, %v6099
  %v6172 = vpack.c.b16 %v6102, %v6101
  %v6173 = vpack.c.b16 %v6104, %v6103
  %v6174 = vpack.c.b16 %v6106, %v6105
  %v6175 = vpack.c.b16 %v6108, %v6107
  %v6176 = vpack.c.b16 %v6110, %v6109
  %v6177 = vpack.c.b16 %v6112, %v6111
  %v6178 = vpack.c.b16 %v6114, %v6113
  %v6179 = vpack.c.b16 %v6116, %v6115
  %v6180 = vpack.c.b16 %v6118, %v6117
  %v6181 = vpack.c.b16 %v6120, %v6119
  %v6182 = vpack.c.b16 %v6122, %v6121
  %v6183 = vpack.c.b16 %v6124, %v6123
  %v6184 = vpack.c.b16 %v6126, %v6125
  %v6185 = vpack.c.b16 %v6128, %v6127
  %v6186 = vpack.c.b16 %v6130, %v6129
  %v6187 = vpack.c.b16 %v6132, %v6131
  %v6188 = vpack.c.b16 %v6134, %v6133
  %v6189 = vpack.c.b16 %v6136, %v6135
  %v6190 = vpack.c.b16 %v6138, %v6137
  %v6191 = vpack.c.b16 %v6140, %v6139
  %v6192 = vpack.c.b16 %v6142, %v6141
  %v6193 = vpack.c.b16 %v6144, %v6143
  %v6194 = vpack.c.b16 %v6146, %v6145
  %v6195 = vpack.c.b16 %v6148, %v6147
  %v6196 = vpack.c.b16 %v6150, %v6149
  %v6197 = vpack.c.b16 %v6152, %v6151
  %v6198 = vpack.c.b16 %v6154, %v6153
  %v6199 = vpack.c.b16 %v6156, %v6155
  %v6200 = vpack.c.b16 %v6158, %v6157
  %v6201 = vpack.c.b16 %v6160, %v6159
  %v6202 = vpack.c.b16 %v6162, %v6161
  %v6203 = vpack.c.b16 %v6164, %v6163
  %v6204 = vpack.c.b16 %v6166, %v6165
  %v6205 = vpack.c.b16 %v6168, %v6167
  %v6206 = vpack.c.b16 %v6170, %v6169
  %vm6243 = vcmask 523264
  %v6245 = vsel %vm6243, %v5887, 0
  %v6248 = vsel %vm6243, %v5892, 0
  %v6251 = vsel %vm6243, %v5897, 0
  %v6254 = vsel %vm6243, %v5902, 0
  %v6257 = vsel %vm6243, %v5907, 0
  %v6260 = vsel %vm6243, %v5912, 0
  %v6263 = vsel %vm6243, %v5917, 0
  %v6266 = vsel %vm6243, %v5922, 0
  %v6269 = vsel %vm6243, %v5927, 0
  %v6272 = vsel %vm6243, %v5932, 0
  %v6275 = vsel %vm6243, %v5937, 0
  %v6278 = vsel %vm6243, %v5942, 0
  %v6281 = vsel %vm6243, %v5947, 0
  %v6284 = vsel %vm6243, %v5952, 0
  %v6287 = vsel %vm6243, %v5957, 0
  %v6290 = vsel %vm6243, %v5962, 0
  %6292 = vmatpush.bf16.msra.mxu0 %v6178
  %6293 = vmatpush.bf16.msra.mxu0 %v6177
  %6294 = vmatpush.bf16.msra.mxu0 %v6176
  %6295 = vmatpush.bf16.msra.mxu0 %v6175
  %6296 = vmatpush.bf16.msra.mxu0 %v6174
  %6297 = vmatpush.bf16.msra.mxu0 %v6173
  %6298 = vmatpush.bf16.msra.mxu0 %v6172
  %6299 = vmatpush.bf16.msra.mxu0 %v6171
  %6300 = vmatmul.bf16.gmra.mxu0 %v5883
  %v6301 = vpop.f32.mrf.mxu0
  %v6302 = vadd.f32 0.0, %v6301
  %v6303 = vpop.f32.mrf.mxu0
  %v6304 = vadd.f32 0.0, %v6303
  %6305 = vmatmul.bf16.gmra.mxu0 %v5888
  %v6306 = vpop.f32.mrf.mxu0
  %v6307 = vadd.f32 0.0, %v6306
  %v6308 = vpop.f32.mrf.mxu0
  %v6309 = vadd.f32 0.0, %v6308
  %6310 = vmatmul.bf16.gmra.mxu0 %v5893
  %v6311 = vpop.f32.mrf.mxu0
  %v6312 = vadd.f32 0.0, %v6311
  %v6313 = vpop.f32.mrf.mxu0
  %v6314 = vadd.f32 0.0, %v6313
  %6315 = vmatmul.bf16.gmra.mxu0 %v5898
  %v6316 = vpop.f32.mrf.mxu0
  %v6317 = vadd.f32 0.0, %v6316
  %v6318 = vpop.f32.mrf.mxu0
  %v6319 = vadd.f32 0.0, %v6318
  %6320 = vmatmul.bf16.gmra.mxu0 %v5903
  %v6321 = vpop.f32.mrf.mxu0
  %v6322 = vadd.f32 0.0, %v6321
  %v6323 = vpop.f32.mrf.mxu0
  %v6324 = vadd.f32 0.0, %v6323
  %6325 = vmatmul.bf16.gmra.mxu0 %v5908
  %v6326 = vpop.f32.mrf.mxu0
  %v6327 = vadd.f32 0.0, %v6326
  %v6328 = vpop.f32.mrf.mxu0
  %v6329 = vadd.f32 0.0, %v6328
  %6330 = vmatmul.bf16.gmra.mxu0 %v5913
  %v6331 = vpop.f32.mrf.mxu0
  %v6332 = vadd.f32 0.0, %v6331
  %v6333 = vpop.f32.mrf.mxu0
  %v6334 = vadd.f32 0.0, %v6333
  %6335 = vmatmul.bf16.gmra.mxu0 %v5918
  %v6336 = vpop.f32.mrf.mxu0
  %v6337 = vadd.f32 0.0, %v6336
  %v6338 = vpop.f32.mrf.mxu0
  %v6339 = vadd.f32 0.0, %v6338
  %6340 = vmatmul.bf16.gmra.mxu0 %v5923
  %v6341 = vpop.f32.mrf.mxu0
  %v6342 = vadd.f32 0.0, %v6341
  %v6343 = vpop.f32.mrf.mxu0
  %v6344 = vadd.f32 0.0, %v6343
  %6345 = vmatmul.bf16.gmra.mxu0 %v5928
  %v6346 = vpop.f32.mrf.mxu0
  %v6347 = vadd.f32 0.0, %v6346
  %v6348 = vpop.f32.mrf.mxu0
  %v6349 = vadd.f32 0.0, %v6348
  %6350 = vmatmul.bf16.gmra.mxu0 %v5933
  %v6351 = vpop.f32.mrf.mxu0
  %v6352 = vadd.f32 0.0, %v6351
  %v6353 = vpop.f32.mrf.mxu0
  %v6354 = vadd.f32 0.0, %v6353
  %6355 = vmatmul.bf16.gmra.mxu0 %v5938
  %v6356 = vpop.f32.mrf.mxu0
  %v6357 = vadd.f32 0.0, %v6356
  %v6358 = vpop.f32.mrf.mxu0
  %v6359 = vadd.f32 0.0, %v6358
  %6360 = vmatmul.bf16.gmra.mxu0 %v5943
  %v6361 = vpop.f32.mrf.mxu0
  %v6362 = vadd.f32 0.0, %v6361
  %v6363 = vpop.f32.mrf.mxu0
  %v6364 = vadd.f32 0.0, %v6363
  %6365 = vmatmul.bf16.gmra.mxu0 %v5948
  %v6366 = vpop.f32.mrf.mxu0
  %v6367 = vadd.f32 0.0, %v6366
  %v6368 = vpop.f32.mrf.mxu0
  %v6369 = vadd.f32 0.0, %v6368
  %6370 = vmatmul.bf16.gmra.mxu0 %v5953
  %v6371 = vpop.f32.mrf.mxu0
  %v6372 = vadd.f32 0.0, %v6371
  %v6373 = vpop.f32.mrf.mxu0
  %v6374 = vadd.f32 0.0, %v6373
  %6375 = vmatmul.bf16.gmra.mxu0 %v5958
  %v6376 = vpop.f32.mrf.mxu0
  %v6377 = vadd.f32 0.0, %v6376
  %v6378 = vpop.f32.mrf.mxu0
  %v6379 = vadd.f32 0.0, %v6378
  %6380 = vdwg.mxu0
  %6381 = vmatpush.bf16.msra.mxu0 %v6186
  %6382 = vmatpush.bf16.msra.mxu0 %v6185
  %6383 = vmatpush.bf16.msra.mxu0 %v6184
  %6384 = vmatpush.bf16.msra.mxu0 %v6183
  %6385 = vmatpush.bf16.msra.mxu0 %v6182
  %6386 = vmatpush.bf16.msra.mxu0 %v6181
  %6387 = vmatpush.bf16.msra.mxu0 %v6180
  %6388 = vmatpush.bf16.msra.mxu0 %v6179
  %6389 = vmatmul.bf16.gmra.mxu0 %v5884
  %v6390 = vpop.f32.mrf.mxu0
  %v6391 = vadd.f32 %v6302, %v6390
  %v6392 = vpop.f32.mrf.mxu0
  %v6393 = vadd.f32 %v6304, %v6392
  %6394 = vmatmul.bf16.gmra.mxu0 %v5889
  %v6395 = vpop.f32.mrf.mxu0
  %v6396 = vadd.f32 %v6307, %v6395
  %v6397 = vpop.f32.mrf.mxu0
  %v6398 = vadd.f32 %v6309, %v6397
  %6399 = vmatmul.bf16.gmra.mxu0 %v5894
  %v6400 = vpop.f32.mrf.mxu0
  %v6401 = vadd.f32 %v6312, %v6400
  %v6402 = vpop.f32.mrf.mxu0
  %v6403 = vadd.f32 %v6314, %v6402
  %6404 = vmatmul.bf16.gmra.mxu0 %v5899
  %v6405 = vpop.f32.mrf.mxu0
  %v6406 = vadd.f32 %v6317, %v6405
  %v6407 = vpop.f32.mrf.mxu0
  %v6408 = vadd.f32 %v6319, %v6407
  %6409 = vmatmul.bf16.gmra.mxu0 %v5904
  %v6410 = vpop.f32.mrf.mxu0
  %v6411 = vadd.f32 %v6322, %v6410
  %v6412 = vpop.f32.mrf.mxu0
  %v6413 = vadd.f32 %v6324, %v6412
  %6414 = vmatmul.bf16.gmra.mxu0 %v5909
  %v6415 = vpop.f32.mrf.mxu0
  %v6416 = vadd.f32 %v6327, %v6415
  %v6417 = vpop.f32.mrf.mxu0
  %v6418 = vadd.f32 %v6329, %v6417
  %6419 = vmatmul.bf16.gmra.mxu0 %v5914
  %v6420 = vpop.f32.mrf.mxu0
  %v6421 = vadd.f32 %v6332, %v6420
  %v6422 = vpop.f32.mrf.mxu0
  %v6423 = vadd.f32 %v6334, %v6422
  %6424 = vmatmul.bf16.gmra.mxu0 %v5919
  %v6425 = vpop.f32.mrf.mxu0
  %v6426 = vadd.f32 %v6337, %v6425
  %v6427 = vpop.f32.mrf.mxu0
  %v6428 = vadd.f32 %v6339, %v6427
  %6429 = vmatmul.bf16.gmra.mxu0 %v5924
  %v6430 = vpop.f32.mrf.mxu0
  %v6431 = vadd.f32 %v6342, %v6430
  %v6432 = vpop.f32.mrf.mxu0
  %v6433 = vadd.f32 %v6344, %v6432
  %6434 = vmatmul.bf16.gmra.mxu0 %v5929
  %v6435 = vpop.f32.mrf.mxu0
  %v6436 = vadd.f32 %v6347, %v6435
  %v6437 = vpop.f32.mrf.mxu0
  %v6438 = vadd.f32 %v6349, %v6437
  %6439 = vmatmul.bf16.gmra.mxu0 %v5934
  %v6440 = vpop.f32.mrf.mxu0
  %v6441 = vadd.f32 %v6352, %v6440
  %v6442 = vpop.f32.mrf.mxu0
  %v6443 = vadd.f32 %v6354, %v6442
  %6444 = vmatmul.bf16.gmra.mxu0 %v5939
  %v6445 = vpop.f32.mrf.mxu0
  %v6446 = vadd.f32 %v6357, %v6445
  %v6447 = vpop.f32.mrf.mxu0
  %v6448 = vadd.f32 %v6359, %v6447
  %6449 = vmatmul.bf16.gmra.mxu0 %v5944
  %v6450 = vpop.f32.mrf.mxu0
  %v6451 = vadd.f32 %v6362, %v6450
  %v6452 = vpop.f32.mrf.mxu0
  %v6453 = vadd.f32 %v6364, %v6452
  %6454 = vmatmul.bf16.gmra.mxu0 %v5949
  %v6455 = vpop.f32.mrf.mxu0
  %v6456 = vadd.f32 %v6367, %v6455
  %v6457 = vpop.f32.mrf.mxu0
  %v6458 = vadd.f32 %v6369, %v6457
  %6459 = vmatmul.bf16.gmra.mxu0 %v5954
  %v6460 = vpop.f32.mrf.mxu0
  %v6461 = vadd.f32 %v6372, %v6460
  %v6462 = vpop.f32.mrf.mxu0
  %v6463 = vadd.f32 %v6374, %v6462
  %6464 = vmatmul.bf16.gmra.mxu0 %v5959
  %v6465 = vpop.f32.mrf.mxu0
  %v6466 = vadd.f32 %v6377, %v6465
  %v6467 = vpop.f32.mrf.mxu0
  %v6468 = vadd.f32 %v6379, %v6467
  %6469 = vdwg.mxu0
  %6470 = vmatpush.bf16.msra.mxu0 %v6194
  %6471 = vmatpush.bf16.msra.mxu0 %v6193
  %6472 = vmatpush.bf16.msra.mxu0 %v6192
  %6473 = vmatpush.bf16.msra.mxu0 %v6191
  %6474 = vmatpush.bf16.msra.mxu0 %v6190
  %6475 = vmatpush.bf16.msra.mxu0 %v6189
  %6476 = vmatpush.bf16.msra.mxu0 %v6188
  %6477 = vmatpush.bf16.msra.mxu0 %v6187
  %6478 = vmatmul.bf16.gmra.mxu0 %v5885
  %v6479 = vpop.f32.mrf.mxu0
  %v6480 = vadd.f32 %v6391, %v6479
  %v6481 = vpop.f32.mrf.mxu0
  %v6482 = vadd.f32 %v6393, %v6481
  %6483 = vmatmul.bf16.gmra.mxu0 %v5890
  %v6484 = vpop.f32.mrf.mxu0
  %v6485 = vadd.f32 %v6396, %v6484
  %v6486 = vpop.f32.mrf.mxu0
  %v6487 = vadd.f32 %v6398, %v6486
  %6488 = vmatmul.bf16.gmra.mxu0 %v5895
  %v6489 = vpop.f32.mrf.mxu0
  %v6490 = vadd.f32 %v6401, %v6489
  %v6491 = vpop.f32.mrf.mxu0
  %v6492 = vadd.f32 %v6403, %v6491
  %6493 = vmatmul.bf16.gmra.mxu0 %v5900
  %v6494 = vpop.f32.mrf.mxu0
  %v6495 = vadd.f32 %v6406, %v6494
  %v6496 = vpop.f32.mrf.mxu0
  %v6497 = vadd.f32 %v6408, %v6496
  %6498 = vmatmul.bf16.gmra.mxu0 %v5905
  %v6499 = vpop.f32.mrf.mxu0
  %v6500 = vadd.f32 %v6411, %v6499
  %v6501 = vpop.f32.mrf.mxu0
  %v6502 = vadd.f32 %v6413, %v6501
  %6503 = vmatmul.bf16.gmra.mxu0 %v5910
  %v6504 = vpop.f32.mrf.mxu0
  %v6505 = vadd.f32 %v6416, %v6504
  %v6506 = vpop.f32.mrf.mxu0
  %v6507 = vadd.f32 %v6418, %v6506
  %6508 = vmatmul.bf16.gmra.mxu0 %v5915
  %v6509 = vpop.f32.mrf.mxu0
  %v6510 = vadd.f32 %v6421, %v6509
  %v6511 = vpop.f32.mrf.mxu0
  %v6512 = vadd.f32 %v6423, %v6511
  %6513 = vmatmul.bf16.gmra.mxu0 %v5920
  %v6514 = vpop.f32.mrf.mxu0
  %v6515 = vadd.f32 %v6426, %v6514
  %v6516 = vpop.f32.mrf.mxu0
  %v6517 = vadd.f32 %v6428, %v6516
  %6518 = vmatmul.bf16.gmra.mxu0 %v5925
  %v6519 = vpop.f32.mrf.mxu0
  %v6520 = vadd.f32 %v6431, %v6519
  %v6521 = vpop.f32.mrf.mxu0
  %v6522 = vadd.f32 %v6433, %v6521
  %6523 = vmatmul.bf16.gmra.mxu0 %v5930
  %v6524 = vpop.f32.mrf.mxu0
  %v6525 = vadd.f32 %v6436, %v6524
  %v6526 = vpop.f32.mrf.mxu0
  %v6527 = vadd.f32 %v6438, %v6526
  %6528 = vmatmul.bf16.gmra.mxu0 %v5935
  %v6529 = vpop.f32.mrf.mxu0
  %v6530 = vadd.f32 %v6441, %v6529
  %v6531 = vpop.f32.mrf.mxu0
  %v6532 = vadd.f32 %v6443, %v6531
  %6533 = vmatmul.bf16.gmra.mxu0 %v5940
  %v6534 = vpop.f32.mrf.mxu0
  %v6535 = vadd.f32 %v6446, %v6534
  %v6536 = vpop.f32.mrf.mxu0
  %v6537 = vadd.f32 %v6448, %v6536
  %6538 = vmatmul.bf16.gmra.mxu0 %v5945
  %v6539 = vpop.f32.mrf.mxu0
  %v6540 = vadd.f32 %v6451, %v6539
  %v6541 = vpop.f32.mrf.mxu0
  %v6542 = vadd.f32 %v6453, %v6541
  %6543 = vmatmul.bf16.gmra.mxu0 %v5950
  %v6544 = vpop.f32.mrf.mxu0
  %v6545 = vadd.f32 %v6456, %v6544
  %v6546 = vpop.f32.mrf.mxu0
  %v6547 = vadd.f32 %v6458, %v6546
  %6548 = vmatmul.bf16.gmra.mxu0 %v5955
  %v6549 = vpop.f32.mrf.mxu0
  %v6550 = vadd.f32 %v6461, %v6549
  %v6551 = vpop.f32.mrf.mxu0
  %v6552 = vadd.f32 %v6463, %v6551
  %6553 = vmatmul.bf16.gmra.mxu0 %v5960
  %v6554 = vpop.f32.mrf.mxu0
  %v6555 = vadd.f32 %v6466, %v6554
  %v6556 = vpop.f32.mrf.mxu0
  %v6557 = vadd.f32 %v6468, %v6556
  %6558 = vdwg.mxu0
  %6559 = vmatpush.bf16.msra.mxu0 %v6202
  %6560 = vmatpush.bf16.msra.mxu0 %v6201
  %6561 = vmatpush.bf16.msra.mxu0 %v6200
  %6562 = vmatpush.bf16.msra.mxu0 %v6199
  %6563 = vmatpush.bf16.msra.mxu0 %v6198
  %6564 = vmatpush.bf16.msra.mxu0 %v6197
  %6565 = vmatpush.bf16.msra.mxu0 %v6196
  %6566 = vmatpush.bf16.msra.mxu0 %v6195
  %6567 = vmatmul.bf16.gmra.mxu0 %v5886
  %v6568 = vpop.f32.mrf.mxu0
  %v6569 = vadd.f32 %v6480, %v6568
  %v6570 = vpop.f32.mrf.mxu0
  %v6571 = vadd.f32 %v6482, %v6570
  %6572 = vmatmul.bf16.gmra.mxu0 %v5891
  %v6573 = vpop.f32.mrf.mxu0
  %v6574 = vadd.f32 %v6485, %v6573
  %v6575 = vpop.f32.mrf.mxu0
  %v6576 = vadd.f32 %v6487, %v6575
  %6577 = vmatmul.bf16.gmra.mxu0 %v5896
  %v6578 = vpop.f32.mrf.mxu0
  %v6579 = vadd.f32 %v6490, %v6578
  %v6580 = vpop.f32.mrf.mxu0
  %v6581 = vadd.f32 %v6492, %v6580
  %6582 = vmatmul.bf16.gmra.mxu0 %v5901
  %v6583 = vpop.f32.mrf.mxu0
  %v6584 = vadd.f32 %v6495, %v6583
  %v6585 = vpop.f32.mrf.mxu0
  %v6586 = vadd.f32 %v6497, %v6585
  %6587 = vmatmul.bf16.gmra.mxu0 %v5906
  %v6588 = vpop.f32.mrf.mxu0
  %v6589 = vadd.f32 %v6500, %v6588
  %v6590 = vpop.f32.mrf.mxu0
  %v6591 = vadd.f32 %v6502, %v6590
  %6592 = vmatmul.bf16.gmra.mxu0 %v5911
  %v6593 = vpop.f32.mrf.mxu0
  %v6594 = vadd.f32 %v6505, %v6593
  %v6595 = vpop.f32.mrf.mxu0
  %v6596 = vadd.f32 %v6507, %v6595
  %6597 = vmatmul.bf16.gmra.mxu0 %v5916
  %v6598 = vpop.f32.mrf.mxu0
  %v6599 = vadd.f32 %v6510, %v6598
  %v6600 = vpop.f32.mrf.mxu0
  %v6601 = vadd.f32 %v6512, %v6600
  %6602 = vmatmul.bf16.gmra.mxu0 %v5921
  %v6603 = vpop.f32.mrf.mxu0
  %v6604 = vadd.f32 %v6515, %v6603
  %v6605 = vpop.f32.mrf.mxu0
  %v6606 = vadd.f32 %v6517, %v6605
  %6607 = vmatmul.bf16.gmra.mxu0 %v5926
  %v6608 = vpop.f32.mrf.mxu0
  %v6609 = vadd.f32 %v6520, %v6608
  %v6610 = vpop.f32.mrf.mxu0
  %v6611 = vadd.f32 %v6522, %v6610
  %6612 = vmatmul.bf16.gmra.mxu0 %v5931
  %v6613 = vpop.f32.mrf.mxu0
  %v6614 = vadd.f32 %v6525, %v6613
  %v6615 = vpop.f32.mrf.mxu0
  %v6616 = vadd.f32 %v6527, %v6615
  %6617 = vmatmul.bf16.gmra.mxu0 %v5936
  %v6618 = vpop.f32.mrf.mxu0
  %v6619 = vadd.f32 %v6530, %v6618
  %v6620 = vpop.f32.mrf.mxu0
  %v6621 = vadd.f32 %v6532, %v6620
  %6622 = vmatmul.bf16.gmra.mxu0 %v5941
  %v6623 = vpop.f32.mrf.mxu0
  %v6624 = vadd.f32 %v6535, %v6623
  %v6625 = vpop.f32.mrf.mxu0
  %v6626 = vadd.f32 %v6537, %v6625
  %6627 = vmatmul.bf16.gmra.mxu0 %v5946
  %v6628 = vpop.f32.mrf.mxu0
  %v6629 = vadd.f32 %v6540, %v6628
  %v6630 = vpop.f32.mrf.mxu0
  %v6631 = vadd.f32 %v6542, %v6630
  %6632 = vmatmul.bf16.gmra.mxu0 %v5951
  %v6633 = vpop.f32.mrf.mxu0
  %v6634 = vadd.f32 %v6545, %v6633
  %v6635 = vpop.f32.mrf.mxu0
  %v6636 = vadd.f32 %v6547, %v6635
  %6637 = vmatmul.bf16.gmra.mxu0 %v5956
  %v6638 = vpop.f32.mrf.mxu0
  %v6639 = vadd.f32 %v6550, %v6638
  %v6640 = vpop.f32.mrf.mxu0
  %v6641 = vadd.f32 %v6552, %v6640
  %6642 = vmatmul.bf16.gmra.mxu0 %v5961
  %v6643 = vpop.f32.mrf.mxu0
  %v6644 = vadd.f32 %v6555, %v6643
  %v6645 = vpop.f32.mrf.mxu0
  %v6646 = vadd.f32 %v6557, %v6645
  %6647 = vdwg.mxu0
  %6648 = vmatpush.bf16.msra.mxu0 0
  %6649 = vmatpush.bf16.msra.mxu0 0
  %6650 = vmatpush.bf16.msra.mxu0 0
  %6651 = vmatpush.bf16.msra.mxu0 0
  %6652 = vmatpush.bf16.msra.mxu0 %v6206
  %6653 = vmatpush.bf16.msra.mxu0 %v6205
  %6654 = vmatpush.bf16.msra.mxu0 %v6204
  %6655 = vmatpush.bf16.msra.mxu0 %v6203
  %6656 = vmatmul.bf16.gmra.mxu0 %v6245
  %v6657 = vpop.f32.mrf.mxu0
  %v6658 = vadd.f32 %v6569, %v6657
  %v6659 = vpop.f32.mrf.mxu0
  %v6660 = vadd.f32 %v6571, %v6659
  %6661 = vmatmul.bf16.gmra.mxu0 %v6248
  %v6662 = vpop.f32.mrf.mxu0
  %v6663 = vadd.f32 %v6574, %v6662
  %v6664 = vpop.f32.mrf.mxu0
  %v6665 = vadd.f32 %v6576, %v6664
  %6666 = vmatmul.bf16.gmra.mxu0 %v6251
  %v6667 = vpop.f32.mrf.mxu0
  %v6668 = vadd.f32 %v6579, %v6667
  %v6669 = vpop.f32.mrf.mxu0
  %v6670 = vadd.f32 %v6581, %v6669
  %6671 = vmatmul.bf16.gmra.mxu0 %v6254
  %v6672 = vpop.f32.mrf.mxu0
  %v6673 = vadd.f32 %v6584, %v6672
  %v6674 = vpop.f32.mrf.mxu0
  %v6675 = vadd.f32 %v6586, %v6674
  %6676 = vmatmul.bf16.gmra.mxu0 %v6257
  %v6677 = vpop.f32.mrf.mxu0
  %v6678 = vadd.f32 %v6589, %v6677
  %v6679 = vpop.f32.mrf.mxu0
  %v6680 = vadd.f32 %v6591, %v6679
  %6681 = vmatmul.bf16.gmra.mxu0 %v6260
  %v6682 = vpop.f32.mrf.mxu0
  %v6683 = vadd.f32 %v6594, %v6682
  %v6684 = vpop.f32.mrf.mxu0
  %v6685 = vadd.f32 %v6596, %v6684
  %6686 = vmatmul.bf16.gmra.mxu0 %v6263
  %v6687 = vpop.f32.mrf.mxu0
  %v6688 = vadd.f32 %v6599, %v6687
  %v6689 = vpop.f32.mrf.mxu0
  %v6690 = vadd.f32 %v6601, %v6689
  %6691 = vmatmul.bf16.gmra.mxu0 %v6266
  %v6692 = vpop.f32.mrf.mxu0
  %v6693 = vadd.f32 %v6604, %v6692
  %v6694 = vpop.f32.mrf.mxu0
  %v6695 = vadd.f32 %v6606, %v6694
  %6696 = vmatmul.bf16.gmra.mxu0 %v6269
  %v6697 = vpop.f32.mrf.mxu0
  %v6698 = vadd.f32 %v6609, %v6697
  %v6699 = vpop.f32.mrf.mxu0
  %v6700 = vadd.f32 %v6611, %v6699
  %6701 = vmatmul.bf16.gmra.mxu0 %v6272
  %v6702 = vpop.f32.mrf.mxu0
  %v6703 = vadd.f32 %v6614, %v6702
  %v6704 = vpop.f32.mrf.mxu0
  %v6705 = vadd.f32 %v6616, %v6704
  %6706 = vmatmul.bf16.gmra.mxu0 %v6275
  %v6707 = vpop.f32.mrf.mxu0
  %v6708 = vadd.f32 %v6619, %v6707
  %v6709 = vpop.f32.mrf.mxu0
  %v6710 = vadd.f32 %v6621, %v6709
  %6711 = vmatmul.bf16.gmra.mxu0 %v6278
  %v6712 = vpop.f32.mrf.mxu0
  %v6713 = vadd.f32 %v6624, %v6712
  %v6714 = vpop.f32.mrf.mxu0
  %v6715 = vadd.f32 %v6626, %v6714
  %6716 = vmatmul.bf16.gmra.mxu0 %v6281
  %v6717 = vpop.f32.mrf.mxu0
  %v6718 = vadd.f32 %v6629, %v6717
  %v6719 = vpop.f32.mrf.mxu0
  %v6720 = vadd.f32 %v6631, %v6719
  %6721 = vmatmul.bf16.gmra.mxu0 %v6284
  %v6722 = vpop.f32.mrf.mxu0
  %v6723 = vadd.f32 %v6634, %v6722
  %v6724 = vpop.f32.mrf.mxu0
  %v6725 = vadd.f32 %v6636, %v6724
  %6726 = vmatmul.bf16.gmra.mxu0 %v6287
  %v6727 = vpop.f32.mrf.mxu0
  %v6728 = vadd.f32 %v6639, %v6727
  %v6729 = vpop.f32.mrf.mxu0
  %v6730 = vadd.f32 %v6641, %v6729
  %6731 = vmatmul.bf16.gmra.mxu0 %v6290
  %v6732 = vpop.f32.mrf.mxu0
  %v6733 = vadd.f32 %v6644, %v6732
  %v6734 = vpop.f32.mrf.mxu0
  %v6735 = vadd.f32 %v6646, %v6734
  %6736 = vdwg.mxu0
  %v6737 = vmax.f32 %v6658, %v6678
  %v6738 = vmax.f32 %v6660, %v6680
  %v6739 = vmax.f32 %v6663, %v6683
  %v6740 = vmax.f32 %v6665, %v6685
  %v6741 = vmax.f32 %v6668, %v6688
  %v6742 = vmax.f32 %v6670, %v6690
  %v6743 = vmax.f32 %v6673, %v6693
  %v6744 = vmax.f32 %v6675, %v6695
  %v6745 = vmax.f32 %v6698, %v6718
  %v6746 = vmax.f32 %v6700, %v6720
  %v6747 = vmax.f32 %v6703, %v6723
  %v6748 = vmax.f32 %v6705, %v6725
  %v6749 = vmax.f32 %v6708, %v6728
  %v6750 = vmax.f32 %v6710, %v6730
  %v6751 = vmax.f32 %v6713, %v6733
  %v6752 = vmax.f32 %v6715, %v6735
  %v6753 = vmax.f32 %v6737, %v6745
  %v6754 = vmax.f32 %v6738, %v6746
  %v6755 = vmax.f32 %v6739, %v6747
  %v6756 = vmax.f32 %v6740, %v6748
  %v6757 = vmax.f32 %v6741, %v6749
  %v6758 = vmax.f32 %v6742, %v6750
  %v6759 = vmax.f32 %v6743, %v6751
  %v6760 = vmax.f32 %v6744, %v6752
  %v6761 = vld [vmem:[%s4] sm:$0x1]
  %v6763 = vperm.slane %v6761, 0
  %v6765 = vadd.f32 %v6753, %v6763
  %v6766 = vadd.f32 %v6754, %v6763
  %v6767 = vadd.f32 %v6755, %v6763
  %v6768 = vadd.f32 %v6756, %v6763
  %v6769 = vadd.f32 %v6757, %v6763
  %v6770 = vadd.f32 %v6758, %v6763
  %v6771 = vadd.f32 %v6759, %v6763
  %v6772 = vadd.f32 %v6760, %v6763
  %v6773 = vmax.f32 %v6765, 0.0
  %v6774 = vmax.f32 %v6766, 0.0
  %v6775 = vmax.f32 %v6767, 0.0
  %v6776 = vmax.f32 %v6768, 0.0
  %v6777 = vmax.f32 %v6769, 0.0
  %v6778 = vmax.f32 %v6770, 0.0
  %v6779 = vmax.f32 %v6771, 0.0
  %v6780 = vmax.f32 %v6772, 0.0
  %v6781 = vpack.c.bf16 %v6773, %v6773
  %v6782 = vpack.c.bf16 %v6774, %v6774
  %v6783 = vpack.c.bf16 %v6775, %v6775
  %v6784 = vpack.c.bf16 %v6776, %v6776
  %v6785 = vpack.c.bf16 %v6777, %v6777
  %v6786 = vpack.c.bf16 %v6778, %v6778
  %v6787 = vpack.c.bf16 %v6779, %v6779
  %v6788 = vpack.c.bf16 %v6780, %v6780
  %vm6789 = vcmask 781312
  %6790 = vst.msk [vmem:[#allocation5] sm:$0xf] %vm6789, 0
  %6791 = vst.msk [vmem:[#allocation5 + $0x4] sm:$0xf] %vm6789, 0
  %6792 = vst.msk [vmem:[#allocation5 + $0x8] sm:$0xf] %vm6789, 0
  %6793 = vst.msk [vmem:[#allocation5 + $0xc] sm:$0xf] %vm6789, 0
  %6794 = vst.msk [vmem:[#allocation5 + $0x10] sm:$0xf] %vm6789, 0
  %6795 = vst.msk [vmem:[#allocation5 + $0x14] sm:$0xf] %vm6789, 0
  %6796 = vst.msk [vmem:[#allocation5 + $0x18] sm:$0xf] %vm6789, 0
  %6797 = vst.msk [vmem:[#allocation5 + $0x1c] sm:$0xf] %vm6789, 0
  %6798 = vst.msk [vmem:[#allocation5 + $0x20] sm:$0xf] %vm6789, 0
  %6799 = vst.msk [vmem:[#allocation5 + $0x24] sm:$0xf] %vm6789, 0
  %6800 = vst.msk [vmem:[#allocation5 + $0x28] sm:$0xf] %vm6789, 0
  %6801 = vst.msk [vmem:[#allocation5 + $0x2c] sm:$0xf] %vm6789, 0
  %6802 = vst.msk [vmem:[#allocation5 + $0x30] sm:$0xf] %vm6789, 0
  %6803 = vst.msk [vmem:[#allocation5 + $0x34] sm:$0xf] %vm6789, 0
  %6804 = vst.msk [vmem:[#allocation5 + $0x38] sm:$0xf] %vm6789, 0
  %6805 = vst.msk [vmem:[#allocation5 + $0x3c] sm:$0xf] %vm6789, 0
  %6806 = vst.msk [vmem:[#allocation5 + $0x40] sm:$0xf] %vm6789, 0
  %6807 = vst.msk [vmem:[#allocation5 + $0x44] sm:$0xf] %vm6789, 0
  %6808 = vst.msk [vmem:[#allocation5 + $0x48] sm:$0xf] %vm6789, 0
  %6809 = vst.msk [vmem:[#allocation5 + $0x4c] sm:$0xf] %vm6789, 0
  %6810 = vst.msk [vmem:[#allocation5 + $0x50] sm:$0xf] %vm6789, 0
  %6811 = vst.msk [vmem:[#allocation5 + $0x54] sm:$0xf] %vm6789, 0
  %6812 = vst.msk [vmem:[#allocation5 + $0x58] sm:$0xf] %vm6789, 0
  %6813 = vst.msk [vmem:[#allocation5 + $0x5c] sm:$0xf] %vm6789, 0
  %s6814 = scalar_lea.vmem [#allocation5], 72
  %6815 = vst.msk [vmem:[%s6814] sm:$0xf] %vm3933, %v6781
  %6816 = vst.msk [vmem:[%s6814 + $0x4] sm:$0xf] %vm3933, %v6782
  %6819 = vrot.lane.b32.xlu0 %v6781, 96
  %v6820 = vpop.permute.xlu0 %6819
  %6821 = vrot.lane.b32.xlu0 %v6782, 96
  %v6822 = vpop.permute.xlu0 %6821
  %s6825 = scalar_lea.vmem [#allocation5], 48
  %vm6826 = vcmask 781568
  %6827 = vst.msk [vmem:[%s6825] sm:$0xf] %vm6826, %v6820
  %6828 = vst.msk [vmem:[%s6825 + $0x4] sm:$0xf] %vm6826, %v6822
  %s6829 = scalar_lea.vmem [#allocation5], 32
  %6830 = vst.msk [vmem:[%s6829] sm:$0xf] %vm3933, %v6783
  %6831 = vst.msk [vmem:[%s6829 + $0x4] sm:$0xf] %vm3933, %v6784
  %6834 = vrot.lane.b32.xlu0 %v6783, 96
  %v6835 = vpop.permute.xlu0 %6834
  %6836 = vrot.lane.b32.xlu0 %v6784, 96
  %v6837 = vpop.permute.xlu0 %6836
  %s6840 = scalar_lea.vmem [#allocation5], 8
  %6841 = vst.msk [vmem:[%s6840] sm:$0xf] %vm6826, %v6835
  %6842 = vst.msk [vmem:[%s6840 + $0x4] sm:$0xf] %vm6826, %v6837
  %s6843 = scalar_lea.vmem [#allocation5], 80
  %6844 = vst.msk [vmem:[%s6843] sm:$0xf] %vm3933, %v6785
  %6845 = vst.msk [vmem:[%s6843 + $0x4] sm:$0xf] %vm3933, %v6786
  %6848 = vrot.lane.b32.xlu0 %v6785, 96
  %v6849 = vpop.permute.xlu0 %6848
  %6850 = vrot.lane.b32.xlu0 %v6786, 96
  %v6851 = vpop.permute.xlu0 %6850
  %s6854 = scalar_lea.vmem [#allocation5], 56
  %6855 = vst.msk [vmem:[%s6854] sm:$0xf] %vm6826, %v6849
  %6856 = vst.msk [vmem:[%s6854 + $0x4] sm:$0xf] %vm6826, %v6851
  %s6857 = scalar_lea.vmem [#allocation5], 40
  %6858 = vst.msk [vmem:[%s6857] sm:$0xf] %vm3933, %v6787
  %6859 = vst.msk [vmem:[%s6857 + $0x4] sm:$0xf] %vm3933, %v6788
  %6862 = vrot.lane.b32.xlu0 %v6787, 96
  %v6863 = vpop.permute.xlu0 %6862
  %6864 = vrot.lane.b32.xlu0 %v6788, 96
  %v6865 = vpop.permute.xlu0 %6864
  %s6868 = scalar_lea.vmem [#allocation5], 16
  %6869 = vst.msk [vmem:[%s6868] sm:$0xf] %vm6826, %v6863
  %6870 = vst.msk [vmem:[%s6868 + $0x4] sm:$0xf] %vm6826, %v6865
  %v6871 = vld [vmem:[#allocation5] sm:$0xf]
  %v6872 = vld [vmem:[#allocation5 + $0x4] sm:$0xf]
  %v6873 = vld [vmem:[#allocation5 + $0x8] sm:$0xf]
  %v6874 = vld [vmem:[#allocation5 + $0xc] sm:$0xf]
  %6875 = vst.msk [vmem:[#allocation6] sm:$0xf] %vm3933, %v6871
  %6876 = vst.msk [vmem:[#allocation6 + $0x14] sm:$0xf] %vm3933, %v6872
  %6877 = vst.msk [vmem:[#allocation6 + $0x28] sm:$0xf] %vm3933, %v6873
  %6878 = vst.msk [vmem:[#allocation6 + $0x3c] sm:$0xf] %vm3933, %v6874
  %s6879 = scalar_lea.vmem [#allocation5], 24
  %v6880 = vld [vmem:[%s6879] sm:$0xf]
  %v6881 = vld [vmem:[%s6879 + $0x4] sm:$0xf]
  %v6882 = vld [vmem:[%s6879 + $0x8] sm:$0xf]
  %v6883 = vld [vmem:[%s6879 + $0xc] sm:$0xf]
  %6888 = vrot.lane.b32.xlu0 %v6880, 64
  %v6889 = vpop.permute.xlu0 %6888
  %6890 = vrot.lane.b32.xlu0 %v6881, 64
  %v6891 = vpop.permute.xlu0 %6890
  %6892 = vrot.lane.b32.xlu0 %v6882, 64
  %v6893 = vpop.permute.xlu0 %6892
  %6894 = vrot.lane.b32.xlu0 %v6883, 64
  %v6895 = vpop.permute.xlu0 %6894
  %6900 = vst.msk [vmem:[#allocation6] sm:$0xf] %vm4103, %v6889
  %6901 = vst.msk [vmem:[#allocation6 + $0x14] sm:$0xf] %vm4103, %v6891
  %6902 = vst.msk [vmem:[#allocation6 + $0x28] sm:$0xf] %vm4103, %v6893
  %6903 = vst.msk [vmem:[#allocation6 + $0x3c] sm:$0xf] %vm4103, %v6895
  %v6904 = vld [vmem:[#allocation5] sm:$0xf]
  %v6905 = vld [vmem:[#allocation5 + $0x4] sm:$0xf]
  %v6906 = vld [vmem:[#allocation5 + $0x8] sm:$0xf]
  %v6907 = vld [vmem:[#allocation5 + $0xc] sm:$0xf]
  %6912 = vrot.lane.b32.xlu0 %v6904, 96
  %v6913 = vpop.permute.xlu0 %6912
  %6914 = vrot.lane.b32.xlu0 %v6905, 96
  %v6915 = vpop.permute.xlu0 %6914
  %6916 = vrot.lane.b32.xlu0 %v6906, 96
  %v6917 = vpop.permute.xlu0 %6916
  %6918 = vrot.lane.b32.xlu0 %v6907, 96
  %v6919 = vpop.permute.xlu0 %6918
  %6924 = vst.msk [vmem:[#allocation6 + $0x4] sm:$0xf] %vm3933, %v6913
  %6925 = vst.msk [vmem:[#allocation6 + $0x18] sm:$0xf] %vm3933, %v6915
  %6926 = vst.msk [vmem:[#allocation6 + $0x2c] sm:$0xf] %vm3933, %v6917
  %6927 = vst.msk [vmem:[#allocation6 + $0x40] sm:$0xf] %vm3933, %v6919
  %v6928 = vld [vmem:[%s6825] sm:$0xf]
  %v6929 = vld [vmem:[%s6825 + $0x4] sm:$0xf]
  %v6930 = vld [vmem:[%s6825 + $0x8] sm:$0xf]
  %v6931 = vld [vmem:[%s6825 + $0xc] sm:$0xf]
  %6936 = vrot.lane.b32.xlu0 %v6928, 64
  %v6937 = vpop.permute.xlu0 %6936
  %6938 = vrot.lane.b32.xlu0 %v6929, 64
  %v6939 = vpop.permute.xlu0 %6938
  %6940 = vrot.lane.b32.xlu0 %v6930, 64
  %v6941 = vpop.permute.xlu0 %6940
  %6942 = vrot.lane.b32.xlu0 %v6931, 64
  %v6943 = vpop.permute.xlu0 %6942
  %6948 = vst.msk [vmem:[#allocation6 + $0x4] sm:$0xf] %vm4103, %v6937
  %6949 = vst.msk [vmem:[#allocation6 + $0x18] sm:$0xf] %vm4103, %v6939
  %6950 = vst.msk [vmem:[#allocation6 + $0x2c] sm:$0xf] %vm4103, %v6941
  %6951 = vst.msk [vmem:[#allocation6 + $0x40] sm:$0xf] %vm4103, %v6943
  %v6952 = vld [vmem:[%s6814] sm:$0xf]
  %v6953 = vld [vmem:[%s6814 + $0x4] sm:$0xf]
  %v6954 = vld [vmem:[%s6814 + $0x8] sm:$0xf]
  %v6955 = vld [vmem:[%s6814 + $0xc] sm:$0xf]
  %6956 = vst.msk [vmem:[#allocation6 + $0x8] sm:$0xf] %vm3933, %v6952
  %6957 = vst.msk [vmem:[#allocation6 + $0x1c] sm:$0xf] %vm3933, %v6953
  %6958 = vst.msk [vmem:[#allocation6 + $0x30] sm:$0xf] %vm3933, %v6954
  %6959 = vst.msk [vmem:[#allocation6 + $0x44] sm:$0xf] %vm3933, %v6955
  %v6960 = vld [vmem:[%s6825] sm:$0xf]
  %v6961 = vld [vmem:[%s6825 + $0x4] sm:$0xf]
  %v6962 = vld [vmem:[%s6825 + $0x8] sm:$0xf]
  %v6963 = vld [vmem:[%s6825 + $0xc] sm:$0xf]
  %6968 = vrot.lane.b32.xlu0 %v6960, 32
  %v6969 = vpop.permute.xlu0 %6968
  %6970 = vrot.lane.b32.xlu0 %v6961, 32
  %v6971 = vpop.permute.xlu0 %6970
  %6972 = vrot.lane.b32.xlu0 %v6962, 32
  %v6973 = vpop.permute.xlu0 %6972
  %6974 = vrot.lane.b32.xlu0 %v6963, 32
  %v6975 = vpop.permute.xlu0 %6974
  %6980 = vst.msk [vmem:[#allocation6 + $0x8] sm:$0xf] %vm4103, %v6969
  %6981 = vst.msk [vmem:[#allocation6 + $0x1c] sm:$0xf] %vm4103, %v6971
  %6982 = vst.msk [vmem:[#allocation6 + $0x30] sm:$0xf] %vm4103, %v6973
  %6983 = vst.msk [vmem:[#allocation6 + $0x44] sm:$0xf] %vm4103, %v6975
  %v6984 = vld [vmem:[%s6840] sm:$0xf]
  %v6985 = vld [vmem:[%s6840 + $0x4] sm:$0xf]
  %v6986 = vld [vmem:[%s6840 + $0x8] sm:$0xf]
  %v6987 = vld [vmem:[%s6840 + $0xc] sm:$0xf]
  %6988 = vst.msk [vmem:[#allocation6 + $0xc] sm:$0xf] %vm3933, %v6984
  %6989 = vst.msk [vmem:[#allocation6 + $0x20] sm:$0xf] %vm3933, %v6985
  %6990 = vst.msk [vmem:[#allocation6 + $0x34] sm:$0xf] %vm3933, %v6986
  %6991 = vst.msk [vmem:[#allocation6 + $0x48] sm:$0xf] %vm3933, %v6987
  %v6992 = vld [vmem:[%s6829] sm:$0xf]
  %v6993 = vld [vmem:[%s6829 + $0x4] sm:$0xf]
  %v6994 = vld [vmem:[%s6829 + $0x8] sm:$0xf]
  %v6995 = vld [vmem:[%s6829 + $0xc] sm:$0xf]
  %7000 = vrot.lane.b32.xlu0 %v6992, 64
  %v7001 = vpop.permute.xlu0 %7000
  %7002 = vrot.lane.b32.xlu0 %v6993, 64
  %v7003 = vpop.permute.xlu0 %7002
  %7004 = vrot.lane.b32.xlu0 %v6994, 64
  %v7005 = vpop.permute.xlu0 %7004
  %7006 = vrot.lane.b32.xlu0 %v6995, 64
  %v7007 = vpop.permute.xlu0 %7006
  %7012 = vst.msk [vmem:[#allocation6 + $0xc] sm:$0xf] %vm4103, %v7001
  %7013 = vst.msk [vmem:[#allocation6 + $0x20] sm:$0xf] %vm4103, %v7003
  %7014 = vst.msk [vmem:[#allocation6 + $0x34] sm:$0xf] %vm4103, %v7005
  %7015 = vst.msk [vmem:[#allocation6 + $0x48] sm:$0xf] %vm4103, %v7007
  %v7016 = vld [vmem:[%s6840] sm:$0xf]
  %v7017 = vld [vmem:[%s6840 + $0x4] sm:$0xf]
  %v7018 = vld [vmem:[%s6840 + $0x8] sm:$0xf]
  %v7019 = vld [vmem:[%s6840 + $0xc] sm:$0xf]
  %7024 = vrot.lane.b32.xlu0 %v7016, 96
  %v7025 = vpop.permute.xlu0 %7024
  %7026 = vrot.lane.b32.xlu0 %v7017, 96
  %v7027 = vpop.permute.xlu0 %7026
  %7028 = vrot.lane.b32.xlu0 %v7018, 96
  %v7029 = vpop.permute.xlu0 %7028
  %7030 = vrot.lane.b32.xlu0 %v7019, 96
  %v7031 = vpop.permute.xlu0 %7030
  %7036 = vst.msk [vmem:[#allocation6 + $0x10] sm:$0xf] %vm3933, %v7025
  %7037 = vst.msk [vmem:[#allocation6 + $0x24] sm:$0xf] %vm3933, %v7027
  %7038 = vst.msk [vmem:[#allocation6 + $0x38] sm:$0xf] %vm3933, %v7029
  %7039 = vst.msk [vmem:[#allocation6 + $0x4c] sm:$0xf] %vm3933, %v7031
  %v7040 = vld [vmem:[%s6879] sm:$0xf]
  %v7041 = vld [vmem:[%s6879 + $0x4] sm:$0xf]
  %v7042 = vld [vmem:[%s6879 + $0x8] sm:$0xf]
  %v7043 = vld [vmem:[%s6879 + $0xc] sm:$0xf]
  %s7044 = scalar_lea.vmem [#allocation6], 80
  %7045 = vst.msk [vmem:[%s7044] sm:$0xf] %vm3933, %v7040
  %7046 = vst.msk [vmem:[%s7044 + $0x14] sm:$0xf] %vm3933, %v7041
  %7047 = vst.msk [vmem:[%s7044 + $0x28] sm:$0xf] %vm3933, %v7042
  %7048 = vst.msk [vmem:[%s7044 + $0x3c] sm:$0xf] %vm3933, %v7043
  %v7049 = vld [vmem:[#allocation5] sm:$0xf]
  %v7050 = vld [vmem:[#allocation5 + $0x4] sm:$0xf]
  %v7051 = vld [vmem:[#allocation5 + $0x8] sm:$0xf]
  %v7052 = vld [vmem:[#allocation5 + $0xc] sm:$0xf]
  %7057 = vrot.lane.b32.xlu0 %v7049, 32
  %v7058 = vpop.permute.xlu0 %7057
  %7059 = vrot.lane.b32.xlu0 %v7050, 32
  %v7060 = vpop.permute.xlu0 %7059
  %7061 = vrot.lane.b32.xlu0 %v7051, 32
  %v7062 = vpop.permute.xlu0 %7061
  %7063 = vrot.lane.b32.xlu0 %v7052, 32
  %v7064 = vpop.permute.xlu0 %7063
  %7069 = vst.msk [vmem:[%s7044] sm:$0xf] %vm4103, %v7058
  %7070 = vst.msk [vmem:[%s7044 + $0x14] sm:$0xf] %vm4103, %v7060
  %7071 = vst.msk [vmem:[%s7044 + $0x28] sm:$0xf] %vm4103, %v7062
  %7072 = vst.msk [vmem:[%s7044 + $0x3c] sm:$0xf] %vm4103, %v7064
  %v7073 = vld [vmem:[%s6879] sm:$0xf]
  %v7074 = vld [vmem:[%s6879 + $0x4] sm:$0xf]
  %v7075 = vld [vmem:[%s6879 + $0x8] sm:$0xf]
  %v7076 = vld [vmem:[%s6879 + $0xc] sm:$0xf]
  %7081 = vrot.lane.b32.xlu0 %v7073, 96
  %v7082 = vpop.permute.xlu0 %7081
  %7083 = vrot.lane.b32.xlu0 %v7074, 96
  %v7084 = vpop.permute.xlu0 %7083
  %7085 = vrot.lane.b32.xlu0 %v7075, 96
  %v7086 = vpop.permute.xlu0 %7085
  %7087 = vrot.lane.b32.xlu0 %v7076, 96
  %v7088 = vpop.permute.xlu0 %7087
  %7093 = vst.msk [vmem:[%s7044 + $0x4] sm:$0xf] %vm3933, %v7082
  %7094 = vst.msk [vmem:[%s7044 + $0x18] sm:$0xf] %vm3933, %v7084
  %7095 = vst.msk [vmem:[%s7044 + $0x2c] sm:$0xf] %vm3933, %v7086
  %7096 = vst.msk [vmem:[%s7044 + $0x40] sm:$0xf] %vm3933, %v7088
  %v7097 = vld [vmem:[%s6814] sm:$0xf]
  %v7098 = vld [vmem:[%s6814 + $0x4] sm:$0xf]
  %v7099 = vld [vmem:[%s6814 + $0x8] sm:$0xf]
  %v7100 = vld [vmem:[%s6814 + $0xc] sm:$0xf]
  %7105 = vrot.lane.b32.xlu0 %v7097, 64
  %v7106 = vpop.permute.xlu0 %7105
  %7107 = vrot.lane.b32.xlu0 %v7098, 64
  %v7108 = vpop.permute.xlu0 %7107
  %7109 = vrot.lane.b32.xlu0 %v7099, 64
  %v7110 = vpop.permute.xlu0 %7109
  %7111 = vrot.lane.b32.xlu0 %v7100, 64
  %v7112 = vpop.permute.xlu0 %7111
  %7117 = vst.msk [vmem:[%s7044 + $0x4] sm:$0xf] %vm4103, %v7106
  %7118 = vst.msk [vmem:[%s7044 + $0x18] sm:$0xf] %vm4103, %v7108
  %7119 = vst.msk [vmem:[%s7044 + $0x2c] sm:$0xf] %vm4103, %v7110
  %7120 = vst.msk [vmem:[%s7044 + $0x40] sm:$0xf] %vm4103, %v7112
  %v7121 = vld [vmem:[%s6825] sm:$0xf]
  %v7122 = vld [vmem:[%s6825 + $0x4] sm:$0xf]
  %v7123 = vld [vmem:[%s6825 + $0x8] sm:$0xf]
  %v7124 = vld [vmem:[%s6825 + $0xc] sm:$0xf]
  %7129 = vrot.lane.b32.xlu0 %v7121, 96
  %v7130 = vpop.permute.xlu0 %7129
  %7131 = vrot.lane.b32.xlu0 %v7122, 96
  %v7132 = vpop.permute.xlu0 %7131
  %7133 = vrot.lane.b32.xlu0 %v7123, 96
  %v7134 = vpop.permute.xlu0 %7133
  %7135 = vrot.lane.b32.xlu0 %v7124, 96
  %v7136 = vpop.permute.xlu0 %7135
  %7141 = vst.msk [vmem:[%s7044 + $0x8] sm:$0xf] %vm3933, %v7130
  %7142 = vst.msk [vmem:[%s7044 + $0x1c] sm:$0xf] %vm3933, %v7132
  %7143 = vst.msk [vmem:[%s7044 + $0x30] sm:$0xf] %vm3933, %v7134
  %7144 = vst.msk [vmem:[%s7044 + $0x44] sm:$0xf] %vm3933, %v7136
  %v7145 = vld [vmem:[%s6814] sm:$0xf]
  %v7146 = vld [vmem:[%s6814 + $0x4] sm:$0xf]
  %v7147 = vld [vmem:[%s6814 + $0x8] sm:$0xf]
  %v7148 = vld [vmem:[%s6814 + $0xc] sm:$0xf]
  %7153 = vrot.lane.b32.xlu0 %v7145, 32
  %v7154 = vpop.permute.xlu0 %7153
  %7155 = vrot.lane.b32.xlu0 %v7146, 32
  %v7156 = vpop.permute.xlu0 %7155
  %7157 = vrot.lane.b32.xlu0 %v7147, 32
  %v7158 = vpop.permute.xlu0 %7157
  %7159 = vrot.lane.b32.xlu0 %v7148, 32
  %v7160 = vpop.permute.xlu0 %7159
  %7165 = vst.msk [vmem:[%s7044 + $0x8] sm:$0xf] %vm4103, %v7154
  %7166 = vst.msk [vmem:[%s7044 + $0x1c] sm:$0xf] %vm4103, %v7156
  %7167 = vst.msk [vmem:[%s7044 + $0x30] sm:$0xf] %vm4103, %v7158
  %7168 = vst.msk [vmem:[%s7044 + $0x44] sm:$0xf] %vm4103, %v7160
  %v7169 = vld [vmem:[%s6829] sm:$0xf]
  %v7170 = vld [vmem:[%s6829 + $0x4] sm:$0xf]
  %v7171 = vld [vmem:[%s6829 + $0x8] sm:$0xf]
  %v7172 = vld [vmem:[%s6829 + $0xc] sm:$0xf]
  %7173 = vst.msk [vmem:[%s7044 + $0xc] sm:$0xf] %vm3933, %v7169
  %7174 = vst.msk [vmem:[%s7044 + $0x20] sm:$0xf] %vm3933, %v7170
  %7175 = vst.msk [vmem:[%s7044 + $0x34] sm:$0xf] %vm3933, %v7171
  %7176 = vst.msk [vmem:[%s7044 + $0x48] sm:$0xf] %vm3933, %v7172
  %v7177 = vld [vmem:[%s6840] sm:$0xf]
  %v7178 = vld [vmem:[%s6840 + $0x4] sm:$0xf]
  %v7179 = vld [vmem:[%s6840 + $0x8] sm:$0xf]
  %v7180 = vld [vmem:[%s6840 + $0xc] sm:$0xf]
  %7185 = vrot.lane.b32.xlu0 %v7177, 32
  %v7186 = vpop.permute.xlu0 %7185
  %7187 = vrot.lane.b32.xlu0 %v7178, 32
  %v7188 = vpop.permute.xlu0 %7187
  %7189 = vrot.lane.b32.xlu0 %v7179, 32
  %v7190 = vpop.permute.xlu0 %7189
  %7191 = vrot.lane.b32.xlu0 %v7180, 32
  %v7192 = vpop.permute.xlu0 %7191
  %7197 = vst.msk [vmem:[%s7044 + $0xc] sm:$0xf] %vm4103, %v7186
  %7198 = vst.msk [vmem:[%s7044 + $0x20] sm:$0xf] %vm4103, %v7188
  %7199 = vst.msk [vmem:[%s7044 + $0x34] sm:$0xf] %vm4103, %v7190
  %7200 = vst.msk [vmem:[%s7044 + $0x48] sm:$0xf] %vm4103, %v7192
  %v7201 = vld [vmem:[%s6829] sm:$0xf]
  %v7202 = vld [vmem:[%s6829 + $0x4] sm:$0xf]
  %v7203 = vld [vmem:[%s6829 + $0x8] sm:$0xf]
  %v7204 = vld [vmem:[%s6829 + $0xc] sm:$0xf]
  %7209 = vrot.lane.b32.xlu0 %v7201, 96
  %v7210 = vpop.permute.xlu0 %7209
  %7211 = vrot.lane.b32.xlu0 %v7202, 96
  %v7212 = vpop.permute.xlu0 %7211
  %7213 = vrot.lane.b32.xlu0 %v7203, 96
  %v7214 = vpop.permute.xlu0 %7213
  %7215 = vrot.lane.b32.xlu0 %v7204, 96
  %v7216 = vpop.permute.xlu0 %7215
  %7221 = vst.msk [vmem:[%s7044 + $0x10] sm:$0xf] %vm3933, %v7210
  %7222 = vst.msk [vmem:[%s7044 + $0x24] sm:$0xf] %vm3933, %v7212
  %7223 = vst.msk [vmem:[%s7044 + $0x38] sm:$0xf] %vm3933, %v7214
  %7224 = vst.msk [vmem:[%s7044 + $0x4c] sm:$0xf] %vm3933, %v7216
  %v7225 = vld [vmem:[%s6825] sm:$0xf]
  %v7226 = vld [vmem:[%s6825 + $0x4] sm:$0xf]
  %v7227 = vld [vmem:[%s6825 + $0x8] sm:$0xf]
  %v7228 = vld [vmem:[%s6825 + $0xc] sm:$0xf]
  %s7229 = scalar_lea.vmem [#allocation6], 160
  %7230 = vst.msk [vmem:[%s7229] sm:$0xf] %vm3933, %v7225
  %7231 = vst.msk [vmem:[%s7229 + $0x14] sm:$0xf] %vm3933, %v7226
  %7232 = vst.msk [vmem:[%s7229 + $0x28] sm:$0xf] %vm3933, %v7227
  %7233 = vst.msk [vmem:[%s7229 + $0x3c] sm:$0xf] %vm3933, %v7228
  %v7234 = vld [vmem:[%s6814] sm:$0xf]
  %v7235 = vld [vmem:[%s6814 + $0x4] sm:$0xf]
  %v7236 = vld [vmem:[%s6814 + $0x8] sm:$0xf]
  %v7237 = vld [vmem:[%s6814 + $0xc] sm:$0xf]
  %7242 = vrot.lane.b32.xlu0 %v7234, 64
  %v7243 = vpop.permute.xlu0 %7242
  %7244 = vrot.lane.b32.xlu0 %v7235, 64
  %v7245 = vpop.permute.xlu0 %7244
  %7246 = vrot.lane.b32.xlu0 %v7236, 64
  %v7247 = vpop.permute.xlu0 %7246
  %7248 = vrot.lane.b32.xlu0 %v7237, 64
  %v7249 = vpop.permute.xlu0 %7248
  %7254 = vst.msk [vmem:[%s7229] sm:$0xf] %vm4103, %v7243
  %7255 = vst.msk [vmem:[%s7229 + $0x14] sm:$0xf] %vm4103, %v7245
  %7256 = vst.msk [vmem:[%s7229 + $0x28] sm:$0xf] %vm4103, %v7247
  %7257 = vst.msk [vmem:[%s7229 + $0x3c] sm:$0xf] %vm4103, %v7249
  %v7258 = vld [vmem:[%s6825] sm:$0xf]
  %v7259 = vld [vmem:[%s6825 + $0x4] sm:$0xf]
  %v7260 = vld [vmem:[%s6825 + $0x8] sm:$0xf]
  %v7261 = vld [vmem:[%s6825 + $0xc] sm:$0xf]
  %7266 = vrot.lane.b32.xlu0 %v7258, 96
  %v7267 = vpop.permute.xlu0 %7266
  %7268 = vrot.lane.b32.xlu0 %v7259, 96
  %v7269 = vpop.permute.xlu0 %7268
  %7270 = vrot.lane.b32.xlu0 %v7260, 96
  %v7271 = vpop.permute.xlu0 %7270
  %7272 = vrot.lane.b32.xlu0 %v7261, 96
  %v7273 = vpop.permute.xlu0 %7272
  %7278 = vst.msk [vmem:[%s7229 + $0x4] sm:$0xf] %vm3933, %v7267
  %7279 = vst.msk [vmem:[%s7229 + $0x18] sm:$0xf] %vm3933, %v7269
  %7280 = vst.msk [vmem:[%s7229 + $0x2c] sm:$0xf] %vm3933, %v7271
  %7281 = vst.msk [vmem:[%s7229 + $0x40] sm:$0xf] %vm3933, %v7273
  %v7282 = vld [vmem:[%s6840] sm:$0xf]
  %v7283 = vld [vmem:[%s6840 + $0x4] sm:$0xf]
  %v7284 = vld [vmem:[%s6840 + $0x8] sm:$0xf]
  %v7285 = vld [vmem:[%s6840 + $0xc] sm:$0xf]
  %7290 = vrot.lane.b32.xlu0 %v7282, 64
  %v7291 = vpop.permute.xlu0 %7290
  %7292 = vrot.lane.b32.xlu0 %v7283, 64
  %v7293 = vpop.permute.xlu0 %7292
  %7294 = vrot.lane.b32.xlu0 %v7284, 64
  %v7295 = vpop.permute.xlu0 %7294
  %7296 = vrot.lane.b32.xlu0 %v7285, 64
  %v7297 = vpop.permute.xlu0 %7296
  %7302 = vst.msk [vmem:[%s7229 + $0x4] sm:$0xf] %vm4103, %v7291
  %7303 = vst.msk [vmem:[%s7229 + $0x18] sm:$0xf] %vm4103, %v7293
  %7304 = vst.msk [vmem:[%s7229 + $0x2c] sm:$0xf] %vm4103, %v7295
  %7305 = vst.msk [vmem:[%s7229 + $0x40] sm:$0xf] %vm4103, %v7297
  %v7306 = vld [vmem:[%s6829] sm:$0xf]
  %v7307 = vld [vmem:[%s6829 + $0x4] sm:$0xf]
  %v7308 = vld [vmem:[%s6829 + $0x8] sm:$0xf]
  %v7309 = vld [vmem:[%s6829 + $0xc] sm:$0xf]
  %7310 = vst.msk [vmem:[%s7229 + $0x8] sm:$0xf] %vm3933, %v7306
  %7311 = vst.msk [vmem:[%s7229 + $0x1c] sm:$0xf] %vm3933, %v7307
  %7312 = vst.msk [vmem:[%s7229 + $0x30] sm:$0xf] %vm3933, %v7308
  %7313 = vst.msk [vmem:[%s7229 + $0x44] sm:$0xf] %vm3933, %v7309
  %v7314 = vld [vmem:[%s6840] sm:$0xf]
  %v7315 = vld [vmem:[%s6840 + $0x4] sm:$0xf]
  %v7316 = vld [vmem:[%s6840 + $0x8] sm:$0xf]
  %v7317 = vld [vmem:[%s6840 + $0xc] sm:$0xf]
  %7322 = vrot.lane.b32.xlu0 %v7314, 32
  %v7323 = vpop.permute.xlu0 %7322
  %7324 = vrot.lane.b32.xlu0 %v7315, 32
  %v7325 = vpop.permute.xlu0 %7324
  %7326 = vrot.lane.b32.xlu0 %v7316, 32
  %v7327 = vpop.permute.xlu0 %7326
  %7328 = vrot.lane.b32.xlu0 %v7317, 32
  %v7329 = vpop.permute.xlu0 %7328
  %7334 = vst.msk [vmem:[%s7229 + $0x8] sm:$0xf] %vm4103, %v7323
  %7335 = vst.msk [vmem:[%s7229 + $0x1c] sm:$0xf] %vm4103, %v7325
  %7336 = vst.msk [vmem:[%s7229 + $0x30] sm:$0xf] %vm4103, %v7327
  %7337 = vst.msk [vmem:[%s7229 + $0x44] sm:$0xf] %vm4103, %v7329
  %v7338 = vld [vmem:[%s6854] sm:$0xf]
  %v7339 = vld [vmem:[%s6854 + $0x4] sm:$0xf]
  %v7340 = vld [vmem:[%s6854 + $0x8] sm:$0xf]
  %v7341 = vld [vmem:[%s6854 + $0xc] sm:$0xf]
  %7342 = vst.msk [vmem:[%s7229 + $0xc] sm:$0xf] %vm3933, %v7338
  %7343 = vst.msk [vmem:[%s7229 + $0x20] sm:$0xf] %vm3933, %v7339
  %7344 = vst.msk [vmem:[%s7229 + $0x34] sm:$0xf] %vm3933, %v7340
  %7345 = vst.msk [vmem:[%s7229 + $0x48] sm:$0xf] %vm3933, %v7341
  %v7346 = vld [vmem:[%s6843] sm:$0xf]
  %v7347 = vld [vmem:[%s6843 + $0x4] sm:$0xf]
  %v7348 = vld [vmem:[%s6843 + $0x8] sm:$0xf]
  %v7349 = vld [vmem:[%s6843 + $0xc] sm:$0xf]
  %7354 = vrot.lane.b32.xlu0 %v7346, 64
  %v7355 = vpop.permute.xlu0 %7354
  %7356 = vrot.lane.b32.xlu0 %v7347, 64
  %v7357 = vpop.permute.xlu0 %7356
  %7358 = vrot.lane.b32.xlu0 %v7348, 64
  %v7359 = vpop.permute.xlu0 %7358
  %7360 = vrot.lane.b32.xlu0 %v7349, 64
  %v7361 = vpop.permute.xlu0 %7360
  %7366 = vst.msk [vmem:[%s7229 + $0xc] sm:$0xf] %vm4103, %v7355
  %7367 = vst.msk [vmem:[%s7229 + $0x20] sm:$0xf] %vm4103, %v7357
  %7368 = vst.msk [vmem:[%s7229 + $0x34] sm:$0xf] %vm4103, %v7359
  %7369 = vst.msk [vmem:[%s7229 + $0x48] sm:$0xf] %vm4103, %v7361
  %v7370 = vld [vmem:[%s6854] sm:$0xf]
  %v7371 = vld [vmem:[%s6854 + $0x4] sm:$0xf]
  %v7372 = vld [vmem:[%s6854 + $0x8] sm:$0xf]
  %v7373 = vld [vmem:[%s6854 + $0xc] sm:$0xf]
  %7378 = vrot.lane.b32.xlu0 %v7370, 96
  %v7379 = vpop.permute.xlu0 %7378
  %7380 = vrot.lane.b32.xlu0 %v7371, 96
  %v7381 = vpop.permute.xlu0 %7380
  %7382 = vrot.lane.b32.xlu0 %v7372, 96
  %v7383 = vpop.permute.xlu0 %7382
  %7384 = vrot.lane.b32.xlu0 %v7373, 96
  %v7385 = vpop.permute.xlu0 %7384
  %7390 = vst.msk [vmem:[%s7229 + $0x10] sm:$0xf] %vm3933, %v7379
  %7391 = vst.msk [vmem:[%s7229 + $0x24] sm:$0xf] %vm3933, %v7381
  %7392 = vst.msk [vmem:[%s7229 + $0x38] sm:$0xf] %vm3933, %v7383
  %7393 = vst.msk [vmem:[%s7229 + $0x4c] sm:$0xf] %vm3933, %v7385
  %v7394 = vld [vmem:[%s6814] sm:$0xf]
  %v7395 = vld [vmem:[%s6814 + $0x4] sm:$0xf]
  %v7396 = vld [vmem:[%s6814 + $0x8] sm:$0xf]
  %v7397 = vld [vmem:[%s6814 + $0xc] sm:$0xf]
  %s7398 = scalar_lea.vmem [#allocation6], 240
  %7399 = vst.msk [vmem:[%s7398] sm:$0xf] %vm3933, %v7394
  %7400 = vst.msk [vmem:[%s7398 + $0x14] sm:$0xf] %vm3933, %v7395
  %7401 = vst.msk [vmem:[%s7398 + $0x28] sm:$0xf] %vm3933, %v7396
  %7402 = vst.msk [vmem:[%s7398 + $0x3c] sm:$0xf] %vm3933, %v7397
  %v7403 = vld [vmem:[%s6825] sm:$0xf]
  %v7404 = vld [vmem:[%s6825 + $0x4] sm:$0xf]
  %v7405 = vld [vmem:[%s6825 + $0x8] sm:$0xf]
  %v7406 = vld [vmem:[%s6825 + $0xc] sm:$0xf]
  %7411 = vrot.lane.b32.xlu0 %v7403, 32
  %v7412 = vpop.permute.xlu0 %7411
  %7413 = vrot.lane.b32.xlu0 %v7404, 32
  %v7414 = vpop.permute.xlu0 %7413
  %7415 = vrot.lane.b32.xlu0 %v7405, 32
  %v7416 = vpop.permute.xlu0 %7415
  %7417 = vrot.lane.b32.xlu0 %v7406, 32
  %v7418 = vpop.permute.xlu0 %7417
  %7423 = vst.msk [vmem:[%s7398] sm:$0xf] %vm4103, %v7412
  %7424 = vst.msk [vmem:[%s7398 + $0x14] sm:$0xf] %vm4103, %v7414
  %7425 = vst.msk [vmem:[%s7398 + $0x28] sm:$0xf] %vm4103, %v7416
  %7426 = vst.msk [vmem:[%s7398 + $0x3c] sm:$0xf] %vm4103, %v7418
  %v7427 = vld [vmem:[%s6814] sm:$0xf]
  %v7428 = vld [vmem:[%s6814 + $0x4] sm:$0xf]
  %v7429 = vld [vmem:[%s6814 + $0x8] sm:$0xf]
  %v7430 = vld [vmem:[%s6814 + $0xc] sm:$0xf]
  %7435 = vrot.lane.b32.xlu0 %v7427, 96
  %v7436 = vpop.permute.xlu0 %7435
  %7437 = vrot.lane.b32.xlu0 %v7428, 96
  %v7438 = vpop.permute.xlu0 %7437
  %7439 = vrot.lane.b32.xlu0 %v7429, 96
  %v7440 = vpop.permute.xlu0 %7439
  %7441 = vrot.lane.b32.xlu0 %v7430, 96
  %v7442 = vpop.permute.xlu0 %7441
  %7447 = vst.msk [vmem:[%s7398 + $0x4] sm:$0xf] %vm3933, %v7436
  %7448 = vst.msk [vmem:[%s7398 + $0x18] sm:$0xf] %vm3933, %v7438
  %7449 = vst.msk [vmem:[%s7398 + $0x2c] sm:$0xf] %vm3933, %v7440
  %7450 = vst.msk [vmem:[%s7398 + $0x40] sm:$0xf] %vm3933, %v7442
  %v7451 = vld [vmem:[%s6829] sm:$0xf]
  %v7452 = vld [vmem:[%s6829 + $0x4] sm:$0xf]
  %v7453 = vld [vmem:[%s6829 + $0x8] sm:$0xf]
  %v7454 = vld [vmem:[%s6829 + $0xc] sm:$0xf]
  %7459 = vrot.lane.b32.xlu0 %v7451, 64
  %v7460 = vpop.permute.xlu0 %7459
  %7461 = vrot.lane.b32.xlu0 %v7452, 64
  %v7462 = vpop.permute.xlu0 %7461
  %7463 = vrot.lane.b32.xlu0 %v7453, 64
  %v7464 = vpop.permute.xlu0 %7463
  %7465 = vrot.lane.b32.xlu0 %v7454, 64
  %v7466 = vpop.permute.xlu0 %7465
  %7471 = vst.msk [vmem:[%s7398 + $0x4] sm:$0xf] %vm4103, %v7460
  %7472 = vst.msk [vmem:[%s7398 + $0x18] sm:$0xf] %vm4103, %v7462
  %7473 = vst.msk [vmem:[%s7398 + $0x2c] sm:$0xf] %vm4103, %v7464
  %7474 = vst.msk [vmem:[%s7398 + $0x40] sm:$0xf] %vm4103, %v7466
  %v7475 = vld [vmem:[%s6840] sm:$0xf]
  %v7476 = vld [vmem:[%s6840 + $0x4] sm:$0xf]
  %v7477 = vld [vmem:[%s6840 + $0x8] sm:$0xf]
  %v7478 = vld [vmem:[%s6840 + $0xc] sm:$0xf]
  %7483 = vrot.lane.b32.xlu0 %v7475, 96
  %v7484 = vpop.permute.xlu0 %7483
  %7485 = vrot.lane.b32.xlu0 %v7476, 96
  %v7486 = vpop.permute.xlu0 %7485
  %7487 = vrot.lane.b32.xlu0 %v7477, 96
  %v7488 = vpop.permute.xlu0 %7487
  %7489 = vrot.lane.b32.xlu0 %v7478, 96
  %v7490 = vpop.permute.xlu0 %7489
  %7495 = vst.msk [vmem:[%s7398 + $0x8] sm:$0xf] %vm3933, %v7484
  %7496 = vst.msk [vmem:[%s7398 + $0x1c] sm:$0xf] %vm3933, %v7486
  %7497 = vst.msk [vmem:[%s7398 + $0x30] sm:$0xf] %vm3933, %v7488
  %7498 = vst.msk [vmem:[%s7398 + $0x44] sm:$0xf] %vm3933, %v7490
  %v7499 = vld [vmem:[%s6829] sm:$0xf]
  %v7500 = vld [vmem:[%s6829 + $0x4] sm:$0xf]
  %v7501 = vld [vmem:[%s6829 + $0x8] sm:$0xf]
  %v7502 = vld [vmem:[%s6829 + $0xc] sm:$0xf]
  %7507 = vrot.lane.b32.xlu0 %v7499, 32
  %v7508 = vpop.permute.xlu0 %7507
  %7509 = vrot.lane.b32.xlu0 %v7500, 32
  %v7510 = vpop.permute.xlu0 %7509
  %7511 = vrot.lane.b32.xlu0 %v7501, 32
  %v7512 = vpop.permute.xlu0 %7511
  %7513 = vrot.lane.b32.xlu0 %v7502, 32
  %v7514 = vpop.permute.xlu0 %7513
  %7519 = vst.msk [vmem:[%s7398 + $0x8] sm:$0xf] %vm4103, %v7508
  %7520 = vst.msk [vmem:[%s7398 + $0x1c] sm:$0xf] %vm4103, %v7510
  %7521 = vst.msk [vmem:[%s7398 + $0x30] sm:$0xf] %vm4103, %v7512
  %7522 = vst.msk [vmem:[%s7398 + $0x44] sm:$0xf] %vm4103, %v7514
  %v7523 = vld [vmem:[%s6843] sm:$0xf]
  %v7524 = vld [vmem:[%s6843 + $0x4] sm:$0xf]
  %v7525 = vld [vmem:[%s6843 + $0x8] sm:$0xf]
  %v7526 = vld [vmem:[%s6843 + $0xc] sm:$0xf]
  %7527 = vst.msk [vmem:[%s7398 + $0xc] sm:$0xf] %vm3933, %v7523
  %7528 = vst.msk [vmem:[%s7398 + $0x20] sm:$0xf] %vm3933, %v7524
  %7529 = vst.msk [vmem:[%s7398 + $0x34] sm:$0xf] %vm3933, %v7525
  %7530 = vst.msk [vmem:[%s7398 + $0x48] sm:$0xf] %vm3933, %v7526
  %v7531 = vld [vmem:[%s6854] sm:$0xf]
  %v7532 = vld [vmem:[%s6854 + $0x4] sm:$0xf]
  %v7533 = vld [vmem:[%s6854 + $0x8] sm:$0xf]
  %v7534 = vld [vmem:[%s6854 + $0xc] sm:$0xf]
  %7539 = vrot.lane.b32.xlu0 %v7531, 32
  %v7540 = vpop.permute.xlu0 %7539
  %7541 = vrot.lane.b32.xlu0 %v7532, 32
  %v7542 = vpop.permute.xlu0 %7541
  %7543 = vrot.lane.b32.xlu0 %v7533, 32
  %v7544 = vpop.permute.xlu0 %7543
  %7545 = vrot.lane.b32.xlu0 %v7534, 32
  %v7546 = vpop.permute.xlu0 %7545
  %7551 = vst.msk [vmem:[%s7398 + $0xc] sm:$0xf] %vm4103, %v7540
  %7552 = vst.msk [vmem:[%s7398 + $0x20] sm:$0xf] %vm4103, %v7542
  %7553 = vst.msk [vmem:[%s7398 + $0x34] sm:$0xf] %vm4103, %v7544
  %7554 = vst.msk [vmem:[%s7398 + $0x48] sm:$0xf] %vm4103, %v7546
  %v7555 = vld [vmem:[%s6843] sm:$0xf]
  %v7556 = vld [vmem:[%s6843 + $0x4] sm:$0xf]
  %v7557 = vld [vmem:[%s6843 + $0x8] sm:$0xf]
  %v7558 = vld [vmem:[%s6843 + $0xc] sm:$0xf]
  %7563 = vrot.lane.b32.xlu0 %v7555, 96
  %v7564 = vpop.permute.xlu0 %7563
  %7565 = vrot.lane.b32.xlu0 %v7556, 96
  %v7566 = vpop.permute.xlu0 %7565
  %7567 = vrot.lane.b32.xlu0 %v7557, 96
  %v7568 = vpop.permute.xlu0 %7567
  %7569 = vrot.lane.b32.xlu0 %v7558, 96
  %v7570 = vpop.permute.xlu0 %7569
  %7575 = vst.msk [vmem:[%s7398 + $0x10] sm:$0xf] %vm3933, %v7564
  %7576 = vst.msk [vmem:[%s7398 + $0x24] sm:$0xf] %vm3933, %v7566
  %7577 = vst.msk [vmem:[%s7398 + $0x38] sm:$0xf] %vm3933, %v7568
  %7578 = vst.msk [vmem:[%s7398 + $0x4c] sm:$0xf] %vm3933, %v7570
  %v7579 = vld [vmem:[#allocation6] sm:$0xff]
  %v7580 = vld [vmem:[#allocation6 + $0x8] sm:$0xff]
  %v7581 = vld [vmem:[#allocation6 + $0x10] sm:$0xf]
  %v7582 = vld [vmem:[#allocation6 + $0x14] sm:$0xff]
  %v7583 = vld [vmem:[#allocation6 + $0x1c] sm:$0xff]
  %v7584 = vld [vmem:[#allocation6 + $0x24] sm:$0xf]
  %v7585 = vld [vmem:[#allocation6 + $0x28] sm:$0xff]
  %v7586 = vld [vmem:[#allocation6 + $0x30] sm:$0xff]
  %v7587 = vld [vmem:[#allocation6 + $0x38] sm:$0xf]
  %v7588 = vld [vmem:[#allocation6 + $0x3c] sm:$0xff]
  %v7589 = vld [vmem:[#allocation6 + $0x44] sm:$0xff]
  %v7590 = vld [vmem:[#allocation6 + $0x4c] sm:$0xf]
  %v7591 = vld [vmem:[#allocation6 + $0x50] sm:$0xff]
  %v7592 = vld [vmem:[#allocation6 + $0x58] sm:$0xff]
  %v7593 = vld [vmem:[#allocation6 + $0x60] sm:$0xf]
  %v7594 = vld [vmem:[#allocation6 + $0x64] sm:$0xff]
  %v7595 = vld [vmem:[#allocation6 + $0x6c] sm:$0xff]
  %v7596 = vld [vmem:[#allocation6 + $0x74] sm:$0xf]
  %v7597 = vld [vmem:[#allocation6 + $0x78] sm:$0xff]
  %v7598 = vld [vmem:[#allocation6 + $0x80] sm:$0xff]
  %v7599 = vld [vmem:[#allocation6 + $0x88] sm:$0xf]
  %v7600 = vld [vmem:[#allocation6 + $0x8c] sm:$0xff]
  %v7601 = vld [vmem:[#allocation6 + $0x94] sm:$0xff]
  %v7602 = vld [vmem:[#allocation6 + $0x9c] sm:$0xf]
  %v7603 = vld [vmem:[#allocation6 + $0xa0] sm:$0xff]
  %v7604 = vld [vmem:[#allocation6 + $0xa8] sm:$0xff]
  %v7605 = vld [vmem:[#allocation6 + $0xb0] sm:$0xf]
  %v7606 = vld [vmem:[#allocation6 + $0xb4] sm:$0xff]
  %v7607 = vld [vmem:[#allocation6 + $0xbc] sm:$0xff]
  %v7608 = vld [vmem:[#allocation6 + $0xc4] sm:$0xf]
  %v7609 = vld [vmem:[#allocation6 + $0xc8] sm:$0xff]
  %v7610 = vld [vmem:[#allocation6 + $0xd0] sm:$0xff]
  %v7611 = vld [vmem:[#allocation6 + $0xd8] sm:$0xf]
  %v7612 = vld [vmem:[#allocation6 + $0xdc] sm:$0xff]
  %v7613 = vld [vmem:[#allocation6 + $0xe4] sm:$0xff]
  %v7614 = vld [vmem:[#allocation6 + $0xec] sm:$0xf]
  %v7615 = vld [vmem:[#allocation6 + $0xf0] sm:$0xff]
  %v7616 = vld [vmem:[#allocation6 + $0xf8] sm:$0xff]
  %v7617 = vld [vmem:[#allocation6 + $0x100] sm:$0xf]
  %v7618 = vld [vmem:[#allocation6 + $0x104] sm:$0xff]
  %v7619 = vld [vmem:[#allocation6 + $0x10c] sm:$0xff]
  %v7620 = vld [vmem:[#allocation6 + $0x114] sm:$0xf]
  %v7621 = vld [vmem:[#allocation6 + $0x118] sm:$0xff]
  %v7622 = vld [vmem:[#allocation6 + $0x120] sm:$0xff]
  %v7623 = vld [vmem:[#allocation6 + $0x128] sm:$0xf]
  %v7624 = vld [vmem:[#allocation6 + $0x12c] sm:$0xff]
  %v7625 = vld [vmem:[#allocation6 + $0x134] sm:$0xff]
  %v7626 = vld [vmem:[#allocation6 + $0x13c] sm:$0xf]
  %v7627 = vld [vmem:[%s5] sm:$0xf]
  %v7628 = vld [vmem:[%s5 + $0x4] sm:$0xf]
  %v7629 = vld [vmem:[%s5 + $0x8] sm:$0xf]
  %v7630 = vld [vmem:[%s5 + $0xc] sm:$0xf]
  %v7631 = vld [vmem:[%s5 + $0x10] sm:$0xf]
  %v7632 = vld [vmem:[%s5 + $0x14] sm:$0xf]
  %v7633 = vld [vmem:[%s5 + $0x18] sm:$0xf]
  %v7634 = vld [vmem:[%s5 + $0x1c] sm:$0xf]
  %v7635 = vld [vmem:[%s5 + $0x20] sm:$0xf]
  %v7636 = vld [vmem:[%s5 + $0x24] sm:$0xf]
  %v7637 = vld [vmem:[%s5 + $0x28] sm:$0xf]
  %v7638 = vld [vmem:[%s5 + $0x2c] sm:$0xf]
  %v7639 = vld [vmem:[%s5 + $0x30] sm:$0xf]
  %v7640 = vld [vmem:[%s5 + $0x34] sm:$0xf]
  %v7641 = vld [vmem:[%s5 + $0x38] sm:$0xf]
  %v7642 = vld [vmem:[%s5 + $0x3c] sm:$0xf]
  %v7643 = vld [vmem:[%s5 + $0x40] sm:$0xf]
  %v7644 = vld [vmem:[%s5 + $0x44] sm:$0xf]
  %v7645 = vld [vmem:[%s5 + $0x48] sm:$0xf]
  %v7646 = vld [vmem:[%s5 + $0x4c] sm:$0xf]
  %v7647 = vld [vmem:[%s5 + $0x50] sm:$0xf]
  %v7648 = vld [vmem:[%s5 + $0x54] sm:$0xf]
  %v7649 = vld [vmem:[%s5 + $0x58] sm:$0xf]
  %v7650 = vld [vmem:[%s5 + $0x5c] sm:$0xf]
  %v7651 = vld [vmem:[%s5 + $0x60] sm:$0xf]
  %v7652 = vld [vmem:[%s5 + $0x64] sm:$0xf]
  %v7653 = vld [vmem:[%s5 + $0x68] sm:$0xf]
  %v7654 = vld [vmem:[%s5 + $0x6c] sm:$0xf]
  %v7655 = vld [vmem:[%s5 + $0x70] sm:$0xf]
  %v7656 = vld [vmem:[%s5 + $0x74] sm:$0xf]
  %v7657 = vld [vmem:[%s5 + $0x78] sm:$0xf]
  %v7658 = vld [vmem:[%s5 + $0x7c] sm:$0xf]
  %v7659 = vld [vmem:[%s5 + $0x80] sm:$0xf]
  %v7660 = vld [vmem:[%s5 + $0x84] sm:$0xf]
  %v7661 = vld [vmem:[%s5 + $0x88] sm:$0xf]
  %v7662 = vld [vmem:[%s5 + $0x8c] sm:$0xf]
  %v7663 = vld [vmem:[%s5 + $0x90] sm:$0xf]
  %v7664 = vld [vmem:[%s5 + $0x94] sm:$0xf]
  %v7665 = vld [vmem:[%s5 + $0x98] sm:$0xf]
  %v7666 = vld [vmem:[%s5 + $0x9c] sm:$0xf]
  %v7667 = vld [vmem:[%s5 + $0xa0] sm:$0xf]
  %v7668 = vld [vmem:[%s5 + $0xa4] sm:$0xf]
  %v7669 = vld [vmem:[%s5 + $0xa8] sm:$0xf]
  %v7670 = vld [vmem:[%s5 + $0xac] sm:$0xf]
  %v7671 = vld [vmem:[%s5 + $0xb0] sm:$0xf]
  %v7672 = vld [vmem:[%s5 + $0xb4] sm:$0xf]
  %v7673 = vld [vmem:[%s5 + $0xb8] sm:$0xf]
  %v7674 = vld [vmem:[%s5 + $0xbc] sm:$0xf]
  %v7675 = vld [vmem:[%s5 + $0xc0] sm:$0xf]
  %v7676 = vld [vmem:[%s5 + $0xc4] sm:$0xf]
  %v7677 = vld [vmem:[%s5 + $0xc8] sm:$0xf]
  %v7678 = vld [vmem:[%s5 + $0xcc] sm:$0xf]
  %v7679 = vld [vmem:[%s5 + $0xd0] sm:$0xf]
  %v7680 = vld [vmem:[%s5 + $0xd4] sm:$0xf]
  %v7681 = vld [vmem:[%s5 + $0xd8] sm:$0xf]
  %v7682 = vld [vmem:[%s5 + $0xdc] sm:$0xf]
  %v7683 = vld [vmem:[%s5 + $0xe0] sm:$0xf]
  %v7684 = vld [vmem:[%s5 + $0xe4] sm:$0xf]
  %v7685 = vld [vmem:[%s5 + $0xe8] sm:$0xf]
  %v7686 = vld [vmem:[%s5 + $0xec] sm:$0xf]
  %v7687 = vld [vmem:[%s5 + $0xf0] sm:$0xf]
  %v7688 = vld [vmem:[%s5 + $0xf4] sm:$0xf]
  %v7689 = vld [vmem:[%s5 + $0xf8] sm:$0xf]
  %v7690 = vld [vmem:[%s5 + $0xfc] sm:$0xf]
  %v7691 = vld [vmem:[%s5 + $0x100] sm:$0xf]
  %v7692 = vld [vmem:[%s5 + $0x104] sm:$0xf]
  %v7693 = vld [vmem:[%s5 + $0x108] sm:$0xf]
  %v7694 = vld [vmem:[%s5 + $0x10c] sm:$0xf]
  %v7695 = vld [vmem:[%s5 + $0x110] sm:$0xf]
  %v7696 = vld [vmem:[%s5 + $0x114] sm:$0xf]
  %v7697 = vld [vmem:[%s5 + $0x118] sm:$0xf]
  %v7698 = vld [vmem:[%s5 + $0x11c] sm:$0xf]
  %v7747 = vunpack.c.l.b16 %v7579
  %v7748 = vunpack.c.h.b16 %v7579
  %v7749 = vunpack.c.l.b16 %v7580
  %v7750 = vunpack.c.h.b16 %v7580
  %v7751 = vunpack.c.l.b16 %v7581
  %v7752 = vunpack.c.l.b16 %v7582
  %v7753 = vunpack.c.h.b16 %v7582
  %v7754 = vunpack.c.l.b16 %v7583
  %v7755 = vunpack.c.h.b16 %v7583
  %v7756 = vunpack.c.l.b16 %v7584
  %v7757 = vunpack.c.l.b16 %v7585
  %v7758 = vunpack.c.h.b16 %v7585
  %v7759 = vunpack.c.l.b16 %v7586
  %v7760 = vunpack.c.h.b16 %v7586
  %v7761 = vunpack.c.l.b16 %v7587
  %v7762 = vunpack.c.l.b16 %v7588
  %v7763 = vunpack.c.h.b16 %v7588
  %v7764 = vunpack.c.l.b16 %v7589
  %v7765 = vunpack.c.h.b16 %v7589
  %v7766 = vunpack.c.l.b16 %v7590
  %v7767 = vunpack.c.l.b16 %v7591
  %v7768 = vunpack.c.h.b16 %v7591
  %v7769 = vunpack.c.l.b16 %v7592
  %v7770 = vunpack.c.h.b16 %v7592
  %v7771 = vunpack.c.l.b16 %v7593
  %v7772 = vunpack.c.l.b16 %v7594
  %v7773 = vunpack.c.h.b16 %v7594
  %v7774 = vunpack.c.l.b16 %v7595
  %v7775 = vunpack.c.h.b16 %v7595
  %v7776 = vunpack.c.l.b16 %v7596
  %v7777 = vunpack.c.l.b16 %v7597
  %v7778 = vunpack.c.h.b16 %v7597
  %v7779 = vunpack.c.l.b16 %v7598
  %v7780 = vunpack.c.h.b16 %v7598
  %v7781 = vunpack.c.l.b16 %v7599
  %v7782 = vunpack.c.l.b16 %v7600
  %v7783 = vunpack.c.h.b16 %v7600
  %v7784 = vunpack.c.l.b16 %v7601
  %v7785 = vunpack.c.h.b16 %v7601
  %v7786 = vunpack.c.l.b16 %v7602
  %v7787 = vunpack.c.l.b16 %v7603
  %v7788 = vunpack.c.h.b16 %v7603
  %v7789 = vunpack.c.l.b16 %v7604
  %v7790 = vunpack.c.h.b16 %v7604
  %v7791 = vunpack.c.l.b16 %v7605
  %v7792 = vunpack.c.l.b16 %v7606
  %v7793 = vunpack.c.h.b16 %v7606
  %v7794 = vunpack.c.l.b16 %v7607
  %v7795 = vunpack.c.h.b16 %v7607
  %v7796 = vunpack.c.l.b16 %v7608
  %v7797 = vunpack.c.l.b16 %v7609
  %v7798 = vunpack.c.h.b16 %v7609
  %v7799 = vunpack.c.l.b16 %v7610
  %v7800 = vunpack.c.h.b16 %v7610
  %v7801 = vunpack.c.l.b16 %v7611
  %v7802 = vunpack.c.l.b16 %v7612
  %v7803 = vunpack.c.h.b16 %v7612
  %v7804 = vunpack.c.l.b16 %v7613
  %v7805 = vunpack.c.h.b16 %v7613
  %v7806 = vunpack.c.l.b16 %v7614
  %v7807 = vunpack.c.l.b16 %v7615
  %v7808 = vunpack.c.h.b16 %v7615
  %v7809 = vunpack.c.l.b16 %v7616
  %v7810 = vunpack.c.h.b16 %v7616
  %v7811 = vunpack.c.l.b16 %v7617
  %v7812 = vunpack.c.l.b16 %v7618
  %v7813 = vunpack.c.h.b16 %v7618
  %v7814 = vunpack.c.l.b16 %v7619
  %v7815 = vunpack.c.h.b16 %v7619
  %v7816 = vunpack.c.l.b16 %v7620
  %v7817 = vunpack.c.l.b16 %v7621
  %v7818 = vunpack.c.h.b16 %v7621
  %v7819 = vunpack.c.l.b16 %v7622
  %v7820 = vunpack.c.h.b16 %v7622
  %v7821 = vunpack.c.l.b16 %v7623
  %v7822 = vunpack.c.l.b16 %v7624
  %v7823 = vunpack.c.h.b16 %v7624
  %v7824 = vunpack.c.l.b16 %v7625
  %v7825 = vunpack.c.h.b16 %v7625
  %v7826 = vunpack.c.l.b16 %v7626
  %v7827 = vpack.c.b16 %v7752, %v7747
  %v7828 = vpack.c.b16 %v7753, %v7748
  %v7829 = vpack.c.b16 %v7754, %v7749
  %v7830 = vpack.c.b16 %v7755, %v7750
  %v7831 = vpack.c.b16 %v7756, %v7751
  %v7832 = vpack.c.b16 %v7762, %v7757
  %v7833 = vpack.c.b16 %v7763, %v7758
  %v7834 = vpack.c.b16 %v7764, %v7759
  %v7835 = vpack.c.b16 %v7765, %v7760
  %v7836 = vpack.c.b16 %v7766, %v7761
  %v7837 = vpack.c.b16 %v7772, %v7767
  %v7838 = vpack.c.b16 %v7773, %v7768
  %v7839 = vpack.c.b16 %v7774, %v7769
  %v7840 = vpack.c.b16 %v7775, %v7770
  %v7841 = vpack.c.b16 %v7776, %v7771
  %v7842 = vpack.c.b16 %v7782, %v7777
  %v7843 = vpack.c.b16 %v7783, %v7778
  %v7844 = vpack.c.b16 %v7784, %v7779
  %v7845 = vpack.c.b16 %v7785, %v7780
  %v7846 = vpack.c.b16 %v7786, %v7781
  %v7847 = vpack.c.b16 %v7792, %v7787
  %v7848 = vpack.c.b16 %v7793, %v7788
  %v7849 = vpack.c.b16 %v7794, %v7789
  %v7850 = vpack.c.b16 %v7795, %v7790
  %v7851 = vpack.c.b16 %v7796, %v7791
  %v7852 = vpack.c.b16 %v7802, %v7797
  %v7853 = vpack.c.b16 %v7803, %v7798
  %v7854 = vpack.c.b16 %v7804, %v7799
  %v7855 = vpack.c.b16 %v7805, %v7800
  %v7856 = vpack.c.b16 %v7806, %v7801
  %v7857 = vpack.c.b16 %v7812, %v7807
  %v7858 = vpack.c.b16 %v7813, %v7808
  %v7859 = vpack.c.b16 %v7814, %v7809
  %v7860 = vpack.c.b16 %v7815, %v7810
  %v7861 = vpack.c.b16 %v7816, %v7811
  %v7862 = vpack.c.b16 %v7822, %v7817
  %v7863 = vpack.c.b16 %v7823, %v7818
  %v7864 = vpack.c.b16 %v7824, %v7819
  %v7865 = vpack.c.b16 %v7825, %v7820
  %v7866 = vpack.c.b16 %v7826, %v7821
  %v7971 = vunpack.c.l.b16 %v7627
  %v7972 = vunpack.c.l.b16 %v7628
  %v7973 = vunpack.c.l.b16 %v7629
  %v7974 = vunpack.c.l.b16 %v7630
  %v7975 = vunpack.c.l.b16 %v7631
  %v7976 = vunpack.c.l.b16 %v7632
  %v7977 = vunpack.c.l.b16 %v7633
  %v7978 = vunpack.c.l.b16 %v7634
  %v7979 = vunpack.c.l.b16 %v7635
  %v7980 = vunpack.c.l.b16 %v7636
  %v7981 = vunpack.c.l.b16 %v7637
  %v7982 = vunpack.c.l.b16 %v7638
  %v7983 = vunpack.c.l.b16 %v7639
  %v7984 = vunpack.c.l.b16 %v7640
  %v7985 = vunpack.c.l.b16 %v7641
  %v7986 = vunpack.c.l.b16 %v7642
  %v7987 = vunpack.c.l.b16 %v7643
  %v7988 = vunpack.c.l.b16 %v7644
  %v7989 = vunpack.c.l.b16 %v7645
  %v7990 = vunpack.c.l.b16 %v7646
  %v7991 = vunpack.c.l.b16 %v7647
  %v7992 = vunpack.c.l.b16 %v7648
  %v7993 = vunpack.c.l.b16 %v7649
  %v7994 = vunpack.c.l.b16 %v7650
  %v7995 = vunpack.c.l.b16 %v7651
  %v7996 = vunpack.c.l.b16 %v7652
  %v7997 = vunpack.c.l.b16 %v7653
  %v7998 = vunpack.c.l.b16 %v7654
  %v7999 = vunpack.c.l.b16 %v7655
  %v8000 = vunpack.c.l.b16 %v7656
  %v8001 = vunpack.c.l.b16 %v7657
  %v8002 = vunpack.c.l.b16 %v7658
  %v8003 = vunpack.c.l.b16 %v7659
  %v8004 = vunpack.c.l.b16 %v7660
  %v8005 = vunpack.c.l.b16 %v7661
  %v8006 = vunpack.c.l.b16 %v7662
  %v8007 = vunpack.c.l.b16 %v7663
  %v8008 = vunpack.c.l.b16 %v7664
  %v8009 = vunpack.c.l.b16 %v7665
  %v8010 = vunpack.c.l.b16 %v7666
  %v8011 = vunpack.c.l.b16 %v7667
  %v8012 = vunpack.c.l.b16 %v7668
  %v8013 = vunpack.c.l.b16 %v7669
  %v8014 = vunpack.c.l.b16 %v7670
  %v8015 = vunpack.c.l.b16 %v7671
  %v8016 = vunpack.c.l.b16 %v7672
  %v8017 = vunpack.c.l.b16 %v7673
  %v8018 = vunpack.c.l.b16 %v7674
  %v8019 = vunpack.c.l.b16 %v7675
  %v8020 = vunpack.c.l.b16 %v7676
  %v8021 = vunpack.c.l.b16 %v7677
  %v8022 = vunpack.c.l.b16 %v7678
  %v8023 = vunpack.c.l.b16 %v7679
  %v8024 = vunpack.c.l.b16 %v7680
  %v8025 = vunpack.c.l.b16 %v7681
  %v8026 = vunpack.c.l.b16 %v7682
  %v8027 = vunpack.c.l.b16 %v7683
  %v8028 = vunpack.c.l.b16 %v7684
  %v8029 = vunpack.c.l.b16 %v7685
  %v8030 = vunpack.c.l.b16 %v7686
  %v8031 = vunpack.c.l.b16 %v7687
  %v8032 = vunpack.c.l.b16 %v7688
  %v8033 = vunpack.c.l.b16 %v7689
  %v8034 = vunpack.c.l.b16 %v7690
  %v8035 = vunpack.c.l.b16 %v7691
  %v8036 = vunpack.c.l.b16 %v7692
  %v8037 = vunpack.c.l.b16 %v7693
  %v8038 = vunpack.c.l.b16 %v7694
  %v8039 = vunpack.c.l.b16 %v7695
  %v8040 = vunpack.c.l.b16 %v7696
  %v8041 = vunpack.c.l.b16 %v7697
  %v8042 = vunpack.c.l.b16 %v7698
  %v8043 = vpack.c.b16 %v7972, %v7971
  %v8044 = vpack.c.b16 %v7974, %v7973
  %v8045 = vpack.c.b16 %v7976, %v7975
  %v8046 = vpack.c.b16 %v7978, %v7977
  %v8047 = vpack.c.b16 %v7980, %v7979
  %v8048 = vpack.c.b16 %v7982, %v7981
  %v8049 = vpack.c.b16 %v7984, %v7983
  %v8050 = vpack.c.b16 %v7986, %v7985
  %v8051 = vpack.c.b16 %v7988, %v7987
  %v8052 = vpack.c.b16 %v7990, %v7989
  %v8053 = vpack.c.b16 %v7992, %v7991
  %v8054 = vpack.c.b16 %v7994, %v7993
  %v8055 = vpack.c.b16 %v7996, %v7995
  %v8056 = vpack.c.b16 %v7998, %v7997
  %v8057 = vpack.c.b16 %v8000, %v7999
  %v8058 = vpack.c.b16 %v8002, %v8001
  %v8059 = vpack.c.b16 %v8004, %v8003
  %v8060 = vpack.c.b16 %v8006, %v8005
  %v8061 = vpack.c.b16 %v8008, %v8007
  %v8062 = vpack.c.b16 %v8010, %v8009
  %v8063 = vpack.c.b16 %v8012, %v8011
  %v8064 = vpack.c.b16 %v8014, %v8013
  %v8065 = vpack.c.b16 %v8016, %v8015
  %v8066 = vpack.c.b16 %v8018, %v8017
  %v8067 = vpack.c.b16 %v8020, %v8019
  %v8068 = vpack.c.b16 %v8022, %v8021
  %v8069 = vpack.c.b16 %v8024, %v8023
  %v8070 = vpack.c.b16 %v8026, %v8025
  %v8071 = vpack.c.b16 %v8028, %v8027
  %v8072 = vpack.c.b16 %v8030, %v8029
  %v8073 = vpack.c.b16 %v8032, %v8031
  %v8074 = vpack.c.b16 %v8034, %v8033
  %v8075 = vpack.c.b16 %v8036, %v8035
  %v8076 = vpack.c.b16 %v8038, %v8037
  %v8077 = vpack.c.b16 %v8040, %v8039
  %v8078 = vpack.c.b16 %v8042, %v8041
  %v8116 = vsel %vm6243, %v7831, 0
  %v8119 = vsel %vm6243, %v7836, 0
  %v8122 = vsel %vm6243, %v7841, 0
  %v8125 = vsel %vm6243, %v7846, 0
  %v8128 = vsel %vm6243, %v7851, 0
  %v8131 = vsel %vm6243, %v7856, 0
  %v8134 = vsel %vm6243, %v7861, 0
  %v8137 = vsel %vm6243, %v7866, 0
  %8139 = vmatpush.bf16.msra.mxu0 %v8050
  %8140 = vmatpush.bf16.msra.mxu0 %v8049
  %8141 = vmatpush.bf16.msra.mxu0 %v8048
  %8142 = vmatpush.bf16.msra.mxu0 %v8047
  %8143 = vmatpush.bf16.msra.mxu0 %v8046
  %8144 = vmatpush.bf16.msra.mxu0 %v8045
  %8145 = vmatpush.bf16.msra.mxu0 %v8044
  %8146 = vmatpush.bf16.msra.mxu0 %v8043
  %8147 = vmatmul.bf16.gmra.mxu0 %v7827
  %v8148 = vpop.f32.mrf.mxu0
  %v8149 = vadd.f32 0.0, %v8148
  %v8150 = vpop.f32.mrf.mxu0
  %v8151 = vadd.f32 0.0, %v8150
  %8152 = vmatmul.bf16.gmra.mxu0 %v7832
  %v8153 = vpop.f32.mrf.mxu0
  %v8154 = vadd.f32 0.0, %v8153
  %v8155 = vpop.f32.mrf.mxu0
  %v8156 = vadd.f32 0.0, %v8155
  %8157 = vmatmul.bf16.gmra.mxu0 %v7837
  %v8158 = vpop.f32.mrf.mxu0
  %v8159 = vadd.f32 0.0, %v8158
  %v8160 = vpop.f32.mrf.mxu0
  %v8161 = vadd.f32 0.0, %v8160
  %8162 = vmatmul.bf16.gmra.mxu0 %v7842
  %v8163 = vpop.f32.mrf.mxu0
  %v8164 = vadd.f32 0.0, %v8163
  %v8165 = vpop.f32.mrf.mxu0
  %v8166 = vadd.f32 0.0, %v8165
  %8167 = vmatmul.bf16.gmra.mxu0 %v7847
  %v8168 = vpop.f32.mrf.mxu0
  %v8169 = vadd.f32 0.0, %v8168
  %v8170 = vpop.f32.mrf.mxu0
  %v8171 = vadd.f32 0.0, %v8170
  %8172 = vmatmul.bf16.gmra.mxu0 %v7852
  %v8173 = vpop.f32.mrf.mxu0
  %v8174 = vadd.f32 0.0, %v8173
  %v8175 = vpop.f32.mrf.mxu0
  %v8176 = vadd.f32 0.0, %v8175
  %8177 = vmatmul.bf16.gmra.mxu0 %v7857
  %v8178 = vpop.f32.mrf.mxu0
  %v8179 = vadd.f32 0.0, %v8178
  %v8180 = vpop.f32.mrf.mxu0
  %v8181 = vadd.f32 0.0, %v8180
  %8182 = vmatmul.bf16.gmra.mxu0 %v7862
  %v8183 = vpop.f32.mrf.mxu0
  %v8184 = vadd.f32 0.0, %v8183
  %v8185 = vpop.f32.mrf.mxu0
  %v8186 = vadd.f32 0.0, %v8185
  %8187 = vdwg.mxu0
  %8188 = vmatpush.bf16.msra.mxu0 %v8058
  %8189 = vmatpush.bf16.msra.mxu0 %v8057
  %8190 = vmatpush.bf16.msra.mxu0 %v8056
  %8191 = vmatpush.bf16.msra.mxu0 %v8055
  %8192 = vmatpush.bf16.msra.mxu0 %v8054
  %8193 = vmatpush.bf16.msra.mxu0 %v8053
  %8194 = vmatpush.bf16.msra.mxu0 %v8052
  %8195 = vmatpush.bf16.msra.mxu0 %v8051
  %8196 = vmatmul.bf16.gmra.mxu0 %v7828
  %v8197 = vpop.f32.mrf.mxu0
  %v8198 = vadd.f32 %v8149, %v8197
  %v8199 = vpop.f32.mrf.mxu0
  %v8200 = vadd.f32 %v8151, %v8199
  %8201 = vmatmul.bf16.gmra.mxu0 %v7833
  %v8202 = vpop.f32.mrf.mxu0
  %v8203 = vadd.f32 %v8154, %v8202
  %v8204 = vpop.f32.mrf.mxu0
  %v8205 = vadd.f32 %v8156, %v8204
  %8206 = vmatmul.bf16.gmra.mxu0 %v7838
  %v8207 = vpop.f32.mrf.mxu0
  %v8208 = vadd.f32 %v8159, %v8207
  %v8209 = vpop.f32.mrf.mxu0
  %v8210 = vadd.f32 %v8161, %v8209
  %8211 = vmatmul.bf16.gmra.mxu0 %v7843
  %v8212 = vpop.f32.mrf.mxu0
  %v8213 = vadd.f32 %v8164, %v8212
  %v8214 = vpop.f32.mrf.mxu0
  %v8215 = vadd.f32 %v8166, %v8214
  %8216 = vmatmul.bf16.gmra.mxu0 %v7848
  %v8217 = vpop.f32.mrf.mxu0
  %v8218 = vadd.f32 %v8169, %v8217
  %v8219 = vpop.f32.mrf.mxu0
  %v8220 = vadd.f32 %v8171, %v8219
  %8221 = vmatmul.bf16.gmra.mxu0 %v7853
  %v8222 = vpop.f32.mrf.mxu0
  %v8223 = vadd.f32 %v8174, %v8222
  %v8224 = vpop.f32.mrf.mxu0
  %v8225 = vadd.f32 %v8176, %v8224
  %8226 = vmatmul.bf16.gmra.mxu0 %v7858
  %v8227 = vpop.f32.mrf.mxu0
  %v8228 = vadd.f32 %v8179, %v8227
  %v8229 = vpop.f32.mrf.mxu0
  %v8230 = vadd.f32 %v8181, %v8229
  %8231 = vmatmul.bf16.gmra.mxu0 %v7863
  %v8232 = vpop.f32.mrf.mxu0
  %v8233 = vadd.f32 %v8184, %v8232
  %v8234 = vpop.f32.mrf.mxu0
  %v8235 = vadd.f32 %v8186, %v8234
  %8236 = vdwg.mxu0
  %8237 = vmatpush.bf16.msra.mxu0 %v8066
  %8238 = vmatpush.bf16.msra.mxu0 %v8065
  %8239 = vmatpush.bf16.msra.mxu0 %v8064
  %8240 = vmatpush.bf16.msra.mxu0 %v8063
  %8241 = vmatpush.bf16.msra.mxu0 %v8062
  %8242 = vmatpush.bf16.msra.mxu0 %v8061
  %8243 = vmatpush.bf16.msra.mxu0 %v8060
  %8244 = vmatpush.bf16.msra.mxu0 %v8059
  %8245 = vmatmul.bf16.gmra.mxu0 %v7829
  %v8246 = vpop.f32.mrf.mxu0
  %v8247 = vadd.f32 %v8198, %v8246
  %v8248 = vpop.f32.mrf.mxu0
  %v8249 = vadd.f32 %v8200, %v8248
  %8250 = vmatmul.bf16.gmra.mxu0 %v7834
  %v8251 = vpop.f32.mrf.mxu0
  %v8252 = vadd.f32 %v8203, %v8251
  %v8253 = vpop.f32.mrf.mxu0
  %v8254 = vadd.f32 %v8205, %v8253
  %8255 = vmatmul.bf16.gmra.mxu0 %v7839
  %v8256 = vpop.f32.mrf.mxu0
  %v8257 = vadd.f32 %v8208, %v8256
  %v8258 = vpop.f32.mrf.mxu0
  %v8259 = vadd.f32 %v8210, %v8258
  %8260 = vmatmul.bf16.gmra.mxu0 %v7844
  %v8261 = vpop.f32.mrf.mxu0
  %v8262 = vadd.f32 %v8213, %v8261
  %v8263 = vpop.f32.mrf.mxu0
  %v8264 = vadd.f32 %v8215, %v8263
  %8265 = vmatmul.bf16.gmra.mxu0 %v7849
  %v8266 = vpop.f32.mrf.mxu0
  %v8267 = vadd.f32 %v8218, %v8266
  %v8268 = vpop.f32.mrf.mxu0
  %v8269 = vadd.f32 %v8220, %v8268
  %8270 = vmatmul.bf16.gmra.mxu0 %v7854
  %v8271 = vpop.f32.mrf.mxu0
  %v8272 = vadd.f32 %v8223, %v8271
  %v8273 = vpop.f32.mrf.mxu0
  %v8274 = vadd.f32 %v8225, %v8273
  %8275 = vmatmul.bf16.gmra.mxu0 %v7859
  %v8276 = vpop.f32.mrf.mxu0
  %v8277 = vadd.f32 %v8228, %v8276
  %v8278 = vpop.f32.mrf.mxu0
  %v8279 = vadd.f32 %v8230, %v8278
  %8280 = vmatmul.bf16.gmra.mxu0 %v7864
  %v8281 = vpop.f32.mrf.mxu0
  %v8282 = vadd.f32 %v8233, %v8281
  %v8283 = vpop.f32.mrf.mxu0
  %v8284 = vadd.f32 %v8235, %v8283
  %8285 = vdwg.mxu0
  %8286 = vmatpush.bf16.msra.mxu0 %v8074
  %8287 = vmatpush.bf16.msra.mxu0 %v8073
  %8288 = vmatpush.bf16.msra.mxu0 %v8072
  %8289 = vmatpush.bf16.msra.mxu0 %v8071
  %8290 = vmatpush.bf16.msra.mxu0 %v8070
  %8291 = vmatpush.bf16.msra.mxu0 %v8069
  %8292 = vmatpush.bf16.msra.mxu0 %v8068
  %8293 = vmatpush.bf16.msra.mxu0 %v8067
  %8294 = vmatmul.bf16.gmra.mxu0 %v7830
  %v8295 = vpop.f32.mrf.mxu0
  %v8296 = vadd.f32 %v8247, %v8295
  %v8297 = vpop.f32.mrf.mxu0
  %v8298 = vadd.f32 %v8249, %v8297
  %8299 = vmatmul.bf16.gmra.mxu0 %v7835
  %v8300 = vpop.f32.mrf.mxu0
  %v8301 = vadd.f32 %v8252, %v8300
  %v8302 = vpop.f32.mrf.mxu0
  %v8303 = vadd.f32 %v8254, %v8302
  %8304 = vmatmul.bf16.gmra.mxu0 %v7840
  %v8305 = vpop.f32.mrf.mxu0
  %v8306 = vadd.f32 %v8257, %v8305
  %v8307 = vpop.f32.mrf.mxu0
  %v8308 = vadd.f32 %v8259, %v8307
  %8309 = vmatmul.bf16.gmra.mxu0 %v7845
  %v8310 = vpop.f32.mrf.mxu0
  %v8311 = vadd.f32 %v8262, %v8310
  %v8312 = vpop.f32.mrf.mxu0
  %v8313 = vadd.f32 %v8264, %v8312
  %8314 = vmatmul.bf16.gmra.mxu0 %v7850
  %v8315 = vpop.f32.mrf.mxu0
  %v8316 = vadd.f32 %v8267, %v8315
  %v8317 = vpop.f32.mrf.mxu0
  %v8318 = vadd.f32 %v8269, %v8317
  %8319 = vmatmul.bf16.gmra.mxu0 %v7855
  %v8320 = vpop.f32.mrf.mxu0
  %v8321 = vadd.f32 %v8272, %v8320
  %v8322 = vpop.f32.mrf.mxu0
  %v8323 = vadd.f32 %v8274, %v8322
  %8324 = vmatmul.bf16.gmra.mxu0 %v7860
  %v8325 = vpop.f32.mrf.mxu0
  %v8326 = vadd.f32 %v8277, %v8325
  %v8327 = vpop.f32.mrf.mxu0
  %v8328 = vadd.f32 %v8279, %v8327
  %8329 = vmatmul.bf16.gmra.mxu0 %v7865
  %v8330 = vpop.f32.mrf.mxu0
  %v8331 = vadd.f32 %v8282, %v8330
  %v8332 = vpop.f32.mrf.mxu0
  %v8333 = vadd.f32 %v8284, %v8332
  %8334 = vdwg.mxu0
  %8335 = vmatpush.bf16.msra.mxu0 0
  %8336 = vmatpush.bf16.msra.mxu0 0
  %8337 = vmatpush.bf16.msra.mxu0 0
  %8338 = vmatpush.bf16.msra.mxu0 0
  %8339 = vmatpush.bf16.msra.mxu0 %v8078
  %8340 = vmatpush.bf16.msra.mxu0 %v8077
  %8341 = vmatpush.bf16.msra.mxu0 %v8076
  %8342 = vmatpush.bf16.msra.mxu0 %v8075
  %8343 = vmatmul.bf16.gmra.mxu0 %v8116
  %v8344 = vpop.f32.mrf.mxu0
  %v8345 = vadd.f32 %v8296, %v8344
  %v8346 = vpop.f32.mrf.mxu0
  %v8347 = vadd.f32 %v8298, %v8346
  %8348 = vmatmul.bf16.gmra.mxu0 %v8119
  %v8349 = vpop.f32.mrf.mxu0
  %v8350 = vadd.f32 %v8301, %v8349
  %v8351 = vpop.f32.mrf.mxu0
  %v8352 = vadd.f32 %v8303, %v8351
  %8353 = vmatmul.bf16.gmra.mxu0 %v8122
  %v8354 = vpop.f32.mrf.mxu0
  %v8355 = vadd.f32 %v8306, %v8354
  %v8356 = vpop.f32.mrf.mxu0
  %v8357 = vadd.f32 %v8308, %v8356
  %8358 = vmatmul.bf16.gmra.mxu0 %v8125
  %v8359 = vpop.f32.mrf.mxu0
  %v8360 = vadd.f32 %v8311, %v8359
  %v8361 = vpop.f32.mrf.mxu0
  %v8362 = vadd.f32 %v8313, %v8361
  %8363 = vmatmul.bf16.gmra.mxu0 %v8128
  %v8364 = vpop.f32.mrf.mxu0
  %v8365 = vadd.f32 %v8316, %v8364
  %v8366 = vpop.f32.mrf.mxu0
  %v8367 = vadd.f32 %v8318, %v8366
  %8368 = vmatmul.bf16.gmra.mxu0 %v8131
  %v8369 = vpop.f32.mrf.mxu0
  %v8370 = vadd.f32 %v8321, %v8369
  %v8371 = vpop.f32.mrf.mxu0
  %v8372 = vadd.f32 %v8323, %v8371
  %8373 = vmatmul.bf16.gmra.mxu0 %v8134
  %v8374 = vpop.f32.mrf.mxu0
  %v8375 = vadd.f32 %v8326, %v8374
  %v8376 = vpop.f32.mrf.mxu0
  %v8377 = vadd.f32 %v8328, %v8376
  %8378 = vmatmul.bf16.gmra.mxu0 %v8137
  %v8379 = vpop.f32.mrf.mxu0
  %v8380 = vadd.f32 %v8331, %v8379
  %v8381 = vpop.f32.mrf.mxu0
  %v8382 = vadd.f32 %v8333, %v8381
  %8383 = vdwg.mxu0
  %v8384 = vmax.f32 %v8345, %v8355
  %v8385 = vmax.f32 %v8347, %v8357
  %v8386 = vmax.f32 %v8350, %v8360
  %v8387 = vmax.f32 %v8352, %v8362
  %v8388 = vmax.f32 %v8365, %v8375
  %v8389 = vmax.f32 %v8367, %v8377
  %v8390 = vmax.f32 %v8370, %v8380
  %v8391 = vmax.f32 %v8372, %v8382
  %v8392 = vmax.f32 %v8384, %v8388
  %v8393 = vmax.f32 %v8385, %v8389
  %v8394 = vmax.f32 %v8386, %v8390
  %v8395 = vmax.f32 %v8387, %v8391
  %v8396 = vld [vmem:[%s6] sm:$0x1]
  %v8398 = vperm.slane %v8396, 0
  %v8400 = vadd.f32 %v8392, %v8398
  %v8401 = vadd.f32 %v8393, %v8398
  %v8402 = vadd.f32 %v8394, %v8398
  %v8403 = vadd.f32 %v8395, %v8398
  %v8404 = vmax.f32 %v8400, 0.0
  %v8405 = vmax.f32 %v8401, 0.0
  %v8406 = vmax.f32 %v8402, 0.0
  %v8407 = vmax.f32 %v8403, 0.0
  %v8408 = vpack.c.bf16 %v8404, %v8404
  %v8409 = vpack.c.bf16 %v8405, %v8405
  %v8410 = vpack.c.bf16 %v8406, %v8406
  %v8411 = vpack.c.bf16 %v8407, %v8407
  %v8414 = vunpack.c.l.b16 %v8408
  %v8415 = vunpack.c.l.b16 %v8409
  %v8416 = vpack.c.b16 %v8415, %v8414
  %v8420 = vunpack.c.l.b16 %v8410
  %v8421 = vunpack.c.l.b16 %v8411
  %v8422 = vpack.c.b16 %v8421, %v8420
  %v8424 = vld [vmem:[%s7] sm:$0xff]
  %v8425 = vld [vmem:[%s7 + $0x8] sm:$0xff]
  %v8426 = vld [vmem:[%s7 + $0x10] sm:$0xff]
  %v8427 = vld [vmem:[%s7 + $0x18] sm:$0xff]
  %v8428 = vld [vmem:[%s7 + $0x20] sm:$0xff]
  %v8429 = vld [vmem:[%s7 + $0x28] sm:$0xff]
  %v8430 = vld [vmem:[%s7 + $0x30] sm:$0xff]
  %v8431 = vld [vmem:[%s7 + $0x38] sm:$0xff]
  %v8432 = vld [vmem:[%s7 + $0x40] sm:$0xff]
  %v8433 = vld [vmem:[%s7 + $0x48] sm:$0xff]
  %v8434 = vld [vmem:[%s7 + $0x50] sm:$0xff]
  %v8435 = vld [vmem:[%s7 + $0x58] sm:$0xff]
  %v8436 = vld [vmem:[%s7 + $0x60] sm:$0xff]
  %v8437 = vld [vmem:[%s7 + $0x68] sm:$0xff]
  %v8438 = vld [vmem:[%s7 + $0x70] sm:$0xff]
  %v8439 = vld [vmem:[%s7 + $0x78] sm:$0xff]
  %v8440 = vld [vmem:[%s7 + $0x80] sm:$0xff]
  %v8441 = vld [vmem:[%s7 + $0x88] sm:$0xff]
  %v8442 = vld [vmem:[%s7 + $0x90] sm:$0xff]
  %v8443 = vld [vmem:[%s7 + $0x98] sm:$0xff]
  %v8444 = vld [vmem:[%s7 + $0xa0] sm:$0xff]
  %v8445 = vld [vmem:[%s7 + $0xa8] sm:$0xff]
  %v8446 = vld [vmem:[%s7 + $0xb0] sm:$0xff]
  %v8447 = vld [vmem:[%s7 + $0xb8] sm:$0xff]
  %v8448 = vld [vmem:[%s7 + $0xc0] sm:$0xff]
  %v8449 = vld [vmem:[%s7 + $0xc8] sm:$0xff]
  %v8450 = vld [vmem:[%s7 + $0xd0] sm:$0xff]
  %v8451 = vld [vmem:[%s7 + $0xd8] sm:$0xff]
  %v8452 = vld [vmem:[%s7 + $0xe0] sm:$0xff]
  %v8453 = vld [vmem:[%s7 + $0xe8] sm:$0xff]
  %v8454 = vld [vmem:[%s7 + $0xf0] sm:$0xff]
  %v8455 = vld [vmem:[%s7 + $0xf8] sm:$0xff]
  %v8456 = vld [vmem:[%s8] sm:$0x3]
  %v8458 = vperm.slane %v8456, 0
  %v8459 = vperm.slane %v8456, 1
  %v8494 = vunpack.c.l.b16 %v8424
  %v8495 = vunpack.c.h.b16 %v8424
  %v8496 = vunpack.c.l.b16 %v8425
  %v8497 = vunpack.c.h.b16 %v8425
  %v8498 = vunpack.c.l.b16 %v8426
  %v8499 = vunpack.c.h.b16 %v8426
  %v8500 = vunpack.c.l.b16 %v8427
  %v8501 = vunpack.c.h.b16 %v8427
  %v8502 = vunpack.c.l.b16 %v8428
  %v8503 = vunpack.c.h.b16 %v8428
  %v8504 = vunpack.c.l.b16 %v8429
  %v8505 = vunpack.c.h.b16 %v8429
  %v8506 = vunpack.c.l.b16 %v8430
  %v8507 = vunpack.c.h.b16 %v8430
  %v8508 = vunpack.c.l.b16 %v8431
  %v8509 = vunpack.c.h.b16 %v8431
  %v8510 = vunpack.c.l.b16 %v8432
  %v8511 = vunpack.c.h.b16 %v8432
  %v8512 = vunpack.c.l.b16 %v8433
  %v8513 = vunpack.c.h.b16 %v8433
  %v8514 = vunpack.c.l.b16 %v8434
  %v8515 = vunpack.c.h.b16 %v8434
  %v8516 = vunpack.c.l.b16 %v8435
  %v8517 = vunpack.c.h.b16 %v8435
  %v8518 = vunpack.c.l.b16 %v8436
  %v8519 = vunpack.c.h.b16 %v8436
  %v8520 = vunpack.c.l.b16 %v8437
  %v8521 = vunpack.c.h.b16 %v8437
  %v8522 = vunpack.c.l.b16 %v8438
  %v8523 = vunpack.c.h.b16 %v8438
  %v8524 = vunpack.c.l.b16 %v8439
  %v8525 = vunpack.c.h.b16 %v8439
  %v8526 = vunpack.c.l.b16 %v8440
  %v8527 = vunpack.c.h.b16 %v8440
  %v8528 = vunpack.c.l.b16 %v8441
  %v8529 = vunpack.c.h.b16 %v8441
  %v8530 = vunpack.c.l.b16 %v8442
  %v8531 = vunpack.c.h.b16 %v8442
  %v8532 = vunpack.c.l.b16 %v8443
  %v8533 = vunpack.c.h.b16 %v8443
  %v8534 = vunpack.c.l.b16 %v8444
  %v8535 = vunpack.c.h.b16 %v8444
  %v8536 = vunpack.c.l.b16 %v8445
  %v8537 = vunpack.c.h.b16 %v8445
  %v8538 = vunpack.c.l.b16 %v8446
  %v8539 = vunpack.c.h.b16 %v8446
  %v8540 = vunpack.c.l.b16 %v8447
  %v8541 = vunpack.c.h.b16 %v8447
  %v8542 = vunpack.c.l.b16 %v8448
  %v8543 = vunpack.c.h.b16 %v8448
  %v8544 = vunpack.c.l.b16 %v8449
  %v8545 = vunpack.c.h.b16 %v8449
  %v8546 = vunpack.c.l.b16 %v8450
  %v8547 = vunpack.c.h.b16 %v8450
  %v8548 = vunpack.c.l.b16 %v8451
  %v8549 = vunpack.c.h.b16 %v8451
  %v8550 = vunpack.c.l.b16 %v8452
  %v8551 = vunpack.c.h.b16 %v8452
  %v8552 = vunpack.c.l.b16 %v8453
  %v8553 = vunpack.c.h.b16 %v8453
  %v8554 = vunpack.c.l.b16 %v8454
  %v8555 = vunpack.c.h.b16 %v8454
  %v8556 = vunpack.c.l.b16 %v8455
  %v8557 = vunpack.c.h.b16 %v8455
  %v8558 = vpack.c.b16 %v8496, %v8494
  %v8559 = vpack.c.b16 %v8497, %v8495
  %v8560 = vpack.c.b16 %v8500, %v8498
  %v8561 = vpack.c.b16 %v8501, %v8499
  %v8562 = vpack.c.b16 %v8504, %v8502
  %v8563 = vpack.c.b16 %v8505, %v8503
  %v8564 = vpack.c.b16 %v8508, %v8506
  %v8565 = vpack.c.b16 %v8509, %v8507
  %v8566 = vpack.c.b16 %v8512, %v8510
  %v8567 = vpack.c.b16 %v8513, %v8511
  %v8568 = vpack.c.b16 %v8516, %v8514
  %v8569 = vpack.c.b16 %v8517, %v8515
  %v8570 = vpack.c.b16 %v8520, %v8518
  %v8571 = vpack.c.b16 %v8521, %v8519
  %v8572 = vpack.c.b16 %v8524, %v8522
  %v8573 = vpack.c.b16 %v8525, %v8523
  %v8574 = vpack.c.b16 %v8528, %v8526
  %v8575 = vpack.c.b16 %v8529, %v8527
  %v8576 = vpack.c.b16 %v8532, %v8530
  %v8577 = vpack.c.b16 %v8533, %v8531
  %v8578 = vpack.c.b16 %v8536, %v8534
  %v8579 = vpack.c.b16 %v8537, %v8535
  %v8580 = vpack.c.b16 %v8540, %v8538
  %v8581 = vpack.c.b16 %v8541, %v8539
  %v8582 = vpack.c.b16 %v8544, %v8542
  %v8583 = vpack.c.b16 %v8545, %v8543
  %v8584 = vpack.c.b16 %v8548, %v8546
  %v8585 = vpack.c.b16 %v8549, %v8547
  %v8586 = vpack.c.b16 %v8552, %v8550
  %v8587 = vpack.c.b16 %v8553, %v8551
  %v8588 = vpack.c.b16 %v8556, %v8554
  %v8589 = vpack.c.b16 %v8557, %v8555
  %8622 = vmatpush.bf16.msra.mxu0 %v8572
  %8623 = vmatpush.bf16.msra.mxu0 %v8570
  %8624 = vmatpush.bf16.msra.mxu0 %v8568
  %8625 = vmatpush.bf16.msra.mxu0 %v8566
  %8626 = vmatpush.bf16.msra.mxu0 %v8564
  %8627 = vmatpush.bf16.msra.mxu0 %v8562
  %8628 = vmatpush.bf16.msra.mxu0 %v8560
  %8629 = vmatpush.bf16.msra.mxu0 %v8558
  %8630 = vmatmul.bf16.gmra.mxu0 %v8416
  %v8631 = vpop.f32.mrf.mxu0
  %v8632 = vadd.f32 %v8458, %v8631
  %v8633 = vpop.f32.mrf.mxu0
  %v8634 = vadd.f32 %v8458, %v8633
  %8635 = vdwg.mxu0
  %8636 = vmatpush.bf16.msra.mxu0 %v8588
  %8637 = vmatpush.bf16.msra.mxu0 %v8586
  %8638 = vmatpush.bf16.msra.mxu0 %v8584
  %8639 = vmatpush.bf16.msra.mxu0 %v8582
  %8640 = vmatpush.bf16.msra.mxu0 %v8580
  %8641 = vmatpush.bf16.msra.mxu0 %v8578
  %8642 = vmatpush.bf16.msra.mxu0 %v8576
  %8643 = vmatpush.bf16.msra.mxu0 %v8574
  %8644 = vmatmul.bf16.gmra.mxu0 %v8422
  %v8645 = vpop.f32.mrf.mxu0
  %v8646 = vadd.f32 %v8632, %v8645
  %v8647 = vpop.f32.mrf.mxu0
  %v8648 = vadd.f32 %v8634, %v8647
  %8649 = vdwg.mxu0
  %8650 = vmatpush.bf16.msra.mxu0 %v8573
  %8651 = vmatpush.bf16.msra.mxu0 %v8571
  %8652 = vmatpush.bf16.msra.mxu0 %v8569
  %8653 = vmatpush.bf16.msra.mxu0 %v8567
  %8654 = vmatpush.bf16.msra.mxu0 %v8565
  %8655 = vmatpush.bf16.msra.mxu0 %v8563
  %8656 = vmatpush.bf16.msra.mxu0 %v8561
  %8657 = vmatpush.bf16.msra.mxu0 %v8559
  %8658 = vmatmul.bf16.gmra.mxu0 %v8416
  %v8659 = vpop.f32.mrf.mxu0
  %v8660 = vadd.f32 %v8459, %v8659
  %v8661 = vpop.f32.mrf.mxu0
  %v8662 = vadd.f32 %v8459, %v8661
  %8663 = vdwg.mxu0
  %8664 = vmatpush.bf16.msra.mxu0 %v8589
  %8665 = vmatpush.bf16.msra.mxu0 %v8587
  %8666 = vmatpush.bf16.msra.mxu0 %v8585
  %8667 = vmatpush.bf16.msra.mxu0 %v8583
  %8668 = vmatpush.bf16.msra.mxu0 %v8581
  %8669 = vmatpush.bf16.msra.mxu0 %v8579
  %8670 = vmatpush.bf16.msra.mxu0 %v8577
  %8671 = vmatpush.bf16.msra.mxu0 %v8575
  %8672 = vmatmul.bf16.gmra.mxu0 %v8422
  %v8673 = vpop.f32.mrf.mxu0
  %v8674 = vadd.f32 %v8660, %v8673
  %v8675 = vpop.f32.mrf.mxu0
  %v8676 = vadd.f32 %v8662, %v8675
  %8677 = vdwg.mxu0
  %v8678 = vmax.f32 %v8646, 0.0
  %v8679 = vmax.f32 %v8674, 0.0
  %v8680 = vmax.f32 %v8648, 0.0
  %v8681 = vmax.f32 %v8676, 0.0
  %v8682 = vpack.c.bf16 %v8680, %v8678
  %v8683 = vpack.c.bf16 %v8681, %v8679
  %v8684 = vld [vmem:[%s9] sm:$0xf]
  %v8685 = vld [vmem:[%s9 + $0x4] sm:$0xf]
  %v8686 = vld [vmem:[%s9 + $0x8] sm:$0xf]
  %v8687 = vld [vmem:[%s9 + $0xc] sm:$0xf]
  %v8688 = vld [vmem:[%s9 + $0x10] sm:$0xf]
  %v8689 = vld [vmem:[%s9 + $0x14] sm:$0xf]
  %v8690 = vld [vmem:[%s9 + $0x18] sm:$0xf]
  %v8691 = vld [vmem:[%s9 + $0x1c] sm:$0xf]
  %v8692 = vld [vmem:[%s9 + $0x20] sm:$0xf]
  %v8693 = vld [vmem:[%s9 + $0x24] sm:$0xf]
  %v8694 = vld [vmem:[%s9 + $0x28] sm:$0xf]
  %v8695 = vld [vmem:[%s9 + $0x2c] sm:$0xf]
  %v8696 = vld [vmem:[%s9 + $0x30] sm:$0xf]
  %v8697 = vld [vmem:[%s9 + $0x34] sm:$0xf]
  %v8698 = vld [vmem:[%s9 + $0x38] sm:$0xf]
  %v8699 = vld [vmem:[%s9 + $0x3c] sm:$0xf]
  %v8700 = vld [vmem:[%s9 + $0x40] sm:$0xf]
  %v8701 = vld [vmem:[%s9 + $0x44] sm:$0xf]
  %v8702 = vld [vmem:[%s9 + $0x48] sm:$0xf]
  %v8703 = vld [vmem:[%s9 + $0x4c] sm:$0xf]
  %v8704 = vld [vmem:[%s9 + $0x50] sm:$0xf]
  %v8705 = vld [vmem:[%s9 + $0x54] sm:$0xf]
  %v8706 = vld [vmem:[%s9 + $0x58] sm:$0xf]
  %v8707 = vld [vmem:[%s9 + $0x5c] sm:$0xf]
  %v8708 = vld [vmem:[%s9 + $0x60] sm:$0xf]
  %v8709 = vld [vmem:[%s9 + $0x64] sm:$0xf]
  %v8710 = vld [vmem:[%s9 + $0x68] sm:$0xf]
  %v8711 = vld [vmem:[%s9 + $0x6c] sm:$0xf]
  %v8712 = vld [vmem:[%s9 + $0x70] sm:$0xf]
  %v8713 = vld [vmem:[%s9 + $0x74] sm:$0xf]
  %v8714 = vld [vmem:[%s9 + $0x78] sm:$0xf]
  %v8715 = vld [vmem:[%s9 + $0x7c] sm:$0xf]
  %v8716 = vld [vmem:[%s10] sm:$0x1]
  %v8718 = vperm.slane %v8716, 0
  %v8752 = vunpack.c.l.b16 %v8684
  %v8753 = vunpack.c.l.b16 %v8685
  %v8754 = vunpack.c.l.b16 %v8686
  %v8755 = vunpack.c.l.b16 %v8687
  %v8756 = vunpack.c.l.b16 %v8688
  %v8757 = vunpack.c.l.b16 %v8689
  %v8758 = vunpack.c.l.b16 %v8690
  %v8759 = vunpack.c.l.b16 %v8691
  %v8760 = vunpack.c.l.b16 %v8692
  %v8761 = vunpack.c.l.b16 %v8693
  %v8762 = vunpack.c.l.b16 %v8694
  %v8763 = vunpack.c.l.b16 %v8695
  %v8764 = vunpack.c.l.b16 %v8696
  %v8765 = vunpack.c.l.b16 %v8697
  %v8766 = vunpack.c.l.b16 %v8698
  %v8767 = vunpack.c.l.b16 %v8699
  %v8768 = vunpack.c.l.b16 %v8700
  %v8769 = vunpack.c.l.b16 %v8701
  %v8770 = vunpack.c.l.b16 %v8702
  %v8771 = vunpack.c.l.b16 %v8703
  %v8772 = vunpack.c.l.b16 %v8704
  %v8773 = vunpack.c.l.b16 %v8705
  %v8774 = vunpack.c.l.b16 %v8706
  %v8775 = vunpack.c.l.b16 %v8707
  %v8776 = vunpack.c.l.b16 %v8708
  %v8777 = vunpack.c.l.b16 %v8709
  %v8778 = vunpack.c.l.b16 %v8710
  %v8779 = vunpack.c.l.b16 %v8711
  %v8780 = vunpack.c.l.b16 %v8712
  %v8781 = vunpack.c.l.b16 %v8713
  %v8782 = vunpack.c.l.b16 %v8714
  %v8783 = vunpack.c.l.b16 %v8715
  %v8784 = vpack.c.b16 %v8753, %v8752
  %v8785 = vpack.c.b16 %v8755, %v8754
  %v8786 = vpack.c.b16 %v8757, %v8756
  %v8787 = vpack.c.b16 %v8759, %v8758
  %v8788 = vpack.c.b16 %v8761, %v8760
  %v8789 = vpack.c.b16 %v8763, %v8762
  %v8790 = vpack.c.b16 %v8765, %v8764
  %v8791 = vpack.c.b16 %v8767, %v8766
  %v8792 = vpack.c.b16 %v8769, %v8768
  %v8793 = vpack.c.b16 %v8771, %v8770
  %v8794 = vpack.c.b16 %v8773, %v8772
  %v8795 = vpack.c.b16 %v8775, %v8774
  %v8796 = vpack.c.b16 %v8777, %v8776
  %v8797 = vpack.c.b16 %v8779, %v8778
  %v8798 = vpack.c.b16 %v8781, %v8780
  %v8799 = vpack.c.b16 %v8783, %v8782
  %8816 = vmatpush.bf16.msra.mxu0 %v8791
  %8817 = vmatpush.bf16.msra.mxu0 %v8790
  %8818 = vmatpush.bf16.msra.mxu0 %v8789
  %8819 = vmatpush.bf16.msra.mxu0 %v8788
  %8820 = vmatpush.bf16.msra.mxu0 %v8787
  %8821 = vmatpush.bf16.msra.mxu0 %v8786
  %8822 = vmatpush.bf16.msra.mxu0 %v8785
  %8823 = vmatpush.bf16.msra.mxu0 %v8784
  %8824 = vmatmul.bf16.gmra.mxu0 %v8682
  %v8825 = vpop.f32.mrf.mxu0
  %v8826 = vadd.f32 %v8718, %v8825
  %v8827 = vpop.f32.mrf.mxu0
  %v8828 = vadd.f32 %v8718, %v8827
  %8829 = vdwg.mxu0
  %8830 = vmatpush.bf16.msra.mxu0 %v8799
  %8831 = vmatpush.bf16.msra.mxu0 %v8798
  %8832 = vmatpush.bf16.msra.mxu0 %v8797
  %8833 = vmatpush.bf16.msra.mxu0 %v8796
  %8834 = vmatpush.bf16.msra.mxu0 %v8795
  %8835 = vmatpush.bf16.msra.mxu0 %v8794
  %8836 = vmatpush.bf16.msra.mxu0 %v8793
  %8837 = vmatpush.bf16.msra.mxu0 %v8792
  %8838 = vmatmul.bf16.gmra.mxu0 %v8683
  %v8839 = vpop.f32.mrf.mxu0
  %v8840 = vadd.f32 %v8826, %v8839
  %v8841 = vpop.f32.mrf.mxu0
  %v8842 = vadd.f32 %v8828, %v8841
  %8843 = vdwg.mxu0
  %v8844 = vmax.f32 %v8840, 0.0
  %v8845 = vmax.f32 %v8842, 0.0
  %v8846 = vld [vmem:[%s11] sm:$0x1]
  %v8848 = vperm.slane %v8846, 0
  %v8850 = vmul.f32 %v8844, %v8848
  %v8851 = vmul.f32 %v8845, %v8848
  %v8852 = vsel %vm6243, %v8850, 0.0
  %8853 = vadd.xlane.f32.xlu0 %v8852
  %v8854 = vpop.xlane.xlu0 %8853
  %v8855 = vsel %vm6243, %v8851, 0.0
  %8856 = vadd.xlane.f32.xlu0 %v8855
  %v8857 = vpop.xlane.xlu0 %8856
  %vm8858 = vcmask 7168
  %8859 = vst.msk [vmem:[%s12] sm:$0xff] %vm8858, %v8854
  %8860 = vst.msk [vmem:[%s12 + $0x8] sm:$0xff] %vm8858, %v8857
  // Predicated region
  $region50: #{simple_cnn_forward.1} parent=0 // pred_check
    _
  $region51: #{simple_cnn_forward.1} parent=0 // pred_check_branch
    %8862 = sbr.rel (0) target = $region53
  $region52: #{simple_cnn_forward.1} parent=0 // pred_region
    _
  $region53: #{simple_cnn_forward.1} parent=0 // pred_fallthru
    _
  // Predicated region
  $region54: #{simple_cnn_forward.1} parent=0 // pred_check
    _
  $region55: #{simple_cnn_forward.1} parent=0 // pred_check_branch
    %8864 = sbr.rel (0) target = $region57
  $region56: #{simple_cnn_forward.1} parent=0 // pred_region
    _
  $region57: #{simple_cnn_forward.1} parent=0 // pred_fallthru
    _

</llo_original>
